<compile_context>
chip_gen: v7x
topology: tpu7x:2x2x1
jax: 0.10.0
libtpu: 0.0.40
codegen_flags: <defaults>
</compile_context>

<pallas_src>
import functools

import jax
import jax.numpy as jnp
from jax import lax
from jax.experimental import pallas as pl
from jax.experimental.pallas import tpu as pltpu


def _round_up(x, m):
    return ((x + m - 1) // m) * m


# ------------------------------- kernel -------------------------------------
def lstm_ed_kernel(x_ref,        # (T, TB, F)    f32, time-major, F unpadded
                   wih_e_ref,    # (F, 4Hp)      bf16 encoder input weight^T
                   whh_e_ref,    # (Hp, 4Hp)     bf16 encoder recurrent weight^T
                   b_e_ref,      # (1, 4Hp)      f32
                   w_dec_ref,    # (Hp, 4Hp+F)   bf16 fused [w_d_eff | Wout^T]
                   b_dec_ref,    # (1, 4Hp+F)    f32  fused [b_d_eff | bout]
                   out_ref,      # (T, TB, F)    f32
                   lat_ref,      # (TB, Hp)      f32
                   xproj_ref,    # scratch (T, TB, 4Hp) f32
                   *, unroll):
    T, TB, F = x_ref.shape
    Hp = whh_e_ref.shape[0]
    G = 4 * Hp
    mm_dtype = whh_e_ref.dtype

    def sigmoid(v):
        # one EUP pass (tanh) instead of exp + reciprocal
        return 0.5 * jnp.tanh(0.5 * v) + 0.5

    def gates_to_hc(gates, c):
        # gate slices are lane-aligned (Hp is a multiple of 128)
        i_g = sigmoid(gates[:, 0 * Hp:1 * Hp])
        f_g = sigmoid(gates[:, 1 * Hp:2 * Hp])
        g_g = jnp.tanh(gates[:, 2 * Hp:3 * Hp])
        o_g = sigmoid(gates[:, 3 * Hp:4 * Hp])
        c_new = f_g * c + i_g * g_g
        h_new = o_g * jnp.tanh(c_new)
        return h_new, c_new

    # ---- input projection hoisted off the recurrent chain: xproj[t] = x_t@Wih_e + b_e ----
    b_e = jnp.broadcast_to(b_e_ref[...], (TB, G))          # hoisted broadcast

    def proj_body(t, carry):
        x_t = x_ref[t].astype(mm_dtype)                    # (TB, F)
        xproj_ref[t] = jnp.dot(x_t, wih_e_ref[...],
                               preferred_element_type=jnp.float32) + b_e
        return carry

    lax.fori_loop(0, T, proj_body, 0)

    # ---- encoder recurrence: per-step critical path = one (TB,Hp)x(Hp,4Hp) matmul ----
    def enc_body(t, carry):
        h, c = carry
        gates = xproj_ref[t] + jnp.dot(h.astype(mm_dtype), whh_e_ref[...],
                                       preferred_element_type=jnp.float32)
        return gates_to_hc(gates, c)

    h0 = jnp.zeros((TB, Hp), jnp.float32)
    c0 = jnp.zeros((TB, Hp), jnp.float32)
    h_enc, c_enc = lax.fori_loop(0, T, enc_body, (h0, c0), unroll=unroll)
    lat_ref[...] = c_enc                                   # enc_hidden[1][-1]

    # ---- decoder, reversed time: ONE fused matmul per step -> [gates | y_t] ----
    b_dec = jnp.broadcast_to(b_dec_ref[...], (TB, G + F))  # hoisted broadcast

    def dec_body(j, carry):
        h, c = carry
        t = T - 1 - j
        z = jnp.dot(h.astype(mm_dtype), w_dec_ref[...],
                    preferred_element_type=jnp.float32) + b_dec
        out_ref[t] = z[:, G:]                              # y_t = h@Wout^T + bout
        return gates_to_hc(z[:, :G], c)

    lax.fori_loop(0, T, dec_body, (h_enc, c_enc), unroll=unroll)


# ------------------------------- VMEM sizing ---------------------------------
def _vmem_budget():
    """Generation-aware VMEM cap (~85% of physical; 64 MiB on v7x, 128 MiB v5e/v6e)."""
    try:
        cap = int(getattr(pltpu.get_tpu_info(), "vmem_capacity_bytes", 64 << 20))
    except Exception:
        cap = 64 << 20      # conservative (v7x-sized) fallback
    return max(32 << 20, int(cap * 0.85))


def _vmem_estimate(T, TB, F, Hp, mm_bytes):
    f32 = 4
    G = 4 * Hp
    x_t = T * TB * F * f32
    out_t = T * TB * F * f32
    lat_t = TB * Hp * f32
    weights = (F * G + Hp * G + Hp * (G + F)) * mm_bytes + (G + (G + F)) * f32
    xproj = T * TB * G * f32
    temps = 6 * TB * (G + F) * f32          # gates/z, h, c, hoisted biases, slack
    # I/O tiles double-buffered (worst case), weights single-buffered, + headroom
    return 2 * (x_t + out_t + lat_t) + weights + xproj + temps + (4 << 20)


# ------------------------------- wrapper -------------------------------------
def lstm_ed_forward(x_btf, packed, return_latent=False):
    """x_btf: (B, T, F) batch_first, like the PyTorch module."""
    B, T, F = x_btf.shape
    assert F == packed["F"]
    H, Hp = packed["H"], packed["Hp"]
    G = 4 * Hp
    mm_bytes = jnp.dtype(packed["wih_e"].dtype).itemsize

    # ---- batch tiling: >=2 tiles when the batch permits (v7x megacore), VMEM-aware ----
    B8 = _round_up(B, 8)
    TB = min(256, _round_up(pl.cdiv(B8, 2), 8)) if B8 >= 16 else B8
    budget = _vmem_budget()
    while TB > 8 and _vmem_estimate(T, TB, F, Hp, mm_bytes) > budget:
        TB = max(8, _round_up(TB // 2, 8))
    Bp = _round_up(B8, TB)
    n_tiles = Bp // TB

    # time-major, batch-padded; feature dim left UNPADDED (no Fp HBM amplification)
    x_tm = jnp.transpose(x_btf.astype(jnp.float32), (1, 0, 2))
    x_tm = jnp.pad(x_tm, ((0, 0), (0, Bp - B), (0, 0)))

    unroll = True if (T <= 16 and TB <= 32) else 4
    vmem_limit = int(min(max(_vmem_estimate(T, TB, F, Hp, mm_bytes), 32 << 20), budget))

    kernel = functools.partial(lstm_ed_kernel, unroll=unroll)
    out_shapes = (jax.ShapeDtypeStruct((T, Bp, F), jnp.float32),
                  jax.ShapeDtypeStruct((Bp, Hp), jnp.float32))

    def call(single_buffer_consts):
        # Grid-invariant weight/bias blocks: 1 buffer (never re-fetched).
        pm = dict(pipeline_mode=pl.Buffered(1)) if single_buffer_consts else {}
        xpm = pm if n_tiles == 1 else {}
        grid_spec = pltpu.PrefetchScalarGridSpec(
            num_scalar_prefetch=0,
            grid=(n_tiles,),
            in_specs=[
                pl.BlockSpec((T, TB, F), lambda b: (0, b, 0), **xpm),   # x (time-major)
                pl.BlockSpec((F, G), lambda b: (0, 0), **pm),           # wih_e
                pl.BlockSpec((Hp, G), lambda b: (0, 0), **pm),          # whh_e
                pl.BlockSpec((1, G), lambda b: (0, 0), **pm),           # b_e
                pl.BlockSpec((Hp, G + F), lambda b: (0, 0), **pm),      # w_dec (fused)
                pl.BlockSpec((1, G + F), lambda b: (0, 0), **pm),       # b_dec (fused)
            ],
            out_specs=(
                pl.BlockSpec((T, TB, F), lambda b: (0, b, 0)),          # reconstruction
                pl.BlockSpec((TB, Hp), lambda b: (b, 0)),               # latent
            ),
            scratch_shapes=[pltpu.VMEM((T, TB, G), jnp.float32)],       # xproj
        )
        return pl.pallas_call(
            kernel,
            out_shape=out_shapes,
            grid_spec=grid_spec,
            compiler_params=pltpu.CompilerParams(
                dimension_semantics=("parallel",),
                vmem_limit_bytes=vmem_limit),
        )(x_tm, packed["wih_e"], packed["whh_e"], packed["b_e"],
          packed["w_dec"], packed["b_dec"])

    try:
        out_tbf, lat = call(True)
    except Exception:
        out_tbf, lat = call(False)      # fall back to default double-buffered specs

    out_btf = jnp.transpose(out_tbf[:, :B, :], (1, 0, 2))
    latent = lat[:B, :H]
    return (out_btf, latent) if return_latent else out_btf


# ------------------------- parameter construction --------------------------
def init_params(key, n_features, hidden_size):
    """PyTorch-style uniform(-1/sqrt(H), 1/sqrt(H)) init, unpadded layout."""
    H, F = hidden_size, n_features
    k = 1.0 / jnp.sqrt(jnp.float32(H))
    keys = jax.random.split(key, 10)

    def u(k_, shape):
        return jax.random.uniform(k_, shape, jnp.float32, -k, k)

    wih_e = u(keys[0], (4 * H, F))
    whh_e = u(keys[1], (4 * H, H))
    b_e = u(keys[2], (4 * H,)) + u(keys[3], (4 * H,))        # b_ih + b_hh
    wih_d = u(keys[4], (4 * H, F))
    whh_d = u(keys[5], (4 * H, H))
    b_d = u(keys[6], (4 * H,)) + u(keys[7], (4 * H,))
    wout = u(keys[8], (F, H))
    bout = u(keys[9], (F,))

    return {
        "wih_e_T": wih_e.T, "whh_e_T": whh_e.T, "b_e": b_e.reshape(1, 4 * H),
        "wih_d_T": wih_d.T, "whh_d_T": whh_d.T, "b_d": b_d.reshape(1, 4 * H),
        "wout_T": wout.T, "bout": bout.reshape(1, F),
    }


def _pad_gate_cols(w, H, Hp):
    """Pad each of the 4 gate blocks along the last axis from H to Hp (zeros)."""
    lead = w.shape[:-1]
    w4 = w.reshape(lead + (4, H))
    w4 = jnp.pad(w4, [(0, 0)] * len(lead) + [(0, 0), (0, Hp - H)])
    return w4.reshape(lead + (4 * Hp,))


def pack_params(params, n_features, hidden_size, lane=128, matmul_dtype=jnp.bfloat16):
    """Pad H to a lane multiple, fold hidden2output into the decoder, fuse its weights."""
    F, H = n_features, hidden_size
    Hp = _round_up(H, lane)
    hi = jax.lax.Precision.HIGHEST

    def pad_rows(w, rows_to):
        return jnp.pad(w, ((0, rows_to - w.shape[0]), (0, 0)))

    # encoder (input projection kept separate; it is hoisted off the recurrent chain)
    wih_e = _pad_gate_cols(params["wih_e_T"], H, Hp)                  # (F, 4Hp)
    whh_e = pad_rows(_pad_gate_cols(params["whh_e_T"], H, Hp), Hp)    # (Hp, 4Hp)
    b_e = _pad_gate_cols(params["b_e"], H, Hp)                        # (1, 4Hp)

    # decoder: fold hidden2output into the recurrence, then fuse [gates | y] weights
    wih_d = _pad_gate_cols(params["wih_d_T"], H, Hp)                  # (F, 4Hp)
    whh_d = pad_rows(_pad_gate_cols(params["whh_d_T"], H, Hp), Hp)    # (Hp, 4Hp)
    b_d = _pad_gate_cols(params["b_d"], H, Hp)                        # (1, 4Hp)
    wout = pad_rows(params["wout_T"], Hp)                             # (Hp, F)
    bout = params["bout"]                                             # (1, F)
    w_d_eff = jnp.dot(wout, wih_d, precision=hi) + whh_d              # (Hp, 4Hp)
    b_d_eff = jnp.dot(bout, wih_d, precision=hi) + b_d                # (1, 4Hp)
    w_dec = jnp.concatenate([w_d_eff, wout], axis=1)                  # (Hp, 4Hp+F)
    b_dec = jnp.concatenate([b_d_eff, bout], axis=1)                  # (1, 4Hp+F)

    return {"wih_e": wih_e.astype(matmul_dtype),
            "whh_e": whh_e.astype(matmul_dtype),
            "b_e": b_e.astype(jnp.float32),
            "w_dec": w_dec.astype(matmul_dtype),
            "b_dec": b_dec.astype(jnp.float32),
            "F": F, "H": H, "Hp": Hp}


# ------------------------- pure-JAX reference (for checking) ---------------
def reference_forward(x_btf, params):
    B, T, F = x_btf.shape
    H = params["whh_e_T"].shape[0]

    def step(x_t, h, c, wih_T, whh_T, b):
        g = x_t @ wih_T + h @ whh_T + b
        i = jax.nn.sigmoid(g[:, 0 * H:1 * H])
        f = jax.nn.sigmoid(g[:, 1 * H:2 * H])
        gg = jnp.tanh(g[:, 2 * H:3 * H])
        o = jax.nn.sigmoid(g[:, 3 * H:4 * H])
        c_n = f * c + i * gg
        return o * jnp.tanh(c_n), c_n

    h = jnp.zeros((B, H), jnp.float32)
    c = jnp.zeros((B, H), jnp.float32)
    for t in range(T):
        h, c = step(x_btf[:, t, :], h, c,
                    params["wih_e_T"], params["whh_e_T"], params["b_e"])
    latent = c
    out = jnp.zeros((B, T, F), jnp.float32)
    for t in reversed(range(T)):
        y = h @ params["wout_T"] + params["bout"]
        out = out.at[:, t, :].set(y)
        h, c = step(y, h, c,
                    params["wih_d_T"], params["whh_d_T"], params["b_d"])
    return out, latent


if __name__ == "__main__":
    B, T, F, H = 2, 8, 4, 32          # batch, seq_len, n_features, hidden_size
    key = jax.random.PRNGKey(0)
    k_x, k_p = jax.random.split(key)
    x = jax.random.normal(k_x, (B, T, F), jnp.float32)
    params = init_params(k_p, n_features=F, hidden_size=H)
    packed = pack_params(params, n_features=F, hidden_size=H)

    out, latent = lstm_ed_forward(x, packed, return_latent=True)
    out = jax.block_until_ready(out)
    latent = jax.block_until_ready(latent)

    ref_out, ref_lat = reference_forward(x, params)
    assert out.shape == (B, T, F) and latent.shape == (B, H)
    # Tolerance reflects bf16 matmul operands (f32 accumulation), the folded decoder
    # weight and the tanh-form sigmoid, compounded over 2*T recurrent steps.
    assert jnp.allclose(out, ref_out, atol=2.5e-2, rtol=2.5e-2), \
        float(jnp.max(jnp.abs(out - ref_out)))
    assert jnp.allclose(latent, ref_lat, atol=2.5e-2, rtol=2.5e-2), \
        float(jnp.max(jnp.abs(latent - ref_lat)))

    print("KERNEL_OK")
</pallas_src>

<mosaic_0001>
module attributes {stable_mosaic.version = 11 : i64} {
  func.func @lstm_ed_kernel(%arg0: i32, %arg1: memref<8x8x4xf32, #tpu.memory_space<vmem>>, %arg2: memref<4x512xbf16, #tpu.memory_space<vmem>>, %arg3: memref<128x512xbf16, #tpu.memory_space<vmem>>, %arg4: memref<1x512xf32, #tpu.memory_space<vmem>>, %arg5: memref<128x516xbf16, #tpu.memory_space<vmem>>, %arg6: memref<1x516xf32, #tpu.memory_space<vmem>>, %arg7: memref<8x8x4xf32, #tpu.memory_space<vmem>>, %arg8: memref<8x128xf32, #tpu.memory_space<vmem>>, %arg9: memref<8x8x512xf32, #tpu.memory_space<vmem>>) attributes {dimension_semantics = [#tpu.dimension_semantics<parallel>], iteration_bounds = array<i64: 1>, scalar_prefetch = 0 : i64, scratch_operands = 1 : i64, tpu.core_type = #tpu.core_type<tc>, window_params = [{pipeline_mode = #tpu.pipeline_mode<synchronous>, transform_indices = @transform_0, window_bounds = array<i64: 8, 8, 4>}, {pipeline_mode = #tpu.pipeline_mode<synchronous>, transform_indices = @transform_1, window_bounds = array<i64: 4, 512>}, {pipeline_mode = #tpu.pipeline_mode<synchronous>, transform_indices = @transform_2, window_bounds = array<i64: 128, 512>}, {pipeline_mode = #tpu.pipeline_mode<synchronous>, transform_indices = @transform_3, window_bounds = array<i64: 1, 512>}, {pipeline_mode = #tpu.pipeline_mode<synchronous>, transform_indices = @transform_4, window_bounds = array<i64: 128, 516>}, {pipeline_mode = #tpu.pipeline_mode<synchronous>, transform_indices = @transform_5, window_bounds = array<i64: 1, 516>}, {transform_indices = @transform_6, window_bounds = array<i64: 8, 8, 4>}, {transform_indices = @transform_7, window_bounds = array<i64: 8, 128>}]} {
    %c0 = arith.constant 0 : index
    %c0_0 = arith.constant 0 : index
    %0 = vector.load %arg4[%c0, %c0_0] : memref<1x512xf32, #tpu.memory_space<vmem>>, vector<1x512xf32>
    %1 = vector.shape_cast %0 : vector<1x512xf32> to vector<1x512xf32>
    %2 = vector.broadcast %1 : vector<1x512xf32> to vector<8x512xf32>
    %c0_i32 = arith.constant 0 : i32
    %c8_i32 = arith.constant 8 : i32
    %3 = arith.addi %c0_i32, %c8_i32 : i32
    %c1_i32 = arith.constant 1 : i32
    scf.for %arg10 = %c0_i32 to %3 step %c1_i32  : i32 {
      %650 = arith.index_cast %arg10 : i32 to index
      %c0_251 = arith.constant 0 : index
      %c0_252 = arith.constant 0 : index
      %651 = vector.load %arg1[%650, %c0_251, %c0_252] : memref<8x8x4xf32, #tpu.memory_space<vmem>>, vector<1x8x4xf32>
      %652 = vector.shape_cast %651 : vector<1x8x4xf32> to vector<8x4xf32>
      %653 = arith.truncf %652 : vector<8x4xf32> to vector<8x4xbf16>
      %c0_253 = arith.constant 0 : index
      %c0_254 = arith.constant 0 : index
      %654 = vector.load %arg2[%c0_253, %c0_254] : memref<4x512xbf16, #tpu.memory_space<vmem>>, vector<4x512xbf16>
      %cst_255 = arith.constant dense<0.000000e+00> : vector<8x512xf32>
      %655 = tpu.matmul %653, %654, %cst_255 {dimension_numbers = #tpu.dot_dimension_numbers<[1], [0], [0], [1], [0, 0, 1, 1], [], []>} : vector<8x4xbf16>, vector<4x512xbf16>, vector<8x512xf32> -> vector<8x512xf32>
      %656 = arith.addf %655, %2 : vector<8x512xf32>
      %657 = arith.index_cast %arg10 : i32 to index
      %c0_256 = arith.constant 0 : index
      %c0_257 = arith.constant 0 : index
      %658 = vector.load %arg9[%657, %c0_256, %c0_257] : memref<8x8x512xf32, #tpu.memory_space<vmem>>, vector<1x8x512xf32>
      %659 = vector.shape_cast %658 : vector<1x8x512xf32> to vector<8x512xf32>
      %660 = vector.shape_cast %656 : vector<8x512xf32> to vector<1x8x512xf32>
      tpu.vector_store %arg9[%657, %c0_256, %c0_257], %660 {strides = array<i32>} : memref<8x8x512xf32, #tpu.memory_space<vmem>>, vector<1x8x512xf32>,
    }
    %c8_i32_1 = arith.constant 8 : i32
    %cst = arith.constant 0.000000e+00 : f32
    %4 = vector.broadcast %cst : f32 to vector<8x128xf32>
    %cst_2 = arith.constant 0.000000e+00 : f32
    %5 = vector.broadcast %cst_2 : f32 to vector<8x128xf32>
    %c0_i32_3 = arith.constant 0 : i32
    %6 = arith.index_cast %c0_i32_3 : i32 to index
    %c0_4 = arith.constant 0 : index
    %c0_5 = arith.constant 0 : index
    %7 = vector.load %arg9[%6, %c0_4, %c0_5] : memref<8x8x512xf32, #tpu.memory_space<vmem>>, vector<1x8x512xf32>
    %8 = vector.shape_cast %7 : vector<1x8x512xf32> to vector<8x512xf32>
    %9 = arith.truncf %4 : vector<8x128xf32> to vector<8x128xbf16>
    %c0_6 = arith.constant 0 : index
    %c0_7 = arith.constant 0 : index
    %10 = vector.load %arg3[%c0_6, %c0_7] : memref<128x512xbf16, #tpu.memory_space<vmem>>, vector<128x512xbf16>
    %cst_8 = arith.constant dense<0.000000e+00> : vector<8x512xf32>
    %11 = tpu.matmul %9, %10, %cst_8 {dimension_numbers = #tpu.dot_dimension_numbers<[1], [0], [0], [1], [0, 0, 1, 1], [], []>} : vector<8x128xbf16>, vector<128x512xbf16>, vector<8x512xf32> -> vector<8x512xf32>
    %12 = arith.addf %8, %11 : vector<8x512xf32>
    %13 = vector.extract_strided_slice %12 {offsets = [0, 0], sizes = [8, 128], strides = [1, 1]} : vector<8x512xf32> to vector<8x128xf32>
    %cst_9 = arith.constant 5.000000e-01 : f32
    %14 = vector.broadcast %cst_9 : f32 to vector<8x128xf32>
    %15 = arith.mulf %14, %13 : vector<8x128xf32>
    %16 = math.tanh %15 : vector<8x128xf32>
    %cst_10 = arith.constant 5.000000e-01 : f32
    %17 = vector.broadcast %cst_10 : f32 to vector<8x128xf32>
    %18 = arith.mulf %17, %16 : vector<8x128xf32>
    %cst_11 = arith.constant 5.000000e-01 : f32
    %19 = vector.broadcast %cst_11 : f32 to vector<8x128xf32>
    %20 = arith.addf %18, %19 : vector<8x128xf32>
    %21 = vector.extract_strided_slice %12 {offsets = [0, 128], sizes = [8, 128], strides = [1, 1]} : vector<8x512xf32> to vector<8x128xf32>
    %cst_12 = arith.constant 5.000000e-01 : f32
    %22 = vector.broadcast %cst_12 : f32 to vector<8x128xf32>
    %23 = arith.mulf %22, %21 : vector<8x128xf32>
    %24 = math.tanh %23 : vector<8x128xf32>
    %cst_13 = arith.constant 5.000000e-01 : f32
    %25 = vector.broadcast %cst_13 : f32 to vector<8x128xf32>
    %26 = arith.mulf %25, %24 : vector<8x128xf32>
    %cst_14 = arith.constant 5.000000e-01 : f32
    %27 = vector.broadcast %cst_14 : f32 to vector<8x128xf32>
    %28 = arith.addf %26, %27 : vector<8x128xf32>
    %29 = vector.extract_strided_slice %12 {offsets = [0, 256], sizes = [8, 128], strides = [1, 1]} : vector<8x512xf32> to vector<8x128xf32>
    %30 = math.tanh %29 : vector<8x128xf32>
    %31 = vector.extract_strided_slice %12 {offsets = [0, 384], sizes = [8, 128], strides = [1, 1]} : vector<8x512xf32> to vector<8x128xf32>
    %cst_15 = arith.constant 5.000000e-01 : f32
    %32 = vector.broadcast %cst_15 : f32 to vector<8x128xf32>
    %33 = arith.mulf %32, %31 : vector<8x128xf32>
    %34 = math.tanh %33 : vector<8x128xf32>
    %cst_16 = arith.constant 5.000000e-01 : f32
    %35 = vector.broadcast %cst_16 : f32 to vector<8x128xf32>
    %36 = arith.mulf %35, %34 : vector<8x128xf32>
    %cst_17 = arith.constant 5.000000e-01 : f32
    %37 = vector.broadcast %cst_17 : f32 to vector<8x128xf32>
    %38 = arith.addf %36, %37 : vector<8x128xf32>
    %39 = arith.mulf %28, %5 : vector<8x128xf32>
    %40 = arith.mulf %20, %30 : vector<8x128xf32>
    %41 = arith.addf %39, %40 : vector<8x128xf32>
    %42 = math.tanh %41 : vector<8x128xf32>
    %43 = arith.mulf %38, %42 : vector<8x128xf32>
    %c1_i32_18 = arith.constant 1 : i32
    %44 = arith.index_cast %c1_i32_18 : i32 to index
    %c0_19 = arith.constant 0 : index
    %c0_20 = arith.constant 0 : index
    %45 = vector.load %arg9[%44, %c0_19, %c0_20] : memref<8x8x512xf32, #tpu.memory_space<vmem>>, vector<1x8x512xf32>
    %46 = vector.shape_cast %45 : vector<1x8x512xf32> to vector<8x512xf32>
    %47 = arith.truncf %43 : vector<8x128xf32> to vector<8x128xbf16>
    %c0_21 = arith.constant 0 : index
    %c0_22 = arith.constant 0 : index
    %48 = vector.load %arg3[%c0_21, %c0_22] : memref<128x512xbf16, #tpu.memory_space<vmem>>, vector<128x512xbf16>
    %cst_23 = arith.constant dense<0.000000e+00> : vector<8x512xf32>
    %49 = tpu.matmul %47, %48, %cst_23 {dimension_numbers = #tpu.dot_dimension_numbers<[1], [0], [0], [1], [0, 0, 1, 1], [], []>} : vector<8x128xbf16>, vector<128x512xbf16>, vector<8x512xf32> -> vector<8x512xf32>
    %50 = arith.addf %46, %49 : vector<8x512xf32>
    %51 = vector.extract_strided_slice %50 {offsets = [0, 0], sizes = [8, 128], strides = [1, 1]} : vector<8x512xf32> to vector<8x128xf32>
    %cst_24 = arith.constant 5.000000e-01 : f32
    %52 = vector.broadcast %cst_24 : f32 to vector<8x128xf32>
    %53 = arith.mulf %52, %51 : vector<8x128xf32>
    %54 = math.tanh %53 : vector<8x128xf32>
    %cst_25 = arith.constant 5.000000e-01 : f32
    %55 = vector.broadcast %cst_25 : f32 to vector<8x128xf32>
    %56 = arith.mulf %55, %54 : vector<8x128xf32>
    %cst_26 = arith.constant 5.000000e-01 : f32
    %57 = vector.broadcast %cst_26 : f32 to vector<8x128xf32>
    %58 = arith.addf %56, %57 : vector<8x128xf32>
    %59 = vector.extract_strided_slice %50 {offsets = [0, 128], sizes = [8, 128], strides = [1, 1]} : vector<8x512xf32> to vector<8x128xf32>
    %cst_27 = arith.constant 5.000000e-01 : f32
    %60 = vector.broadcast %cst_27 : f32 to vector<8x128xf32>
    %61 = arith.mulf %60, %59 : vector<8x128xf32>
    %62 = math.tanh %61 : vector<8x128xf32>
    %cst_28 = arith.constant 5.000000e-01 : f32
    %63 = vector.broadcast %cst_28 : f32 to vector<8x128xf32>
    %64 = arith.mulf %63, %62 : vector<8x128xf32>
    %cst_29 = arith.constant 5.000000e-01 : f32
    %65 = vector.broadcast %cst_29 : f32 to vector<8x128xf32>
    %66 = arith.addf %64, %65 : vector<8x128xf32>
    %67 = vector.extract_strided_slice %50 {offsets = [0, 256], sizes = [8, 128], strides = [1, 1]} : vector<8x512xf32> to vector<8x128xf32>
    %68 = math.tanh %67 : vector<8x128xf32>
    %69 = vector.extract_strided_slice %50 {offsets = [0, 384], sizes = [8, 128], strides = [1, 1]} : vector<8x512xf32> to vector<8x128xf32>
    %cst_30 = arith.constant 5.000000e-01 : f32
    %70 = vector.broadcast %cst_30 : f32 to vector<8x128xf32>
    %71 = arith.mulf %70, %69 : vector<8x128xf32>
    %72 = math.tanh %71 : vector<8x128xf32>
    %cst_31 = arith.constant 5.000000e-01 : f32
    %73 = vector.broadcast %cst_31 : f32 to vector<8x128xf32>
    %74 = arith.mulf %73, %72 : vector<8x128xf32>
    %cst_32 = arith.constant 5.000000e-01 : f32
    %75 = vector.broadcast %cst_32 : f32 to vector<8x128xf32>
    %76 = arith.addf %74, %75 : vector<8x128xf32>
    %77 = arith.mulf %66, %41 : vector<8x128xf32>
    %78 = arith.mulf %58, %68 : vector<8x128xf32>
    %79 = arith.addf %77, %78 : vector<8x128xf32>
    %80 = math.tanh %79 : vector<8x128xf32>
    %81 = arith.mulf %76, %80 : vector<8x128xf32>
    %c2_i32 = arith.constant 2 : i32
    %82 = arith.index_cast %c2_i32 : i32 to index
    %c0_33 = arith.constant 0 : index
    %c0_34 = arith.constant 0 : index
    %83 = vector.load %arg9[%82, %c0_33, %c0_34] : memref<8x8x512xf32, #tpu.memory_space<vmem>>, vector<1x8x512xf32>
    %84 = vector.shape_cast %83 : vector<1x8x512xf32> to vector<8x512xf32>
    %85 = arith.truncf %81 : vector<8x128xf32> to vector<8x128xbf16>
    %c0_35 = arith.constant 0 : index
    %c0_36 = arith.constant 0 : index
    %86 = vector.load %arg3[%c0_35, %c0_36] : memref<128x512xbf16, #tpu.memory_space<vmem>>, vector<128x512xbf16>
    %cst_37 = arith.constant dense<0.000000e+00> : vector<8x512xf32>
    %87 = tpu.matmul %85, %86, %cst_37 {dimension_numbers = #tpu.dot_dimension_numbers<[1], [0], [0], [1], [0, 0, 1, 1], [], []>} : vector<8x128xbf16>, vector<128x512xbf16>, vector<8x512xf32> -> vector<8x512xf32>
    %88 = arith.addf %84, %87 : vector<8x512xf32>
    %89 = vector.extract_strided_slice %88 {offsets = [0, 0], sizes = [8, 128], strides = [1, 1]} : vector<8x512xf32> to vector<8x128xf32>
    %cst_38 = arith.constant 5.000000e-01 : f32
    %90 = vector.broadcast %cst_38 : f32 to vector<8x128xf32>
    %91 = arith.mulf %90, %89 : vector<8x128xf32>
    %92 = math.tanh %91 : vector<8x128xf32>
    %cst_39 = arith.constant 5.000000e-01 : f32
    %93 = vector.broadcast %cst_39 : f32 to vector<8x128xf32>
    %94 = arith.mulf %93, %92 : vector<8x128xf32>
    %cst_40 = arith.constant 5.000000e-01 : f32
    %95 = vector.broadcast %cst_40 : f32 to vector<8x128xf32>
    %96 = arith.addf %94, %95 : vector<8x128xf32>
    %97 = vector.extract_strided_slice %88 {offsets = [0, 128], sizes = [8, 128], strides = [1, 1]} : vector<8x512xf32> to vector<8x128xf32>
    %cst_41 = arith.constant 5.000000e-01 : f32
    %98 = vector.broadcast %cst_41 : f32 to vector<8x128xf32>
    %99 = arith.mulf %98, %97 : vector<8x128xf32>
    %100 = math.tanh %99 : vector<8x128xf32>
    %cst_42 = arith.constant 5.000000e-01 : f32
    %101 = vector.broadcast %cst_42 : f32 to vector<8x128xf32>
    %102 = arith.mulf %101, %100 : vector<8x128xf32>
    %cst_43 = arith.constant 5.000000e-01 : f32
    %103 = vector.broadcast %cst_43 : f32 to vector<8x128xf32>
    %104 = arith.addf %102, %103 : vector<8x128xf32>
    %105 = vector.extract_strided_slice %88 {offsets = [0, 256], sizes = [8, 128], strides = [1, 1]} : vector<8x512xf32> to vector<8x128xf32>
    %106 = math.tanh %105 : vector<8x128xf32>
    %107 = vector.extract_strided_slice %88 {offsets = [0, 384], sizes = [8, 128], strides = [1, 1]} : vector<8x512xf32> to vector<8x128xf32>
    %cst_44 = arith.constant 5.000000e-01 : f32
    %108 = vector.broadcast %cst_44 : f32 to vector<8x128xf32>
    %109 = arith.mulf %108, %107 : vector<8x128xf32>
    %110 = math.tanh %109 : vector<8x128xf32>
    %cst_45 = arith.constant 5.000000e-01 : f32
    %111 = vector.broadcast %cst_45 : f32 to vector<8x128xf32>
    %112 = arith.mulf %111, %110 : vector<8x128xf32>
    %cst_46 = arith.constant 5.000000e-01 : f32
    %113 = vector.broadcast %cst_46 : f32 to vector<8x128xf32>
    %114 = arith.addf %112, %113 : vector<8x128xf32>
    %115 = arith.mulf %104, %79 : vector<8x128xf32>
    %116 = arith.mulf %96, %106 : vector<8x128xf32>
    %117 = arith.addf %115, %116 : vector<8x128xf32>
    %118 = math.tanh %117 : vector<8x128xf32>
    %119 = arith.mulf %114, %118 : vector<8x128xf32>
    %c3_i32 = arith.constant 3 : i32
    %120 = arith.index_cast %c3_i32 : i32 to index
    %c0_47 = arith.constant 0 : index
    %c0_48 = arith.constant 0 : index
    %121 = vector.load %arg9[%120, %c0_47, %c0_48] : memref<8x8x512xf32, #tpu.memory_space<vmem>>, vector<1x8x512xf32>
    %122 = vector.shape_cast %121 : vector<1x8x512xf32> to vector<8x512xf32>
    %123 = arith.truncf %119 : vector<8x128xf32> to vector<8x128xbf16>
    %c0_49 = arith.constant 0 : index
    %c0_50 = arith.constant 0 : index
    %124 = vector.load %arg3[%c0_49, %c0_50] : memref<128x512xbf16, #tpu.memory_space<vmem>>, vector<128x512xbf16>
    %cst_51 = arith.constant dense<0.000000e+00> : vector<8x512xf32>
    %125 = tpu.matmul %123, %124, %cst_51 {dimension_numbers = #tpu.dot_dimension_numbers<[1], [0], [0], [1], [0, 0, 1, 1], [], []>} : vector<8x128xbf16>, vector<128x512xbf16>, vector<8x512xf32> -> vector<8x512xf32>
    %126 = arith.addf %122, %125 : vector<8x512xf32>
    %127 = vector.extract_strided_slice %126 {offsets = [0, 0], sizes = [8, 128], strides = [1, 1]} : vector<8x512xf32> to vector<8x128xf32>
    %cst_52 = arith.constant 5.000000e-01 : f32
    %128 = vector.broadcast %cst_52 : f32 to vector<8x128xf32>
    %129 = arith.mulf %128, %127 : vector<8x128xf32>
    %130 = math.tanh %129 : vector<8x128xf32>
    %cst_53 = arith.constant 5.000000e-01 : f32
    %131 = vector.broadcast %cst_53 : f32 to vector<8x128xf32>
    %132 = arith.mulf %131, %130 : vector<8x128xf32>
    %cst_54 = arith.constant 5.000000e-01 : f32
    %133 = vector.broadcast %cst_54 : f32 to vector<8x128xf32>
    %134 = arith.addf %132, %133 : vector<8x128xf32>
    %135 = vector.extract_strided_slice %126 {offsets = [0, 128], sizes = [8, 128], strides = [1, 1]} : vector<8x512xf32> to vector<8x128xf32>
    %cst_55 = arith.constant 5.000000e-01 : f32
    %136 = vector.broadcast %cst_55 : f32 to vector<8x128xf32>
    %137 = arith.mulf %136, %135 : vector<8x128xf32>
    %138 = math.tanh %137 : vector<8x128xf32>
    %cst_56 = arith.constant 5.000000e-01 : f32
    %139 = vector.broadcast %cst_56 : f32 to vector<8x128xf32>
    %140 = arith.mulf %139, %138 : vector<8x128xf32>
    %cst_57 = arith.constant 5.000000e-01 : f32
    %141 = vector.broadcast %cst_57 : f32 to vector<8x128xf32>
    %142 = arith.addf %140, %141 : vector<8x128xf32>
    %143 = vector.extract_strided_slice %126 {offsets = [0, 256], sizes = [8, 128], strides = [1, 1]} : vector<8x512xf32> to vector<8x128xf32>
    %144 = math.tanh %143 : vector<8x128xf32>
    %145 = vector.extract_strided_slice %126 {offsets = [0, 384], sizes = [8, 128], strides = [1, 1]} : vector<8x512xf32> to vector<8x128xf32>
    %cst_58 = arith.constant 5.000000e-01 : f32
    %146 = vector.broadcast %cst_58 : f32 to vector<8x128xf32>
    %147 = arith.mulf %146, %145 : vector<8x128xf32>
    %148 = math.tanh %147 : vector<8x128xf32>
    %cst_59 = arith.constant 5.000000e-01 : f32
    %149 = vector.broadcast %cst_59 : f32 to vector<8x128xf32>
    %150 = arith.mulf %149, %148 : vector<8x128xf32>
    %cst_60 = arith.constant 5.000000e-01 : f32
    %151 = vector.broadcast %cst_60 : f32 to vector<8x128xf32>
    %152 = arith.addf %150, %151 : vector<8x128xf32>
    %153 = arith.mulf %142, %117 : vector<8x128xf32>
    %154 = arith.mulf %134, %144 : vector<8x128xf32>
    %155 = arith.addf %153, %154 : vector<8x128xf32>
    %156 = math.tanh %155 : vector<8x128xf32>
    %157 = arith.mulf %152, %156 : vector<8x128xf32>
    %c4_i32 = arith.constant 4 : i32
    %158 = arith.index_cast %c4_i32 : i32 to index
    %c0_61 = arith.constant 0 : index
    %c0_62 = arith.constant 0 : index
    %159 = vector.load %arg9[%158, %c0_61, %c0_62] : memref<8x8x512xf32, #tpu.memory_space<vmem>>, vector<1x8x512xf32>
    %160 = vector.shape_cast %159 : vector<1x8x512xf32> to vector<8x512xf32>
    %161 = arith.truncf %157 : vector<8x128xf32> to vector<8x128xbf16>
    %c0_63 = arith.constant 0 : index
    %c0_64 = arith.constant 0 : index
    %162 = vector.load %arg3[%c0_63, %c0_64] : memref<128x512xbf16, #tpu.memory_space<vmem>>, vector<128x512xbf16>
    %cst_65 = arith.constant dense<0.000000e+00> : vector<8x512xf32>
    %163 = tpu.matmul %161, %162, %cst_65 {dimension_numbers = #tpu.dot_dimension_numbers<[1], [0], [0], [1], [0, 0, 1, 1], [], []>} : vector<8x128xbf16>, vector<128x512xbf16>, vector<8x512xf32> -> vector<8x512xf32>
    %164 = arith.addf %160, %163 : vector<8x512xf32>
    %165 = vector.extract_strided_slice %164 {offsets = [0, 0], sizes = [8, 128], strides = [1, 1]} : vector<8x512xf32> to vector<8x128xf32>
    %cst_66 = arith.constant 5.000000e-01 : f32
    %166 = vector.broadcast %cst_66 : f32 to vector<8x128xf32>
    %167 = arith.mulf %166, %165 : vector<8x128xf32>
    %168 = math.tanh %167 : vector<8x128xf32>
    %cst_67 = arith.constant 5.000000e-01 : f32
    %169 = vector.broadcast %cst_67 : f32 to vector<8x128xf32>
    %170 = arith.mulf %169, %168 : vector<8x128xf32>
    %cst_68 = arith.constant 5.000000e-01 : f32
    %171 = vector.broadcast %cst_68 : f32 to vector<8x128xf32>
    %172 = arith.addf %170, %171 : vector<8x128xf32>
    %173 = vector.extract_strided_slice %164 {offsets = [0, 128], sizes = [8, 128], strides = [1, 1]} : vector<8x512xf32> to vector<8x128xf32>
    %cst_69 = arith.constant 5.000000e-01 : f32
    %174 = vector.broadcast %cst_69 : f32 to vector<8x128xf32>
    %175 = arith.mulf %174, %173 : vector<8x128xf32>
    %176 = math.tanh %175 : vector<8x128xf32>
    %cst_70 = arith.constant 5.000000e-01 : f32
    %177 = vector.broadcast %cst_70 : f32 to vector<8x128xf32>
    %178 = arith.mulf %177, %176 : vector<8x128xf32>
    %cst_71 = arith.constant 5.000000e-01 : f32
    %179 = vector.broadcast %cst_71 : f32 to vector<8x128xf32>
    %180 = arith.addf %178, %179 : vector<8x128xf32>
    %181 = vector.extract_strided_slice %164 {offsets = [0, 256], sizes = [8, 128], strides = [1, 1]} : vector<8x512xf32> to vector<8x128xf32>
    %182 = math.tanh %181 : vector<8x128xf32>
    %183 = vector.extract_strided_slice %164 {offsets = [0, 384], sizes = [8, 128], strides = [1, 1]} : vector<8x512xf32> to vector<8x128xf32>
    %cst_72 = arith.constant 5.000000e-01 : f32
    %184 = vector.broadcast %cst_72 : f32 to vector<8x128xf32>
    %185 = arith.mulf %184, %183 : vector<8x128xf32>
    %186 = math.tanh %185 : vector<8x128xf32>
    %cst_73 = arith.constant 5.000000e-01 : f32
    %187 = vector.broadcast %cst_73 : f32 to vector<8x128xf32>
    %188 = arith.mulf %187, %186 : vector<8x128xf32>
    %cst_74 = arith.constant 5.000000e-01 : f32
    %189 = vector.broadcast %cst_74 : f32 to vector<8x128xf32>
    %190 = arith.addf %188, %189 : vector<8x128xf32>
    %191 = arith.mulf %180, %155 : vector<8x128xf32>
    %192 = arith.mulf %172, %182 : vector<8x128xf32>
    %193 = arith.addf %191, %192 : vector<8x128xf32>
    %194 = math.tanh %193 : vector<8x128xf32>
    %195 = arith.mulf %190, %194 : vector<8x128xf32>
    %c5_i32 = arith.constant 5 : i32
    %196 = arith.index_cast %c5_i32 : i32 to index
    %c0_75 = arith.constant 0 : index
    %c0_76 = arith.constant 0 : index
    %197 = vector.load %arg9[%196, %c0_75, %c0_76] : memref<8x8x512xf32, #tpu.memory_space<vmem>>, vector<1x8x512xf32>
    %198 = vector.shape_cast %197 : vector<1x8x512xf32> to vector<8x512xf32>
    %199 = arith.truncf %195 : vector<8x128xf32> to vector<8x128xbf16>
    %c0_77 = arith.constant 0 : index
    %c0_78 = arith.constant 0 : index
    %200 = vector.load %arg3[%c0_77, %c0_78] : memref<128x512xbf16, #tpu.memory_space<vmem>>, vector<128x512xbf16>
    %cst_79 = arith.constant dense<0.000000e+00> : vector<8x512xf32>
    %201 = tpu.matmul %199, %200, %cst_79 {dimension_numbers = #tpu.dot_dimension_numbers<[1], [0], [0], [1], [0, 0, 1, 1], [], []>} : vector<8x128xbf16>, vector<128x512xbf16>, vector<8x512xf32> -> vector<8x512xf32>
    %202 = arith.addf %198, %201 : vector<8x512xf32>
    %203 = vector.extract_strided_slice %202 {offsets = [0, 0], sizes = [8, 128], strides = [1, 1]} : vector<8x512xf32> to vector<8x128xf32>
    %cst_80 = arith.constant 5.000000e-01 : f32
    %204 = vector.broadcast %cst_80 : f32 to vector<8x128xf32>
    %205 = arith.mulf %204, %203 : vector<8x128xf32>
    %206 = math.tanh %205 : vector<8x128xf32>
    %cst_81 = arith.constant 5.000000e-01 : f32
    %207 = vector.broadcast %cst_81 : f32 to vector<8x128xf32>
    %208 = arith.mulf %207, %206 : vector<8x128xf32>
    %cst_82 = arith.constant 5.000000e-01 : f32
    %209 = vector.broadcast %cst_82 : f32 to vector<8x128xf32>
    %210 = arith.addf %208, %209 : vector<8x128xf32>
    %211 = vector.extract_strided_slice %202 {offsets = [0, 128], sizes = [8, 128], strides = [1, 1]} : vector<8x512xf32> to vector<8x128xf32>
    %cst_83 = arith.constant 5.000000e-01 : f32
    %212 = vector.broadcast %cst_83 : f32 to vector<8x128xf32>
    %213 = arith.mulf %212, %211 : vector<8x128xf32>
    %214 = math.tanh %213 : vector<8x128xf32>
    %cst_84 = arith.constant 5.000000e-01 : f32
    %215 = vector.broadcast %cst_84 : f32 to vector<8x128xf32>
    %216 = arith.mulf %215, %214 : vector<8x128xf32>
    %cst_85 = arith.constant 5.000000e-01 : f32
    %217 = vector.broadcast %cst_85 : f32 to vector<8x128xf32>
    %218 = arith.addf %216, %217 : vector<8x128xf32>
    %219 = vector.extract_strided_slice %202 {offsets = [0, 256], sizes = [8, 128], strides = [1, 1]} : vector<8x512xf32> to vector<8x128xf32>
    %220 = math.tanh %219 : vector<8x128xf32>
    %221 = vector.extract_strided_slice %202 {offsets = [0, 384], sizes = [8, 128], strides = [1, 1]} : vector<8x512xf32> to vector<8x128xf32>
    %cst_86 = arith.constant 5.000000e-01 : f32
    %222 = vector.broadcast %cst_86 : f32 to vector<8x128xf32>
    %223 = arith.mulf %222, %221 : vector<8x128xf32>
    %224 = math.tanh %223 : vector<8x128xf32>
    %cst_87 = arith.constant 5.000000e-01 : f32
    %225 = vector.broadcast %cst_87 : f32 to vector<8x128xf32>
    %226 = arith.mulf %225, %224 : vector<8x128xf32>
    %cst_88 = arith.constant 5.000000e-01 : f32
    %227 = vector.broadcast %cst_88 : f32 to vector<8x128xf32>
    %228 = arith.addf %226, %227 : vector<8x128xf32>
    %229 = arith.mulf %218, %193 : vector<8x128xf32>
    %230 = arith.mulf %210, %220 : vector<8x128xf32>
    %231 = arith.addf %229, %230 : vector<8x128xf32>
    %232 = math.tanh %231 : vector<8x128xf32>
    %233 = arith.mulf %228, %232 : vector<8x128xf32>
    %c6_i32 = arith.constant 6 : i32
    %234 = arith.index_cast %c6_i32 : i32 to index
    %c0_89 = arith.constant 0 : index
    %c0_90 = arith.constant 0 : index
    %235 = vector.load %arg9[%234, %c0_89, %c0_90] : memref<8x8x512xf32, #tpu.memory_space<vmem>>, vector<1x8x512xf32>
    %236 = vector.shape_cast %235 : vector<1x8x512xf32> to vector<8x512xf32>
    %237 = arith.truncf %233 : vector<8x128xf32> to vector<8x128xbf16>
    %c0_91 = arith.constant 0 : index
    %c0_92 = arith.constant 0 : index
    %238 = vector.load %arg3[%c0_91, %c0_92] : memref<128x512xbf16, #tpu.memory_space<vmem>>, vector<128x512xbf16>
    %cst_93 = arith.constant dense<0.000000e+00> : vector<8x512xf32>
    %239 = tpu.matmul %237, %238, %cst_93 {dimension_numbers = #tpu.dot_dimension_numbers<[1], [0], [0], [1], [0, 0, 1, 1], [], []>} : vector<8x128xbf16>, vector<128x512xbf16>, vector<8x512xf32> -> vector<8x512xf32>
    %240 = arith.addf %236, %239 : vector<8x512xf32>
    %241 = vector.extract_strided_slice %240 {offsets = [0, 0], sizes = [8, 128], strides = [1, 1]} : vector<8x512xf32> to vector<8x128xf32>
    %cst_94 = arith.constant 5.000000e-01 : f32
    %242 = vector.broadcast %cst_94 : f32 to vector<8x128xf32>
    %243 = arith.mulf %242, %241 : vector<8x128xf32>
    %244 = math.tanh %243 : vector<8x128xf32>
    %cst_95 = arith.constant 5.000000e-01 : f32
    %245 = vector.broadcast %cst_95 : f32 to vector<8x128xf32>
    %246 = arith.mulf %245, %244 : vector<8x128xf32>
    %cst_96 = arith.constant 5.000000e-01 : f32
    %247 = vector.broadcast %cst_96 : f32 to vector<8x128xf32>
    %248 = arith.addf %246, %247 : vector<8x128xf32>
    %249 = vector.extract_strided_slice %240 {offsets = [0, 128], sizes = [8, 128], strides = [1, 1]} : vector<8x512xf32> to vector<8x128xf32>
    %cst_97 = arith.constant 5.000000e-01 : f32
    %250 = vector.broadcast %cst_97 : f32 to vector<8x128xf32>
    %251 = arith.mulf %250, %249 : vector<8x128xf32>
    %252 = math.tanh %251 : vector<8x128xf32>
    %cst_98 = arith.constant 5.000000e-01 : f32
    %253 = vector.broadcast %cst_98 : f32 to vector<8x128xf32>
    %254 = arith.mulf %253, %252 : vector<8x128xf32>
    %cst_99 = arith.constant 5.000000e-01 : f32
    %255 = vector.broadcast %cst_99 : f32 to vector<8x128xf32>
    %256 = arith.addf %254, %255 : vector<8x128xf32>
    %257 = vector.extract_strided_slice %240 {offsets = [0, 256], sizes = [8, 128], strides = [1, 1]} : vector<8x512xf32> to vector<8x128xf32>
    %258 = math.tanh %257 : vector<8x128xf32>
    %259 = vector.extract_strided_slice %240 {offsets = [0, 384], sizes = [8, 128], strides = [1, 1]} : vector<8x512xf32> to vector<8x128xf32>
    %cst_100 = arith.constant 5.000000e-01 : f32
    %260 = vector.broadcast %cst_100 : f32 to vector<8x128xf32>
    %261 = arith.mulf %260, %259 : vector<8x128xf32>
    %262 = math.tanh %261 : vector<8x128xf32>
    %cst_101 = arith.constant 5.000000e-01 : f32
    %263 = vector.broadcast %cst_101 : f32 to vector<8x128xf32>
    %264 = arith.mulf %263, %262 : vector<8x128xf32>
    %cst_102 = arith.constant 5.000000e-01 : f32
    %265 = vector.broadcast %cst_102 : f32 to vector<8x128xf32>
    %266 = arith.addf %264, %265 : vector<8x128xf32>
    %267 = arith.mulf %256, %231 : vector<8x128xf32>
    %268 = arith.mulf %248, %258 : vector<8x128xf32>
    %269 = arith.addf %267, %268 : vector<8x128xf32>
    %270 = math.tanh %269 : vector<8x128xf32>
    %271 = arith.mulf %266, %270 : vector<8x128xf32>
    %c7_i32 = arith.constant 7 : i32
    %272 = arith.index_cast %c7_i32 : i32 to index
    %c0_103 = arith.constant 0 : index
    %c0_104 = arith.constant 0 : index
    %273 = vector.load %arg9[%272, %c0_103, %c0_104] : memref<8x8x512xf32, #tpu.memory_space<vmem>>, vector<1x8x512xf32>
    %274 = vector.shape_cast %273 : vector<1x8x512xf32> to vector<8x512xf32>
    %275 = arith.truncf %271 : vector<8x128xf32> to vector<8x128xbf16>
    %c0_105 = arith.constant 0 : index
    %c0_106 = arith.constant 0 : index
    %276 = vector.load %arg3[%c0_105, %c0_106] : memref<128x512xbf16, #tpu.memory_space<vmem>>, vector<128x512xbf16>
    %cst_107 = arith.constant dense<0.000000e+00> : vector<8x512xf32>
    %277 = tpu.matmul %275, %276, %cst_107 {dimension_numbers = #tpu.dot_dimension_numbers<[1], [0], [0], [1], [0, 0, 1, 1], [], []>} : vector<8x128xbf16>, vector<128x512xbf16>, vector<8x512xf32> -> vector<8x512xf32>
    %278 = arith.addf %274, %277 : vector<8x512xf32>
    %279 = vector.extract_strided_slice %278 {offsets = [0, 0], sizes = [8, 128], strides = [1, 1]} : vector<8x512xf32> to vector<8x128xf32>
    %cst_108 = arith.constant 5.000000e-01 : f32
    %280 = vector.broadcast %cst_108 : f32 to vector<8x128xf32>
    %281 = arith.mulf %280, %279 : vector<8x128xf32>
    %282 = math.tanh %281 : vector<8x128xf32>
    %cst_109 = arith.constant 5.000000e-01 : f32
    %283 = vector.broadcast %cst_109 : f32 to vector<8x128xf32>
    %284 = arith.mulf %283, %282 : vector<8x128xf32>
    %cst_110 = arith.constant 5.000000e-01 : f32
    %285 = vector.broadcast %cst_110 : f32 to vector<8x128xf32>
    %286 = arith.addf %284, %285 : vector<8x128xf32>
    %287 = vector.extract_strided_slice %278 {offsets = [0, 128], sizes = [8, 128], strides = [1, 1]} : vector<8x512xf32> to vector<8x128xf32>
    %cst_111 = arith.constant 5.000000e-01 : f32
    %288 = vector.broadcast %cst_111 : f32 to vector<8x128xf32>
    %289 = arith.mulf %288, %287 : vector<8x128xf32>
    %290 = math.tanh %289 : vector<8x128xf32>
    %cst_112 = arith.constant 5.000000e-01 : f32
    %291 = vector.broadcast %cst_112 : f32 to vector<8x128xf32>
    %292 = arith.mulf %291, %290 : vector<8x128xf32>
    %cst_113 = arith.constant 5.000000e-01 : f32
    %293 = vector.broadcast %cst_113 : f32 to vector<8x128xf32>
    %294 = arith.addf %292, %293 : vector<8x128xf32>
    %295 = vector.extract_strided_slice %278 {offsets = [0, 256], sizes = [8, 128], strides = [1, 1]} : vector<8x512xf32> to vector<8x128xf32>
    %296 = math.tanh %295 : vector<8x128xf32>
    %297 = vector.extract_strided_slice %278 {offsets = [0, 384], sizes = [8, 128], strides = [1, 1]} : vector<8x512xf32> to vector<8x128xf32>
    %cst_114 = arith.constant 5.000000e-01 : f32
    %298 = vector.broadcast %cst_114 : f32 to vector<8x128xf32>
    %299 = arith.mulf %298, %297 : vector<8x128xf32>
    %300 = math.tanh %299 : vector<8x128xf32>
    %cst_115 = arith.constant 5.000000e-01 : f32
    %301 = vector.broadcast %cst_115 : f32 to vector<8x128xf32>
    %302 = arith.mulf %301, %300 : vector<8x128xf32>
    %cst_116 = arith.constant 5.000000e-01 : f32
    %303 = vector.broadcast %cst_116 : f32 to vector<8x128xf32>
    %304 = arith.addf %302, %303 : vector<8x128xf32>
    %305 = arith.mulf %294, %269 : vector<8x128xf32>
    %306 = arith.mulf %286, %296 : vector<8x128xf32>
    %307 = arith.addf %305, %306 : vector<8x128xf32>
    %308 = math.tanh %307 : vector<8x128xf32>
    %309 = arith.mulf %304, %308 : vector<8x128xf32>
    %c8_i32_117 = arith.constant 8 : i32
    %c0_118 = arith.constant 0 : index
    %c0_119 = arith.constant 0 : index
    %310 = vector.load %arg8[%c0_118, %c0_119] : memref<8x128xf32, #tpu.memory_space<vmem>>, vector<8x128xf32>
    tpu.vector_store %arg8[%c0_118, %c0_119], %307 {strides = array<i32>} : memref<8x128xf32, #tpu.memory_space<vmem>>, vector<8x128xf32>,
    %c0_120 = arith.constant 0 : index
    %c0_121 = arith.constant 0 : index
    %311 = vector.load %arg6[%c0_120, %c0_121] : memref<1x516xf32, #tpu.memory_space<vmem>>, vector<1x516xf32>
    %312 = vector.shape_cast %311 : vector<1x516xf32> to vector<1x516xf32>
    %313 = vector.broadcast %312 : vector<1x516xf32> to vector<8x516xf32>
    %c0_i32_122 = arith.constant 0 : i32
    %c7_i32_123 = arith.constant 7 : i32
    %314 = arith.subi %c7_i32_123, %c0_i32_122 : i32
    %315 = arith.truncf %309 : vector<8x128xf32> to vector<8x128xbf16>
    %c0_124 = arith.constant 0 : index
    %c0_125 = arith.constant 0 : index
    %316 = vector.load %arg5[%c0_124, %c0_125] : memref<128x516xbf16, #tpu.memory_space<vmem>>, vector<128x516xbf16>
    %cst_126 = arith.constant dense<0.000000e+00> : vector<8x516xf32>
    %317 = tpu.matmul %315, %316, %cst_126 {dimension_numbers = #tpu.dot_dimension_numbers<[1], [0], [0], [1], [0, 0, 1, 1], [], []>} : vector<8x128xbf16>, vector<128x516xbf16>, vector<8x516xf32> -> vector<8x516xf32>
    %318 = arith.addf %317, %313 : vector<8x516xf32>
    %319 = vector.extract_strided_slice %318 {offsets = [0, 512], sizes = [8, 4], strides = [1, 1]} : vector<8x516xf32> to vector<8x4xf32>
    %320 = arith.index_cast %314 : i32 to index
    %c0_127 = arith.constant 0 : index
    %c0_128 = arith.constant 0 : index
    %321 = vector.load %arg7[%320, %c0_127, %c0_128] : memref<8x8x4xf32, #tpu.memory_space<vmem>>, vector<1x8x4xf32>
    %322 = vector.shape_cast %321 : vector<1x8x4xf32> to vector<8x4xf32>
    %323 = vector.shape_cast %319 : vector<8x4xf32> to vector<1x8x4xf32>
    tpu.vector_store %arg7[%320, %c0_127, %c0_128], %323 {strides = array<i32>} : memref<8x8x4xf32, #tpu.memory_space<vmem>>, vector<1x8x4xf32>,
    %324 = vector.extract_strided_slice %318 {offsets = [0, 0], sizes = [8, 512], strides = [1, 1]} : vector<8x516xf32> to vector<8x512xf32>
    %325 = vector.extract_strided_slice %324 {offsets = [0, 0], sizes = [8, 128], strides = [1, 1]} : vector<8x512xf32> to vector<8x128xf32>
    %cst_129 = arith.constant 5.000000e-01 : f32
    %326 = vector.broadcast %cst_129 : f32 to vector<8x128xf32>
    %327 = arith.mulf %326, %325 : vector<8x128xf32>
    %328 = math.tanh %327 : vector<8x128xf32>
    %cst_130 = arith.constant 5.000000e-01 : f32
    %329 = vector.broadcast %cst_130 : f32 to vector<8x128xf32>
    %330 = arith.mulf %329, %328 : vector<8x128xf32>
    %cst_131 = arith.constant 5.000000e-01 : f32
    %331 = vector.broadcast %cst_131 : f32 to vector<8x128xf32>
    %332 = arith.addf %330, %331 : vector<8x128xf32>
    %333 = vector.extract_strided_slice %324 {offsets = [0, 128], sizes = [8, 128], strides = [1, 1]} : vector<8x512xf32> to vector<8x128xf32>
    %cst_132 = arith.constant 5.000000e-01 : f32
    %334 = vector.broadcast %cst_132 : f32 to vector<8x128xf32>
    %335 = arith.mulf %334, %333 : vector<8x128xf32>
    %336 = math.tanh %335 : vector<8x128xf32>
    %cst_133 = arith.constant 5.000000e-01 : f32
    %337 = vector.broadcast %cst_133 : f32 to vector<8x128xf32>
    %338 = arith.mulf %337, %336 : vector<8x128xf32>
    %cst_134 = arith.constant 5.000000e-01 : f32
    %339 = vector.broadcast %cst_134 : f32 to vector<8x128xf32>
    %340 = arith.addf %338, %339 : vector<8x128xf32>
    %341 = vector.extract_strided_slice %324 {offsets = [0, 256], sizes = [8, 128], strides = [1, 1]} : vector<8x512xf32> to vector<8x128xf32>
    %342 = math.tanh %341 : vector<8x128xf32>
    %343 = vector.extract_strided_slice %324 {offsets = [0, 384], sizes = [8, 128], strides = [1, 1]} : vector<8x512xf32> to vector<8x128xf32>
    %cst_135 = arith.constant 5.000000e-01 : f32
    %344 = vector.broadcast %cst_135 : f32 to vector<8x128xf32>
    %345 = arith.mulf %344, %343 : vector<8x128xf32>
    %346 = math.tanh %345 : vector<8x128xf32>
    %cst_136 = arith.constant 5.000000e-01 : f32
    %347 = vector.broadcast %cst_136 : f32 to vector<8x128xf32>
    %348 = arith.mulf %347, %346 : vector<8x128xf32>
    %cst_137 = arith.constant 5.000000e-01 : f32
    %349 = vector.broadcast %cst_137 : f32 to vector<8x128xf32>
    %350 = arith.addf %348, %349 : vector<8x128xf32>
    %351 = arith.mulf %340, %307 : vector<8x128xf32>
    %352 = arith.mulf %332, %342 : vector<8x128xf32>
    %353 = arith.addf %351, %352 : vector<8x128xf32>
    %354 = math.tanh %353 : vector<8x128xf32>
    %355 = arith.mulf %350, %354 : vector<8x128xf32>
    %c1_i32_138 = arith.constant 1 : i32
    %c7_i32_139 = arith.constant 7 : i32
    %356 = arith.subi %c7_i32_139, %c1_i32_138 : i32
    %357 = arith.truncf %355 : vector<8x128xf32> to vector<8x128xbf16>
    %c0_140 = arith.constant 0 : index
    %c0_141 = arith.constant 0 : index
    %358 = vector.load %arg5[%c0_140, %c0_141] : memref<128x516xbf16, #tpu.memory_space<vmem>>, vector<128x516xbf16>
    %cst_142 = arith.constant dense<0.000000e+00> : vector<8x516xf32>
    %359 = tpu.matmul %357, %358, %cst_142 {dimension_numbers = #tpu.dot_dimension_numbers<[1], [0], [0], [1], [0, 0, 1, 1], [], []>} : vector<8x128xbf16>, vector<128x516xbf16>, vector<8x516xf32> -> vector<8x516xf32>
    %360 = arith.addf %359, %313 : vector<8x516xf32>
    %361 = vector.extract_strided_slice %360 {offsets = [0, 512], sizes = [8, 4], strides = [1, 1]} : vector<8x516xf32> to vector<8x4xf32>
    %362 = arith.index_cast %356 : i32 to index
    %c0_143 = arith.constant 0 : index
    %c0_144 = arith.constant 0 : index
    %363 = vector.load %arg7[%362, %c0_143, %c0_144] : memref<8x8x4xf32, #tpu.memory_space<vmem>>, vector<1x8x4xf32>
    %364 = vector.shape_cast %363 : vector<1x8x4xf32> to vector<8x4xf32>
    %365 = vector.shape_cast %361 : vector<8x4xf32> to vector<1x8x4xf32>
    tpu.vector_store %arg7[%362, %c0_143, %c0_144], %365 {strides = array<i32>} : memref<8x8x4xf32, #tpu.memory_space<vmem>>, vector<1x8x4xf32>,
    %366 = vector.extract_strided_slice %360 {offsets = [0, 0], sizes = [8, 512], strides = [1, 1]} : vector<8x516xf32> to vector<8x512xf32>
    %367 = vector.extract_strided_slice %366 {offsets = [0, 0], sizes = [8, 128], strides = [1, 1]} : vector<8x512xf32> to vector<8x128xf32>
    %cst_145 = arith.constant 5.000000e-01 : f32
    %368 = vector.broadcast %cst_145 : f32 to vector<8x128xf32>
    %369 = arith.mulf %368, %367 : vector<8x128xf32>
    %370 = math.tanh %369 : vector<8x128xf32>
    %cst_146 = arith.constant 5.000000e-01 : f32
    %371 = vector.broadcast %cst_146 : f32 to vector<8x128xf32>
    %372 = arith.mulf %371, %370 : vector<8x128xf32>
    %cst_147 = arith.constant 5.000000e-01 : f32
    %373 = vector.broadcast %cst_147 : f32 to vector<8x128xf32>
    %374 = arith.addf %372, %373 : vector<8x128xf32>
    %375 = vector.extract_strided_slice %366 {offsets = [0, 128], sizes = [8, 128], strides = [1, 1]} : vector<8x512xf32> to vector<8x128xf32>
    %cst_148 = arith.constant 5.000000e-01 : f32
    %376 = vector.broadcast %cst_148 : f32 to vector<8x128xf32>
    %377 = arith.mulf %376, %375 : vector<8x128xf32>
    %378 = math.tanh %377 : vector<8x128xf32>
    %cst_149 = arith.constant 5.000000e-01 : f32
    %379 = vector.broadcast %cst_149 : f32 to vector<8x128xf32>
    %380 = arith.mulf %379, %378 : vector<8x128xf32>
    %cst_150 = arith.constant 5.000000e-01 : f32
    %381 = vector.broadcast %cst_150 : f32 to vector<8x128xf32>
    %382 = arith.addf %380, %381 : vector<8x128xf32>
    %383 = vector.extract_strided_slice %366 {offsets = [0, 256], sizes = [8, 128], strides = [1, 1]} : vector<8x512xf32> to vector<8x128xf32>
    %384 = math.tanh %383 : vector<8x128xf32>
    %385 = vector.extract_strided_slice %366 {offsets = [0, 384], sizes = [8, 128], strides = [1, 1]} : vector<8x512xf32> to vector<8x128xf32>
    %cst_151 = arith.constant 5.000000e-01 : f32
    %386 = vector.broadcast %cst_151 : f32 to vector<8x128xf32>
    %387 = arith.mulf %386, %385 : vector<8x128xf32>
    %388 = math.tanh %387 : vector<8x128xf32>
    %cst_152 = arith.constant 5.000000e-01 : f32
    %389 = vector.broadcast %cst_152 : f32 to vector<8x128xf32>
    %390 = arith.mulf %389, %388 : vector<8x128xf32>
    %cst_153 = arith.constant 5.000000e-01 : f32
    %391 = vector.broadcast %cst_153 : f32 to vector<8x128xf32>
    %392 = arith.addf %390, %391 : vector<8x128xf32>
    %393 = arith.mulf %382, %353 : vector<8x128xf32>
    %394 = arith.mulf %374, %384 : vector<8x128xf32>
    %395 = arith.addf %393, %394 : vector<8x128xf32>
    %396 = math.tanh %395 : vector<8x128xf32>
    %397 = arith.mulf %392, %396 : vector<8x128xf32>
    %c2_i32_154 = arith.constant 2 : i32
    %c7_i32_155 = arith.constant 7 : i32
    %398 = arith.subi %c7_i32_155, %c2_i32_154 : i32
    %399 = arith.truncf %397 : vector<8x128xf32> to vector<8x128xbf16>
    %c0_156 = arith.constant 0 : index
    %c0_157 = arith.constant 0 : index
    %400 = vector.load %arg5[%c0_156, %c0_157] : memref<128x516xbf16, #tpu.memory_space<vmem>>, vector<128x516xbf16>
    %cst_158 = arith.constant dense<0.000000e+00> : vector<8x516xf32>
    %401 = tpu.matmul %399, %400, %cst_158 {dimension_numbers = #tpu.dot_dimension_numbers<[1], [0], [0], [1], [0, 0, 1, 1], [], []>} : vector<8x128xbf16>, vector<128x516xbf16>, vector<8x516xf32> -> vector<8x516xf32>
    %402 = arith.addf %401, %313 : vector<8x516xf32>
    %403 = vector.extract_strided_slice %402 {offsets = [0, 512], sizes = [8, 4], strides = [1, 1]} : vector<8x516xf32> to vector<8x4xf32>
    %404 = arith.index_cast %398 : i32 to index
    %c0_159 = arith.constant 0 : index
    %c0_160 = arith.constant 0 : index
    %405 = vector.load %arg7[%404, %c0_159, %c0_160] : memref<8x8x4xf32, #tpu.memory_space<vmem>>, vector<1x8x4xf32>
    %406 = vector.shape_cast %405 : vector<1x8x4xf32> to vector<8x4xf32>
    %407 = vector.shape_cast %403 : vector<8x4xf32> to vector<1x8x4xf32>
    tpu.vector_store %arg7[%404, %c0_159, %c0_160], %407 {strides = array<i32>} : memref<8x8x4xf32, #tpu.memory_space<vmem>>, vector<1x8x4xf32>,
    %408 = vector.extract_strided_slice %402 {offsets = [0, 0], sizes = [8, 512], strides = [1, 1]} : vector<8x516xf32> to vector<8x512xf32>
    %409 = vector.extract_strided_slice %408 {offsets = [0, 0], sizes = [8, 128], strides = [1, 1]} : vector<8x512xf32> to vector<8x128xf32>
    %cst_161 = arith.constant 5.000000e-01 : f32
    %410 = vector.broadcast %cst_161 : f32 to vector<8x128xf32>
    %411 = arith.mulf %410, %409 : vector<8x128xf32>
    %412 = math.tanh %411 : vector<8x128xf32>
    %cst_162 = arith.constant 5.000000e-01 : f32
    %413 = vector.broadcast %cst_162 : f32 to vector<8x128xf32>
    %414 = arith.mulf %413, %412 : vector<8x128xf32>
    %cst_163 = arith.constant 5.000000e-01 : f32
    %415 = vector.broadcast %cst_163 : f32 to vector<8x128xf32>
    %416 = arith.addf %414, %415 : vector<8x128xf32>
    %417 = vector.extract_strided_slice %408 {offsets = [0, 128], sizes = [8, 128], strides = [1, 1]} : vector<8x512xf32> to vector<8x128xf32>
    %cst_164 = arith.constant 5.000000e-01 : f32
    %418 = vector.broadcast %cst_164 : f32 to vector<8x128xf32>
    %419 = arith.mulf %418, %417 : vector<8x128xf32>
    %420 = math.tanh %419 : vector<8x128xf32>
    %cst_165 = arith.constant 5.000000e-01 : f32
    %421 = vector.broadcast %cst_165 : f32 to vector<8x128xf32>
    %422 = arith.mulf %421, %420 : vector<8x128xf32>
    %cst_166 = arith.constant 5.000000e-01 : f32
    %423 = vector.broadcast %cst_166 : f32 to vector<8x128xf32>
    %424 = arith.addf %422, %423 : vector<8x128xf32>
    %425 = vector.extract_strided_slice %408 {offsets = [0, 256], sizes = [8, 128], strides = [1, 1]} : vector<8x512xf32> to vector<8x128xf32>
    %426 = math.tanh %425 : vector<8x128xf32>
    %427 = vector.extract_strided_slice %408 {offsets = [0, 384], sizes = [8, 128], strides = [1, 1]} : vector<8x512xf32> to vector<8x128xf32>
    %cst_167 = arith.constant 5.000000e-01 : f32
    %428 = vector.broadcast %cst_167 : f32 to vector<8x128xf32>
    %429 = arith.mulf %428, %427 : vector<8x128xf32>
    %430 = math.tanh %429 : vector<8x128xf32>
    %cst_168 = arith.constant 5.000000e-01 : f32
    %431 = vector.broadcast %cst_168 : f32 to vector<8x128xf32>
    %432 = arith.mulf %431, %430 : vector<8x128xf32>
    %cst_169 = arith.constant 5.000000e-01 : f32
    %433 = vector.broadcast %cst_169 : f32 to vector<8x128xf32>
    %434 = arith.addf %432, %433 : vector<8x128xf32>
    %435 = arith.mulf %424, %395 : vector<8x128xf32>
    %436 = arith.mulf %416, %426 : vector<8x128xf32>
    %437 = arith.addf %435, %436 : vector<8x128xf32>
    %438 = math.tanh %437 : vector<8x128xf32>
    %439 = arith.mulf %434, %438 : vector<8x128xf32>
    %c3_i32_170 = arith.constant 3 : i32
    %c7_i32_171 = arith.constant 7 : i32
    %440 = arith.subi %c7_i32_171, %c3_i32_170 : i32
    %441 = arith.truncf %439 : vector<8x128xf32> to vector<8x128xbf16>
    %c0_172 = arith.constant 0 : index
    %c0_173 = arith.constant 0 : index
    %442 = vector.load %arg5[%c0_172, %c0_173] : memref<128x516xbf16, #tpu.memory_space<vmem>>, vector<128x516xbf16>
    %cst_174 = arith.constant dense<0.000000e+00> : vector<8x516xf32>
    %443 = tpu.matmul %441, %442, %cst_174 {dimension_numbers = #tpu.dot_dimension_numbers<[1], [0], [0], [1], [0, 0, 1, 1], [], []>} : vector<8x128xbf16>, vector<128x516xbf16>, vector<8x516xf32> -> vector<8x516xf32>
    %444 = arith.addf %443, %313 : vector<8x516xf32>
    %445 = vector.extract_strided_slice %444 {offsets = [0, 512], sizes = [8, 4], strides = [1, 1]} : vector<8x516xf32> to vector<8x4xf32>
    %446 = arith.index_cast %440 : i32 to index
    %c0_175 = arith.constant 0 : index
    %c0_176 = arith.constant 0 : index
    %447 = vector.load %arg7[%446, %c0_175, %c0_176] : memref<8x8x4xf32, #tpu.memory_space<vmem>>, vector<1x8x4xf32>
    %448 = vector.shape_cast %447 : vector<1x8x4xf32> to vector<8x4xf32>
    %449 = vector.shape_cast %445 : vector<8x4xf32> to vector<1x8x4xf32>
    tpu.vector_store %arg7[%446, %c0_175, %c0_176], %449 {strides = array<i32>} : memref<8x8x4xf32, #tpu.memory_space<vmem>>, vector<1x8x4xf32>,
    %450 = vector.extract_strided_slice %444 {offsets = [0, 0], sizes = [8, 512], strides = [1, 1]} : vector<8x516xf32> to vector<8x512xf32>
    %451 = vector.extract_strided_slice %450 {offsets = [0, 0], sizes = [8, 128], strides = [1, 1]} : vector<8x512xf32> to vector<8x128xf32>
    %cst_177 = arith.constant 5.000000e-01 : f32
    %452 = vector.broadcast %cst_177 : f32 to vector<8x128xf32>
    %453 = arith.mulf %452, %451 : vector<8x128xf32>
    %454 = math.tanh %453 : vector<8x128xf32>
    %cst_178 = arith.constant 5.000000e-01 : f32
    %455 = vector.broadcast %cst_178 : f32 to vector<8x128xf32>
    %456 = arith.mulf %455, %454 : vector<8x128xf32>
    %cst_179 = arith.constant 5.000000e-01 : f32
    %457 = vector.broadcast %cst_179 : f32 to vector<8x128xf32>
    %458 = arith.addf %456, %457 : vector<8x128xf32>
    %459 = vector.extract_strided_slice %450 {offsets = [0, 128], sizes = [8, 128], strides = [1, 1]} : vector<8x512xf32> to vector<8x128xf32>
    %cst_180 = arith.constant 5.000000e-01 : f32
    %460 = vector.broadcast %cst_180 : f32 to vector<8x128xf32>
    %461 = arith.mulf %460, %459 : vector<8x128xf32>
    %462 = math.tanh %461 : vector<8x128xf32>
    %cst_181 = arith.constant 5.000000e-01 : f32
    %463 = vector.broadcast %cst_181 : f32 to vector<8x128xf32>
    %464 = arith.mulf %463, %462 : vector<8x128xf32>
    %cst_182 = arith.constant 5.000000e-01 : f32
    %465 = vector.broadcast %cst_182 : f32 to vector<8x128xf32>
    %466 = arith.addf %464, %465 : vector<8x128xf32>
    %467 = vector.extract_strided_slice %450 {offsets = [0, 256], sizes = [8, 128], strides = [1, 1]} : vector<8x512xf32> to vector<8x128xf32>
    %468 = math.tanh %467 : vector<8x128xf32>
    %469 = vector.extract_strided_slice %450 {offsets = [0, 384], sizes = [8, 128], strides = [1, 1]} : vector<8x512xf32> to vector<8x128xf32>
    %cst_183 = arith.constant 5.000000e-01 : f32
    %470 = vector.broadcast %cst_183 : f32 to vector<8x128xf32>
    %471 = arith.mulf %470, %469 : vector<8x128xf32>
    %472 = math.tanh %471 : vector<8x128xf32>
    %cst_184 = arith.constant 5.000000e-01 : f32
    %473 = vector.broadcast %cst_184 : f32 to vector<8x128xf32>
    %474 = arith.mulf %473, %472 : vector<8x128xf32>
    %cst_185 = arith.constant 5.000000e-01 : f32
    %475 = vector.broadcast %cst_185 : f32 to vector<8x128xf32>
    %476 = arith.addf %474, %475 : vector<8x128xf32>
    %477 = arith.mulf %466, %437 : vector<8x128xf32>
    %478 = arith.mulf %458, %468 : vector<8x128xf32>
    %479 = arith.addf %477, %478 : vector<8x128xf32>
    %480 = math.tanh %479 : vector<8x128xf32>
    %481 = arith.mulf %476, %480 : vector<8x128xf32>
    %c4_i32_186 = arith.constant 4 : i32
    %c7_i32_187 = arith.constant 7 : i32
    %482 = arith.subi %c7_i32_187, %c4_i32_186 : i32
    %483 = arith.truncf %481 : vector<8x128xf32> to vector<8x128xbf16>
    %c0_188 = arith.constant 0 : index
    %c0_189 = arith.constant 0 : index
    %484 = vector.load %arg5[%c0_188, %c0_189] : memref<128x516xbf16, #tpu.memory_space<vmem>>, vector<128x516xbf16>
    %cst_190 = arith.constant dense<0.000000e+00> : vector<8x516xf32>
    %485 = tpu.matmul %483, %484, %cst_190 {dimension_numbers = #tpu.dot_dimension_numbers<[1], [0], [0], [1], [0, 0, 1, 1], [], []>} : vector<8x128xbf16>, vector<128x516xbf16>, vector<8x516xf32> -> vector<8x516xf32>
    %486 = arith.addf %485, %313 : vector<8x516xf32>
    %487 = vector.extract_strided_slice %486 {offsets = [0, 512], sizes = [8, 4], strides = [1, 1]} : vector<8x516xf32> to vector<8x4xf32>
    %488 = arith.index_cast %482 : i32 to index
    %c0_191 = arith.constant 0 : index
    %c0_192 = arith.constant 0 : index
    %489 = vector.load %arg7[%488, %c0_191, %c0_192] : memref<8x8x4xf32, #tpu.memory_space<vmem>>, vector<1x8x4xf32>
    %490 = vector.shape_cast %489 : vector<1x8x4xf32> to vector<8x4xf32>
    %491 = vector.shape_cast %487 : vector<8x4xf32> to vector<1x8x4xf32>
    tpu.vector_store %arg7[%488, %c0_191, %c0_192], %491 {strides = array<i32>} : memref<8x8x4xf32, #tpu.memory_space<vmem>>, vector<1x8x4xf32>,
    %492 = vector.extract_strided_slice %486 {offsets = [0, 0], sizes = [8, 512], strides = [1, 1]} : vector<8x516xf32> to vector<8x512xf32>
    %493 = vector.extract_strided_slice %492 {offsets = [0, 0], sizes = [8, 128], strides = [1, 1]} : vector<8x512xf32> to vector<8x128xf32>
    %cst_193 = arith.constant 5.000000e-01 : f32
    %494 = vector.broadcast %cst_193 : f32 to vector<8x128xf32>
    %495 = arith.mulf %494, %493 : vector<8x128xf32>
    %496 = math.tanh %495 : vector<8x128xf32>
    %cst_194 = arith.constant 5.000000e-01 : f32
    %497 = vector.broadcast %cst_194 : f32 to vector<8x128xf32>
    %498 = arith.mulf %497, %496 : vector<8x128xf32>
    %cst_195 = arith.constant 5.000000e-01 : f32
    %499 = vector.broadcast %cst_195 : f32 to vector<8x128xf32>
    %500 = arith.addf %498, %499 : vector<8x128xf32>
    %501 = vector.extract_strided_slice %492 {offsets = [0, 128], sizes = [8, 128], strides = [1, 1]} : vector<8x512xf32> to vector<8x128xf32>
    %cst_196 = arith.constant 5.000000e-01 : f32
    %502 = vector.broadcast %cst_196 : f32 to vector<8x128xf32>
    %503 = arith.mulf %502, %501 : vector<8x128xf32>
    %504 = math.tanh %503 : vector<8x128xf32>
    %cst_197 = arith.constant 5.000000e-01 : f32
    %505 = vector.broadcast %cst_197 : f32 to vector<8x128xf32>
    %506 = arith.mulf %505, %504 : vector<8x128xf32>
    %cst_198 = arith.constant 5.000000e-01 : f32
    %507 = vector.broadcast %cst_198 : f32 to vector<8x128xf32>
    %508 = arith.addf %506, %507 : vector<8x128xf32>
    %509 = vector.extract_strided_slice %492 {offsets = [0, 256], sizes = [8, 128], strides = [1, 1]} : vector<8x512xf32> to vector<8x128xf32>
    %510 = math.tanh %509 : vector<8x128xf32>
    %511 = vector.extract_strided_slice %492 {offsets = [0, 384], sizes = [8, 128], strides = [1, 1]} : vector<8x512xf32> to vector<8x128xf32>
    %cst_199 = arith.constant 5.000000e-01 : f32
    %512 = vector.broadcast %cst_199 : f32 to vector<8x128xf32>
    %513 = arith.mulf %512, %511 : vector<8x128xf32>
    %514 = math.tanh %513 : vector<8x128xf32>
    %cst_200 = arith.constant 5.000000e-01 : f32
    %515 = vector.broadcast %cst_200 : f32 to vector<8x128xf32>
    %516 = arith.mulf %515, %514 : vector<8x128xf32>
    %cst_201 = arith.constant 5.000000e-01 : f32
    %517 = vector.broadcast %cst_201 : f32 to vector<8x128xf32>
    %518 = arith.addf %516, %517 : vector<8x128xf32>
    %519 = arith.mulf %508, %479 : vector<8x128xf32>
    %520 = arith.mulf %500, %510 : vector<8x128xf32>
    %521 = arith.addf %519, %520 : vector<8x128xf32>
    %522 = math.tanh %521 : vector<8x128xf32>
    %523 = arith.mulf %518, %522 : vector<8x128xf32>
    %c5_i32_202 = arith.constant 5 : i32
    %c7_i32_203 = arith.constant 7 : i32
    %524 = arith.subi %c7_i32_203, %c5_i32_202 : i32
    %525 = arith.truncf %523 : vector<8x128xf32> to vector<8x128xbf16>
    %c0_204 = arith.constant 0 : index
    %c0_205 = arith.constant 0 : index
    %526 = vector.load %arg5[%c0_204, %c0_205] : memref<128x516xbf16, #tpu.memory_space<vmem>>, vector<128x516xbf16>
    %cst_206 = arith.constant dense<0.000000e+00> : vector<8x516xf32>
    %527 = tpu.matmul %525, %526, %cst_206 {dimension_numbers = #tpu.dot_dimension_numbers<[1], [0], [0], [1], [0, 0, 1, 1], [], []>} : vector<8x128xbf16>, vector<128x516xbf16>, vector<8x516xf32> -> vector<8x516xf32>
    %528 = arith.addf %527, %313 : vector<8x516xf32>
    %529 = vector.extract_strided_slice %528 {offsets = [0, 512], sizes = [8, 4], strides = [1, 1]} : vector<8x516xf32> to vector<8x4xf32>
    %530 = arith.index_cast %524 : i32 to index
    %c0_207 = arith.constant 0 : index
    %c0_208 = arith.constant 0 : index
    %531 = vector.load %arg7[%530, %c0_207, %c0_208] : memref<8x8x4xf32, #tpu.memory_space<vmem>>, vector<1x8x4xf32>
    %532 = vector.shape_cast %531 : vector<1x8x4xf32> to vector<8x4xf32>
    %533 = vector.shape_cast %529 : vector<8x4xf32> to vector<1x8x4xf32>
    tpu.vector_store %arg7[%530, %c0_207, %c0_208], %533 {strides = array<i32>} : memref<8x8x4xf32, #tpu.memory_space<vmem>>, vector<1x8x4xf32>,
    %534 = vector.extract_strided_slice %528 {offsets = [0, 0], sizes = [8, 512], strides = [1, 1]} : vector<8x516xf32> to vector<8x512xf32>
    %535 = vector.extract_strided_slice %534 {offsets = [0, 0], sizes = [8, 128], strides = [1, 1]} : vector<8x512xf32> to vector<8x128xf32>
    %cst_209 = arith.constant 5.000000e-01 : f32
    %536 = vector.broadcast %cst_209 : f32 to vector<8x128xf32>
    %537 = arith.mulf %536, %535 : vector<8x128xf32>
    %538 = math.tanh %537 : vector<8x128xf32>
    %cst_210 = arith.constant 5.000000e-01 : f32
    %539 = vector.broadcast %cst_210 : f32 to vector<8x128xf32>
    %540 = arith.mulf %539, %538 : vector<8x128xf32>
    %cst_211 = arith.constant 5.000000e-01 : f32
    %541 = vector.broadcast %cst_211 : f32 to vector<8x128xf32>
    %542 = arith.addf %540, %541 : vector<8x128xf32>
    %543 = vector.extract_strided_slice %534 {offsets = [0, 128], sizes = [8, 128], strides = [1, 1]} : vector<8x512xf32> to vector<8x128xf32>
    %cst_212 = arith.constant 5.000000e-01 : f32
    %544 = vector.broadcast %cst_212 : f32 to vector<8x128xf32>
    %545 = arith.mulf %544, %543 : vector<8x128xf32>
    %546 = math.tanh %545 : vector<8x128xf32>
    %cst_213 = arith.constant 5.000000e-01 : f32
    %547 = vector.broadcast %cst_213 : f32 to vector<8x128xf32>
    %548 = arith.mulf %547, %546 : vector<8x128xf32>
    %cst_214 = arith.constant 5.000000e-01 : f32
    %549 = vector.broadcast %cst_214 : f32 to vector<8x128xf32>
    %550 = arith.addf %548, %549 : vector<8x128xf32>
    %551 = vector.extract_strided_slice %534 {offsets = [0, 256], sizes = [8, 128], strides = [1, 1]} : vector<8x512xf32> to vector<8x128xf32>
    %552 = math.tanh %551 : vector<8x128xf32>
    %553 = vector.extract_strided_slice %534 {offsets = [0, 384], sizes = [8, 128], strides = [1, 1]} : vector<8x512xf32> to vector<8x128xf32>
    %cst_215 = arith.constant 5.000000e-01 : f32
    %554 = vector.broadcast %cst_215 : f32 to vector<8x128xf32>
    %555 = arith.mulf %554, %553 : vector<8x128xf32>
    %556 = math.tanh %555 : vector<8x128xf32>
    %cst_216 = arith.constant 5.000000e-01 : f32
    %557 = vector.broadcast %cst_216 : f32 to vector<8x128xf32>
    %558 = arith.mulf %557, %556 : vector<8x128xf32>
    %cst_217 = arith.constant 5.000000e-01 : f32
    %559 = vector.broadcast %cst_217 : f32 to vector<8x128xf32>
    %560 = arith.addf %558, %559 : vector<8x128xf32>
    %561 = arith.mulf %550, %521 : vector<8x128xf32>
    %562 = arith.mulf %542, %552 : vector<8x128xf32>
    %563 = arith.addf %561, %562 : vector<8x128xf32>
    %564 = math.tanh %563 : vector<8x128xf32>
    %565 = arith.mulf %560, %564 : vector<8x128xf32>
    %c6_i32_218 = arith.constant 6 : i32
    %c7_i32_219 = arith.constant 7 : i32
    %566 = arith.subi %c7_i32_219, %c6_i32_218 : i32
    %567 = arith.truncf %565 : vector<8x128xf32> to vector<8x128xbf16>
    %c0_220 = arith.constant 0 : index
    %c0_221 = arith.constant 0 : index
    %568 = vector.load %arg5[%c0_220, %c0_221] : memref<128x516xbf16, #tpu.memory_space<vmem>>, vector<128x516xbf16>
    %cst_222 = arith.constant dense<0.000000e+00> : vector<8x516xf32>
    %569 = tpu.matmul %567, %568, %cst_222 {dimension_numbers = #tpu.dot_dimension_numbers<[1], [0], [0], [1], [0, 0, 1, 1], [], []>} : vector<8x128xbf16>, vector<128x516xbf16>, vector<8x516xf32> -> vector<8x516xf32>
    %570 = arith.addf %569, %313 : vector<8x516xf32>
    %571 = vector.extract_strided_slice %570 {offsets = [0, 512], sizes = [8, 4], strides = [1, 1]} : vector<8x516xf32> to vector<8x4xf32>
    %572 = arith.index_cast %566 : i32 to index
    %c0_223 = arith.constant 0 : index
    %c0_224 = arith.constant 0 : index
    %573 = vector.load %arg7[%572, %c0_223, %c0_224] : memref<8x8x4xf32, #tpu.memory_space<vmem>>, vector<1x8x4xf32>
    %574 = vector.shape_cast %573 : vector<1x8x4xf32> to vector<8x4xf32>
    %575 = vector.shape_cast %571 : vector<8x4xf32> to vector<1x8x4xf32>
    tpu.vector_store %arg7[%572, %c0_223, %c0_224], %575 {strides = array<i32>} : memref<8x8x4xf32, #tpu.memory_space<vmem>>, vector<1x8x4xf32>,
    %576 = vector.extract_strided_slice %570 {offsets = [0, 0], sizes = [8, 512], strides = [1, 1]} : vector<8x516xf32> to vector<8x512xf32>
    %577 = vector.extract_strided_slice %576 {offsets = [0, 0], sizes = [8, 128], strides = [1, 1]} : vector<8x512xf32> to vector<8x128xf32>
    %cst_225 = arith.constant 5.000000e-01 : f32
    %578 = vector.broadcast %cst_225 : f32 to vector<8x128xf32>
    %579 = arith.mulf %578, %577 : vector<8x128xf32>
    %580 = math.tanh %579 : vector<8x128xf32>
    %cst_226 = arith.constant 5.000000e-01 : f32
    %581 = vector.broadcast %cst_226 : f32 to vector<8x128xf32>
    %582 = arith.mulf %581, %580 : vector<8x128xf32>
    %cst_227 = arith.constant 5.000000e-01 : f32
    %583 = vector.broadcast %cst_227 : f32 to vector<8x128xf32>
    %584 = arith.addf %582, %583 : vector<8x128xf32>
    %585 = vector.extract_strided_slice %576 {offsets = [0, 128], sizes = [8, 128], strides = [1, 1]} : vector<8x512xf32> to vector<8x128xf32>
    %cst_228 = arith.constant 5.000000e-01 : f32
    %586 = vector.broadcast %cst_228 : f32 to vector<8x128xf32>
    %587 = arith.mulf %586, %585 : vector<8x128xf32>
    %588 = math.tanh %587 : vector<8x128xf32>
    %cst_229 = arith.constant 5.000000e-01 : f32
    %589 = vector.broadcast %cst_229 : f32 to vector<8x128xf32>
    %590 = arith.mulf %589, %588 : vector<8x128xf32>
    %cst_230 = arith.constant 5.000000e-01 : f32
    %591 = vector.broadcast %cst_230 : f32 to vector<8x128xf32>
    %592 = arith.addf %590, %591 : vector<8x128xf32>
    %593 = vector.extract_strided_slice %576 {offsets = [0, 256], sizes = [8, 128], strides = [1, 1]} : vector<8x512xf32> to vector<8x128xf32>
    %594 = math.tanh %593 : vector<8x128xf32>
    %595 = vector.extract_strided_slice %576 {offsets = [0, 384], sizes = [8, 128], strides = [1, 1]} : vector<8x512xf32> to vector<8x128xf32>
    %cst_231 = arith.constant 5.000000e-01 : f32
    %596 = vector.broadcast %cst_231 : f32 to vector<8x128xf32>
    %597 = arith.mulf %596, %595 : vector<8x128xf32>
    %598 = math.tanh %597 : vector<8x128xf32>
    %cst_232 = arith.constant 5.000000e-01 : f32
    %599 = vector.broadcast %cst_232 : f32 to vector<8x128xf32>
    %600 = arith.mulf %599, %598 : vector<8x128xf32>
    %cst_233 = arith.constant 5.000000e-01 : f32
    %601 = vector.broadcast %cst_233 : f32 to vector<8x128xf32>
    %602 = arith.addf %600, %601 : vector<8x128xf32>
    %603 = arith.mulf %592, %563 : vector<8x128xf32>
    %604 = arith.mulf %584, %594 : vector<8x128xf32>
    %605 = arith.addf %603, %604 : vector<8x128xf32>
    %606 = math.tanh %605 : vector<8x128xf32>
    %607 = arith.mulf %602, %606 : vector<8x128xf32>
    %c7_i32_234 = arith.constant 7 : i32
    %c7_i32_235 = arith.constant 7 : i32
    %608 = arith.subi %c7_i32_235, %c7_i32_234 : i32
    %609 = arith.truncf %607 : vector<8x128xf32> to vector<8x128xbf16>
    %c0_236 = arith.constant 0 : index
    %c0_237 = arith.constant 0 : index
    %610 = vector.load %arg5[%c0_236, %c0_237] : memref<128x516xbf16, #tpu.memory_space<vmem>>, vector<128x516xbf16>
    %cst_238 = arith.constant dense<0.000000e+00> : vector<8x516xf32>
    %611 = tpu.matmul %609, %610, %cst_238 {dimension_numbers = #tpu.dot_dimension_numbers<[1], [0], [0], [1], [0, 0, 1, 1], [], []>} : vector<8x128xbf16>, vector<128x516xbf16>, vector<8x516xf32> -> vector<8x516xf32>
    %612 = arith.addf %611, %313 : vector<8x516xf32>
    %613 = vector.extract_strided_slice %612 {offsets = [0, 512], sizes = [8, 4], strides = [1, 1]} : vector<8x516xf32> to vector<8x4xf32>
    %614 = arith.index_cast %608 : i32 to index
    %c0_239 = arith.constant 0 : index
    %c0_240 = arith.constant 0 : index
    %615 = vector.load %arg7[%614, %c0_239, %c0_240] : memref<8x8x4xf32, #tpu.memory_space<vmem>>, vector<1x8x4xf32>
    %616 = vector.shape_cast %615 : vector<1x8x4xf32> to vector<8x4xf32>
    %617 = vector.shape_cast %613 : vector<8x4xf32> to vector<1x8x4xf32>
    tpu.vector_store %arg7[%614, %c0_239, %c0_240], %617 {strides = array<i32>} : memref<8x8x4xf32, #tpu.memory_space<vmem>>, vector<1x8x4xf32>,
    %618 = vector.extract_strided_slice %612 {offsets = [0, 0], sizes = [8, 512], strides = [1, 1]} : vector<8x516xf32> to vector<8x512xf32>
    %619 = vector.extract_strided_slice %618 {offsets = [0, 0], sizes = [8, 128], strides = [1, 1]} : vector<8x512xf32> to vector<8x128xf32>
    %cst_241 = arith.constant 5.000000e-01 : f32
    %620 = vector.broadcast %cst_241 : f32 to vector<8x128xf32>
    %621 = arith.mulf %620, %619 : vector<8x128xf32>
    %622 = math.tanh %621 : vector<8x128xf32>
    %cst_242 = arith.constant 5.000000e-01 : f32
    %623 = vector.broadcast %cst_242 : f32 to vector<8x128xf32>
    %624 = arith.mulf %623, %622 : vector<8x128xf32>
    %cst_243 = arith.constant 5.000000e-01 : f32
    %625 = vector.broadcast %cst_243 : f32 to vector<8x128xf32>
    %626 = arith.addf %624, %625 : vector<8x128xf32>
    %627 = vector.extract_strided_slice %618 {offsets = [0, 128], sizes = [8, 128], strides = [1, 1]} : vector<8x512xf32> to vector<8x128xf32>
    %cst_244 = arith.constant 5.000000e-01 : f32
    %628 = vector.broadcast %cst_244 : f32 to vector<8x128xf32>
    %629 = arith.mulf %628, %627 : vector<8x128xf32>
    %630 = math.tanh %629 : vector<8x128xf32>
    %cst_245 = arith.constant 5.000000e-01 : f32
    %631 = vector.broadcast %cst_245 : f32 to vector<8x128xf32>
    %632 = arith.mulf %631, %630 : vector<8x128xf32>
    %cst_246 = arith.constant 5.000000e-01 : f32
    %633 = vector.broadcast %cst_246 : f32 to vector<8x128xf32>
    %634 = arith.addf %632, %633 : vector<8x128xf32>
    %635 = vector.extract_strided_slice %618 {offsets = [0, 256], sizes = [8, 128], strides = [1, 1]} : vector<8x512xf32> to vector<8x128xf32>
    %636 = math.tanh %635 : vector<8x128xf32>
    %637 = vector.extract_strided_slice %618 {offsets = [0, 384], sizes = [8, 128], strides = [1, 1]} : vector<8x512xf32> to vector<8x128xf32>
    %cst_247 = arith.constant 5.000000e-01 : f32
    %638 = vector.broadcast %cst_247 : f32 to vector<8x128xf32>
    %639 = arith.mulf %638, %637 : vector<8x128xf32>
    %640 = math.tanh %639 : vector<8x128xf32>
    %cst_248 = arith.constant 5.000000e-01 : f32
    %641 = vector.broadcast %cst_248 : f32 to vector<8x128xf32>
    %642 = arith.mulf %641, %640 : vector<8x128xf32>
    %cst_249 = arith.constant 5.000000e-01 : f32
    %643 = vector.broadcast %cst_249 : f32 to vector<8x128xf32>
    %644 = arith.addf %642, %643 : vector<8x128xf32>
    %645 = arith.mulf %634, %605 : vector<8x128xf32>
    %646 = arith.mulf %626, %636 : vector<8x128xf32>
    %647 = arith.addf %645, %646 : vector<8x128xf32>
    %648 = math.tanh %647 : vector<8x128xf32>
    %649 = arith.mulf %644, %648 : vector<8x128xf32>
    %c8_i32_250 = arith.constant 8 : i32
    return
  }
  func.func @transform_0(%arg0: i32) -> (i32, i32, i32) {
    %c0_i32 = arith.constant 0 : i32
    %c0_i32_0 = arith.constant 0 : i32
    %c0_i32_1 = arith.constant 0 : i32
    return %c0_i32, %arg0, %c0_i32_0 : i32, i32, i32
  }
  func.func @transform_1(%arg0: i32) -> (i32, i32) {
    %c0_i32 = arith.constant 0 : i32
    %c0_i32_0 = arith.constant 0 : i32
    %c0_i32_1 = arith.constant 0 : i32
    return %c0_i32, %c0_i32_0 : i32, i32
  }
  func.func @transform_2(%arg0: i32) -> (i32, i32) {
    %c0_i32 = arith.constant 0 : i32
    %c0_i32_0 = arith.constant 0 : i32
    %c0_i32_1 = arith.constant 0 : i32
    return %c0_i32, %c0_i32_0 : i32, i32
  }
  func.func @transform_3(%arg0: i32) -> (i32, i32) {
    %c0_i32 = arith.constant 0 : i32
    %c0_i32_0 = arith.constant 0 : i32
    %c0_i32_1 = arith.constant 0 : i32
    return %c0_i32, %c0_i32_0 : i32, i32
  }
  func.func @transform_4(%arg0: i32) -> (i32, i32) {
    %c0_i32 = arith.constant 0 : i32
    %c0_i32_0 = arith.constant 0 : i32
    %c0_i32_1 = arith.constant 0 : i32
    return %c0_i32, %c0_i32_0 : i32, i32
  }
  func.func @transform_5(%arg0: i32) -> (i32, i32) {
    %c0_i32 = arith.constant 0 : i32
    %c0_i32_0 = arith.constant 0 : i32
    %c0_i32_1 = arith.constant 0 : i32
    return %c0_i32, %c0_i32_0 : i32, i32
  }
  func.func @transform_6(%arg0: i32) -> (i32, i32, i32) {
    %c0_i32 = arith.constant 0 : i32
    %c0_i32_0 = arith.constant 0 : i32
    %c0_i32_1 = arith.constant 0 : i32
    return %c0_i32, %arg0, %c0_i32_0 : i32, i32, i32
  }
  func.func @transform_7(%arg0: i32) -> (i32, i32) {
    %c0_i32 = arith.constant 0 : i32
    %c0_i32_0 = arith.constant 0 : i32
    return %arg0, %c0_i32 : i32, i32
  }
}

module attributes {stable_mosaic.version = 11 : i64} {
  func.func @lstm_ed_kernel(%arg0: i32, %arg1: memref<8x8x4xf32, #tpu.memory_space<vmem>>, %arg2: memref<4x512xbf16, #tpu.memory_space<vmem>>, %arg3: memref<128x512xbf16, #tpu.memory_space<vmem>>, %arg4: memref<1x512xf32, #tpu.memory_space<vmem>>, %arg5: memref<128x516xbf16, #tpu.memory_space<vmem>>, %arg6: memref<1x516xf32, #tpu.memory_space<vmem>>, %arg7: memref<8x8x4xf32, #tpu.memory_space<vmem>>, %arg8: memref<8x128xf32, #tpu.memory_space<vmem>>, %arg9: memref<8x8x512xf32, #tpu.memory_space<vmem>>) attributes {dimension_semantics = [#tpu.dimension_semantics<parallel>], iteration_bounds = array<i64: 1>, scalar_prefetch = 0 : i64, scratch_operands = 1 : i64, tpu.core_type = #tpu.core_type<tc>, window_params = [{transform_indices = @transform_0, window_bounds = array<i64: 8, 8, 4>}, {pipeline_mode = #tpu.pipeline_mode<synchronous>, transform_indices = @transform_1, window_bounds = array<i64: 4, 512>}, {pipeline_mode = #tpu.pipeline_mode<synchronous>, transform_indices = @transform_2, window_bounds = array<i64: 128, 512>}, {pipeline_mode = #tpu.pipeline_mode<synchronous>, transform_indices = @transform_3, window_bounds = array<i64: 1, 512>}, {pipeline_mode = #tpu.pipeline_mode<synchronous>, transform_indices = @transform_4, window_bounds = array<i64: 128, 516>}, {pipeline_mode = #tpu.pipeline_mode<synchronous>, transform_indices = @transform_5, window_bounds = array<i64: 1, 516>}, {transform_indices = @transform_6, window_bounds = array<i64: 8, 8, 4>}, {transform_indices = @transform_7, window_bounds = array<i64: 8, 128>}]} {
    %c0 = arith.constant 0 : index
    %c0_0 = arith.constant 0 : index
    %0 = vector.load %arg4[%c0, %c0_0] : memref<1x512xf32, #tpu.memory_space<vmem>>, vector<1x512xf32>
    %1 = vector.shape_cast %0 : vector<1x512xf32> to vector<1x512xf32>
    %2 = vector.broadcast %1 : vector<1x512xf32> to vector<8x512xf32>
    %c0_i32 = arith.constant 0 : i32
    %c8_i32 = arith.constant 8 : i32
    %3 = arith.addi %c0_i32, %c8_i32 : i32
    %c1_i32 = arith.constant 1 : i32
    scf.for %arg10 = %c0_i32 to %3 step %c1_i32  : i32 {
      %650 = arith.index_cast %arg10 : i32 to index
      %c0_251 = arith.constant 0 : index
      %c0_252 = arith.constant 0 : index
      %651 = vector.load %arg1[%650, %c0_251, %c0_252] : memref<8x8x4xf32, #tpu.memory_space<vmem>>, vector<1x8x4xf32>
      %652 = vector.shape_cast %651 : vector<1x8x4xf32> to vector<8x4xf32>
      %653 = arith.truncf %652 : vector<8x4xf32> to vector<8x4xbf16>
      %c0_253 = arith.constant 0 : index
      %c0_254 = arith.constant 0 : index
      %654 = vector.load %arg2[%c0_253, %c0_254] : memref<4x512xbf16, #tpu.memory_space<vmem>>, vector<4x512xbf16>
      %cst_255 = arith.constant dense<0.000000e+00> : vector<8x512xf32>
      %655 = tpu.matmul %653, %654, %cst_255 {dimension_numbers = #tpu.dot_dimension_numbers<[1], [0], [0], [1], [0, 0, 1, 1], [], []>} : vector<8x4xbf16>, vector<4x512xbf16>, vector<8x512xf32> -> vector<8x512xf32>
      %656 = arith.addf %655, %2 : vector<8x512xf32>
      %657 = arith.index_cast %arg10 : i32 to index
      %c0_256 = arith.constant 0 : index
      %c0_257 = arith.constant 0 : index
      %658 = vector.load %arg9[%657, %c0_256, %c0_257] : memref<8x8x512xf32, #tpu.memory_space<vmem>>, vector<1x8x512xf32>
      %659 = vector.shape_cast %658 : vector<1x8x512xf32> to vector<8x512xf32>
      %660 = vector.shape_cast %656 : vector<8x512xf32> to vector<1x8x512xf32>
      tpu.vector_store %arg9[%657, %c0_256, %c0_257], %660 {strides = array<i32>} : memref<8x8x512xf32, #tpu.memory_space<vmem>>, vector<1x8x512xf32>,
    }
    %c8_i32_1 = arith.constant 8 : i32
    %cst = arith.constant 0.000000e+00 : f32
    %4 = vector.broadcast %cst : f32 to vector<8x128xf32>
    %cst_2 = arith.constant 0.000000e+00 : f32
    %5 = vector.broadcast %cst_2 : f32 to vector<8x128xf32>
    %c0_i32_3 = arith.constant 0 : i32
    %6 = arith.index_cast %c0_i32_3 : i32 to index
    %c0_4 = arith.constant 0 : index
    %c0_5 = arith.constant 0 : index
    %7 = vector.load %arg9[%6, %c0_4, %c0_5] : memref<8x8x512xf32, #tpu.memory_space<vmem>>, vector<1x8x512xf32>
    %8 = vector.shape_cast %7 : vector<1x8x512xf32> to vector<8x512xf32>
    %9 = arith.truncf %4 : vector<8x128xf32> to vector<8x128xbf16>
    %c0_6 = arith.constant 0 : index
    %c0_7 = arith.constant 0 : index
    %10 = vector.load %arg3[%c0_6, %c0_7] : memref<128x512xbf16, #tpu.memory_space<vmem>>, vector<128x512xbf16>
    %cst_8 = arith.constant dense<0.000000e+00> : vector<8x512xf32>
    %11 = tpu.matmul %9, %10, %cst_8 {dimension_numbers = #tpu.dot_dimension_numbers<[1], [0], [0], [1], [0, 0, 1, 1], [], []>} : vector<8x128xbf16>, vector<128x512xbf16>, vector<8x512xf32> -> vector<8x512xf32>
    %12 = arith.addf %8, %11 : vector<8x512xf32>
    %13 = vector.extract_strided_slice %12 {offsets = [0, 0], sizes = [8, 128], strides = [1, 1]} : vector<8x512xf32> to vector<8x128xf32>
    %cst_9 = arith.constant 5.000000e-01 : f32
    %14 = vector.broadcast %cst_9 : f32 to vector<8x128xf32>
    %15 = arith.mulf %14, %13 : vector<8x128xf32>
    %16 = math.tanh %15 : vector<8x128xf32>
    %cst_10 = arith.constant 5.000000e-01 : f32
    %17 = vector.broadcast %cst_10 : f32 to vector<8x128xf32>
    %18 = arith.mulf %17, %16 : vector<8x128xf32>
    %cst_11 = arith.constant 5.000000e-01 : f32
    %19 = vector.broadcast %cst_11 : f32 to vector<8x128xf32>
    %20 = arith.addf %18, %19 : vector<8x128xf32>
    %21 = vector.extract_strided_slice %12 {offsets = [0, 128], sizes = [8, 128], strides = [1, 1]} : vector<8x512xf32> to vector<8x128xf32>
    %cst_12 = arith.constant 5.000000e-01 : f32
    %22 = vector.broadcast %cst_12 : f32 to vector<8x128xf32>
    %23 = arith.mulf %22, %21 : vector<8x128xf32>
    %24 = math.tanh %23 : vector<8x128xf32>
    %cst_13 = arith.constant 5.000000e-01 : f32
    %25 = vector.broadcast %cst_13 : f32 to vector<8x128xf32>
    %26 = arith.mulf %25, %24 : vector<8x128xf32>
    %cst_14 = arith.constant 5.000000e-01 : f32
    %27 = vector.broadcast %cst_14 : f32 to vector<8x128xf32>
    %28 = arith.addf %26, %27 : vector<8x128xf32>
    %29 = vector.extract_strided_slice %12 {offsets = [0, 256], sizes = [8, 128], strides = [1, 1]} : vector<8x512xf32> to vector<8x128xf32>
    %30 = math.tanh %29 : vector<8x128xf32>
    %31 = vector.extract_strided_slice %12 {offsets = [0, 384], sizes = [8, 128], strides = [1, 1]} : vector<8x512xf32> to vector<8x128xf32>
    %cst_15 = arith.constant 5.000000e-01 : f32
    %32 = vector.broadcast %cst_15 : f32 to vector<8x128xf32>
    %33 = arith.mulf %32, %31 : vector<8x128xf32>
    %34 = math.tanh %33 : vector<8x128xf32>
    %cst_16 = arith.constant 5.000000e-01 : f32
    %35 = vector.broadcast %cst_16 : f32 to vector<8x128xf32>
    %36 = arith.mulf %35, %34 : vector<8x128xf32>
    %cst_17 = arith.constant 5.000000e-01 : f32
    %37 = vector.broadcast %cst_17 : f32 to vector<8x128xf32>
    %38 = arith.addf %36, %37 : vector<8x128xf32>
    %39 = arith.mulf %28, %5 : vector<8x128xf32>
    %40 = arith.mulf %20, %30 : vector<8x128xf32>
    %41 = arith.addf %39, %40 : vector<8x128xf32>
    %42 = math.tanh %41 : vector<8x128xf32>
    %43 = arith.mulf %38, %42 : vector<8x128xf32>
    %c1_i32_18 = arith.constant 1 : i32
    %44 = arith.index_cast %c1_i32_18 : i32 to index
    %c0_19 = arith.constant 0 : index
    %c0_20 = arith.constant 0 : index
    %45 = vector.load %arg9[%44, %c0_19, %c0_20] : memref<8x8x512xf32, #tpu.memory_space<vmem>>, vector<1x8x512xf32>
    %46 = vector.shape_cast %45 : vector<1x8x512xf32> to vector<8x512xf32>
    %47 = arith.truncf %43 : vector<8x128xf32> to vector<8x128xbf16>
    %c0_21 = arith.constant 0 : index
    %c0_22 = arith.constant 0 : index
    %48 = vector.load %arg3[%c0_21, %c0_22] : memref<128x512xbf16, #tpu.memory_space<vmem>>, vector<128x512xbf16>
    %cst_23 = arith.constant dense<0.000000e+00> : vector<8x512xf32>
    %49 = tpu.matmul %47, %48, %cst_23 {dimension_numbers = #tpu.dot_dimension_numbers<[1], [0], [0], [1], [0, 0, 1, 1], [], []>} : vector<8x128xbf16>, vector<128x512xbf16>, vector<8x512xf32> -> vector<8x512xf32>
    %50 = arith.addf %46, %49 : vector<8x512xf32>
    %51 = vector.extract_strided_slice %50 {offsets = [0, 0], sizes = [8, 128], strides = [1, 1]} : vector<8x512xf32> to vector<8x128xf32>
    %cst_24 = arith.constant 5.000000e-01 : f32
    %52 = vector.broadcast %cst_24 : f32 to vector<8x128xf32>
    %53 = arith.mulf %52, %51 : vector<8x128xf32>
    %54 = math.tanh %53 : vector<8x128xf32>
    %cst_25 = arith.constant 5.000000e-01 : f32
    %55 = vector.broadcast %cst_25 : f32 to vector<8x128xf32>
    %56 = arith.mulf %55, %54 : vector<8x128xf32>
    %cst_26 = arith.constant 5.000000e-01 : f32
    %57 = vector.broadcast %cst_26 : f32 to vector<8x128xf32>
    %58 = arith.addf %56, %57 : vector<8x128xf32>
    %59 = vector.extract_strided_slice %50 {offsets = [0, 128], sizes = [8, 128], strides = [1, 1]} : vector<8x512xf32> to vector<8x128xf32>
    %cst_27 = arith.constant 5.000000e-01 : f32
    %60 = vector.broadcast %cst_27 : f32 to vector<8x128xf32>
    %61 = arith.mulf %60, %59 : vector<8x128xf32>
    %62 = math.tanh %61 : vector<8x128xf32>
    %cst_28 = arith.constant 5.000000e-01 : f32
    %63 = vector.broadcast %cst_28 : f32 to vector<8x128xf32>
    %64 = arith.mulf %63, %62 : vector<8x128xf32>
    %cst_29 = arith.constant 5.000000e-01 : f32
    %65 = vector.broadcast %cst_29 : f32 to vector<8x128xf32>
    %66 = arith.addf %64, %65 : vector<8x128xf32>
    %67 = vector.extract_strided_slice %50 {offsets = [0, 256], sizes = [8, 128], strides = [1, 1]} : vector<8x512xf32> to vector<8x128xf32>
    %68 = math.tanh %67 : vector<8x128xf32>
    %69 = vector.extract_strided_slice %50 {offsets = [0, 384], sizes = [8, 128], strides = [1, 1]} : vector<8x512xf32> to vector<8x128xf32>
    %cst_30 = arith.constant 5.000000e-01 : f32
    %70 = vector.broadcast %cst_30 : f32 to vector<8x128xf32>
    %71 = arith.mulf %70, %69 : vector<8x128xf32>
    %72 = math.tanh %71 : vector<8x128xf32>
    %cst_31 = arith.constant 5.000000e-01 : f32
    %73 = vector.broadcast %cst_31 : f32 to vector<8x128xf32>
    %74 = arith.mulf %73, %72 : vector<8x128xf32>
    %cst_32 = arith.constant 5.000000e-01 : f32
    %75 = vector.broadcast %cst_32 : f32 to vector<8x128xf32>
    %76 = arith.addf %74, %75 : vector<8x128xf32>
    %77 = arith.mulf %66, %41 : vector<8x128xf32>
    %78 = arith.mulf %58, %68 : vector<8x128xf32>
    %79 = arith.addf %77, %78 : vector<8x128xf32>
    %80 = math.tanh %79 : vector<8x128xf32>
    %81 = arith.mulf %76, %80 : vector<8x128xf32>
    %c2_i32 = arith.constant 2 : i32
    %82 = arith.index_cast %c2_i32 : i32 to index
    %c0_33 = arith.constant 0 : index
    %c0_34 = arith.constant 0 : index
    %83 = vector.load %arg9[%82, %c0_33, %c0_34] : memref<8x8x512xf32, #tpu.memory_space<vmem>>, vector<1x8x512xf32>
    %84 = vector.shape_cast %83 : vector<1x8x512xf32> to vector<8x512xf32>
    %85 = arith.truncf %81 : vector<8x128xf32> to vector<8x128xbf16>
    %c0_35 = arith.constant 0 : index
    %c0_36 = arith.constant 0 : index
    %86 = vector.load %arg3[%c0_35, %c0_36] : memref<128x512xbf16, #tpu.memory_space<vmem>>, vector<128x512xbf16>
    %cst_37 = arith.constant dense<0.000000e+00> : vector<8x512xf32>
    %87 = tpu.matmul %85, %86, %cst_37 {dimension_numbers = #tpu.dot_dimension_numbers<[1], [0], [0], [1], [0, 0, 1, 1], [], []>} : vector<8x128xbf16>, vector<128x512xbf16>, vector<8x512xf32> -> vector<8x512xf32>
    %88 = arith.addf %84, %87 : vector<8x512xf32>
    %89 = vector.extract_strided_slice %88 {offsets = [0, 0], sizes = [8, 128], strides = [1, 1]} : vector<8x512xf32> to vector<8x128xf32>
    %cst_38 = arith.constant 5.000000e-01 : f32
    %90 = vector.broadcast %cst_38 : f32 to vector<8x128xf32>
    %91 = arith.mulf %90, %89 : vector<8x128xf32>
    %92 = math.tanh %91 : vector<8x128xf32>
    %cst_39 = arith.constant 5.000000e-01 : f32
    %93 = vector.broadcast %cst_39 : f32 to vector<8x128xf32>
    %94 = arith.mulf %93, %92 : vector<8x128xf32>
    %cst_40 = arith.constant 5.000000e-01 : f32
    %95 = vector.broadcast %cst_40 : f32 to vector<8x128xf32>
    %96 = arith.addf %94, %95 : vector<8x128xf32>
    %97 = vector.extract_strided_slice %88 {offsets = [0, 128], sizes = [8, 128], strides = [1, 1]} : vector<8x512xf32> to vector<8x128xf32>
    %cst_41 = arith.constant 5.000000e-01 : f32
    %98 = vector.broadcast %cst_41 : f32 to vector<8x128xf32>
    %99 = arith.mulf %98, %97 : vector<8x128xf32>
    %100 = math.tanh %99 : vector<8x128xf32>
    %cst_42 = arith.constant 5.000000e-01 : f32
    %101 = vector.broadcast %cst_42 : f32 to vector<8x128xf32>
    %102 = arith.mulf %101, %100 : vector<8x128xf32>
    %cst_43 = arith.constant 5.000000e-01 : f32
    %103 = vector.broadcast %cst_43 : f32 to vector<8x128xf32>
    %104 = arith.addf %102, %103 : vector<8x128xf32>
    %105 = vector.extract_strided_slice %88 {offsets = [0, 256], sizes = [8, 128], strides = [1, 1]} : vector<8x512xf32> to vector<8x128xf32>
    %106 = math.tanh %105 : vector<8x128xf32>
    %107 = vector.extract_strided_slice %88 {offsets = [0, 384], sizes = [8, 128], strides = [1, 1]} : vector<8x512xf32> to vector<8x128xf32>
    %cst_44 = arith.constant 5.000000e-01 : f32
    %108 = vector.broadcast %cst_44 : f32 to vector<8x128xf32>
    %109 = arith.mulf %108, %107 : vector<8x128xf32>
    %110 = math.tanh %109 : vector<8x128xf32>
    %cst_45 = arith.constant 5.000000e-01 : f32
    %111 = vector.broadcast %cst_45 : f32 to vector<8x128xf32>
    %112 = arith.mulf %111, %110 : vector<8x128xf32>
    %cst_46 = arith.constant 5.000000e-01 : f32
    %113 = vector.broadcast %cst_46 : f32 to vector<8x128xf32>
    %114 = arith.addf %112, %113 : vector<8x128xf32>
    %115 = arith.mulf %104, %79 : vector<8x128xf32>
    %116 = arith.mulf %96, %106 : vector<8x128xf32>
    %117 = arith.addf %115, %116 : vector<8x128xf32>
    %118 = math.tanh %117 : vector<8x128xf32>
    %119 = arith.mulf %114, %118 : vector<8x128xf32>
    %c3_i32 = arith.constant 3 : i32
    %120 = arith.index_cast %c3_i32 : i32 to index
    %c0_47 = arith.constant 0 : index
    %c0_48 = arith.constant 0 : index
    %121 = vector.load %arg9[%120, %c0_47, %c0_48] : memref<8x8x512xf32, #tpu.memory_space<vmem>>, vector<1x8x512xf32>
    %122 = vector.shape_cast %121 : vector<1x8x512xf32> to vector<8x512xf32>
    %123 = arith.truncf %119 : vector<8x128xf32> to vector<8x128xbf16>
    %c0_49 = arith.constant 0 : index
    %c0_50 = arith.constant 0 : index
    %124 = vector.load %arg3[%c0_49, %c0_50] : memref<128x512xbf16, #tpu.memory_space<vmem>>, vector<128x512xbf16>
    %cst_51 = arith.constant dense<0.000000e+00> : vector<8x512xf32>
    %125 = tpu.matmul %123, %124, %cst_51 {dimension_numbers = #tpu.dot_dimension_numbers<[1], [0], [0], [1], [0, 0, 1, 1], [], []>} : vector<8x128xbf16>, vector<128x512xbf16>, vector<8x512xf32> -> vector<8x512xf32>
    %126 = arith.addf %122, %125 : vector<8x512xf32>
    %127 = vector.extract_strided_slice %126 {offsets = [0, 0], sizes = [8, 128], strides = [1, 1]} : vector<8x512xf32> to vector<8x128xf32>
    %cst_52 = arith.constant 5.000000e-01 : f32
    %128 = vector.broadcast %cst_52 : f32 to vector<8x128xf32>
    %129 = arith.mulf %128, %127 : vector<8x128xf32>
    %130 = math.tanh %129 : vector<8x128xf32>
    %cst_53 = arith.constant 5.000000e-01 : f32
    %131 = vector.broadcast %cst_53 : f32 to vector<8x128xf32>
    %132 = arith.mulf %131, %130 : vector<8x128xf32>
    %cst_54 = arith.constant 5.000000e-01 : f32
    %133 = vector.broadcast %cst_54 : f32 to vector<8x128xf32>
    %134 = arith.addf %132, %133 : vector<8x128xf32>
    %135 = vector.extract_strided_slice %126 {offsets = [0, 128], sizes = [8, 128], strides = [1, 1]} : vector<8x512xf32> to vector<8x128xf32>
    %cst_55 = arith.constant 5.000000e-01 : f32
    %136 = vector.broadcast %cst_55 : f32 to vector<8x128xf32>
    %137 = arith.mulf %136, %135 : vector<8x128xf32>
    %138 = math.tanh %137 : vector<8x128xf32>
    %cst_56 = arith.constant 5.000000e-01 : f32
    %139 = vector.broadcast %cst_56 : f32 to vector<8x128xf32>
    %140 = arith.mulf %139, %138 : vector<8x128xf32>
    %cst_57 = arith.constant 5.000000e-01 : f32
    %141 = vector.broadcast %cst_57 : f32 to vector<8x128xf32>
    %142 = arith.addf %140, %141 : vector<8x128xf32>
    %143 = vector.extract_strided_slice %126 {offsets = [0, 256], sizes = [8, 128], strides = [1, 1]} : vector<8x512xf32> to vector<8x128xf32>
    %144 = math.tanh %143 : vector<8x128xf32>
    %145 = vector.extract_strided_slice %126 {offsets = [0, 384], sizes = [8, 128], strides = [1, 1]} : vector<8x512xf32> to vector<8x128xf32>
    %cst_58 = arith.constant 5.000000e-01 : f32
    %146 = vector.broadcast %cst_58 : f32 to vector<8x128xf32>
    %147 = arith.mulf %146, %145 : vector<8x128xf32>
    %148 = math.tanh %147 : vector<8x128xf32>
    %cst_59 = arith.constant 5.000000e-01 : f32
    %149 = vector.broadcast %cst_59 : f32 to vector<8x128xf32>
    %150 = arith.mulf %149, %148 : vector<8x128xf32>
    %cst_60 = arith.constant 5.000000e-01 : f32
    %151 = vector.broadcast %cst_60 : f32 to vector<8x128xf32>
    %152 = arith.addf %150, %151 : vector<8x128xf32>
    %153 = arith.mulf %142, %117 : vector<8x128xf32>
    %154 = arith.mulf %134, %144 : vector<8x128xf32>
    %155 = arith.addf %153, %154 : vector<8x128xf32>
    %156 = math.tanh %155 : vector<8x128xf32>
    %157 = arith.mulf %152, %156 : vector<8x128xf32>
    %c4_i32 = arith.constant 4 : i32
    %158 = arith.index_cast %c4_i32 : i32 to index
    %c0_61 = arith.constant 0 : index
    %c0_62 = arith.constant 0 : index
    %159 = vector.load %arg9[%158, %c0_61, %c0_62] : memref<8x8x512xf32, #tpu.memory_space<vmem>>, vector<1x8x512xf32>
    %160 = vector.shape_cast %159 : vector<1x8x512xf32> to vector<8x512xf32>
    %161 = arith.truncf %157 : vector<8x128xf32> to vector<8x128xbf16>
    %c0_63 = arith.constant 0 : index
    %c0_64 = arith.constant 0 : index
    %162 = vector.load %arg3[%c0_63, %c0_64] : memref<128x512xbf16, #tpu.memory_space<vmem>>, vector<128x512xbf16>
    %cst_65 = arith.constant dense<0.000000e+00> : vector<8x512xf32>
    %163 = tpu.matmul %161, %162, %cst_65 {dimension_numbers = #tpu.dot_dimension_numbers<[1], [0], [0], [1], [0, 0, 1, 1], [], []>} : vector<8x128xbf16>, vector<128x512xbf16>, vector<8x512xf32> -> vector<8x512xf32>
    %164 = arith.addf %160, %163 : vector<8x512xf32>
    %165 = vector.extract_strided_slice %164 {offsets = [0, 0], sizes = [8, 128], strides = [1, 1]} : vector<8x512xf32> to vector<8x128xf32>
    %cst_66 = arith.constant 5.000000e-01 : f32
    %166 = vector.broadcast %cst_66 : f32 to vector<8x128xf32>
    %167 = arith.mulf %166, %165 : vector<8x128xf32>
    %168 = math.tanh %167 : vector<8x128xf32>
    %cst_67 = arith.constant 5.000000e-01 : f32
    %169 = vector.broadcast %cst_67 : f32 to vector<8x128xf32>
    %170 = arith.mulf %169, %168 : vector<8x128xf32>
    %cst_68 = arith.constant 5.000000e-01 : f32
    %171 = vector.broadcast %cst_68 : f32 to vector<8x128xf32>
    %172 = arith.addf %170, %171 : vector<8x128xf32>
    %173 = vector.extract_strided_slice %164 {offsets = [0, 128], sizes = [8, 128], strides = [1, 1]} : vector<8x512xf32> to vector<8x128xf32>
    %cst_69 = arith.constant 5.000000e-01 : f32
    %174 = vector.broadcast %cst_69 : f32 to vector<8x128xf32>
    %175 = arith.mulf %174, %173 : vector<8x128xf32>
    %176 = math.tanh %175 : vector<8x128xf32>
    %cst_70 = arith.constant 5.000000e-01 : f32
    %177 = vector.broadcast %cst_70 : f32 to vector<8x128xf32>
    %178 = arith.mulf %177, %176 : vector<8x128xf32>
    %cst_71 = arith.constant 5.000000e-01 : f32
    %179 = vector.broadcast %cst_71 : f32 to vector<8x128xf32>
    %180 = arith.addf %178, %179 : vector<8x128xf32>
    %181 = vector.extract_strided_slice %164 {offsets = [0, 256], sizes = [8, 128], strides = [1, 1]} : vector<8x512xf32> to vector<8x128xf32>
    %182 = math.tanh %181 : vector<8x128xf32>
    %183 = vector.extract_strided_slice %164 {offsets = [0, 384], sizes = [8, 128], strides = [1, 1]} : vector<8x512xf32> to vector<8x128xf32>
    %cst_72 = arith.constant 5.000000e-01 : f32
    %184 = vector.broadcast %cst_72 : f32 to vector<8x128xf32>
    %185 = arith.mulf %184, %183 : vector<8x128xf32>
    %186 = math.tanh %185 : vector<8x128xf32>
    %cst_73 = arith.constant 5.000000e-01 : f32
    %187 = vector.broadcast %cst_73 : f32 to vector<8x128xf32>
    %188 = arith.mulf %187, %186 : vector<8x128xf32>
    %cst_74 = arith.constant 5.000000e-01 : f32
    %189 = vector.broadcast %cst_74 : f32 to vector<8x128xf32>
    %190 = arith.addf %188, %189 : vector<8x128xf32>
    %191 = arith.mulf %180, %155 : vector<8x128xf32>
    %192 = arith.mulf %172, %182 : vector<8x128xf32>
    %193 = arith.addf %191, %192 : vector<8x128xf32>
    %194 = math.tanh %193 : vector<8x128xf32>
    %195 = arith.mulf %190, %194 : vector<8x128xf32>
    %c5_i32 = arith.constant 5 : i32
    %196 = arith.index_cast %c5_i32 : i32 to index
    %c0_75 = arith.constant 0 : index
    %c0_76 = arith.constant 0 : index
    %197 = vector.load %arg9[%196, %c0_75, %c0_76] : memref<8x8x512xf32, #tpu.memory_space<vmem>>, vector<1x8x512xf32>
    %198 = vector.shape_cast %197 : vector<1x8x512xf32> to vector<8x512xf32>
    %199 = arith.truncf %195 : vector<8x128xf32> to vector<8x128xbf16>
    %c0_77 = arith.constant 0 : index
    %c0_78 = arith.constant 0 : index
    %200 = vector.load %arg3[%c0_77, %c0_78] : memref<128x512xbf16, #tpu.memory_space<vmem>>, vector<128x512xbf16>
    %cst_79 = arith.constant dense<0.000000e+00> : vector<8x512xf32>
    %201 = tpu.matmul %199, %200, %cst_79 {dimension_numbers = #tpu.dot_dimension_numbers<[1], [0], [0], [1], [0, 0, 1, 1], [], []>} : vector<8x128xbf16>, vector<128x512xbf16>, vector<8x512xf32> -> vector<8x512xf32>
    %202 = arith.addf %198, %201 : vector<8x512xf32>
    %203 = vector.extract_strided_slice %202 {offsets = [0, 0], sizes = [8, 128], strides = [1, 1]} : vector<8x512xf32> to vector<8x128xf32>
    %cst_80 = arith.constant 5.000000e-01 : f32
    %204 = vector.broadcast %cst_80 : f32 to vector<8x128xf32>
    %205 = arith.mulf %204, %203 : vector<8x128xf32>
    %206 = math.tanh %205 : vector<8x128xf32>
    %cst_81 = arith.constant 5.000000e-01 : f32
    %207 = vector.broadcast %cst_81 : f32 to vector<8x128xf32>
    %208 = arith.mulf %207, %206 : vector<8x128xf32>
    %cst_82 = arith.constant 5.000000e-01 : f32
    %209 = vector.broadcast %cst_82 : f32 to vector<8x128xf32>
    %210 = arith.addf %208, %209 : vector<8x128xf32>
    %211 = vector.extract_strided_slice %202 {offsets = [0, 128], sizes = [8, 128], strides = [1, 1]} : vector<8x512xf32> to vector<8x128xf32>
    %cst_83 = arith.constant 5.000000e-01 : f32
    %212 = vector.broadcast %cst_83 : f32 to vector<8x128xf32>
    %213 = arith.mulf %212, %211 : vector<8x128xf32>
    %214 = math.tanh %213 : vector<8x128xf32>
    %cst_84 = arith.constant 5.000000e-01 : f32
    %215 = vector.broadcast %cst_84 : f32 to vector<8x128xf32>
    %216 = arith.mulf %215, %214 : vector<8x128xf32>
    %cst_85 = arith.constant 5.000000e-01 : f32
    %217 = vector.broadcast %cst_85 : f32 to vector<8x128xf32>
    %218 = arith.addf %216, %217 : vector<8x128xf32>
    %219 = vector.extract_strided_slice %202 {offsets = [0, 256], sizes = [8, 128], strides = [1, 1]} : vector<8x512xf32> to vector<8x128xf32>
    %220 = math.tanh %219 : vector<8x128xf32>
    %221 = vector.extract_strided_slice %202 {offsets = [0, 384], sizes = [8, 128], strides = [1, 1]} : vector<8x512xf32> to vector<8x128xf32>
    %cst_86 = arith.constant 5.000000e-01 : f32
    %222 = vector.broadcast %cst_86 : f32 to vector<8x128xf32>
    %223 = arith.mulf %222, %221 : vector<8x128xf32>
    %224 = math.tanh %223 : vector<8x128xf32>
    %cst_87 = arith.constant 5.000000e-01 : f32
    %225 = vector.broadcast %cst_87 : f32 to vector<8x128xf32>
    %226 = arith.mulf %225, %224 : vector<8x128xf32>
    %cst_88 = arith.constant 5.000000e-01 : f32
    %227 = vector.broadcast %cst_88 : f32 to vector<8x128xf32>
    %228 = arith.addf %226, %227 : vector<8x128xf32>
    %229 = arith.mulf %218, %193 : vector<8x128xf32>
    %230 = arith.mulf %210, %220 : vector<8x128xf32>
    %231 = arith.addf %229, %230 : vector<8x128xf32>
    %232 = math.tanh %231 : vector<8x128xf32>
    %233 = arith.mulf %228, %232 : vector<8x128xf32>
    %c6_i32 = arith.constant 6 : i32
    %234 = arith.index_cast %c6_i32 : i32 to index
    %c0_89 = arith.constant 0 : index
    %c0_90 = arith.constant 0 : index
    %235 = vector.load %arg9[%234, %c0_89, %c0_90] : memref<8x8x512xf32, #tpu.memory_space<vmem>>, vector<1x8x512xf32>
    %236 = vector.shape_cast %235 : vector<1x8x512xf32> to vector<8x512xf32>
    %237 = arith.truncf %233 : vector<8x128xf32> to vector<8x128xbf16>
    %c0_91 = arith.constant 0 : index
    %c0_92 = arith.constant 0 : index
    %238 = vector.load %arg3[%c0_91, %c0_92] : memref<128x512xbf16, #tpu.memory_space<vmem>>, vector<128x512xbf16>
    %cst_93 = arith.constant dense<0.000000e+00> : vector<8x512xf32>
    %239 = tpu.matmul %237, %238, %cst_93 {dimension_numbers = #tpu.dot_dimension_numbers<[1], [0], [0], [1], [0, 0, 1, 1], [], []>} : vector<8x128xbf16>, vector<128x512xbf16>, vector<8x512xf32> -> vector<8x512xf32>
    %240 = arith.addf %236, %239 : vector<8x512xf32>
    %241 = vector.extract_strided_slice %240 {offsets = [0, 0], sizes = [8, 128], strides = [1, 1]} : vector<8x512xf32> to vector<8x128xf32>
    %cst_94 = arith.constant 5.000000e-01 : f32
    %242 = vector.broadcast %cst_94 : f32 to vector<8x128xf32>
    %243 = arith.mulf %242, %241 : vector<8x128xf32>
    %244 = math.tanh %243 : vector<8x128xf32>
    %cst_95 = arith.constant 5.000000e-01 : f32
    %245 = vector.broadcast %cst_95 : f32 to vector<8x128xf32>
    %246 = arith.mulf %245, %244 : vector<8x128xf32>
    %cst_96 = arith.constant 5.000000e-01 : f32
    %247 = vector.broadcast %cst_96 : f32 to vector<8x128xf32>
    %248 = arith.addf %246, %247 : vector<8x128xf32>
    %249 = vector.extract_strided_slice %240 {offsets = [0, 128], sizes = [8, 128], strides = [1, 1]} : vector<8x512xf32> to vector<8x128xf32>
    %cst_97 = arith.constant 5.000000e-01 : f32
    %250 = vector.broadcast %cst_97 : f32 to vector<8x128xf32>
    %251 = arith.mulf %250, %249 : vector<8x128xf32>
    %252 = math.tanh %251 : vector<8x128xf32>
    %cst_98 = arith.constant 5.000000e-01 : f32
    %253 = vector.broadcast %cst_98 : f32 to vector<8x128xf32>
    %254 = arith.mulf %253, %252 : vector<8x128xf32>
    %cst_99 = arith.constant 5.000000e-01 : f32
    %255 = vector.broadcast %cst_99 : f32 to vector<8x128xf32>
    %256 = arith.addf %254, %255 : vector<8x128xf32>
    %257 = vector.extract_strided_slice %240 {offsets = [0, 256], sizes = [8, 128], strides = [1, 1]} : vector<8x512xf32> to vector<8x128xf32>
    %258 = math.tanh %257 : vector<8x128xf32>
    %259 = vector.extract_strided_slice %240 {offsets = [0, 384], sizes = [8, 128], strides = [1, 1]} : vector<8x512xf32> to vector<8x128xf32>
    %cst_100 = arith.constant 5.000000e-01 : f32
    %260 = vector.broadcast %cst_100 : f32 to vector<8x128xf32>
    %261 = arith.mulf %260, %259 : vector<8x128xf32>
    %262 = math.tanh %261 : vector<8x128xf32>
    %cst_101 = arith.constant 5.000000e-01 : f32
    %263 = vector.broadcast %cst_101 : f32 to vector<8x128xf32>
    %264 = arith.mulf %263, %262 : vector<8x128xf32>
    %cst_102 = arith.constant 5.000000e-01 : f32
    %265 = vector.broadcast %cst_102 : f32 to vector<8x128xf32>
    %266 = arith.addf %264, %265 : vector<8x128xf32>
    %267 = arith.mulf %256, %231 : vector<8x128xf32>
    %268 = arith.mulf %248, %258 : vector<8x128xf32>
    %269 = arith.addf %267, %268 : vector<8x128xf32>
    %270 = math.tanh %269 : vector<8x128xf32>
    %271 = arith.mulf %266, %270 : vector<8x128xf32>
    %c7_i32 = arith.constant 7 : i32
    %272 = arith.index_cast %c7_i32 : i32 to index
    %c0_103 = arith.constant 0 : index
    %c0_104 = arith.constant 0 : index
    %273 = vector.load %arg9[%272, %c0_103, %c0_104] : memref<8x8x512xf32, #tpu.memory_space<vmem>>, vector<1x8x512xf32>
    %274 = vector.shape_cast %273 : vector<1x8x512xf32> to vector<8x512xf32>
    %275 = arith.truncf %271 : vector<8x128xf32> to vector<8x128xbf16>
    %c0_105 = arith.constant 0 : index
    %c0_106 = arith.constant 0 : index
    %276 = vector.load %arg3[%c0_105, %c0_106] : memref<128x512xbf16, #tpu.memory_space<vmem>>, vector<128x512xbf16>
    %cst_107 = arith.constant dense<0.000000e+00> : vector<8x512xf32>
    %277 = tpu.matmul %275, %276, %cst_107 {dimension_numbers = #tpu.dot_dimension_numbers<[1], [0], [0], [1], [0, 0, 1, 1], [], []>} : vector<8x128xbf16>, vector<128x512xbf16>, vector<8x512xf32> -> vector<8x512xf32>
    %278 = arith.addf %274, %277 : vector<8x512xf32>
    %279 = vector.extract_strided_slice %278 {offsets = [0, 0], sizes = [8, 128], strides = [1, 1]} : vector<8x512xf32> to vector<8x128xf32>
    %cst_108 = arith.constant 5.000000e-01 : f32
    %280 = vector.broadcast %cst_108 : f32 to vector<8x128xf32>
    %281 = arith.mulf %280, %279 : vector<8x128xf32>
    %282 = math.tanh %281 : vector<8x128xf32>
    %cst_109 = arith.constant 5.000000e-01 : f32
    %283 = vector.broadcast %cst_109 : f32 to vector<8x128xf32>
    %284 = arith.mulf %283, %282 : vector<8x128xf32>
    %cst_110 = arith.constant 5.000000e-01 : f32
    %285 = vector.broadcast %cst_110 : f32 to vector<8x128xf32>
    %286 = arith.addf %284, %285 : vector<8x128xf32>
    %287 = vector.extract_strided_slice %278 {offsets = [0, 128], sizes = [8, 128], strides = [1, 1]} : vector<8x512xf32> to vector<8x128xf32>
    %cst_111 = arith.constant 5.000000e-01 : f32
    %288 = vector.broadcast %cst_111 : f32 to vector<8x128xf32>
    %289 = arith.mulf %288, %287 : vector<8x128xf32>
    %290 = math.tanh %289 : vector<8x128xf32>
    %cst_112 = arith.constant 5.000000e-01 : f32
    %291 = vector.broadcast %cst_112 : f32 to vector<8x128xf32>
    %292 = arith.mulf %291, %290 : vector<8x128xf32>
    %cst_113 = arith.constant 5.000000e-01 : f32
    %293 = vector.broadcast %cst_113 : f32 to vector<8x128xf32>
    %294 = arith.addf %292, %293 : vector<8x128xf32>
    %295 = vector.extract_strided_slice %278 {offsets = [0, 256], sizes = [8, 128], strides = [1, 1]} : vector<8x512xf32> to vector<8x128xf32>
    %296 = math.tanh %295 : vector<8x128xf32>
    %297 = vector.extract_strided_slice %278 {offsets = [0, 384], sizes = [8, 128], strides = [1, 1]} : vector<8x512xf32> to vector<8x128xf32>
    %cst_114 = arith.constant 5.000000e-01 : f32
    %298 = vector.broadcast %cst_114 : f32 to vector<8x128xf32>
    %299 = arith.mulf %298, %297 : vector<8x128xf32>
    %300 = math.tanh %299 : vector<8x128xf32>
    %cst_115 = arith.constant 5.000000e-01 : f32
    %301 = vector.broadcast %cst_115 : f32 to vector<8x128xf32>
    %302 = arith.mulf %301, %300 : vector<8x128xf32>
    %cst_116 = arith.constant 5.000000e-01 : f32
    %303 = vector.broadcast %cst_116 : f32 to vector<8x128xf32>
    %304 = arith.addf %302, %303 : vector<8x128xf32>
    %305 = arith.mulf %294, %269 : vector<8x128xf32>
    %306 = arith.mulf %286, %296 : vector<8x128xf32>
    %307 = arith.addf %305, %306 : vector<8x128xf32>
    %308 = math.tanh %307 : vector<8x128xf32>
    %309 = arith.mulf %304, %308 : vector<8x128xf32>
    %c8_i32_117 = arith.constant 8 : i32
    %c0_118 = arith.constant 0 : index
    %c0_119 = arith.constant 0 : index
    %310 = vector.load %arg8[%c0_118, %c0_119] : memref<8x128xf32, #tpu.memory_space<vmem>>, vector<8x128xf32>
    tpu.vector_store %arg8[%c0_118, %c0_119], %307 {strides = array<i32>} : memref<8x128xf32, #tpu.memory_space<vmem>>, vector<8x128xf32>,
    %c0_120 = arith.constant 0 : index
    %c0_121 = arith.constant 0 : index
    %311 = vector.load %arg6[%c0_120, %c0_121] : memref<1x516xf32, #tpu.memory_space<vmem>>, vector<1x516xf32>
    %312 = vector.shape_cast %311 : vector<1x516xf32> to vector<1x516xf32>
    %313 = vector.broadcast %312 : vector<1x516xf32> to vector<8x516xf32>
    %c0_i32_122 = arith.constant 0 : i32
    %c7_i32_123 = arith.constant 7 : i32
    %314 = arith.subi %c7_i32_123, %c0_i32_122 : i32
    %315 = arith.truncf %309 : vector<8x128xf32> to vector<8x128xbf16>
    %c0_124 = arith.constant 0 : index
    %c0_125 = arith.constant 0 : index
    %316 = vector.load %arg5[%c0_124, %c0_125] : memref<128x516xbf16, #tpu.memory_space<vmem>>, vector<128x516xbf16>
    %cst_126 = arith.constant dense<0.000000e+00> : vector<8x516xf32>
    %317 = tpu.matmul %315, %316, %cst_126 {dimension_numbers = #tpu.dot_dimension_numbers<[1], [0], [0], [1], [0, 0, 1, 1], [], []>} : vector<8x128xbf16>, vector<128x516xbf16>, vector<8x516xf32> -> vector<8x516xf32>
    %318 = arith.addf %317, %313 : vector<8x516xf32>
    %319 = vector.extract_strided_slice %318 {offsets = [0, 512], sizes = [8, 4], strides = [1, 1]} : vector<8x516xf32> to vector<8x4xf32>
    %320 = arith.index_cast %314 : i32 to index
    %c0_127 = arith.constant 0 : index
    %c0_128 = arith.constant 0 : index
    %321 = vector.load %arg7[%320, %c0_127, %c0_128] : memref<8x8x4xf32, #tpu.memory_space<vmem>>, vector<1x8x4xf32>
    %322 = vector.shape_cast %321 : vector<1x8x4xf32> to vector<8x4xf32>
    %323 = vector.shape_cast %319 : vector<8x4xf32> to vector<1x8x4xf32>
    tpu.vector_store %arg7[%320, %c0_127, %c0_128], %323 {strides = array<i32>} : memref<8x8x4xf32, #tpu.memory_space<vmem>>, vector<1x8x4xf32>,
    %324 = vector.extract_strided_slice %318 {offsets = [0, 0], sizes = [8, 512], strides = [1, 1]} : vector<8x516xf32> to vector<8x512xf32>
    %325 = vector.extract_strided_slice %324 {offsets = [0, 0], sizes = [8, 128], strides = [1, 1]} : vector<8x512xf32> to vector<8x128xf32>
    %cst_129 = arith.constant 5.000000e-01 : f32
    %326 = vector.broadcast %cst_129 : f32 to vector<8x128xf32>
    %327 = arith.mulf %326, %325 : vector<8x128xf32>
    %328 = math.tanh %327 : vector<8x128xf32>
    %cst_130 = arith.constant 5.000000e-01 : f32
    %329 = vector.broadcast %cst_130 : f32 to vector<8x128xf32>
    %330 = arith.mulf %329, %328 : vector<8x128xf32>
    %cst_131 = arith.constant 5.000000e-01 : f32
    %331 = vector.broadcast %cst_131 : f32 to vector<8x128xf32>
    %332 = arith.addf %330, %331 : vector<8x128xf32>
    %333 = vector.extract_strided_slice %324 {offsets = [0, 128], sizes = [8, 128], strides = [1, 1]} : vector<8x512xf32> to vector<8x128xf32>
    %cst_132 = arith.constant 5.000000e-01 : f32
    %334 = vector.broadcast %cst_132 : f32 to vector<8x128xf32>
    %335 = arith.mulf %334, %333 : vector<8x128xf32>
    %336 = math.tanh %335 : vector<8x128xf32>
    %cst_133 = arith.constant 5.000000e-01 : f32
    %337 = vector.broadcast %cst_133 : f32 to vector<8x128xf32>
    %338 = arith.mulf %337, %336 : vector<8x128xf32>
    %cst_134 = arith.constant 5.000000e-01 : f32
    %339 = vector.broadcast %cst_134 : f32 to vector<8x128xf32>
    %340 = arith.addf %338, %339 : vector<8x128xf32>
    %341 = vector.extract_strided_slice %324 {offsets = [0, 256], sizes = [8, 128], strides = [1, 1]} : vector<8x512xf32> to vector<8x128xf32>
    %342 = math.tanh %341 : vector<8x128xf32>
    %343 = vector.extract_strided_slice %324 {offsets = [0, 384], sizes = [8, 128], strides = [1, 1]} : vector<8x512xf32> to vector<8x128xf32>
    %cst_135 = arith.constant 5.000000e-01 : f32
    %344 = vector.broadcast %cst_135 : f32 to vector<8x128xf32>
    %345 = arith.mulf %344, %343 : vector<8x128xf32>
    %346 = math.tanh %345 : vector<8x128xf32>
    %cst_136 = arith.constant 5.000000e-01 : f32
    %347 = vector.broadcast %cst_136 : f32 to vector<8x128xf32>
    %348 = arith.mulf %347, %346 : vector<8x128xf32>
    %cst_137 = arith.constant 5.000000e-01 : f32
    %349 = vector.broadcast %cst_137 : f32 to vector<8x128xf32>
    %350 = arith.addf %348, %349 : vector<8x128xf32>
    %351 = arith.mulf %340, %307 : vector<8x128xf32>
    %352 = arith.mulf %332, %342 : vector<8x128xf32>
    %353 = arith.addf %351, %352 : vector<8x128xf32>
    %354 = math.tanh %353 : vector<8x128xf32>
    %355 = arith.mulf %350, %354 : vector<8x128xf32>
    %c1_i32_138 = arith.constant 1 : i32
    %c7_i32_139 = arith.constant 7 : i32
    %356 = arith.subi %c7_i32_139, %c1_i32_138 : i32
    %357 = arith.truncf %355 : vector<8x128xf32> to vector<8x128xbf16>
    %c0_140 = arith.constant 0 : index
    %c0_141 = arith.constant 0 : index
    %358 = vector.load %arg5[%c0_140, %c0_141] : memref<128x516xbf16, #tpu.memory_space<vmem>>, vector<128x516xbf16>
    %cst_142 = arith.constant dense<0.000000e+00> : vector<8x516xf32>
    %359 = tpu.matmul %357, %358, %cst_142 {dimension_numbers = #tpu.dot_dimension_numbers<[1], [0], [0], [1], [0, 0, 1, 1], [], []>} : vector<8x128xbf16>, vector<128x516xbf16>, vector<8x516xf32> -> vector<8x516xf32>
    %360 = arith.addf %359, %313 : vector<8x516xf32>
    %361 = vector.extract_strided_slice %360 {offsets = [0, 512], sizes = [8, 4], strides = [1, 1]} : vector<8x516xf32> to vector<8x4xf32>
    %362 = arith.index_cast %356 : i32 to index
    %c0_143 = arith.constant 0 : index
    %c0_144 = arith.constant 0 : index
    %363 = vector.load %arg7[%362, %c0_143, %c0_144] : memref<8x8x4xf32, #tpu.memory_space<vmem>>, vector<1x8x4xf32>
    %364 = vector.shape_cast %363 : vector<1x8x4xf32> to vector<8x4xf32>
    %365 = vector.shape_cast %361 : vector<8x4xf32> to vector<1x8x4xf32>
    tpu.vector_store %arg7[%362, %c0_143, %c0_144], %365 {strides = array<i32>} : memref<8x8x4xf32, #tpu.memory_space<vmem>>, vector<1x8x4xf32>,
    %366 = vector.extract_strided_slice %360 {offsets = [0, 0], sizes = [8, 512], strides = [1, 1]} : vector<8x516xf32> to vector<8x512xf32>
    %367 = vector.extract_strided_slice %366 {offsets = [0, 0], sizes = [8, 128], strides = [1, 1]} : vector<8x512xf32> to vector<8x128xf32>
    %cst_145 = arith.constant 5.000000e-01 : f32
    %368 = vector.broadcast %cst_145 : f32 to vector<8x128xf32>
    %369 = arith.mulf %368, %367 : vector<8x128xf32>
    %370 = math.tanh %369 : vector<8x128xf32>
    %cst_146 = arith.constant 5.000000e-01 : f32
    %371 = vector.broadcast %cst_146 : f32 to vector<8x128xf32>
    %372 = arith.mulf %371, %370 : vector<8x128xf32>
    %cst_147 = arith.constant 5.000000e-01 : f32
    %373 = vector.broadcast %cst_147 : f32 to vector<8x128xf32>
    %374 = arith.addf %372, %373 : vector<8x128xf32>
    %375 = vector.extract_strided_slice %366 {offsets = [0, 128], sizes = [8, 128], strides = [1, 1]} : vector<8x512xf32> to vector<8x128xf32>
    %cst_148 = arith.constant 5.000000e-01 : f32
    %376 = vector.broadcast %cst_148 : f32 to vector<8x128xf32>
    %377 = arith.mulf %376, %375 : vector<8x128xf32>
    %378 = math.tanh %377 : vector<8x128xf32>
    %cst_149 = arith.constant 5.000000e-01 : f32
    %379 = vector.broadcast %cst_149 : f32 to vector<8x128xf32>
    %380 = arith.mulf %379, %378 : vector<8x128xf32>
    %cst_150 = arith.constant 5.000000e-01 : f32
    %381 = vector.broadcast %cst_150 : f32 to vector<8x128xf32>
    %382 = arith.addf %380, %381 : vector<8x128xf32>
    %383 = vector.extract_strided_slice %366 {offsets = [0, 256], sizes = [8, 128], strides = [1, 1]} : vector<8x512xf32> to vector<8x128xf32>
    %384 = math.tanh %383 : vector<8x128xf32>
    %385 = vector.extract_strided_slice %366 {offsets = [0, 384], sizes = [8, 128], strides = [1, 1]} : vector<8x512xf32> to vector<8x128xf32>
    %cst_151 = arith.constant 5.000000e-01 : f32
    %386 = vector.broadcast %cst_151 : f32 to vector<8x128xf32>
    %387 = arith.mulf %386, %385 : vector<8x128xf32>
    %388 = math.tanh %387 : vector<8x128xf32>
    %cst_152 = arith.constant 5.000000e-01 : f32
    %389 = vector.broadcast %cst_152 : f32 to vector<8x128xf32>
    %390 = arith.mulf %389, %388 : vector<8x128xf32>
    %cst_153 = arith.constant 5.000000e-01 : f32
    %391 = vector.broadcast %cst_153 : f32 to vector<8x128xf32>
    %392 = arith.addf %390, %391 : vector<8x128xf32>
    %393 = arith.mulf %382, %353 : vector<8x128xf32>
    %394 = arith.mulf %374, %384 : vector<8x128xf32>
    %395 = arith.addf %393, %394 : vector<8x128xf32>
    %396 = math.tanh %395 : vector<8x128xf32>
    %397 = arith.mulf %392, %396 : vector<8x128xf32>
    %c2_i32_154 = arith.constant 2 : i32
    %c7_i32_155 = arith.constant 7 : i32
    %398 = arith.subi %c7_i32_155, %c2_i32_154 : i32
    %399 = arith.truncf %397 : vector<8x128xf32> to vector<8x128xbf16>
    %c0_156 = arith.constant 0 : index
    %c0_157 = arith.constant 0 : index
    %400 = vector.load %arg5[%c0_156, %c0_157] : memref<128x516xbf16, #tpu.memory_space<vmem>>, vector<128x516xbf16>
    %cst_158 = arith.constant dense<0.000000e+00> : vector<8x516xf32>
    %401 = tpu.matmul %399, %400, %cst_158 {dimension_numbers = #tpu.dot_dimension_numbers<[1], [0], [0], [1], [0, 0, 1, 1], [], []>} : vector<8x128xbf16>, vector<128x516xbf16>, vector<8x516xf32> -> vector<8x516xf32>
    %402 = arith.addf %401, %313 : vector<8x516xf32>
    %403 = vector.extract_strided_slice %402 {offsets = [0, 512], sizes = [8, 4], strides = [1, 1]} : vector<8x516xf32> to vector<8x4xf32>
    %404 = arith.index_cast %398 : i32 to index
    %c0_159 = arith.constant 0 : index
    %c0_160 = arith.constant 0 : index
    %405 = vector.load %arg7[%404, %c0_159, %c0_160] : memref<8x8x4xf32, #tpu.memory_space<vmem>>, vector<1x8x4xf32>
    %406 = vector.shape_cast %405 : vector<1x8x4xf32> to vector<8x4xf32>
    %407 = vector.shape_cast %403 : vector<8x4xf32> to vector<1x8x4xf32>
    tpu.vector_store %arg7[%404, %c0_159, %c0_160], %407 {strides = array<i32>} : memref<8x8x4xf32, #tpu.memory_space<vmem>>, vector<1x8x4xf32>,
    %408 = vector.extract_strided_slice %402 {offsets = [0, 0], sizes = [8, 512], strides = [1, 1]} : vector<8x516xf32> to vector<8x512xf32>
    %409 = vector.extract_strided_slice %408 {offsets = [0, 0], sizes = [8, 128], strides = [1, 1]} : vector<8x512xf32> to vector<8x128xf32>
    %cst_161 = arith.constant 5.000000e-01 : f32
    %410 = vector.broadcast %cst_161 : f32 to vector<8x128xf32>
    %411 = arith.mulf %410, %409 : vector<8x128xf32>
    %412 = math.tanh %411 : vector<8x128xf32>
    %cst_162 = arith.constant 5.000000e-01 : f32
    %413 = vector.broadcast %cst_162 : f32 to vector<8x128xf32>
    %414 = arith.mulf %413, %412 : vector<8x128xf32>
    %cst_163 = arith.constant 5.000000e-01 : f32
    %415 = vector.broadcast %cst_163 : f32 to vector<8x128xf32>
    %416 = arith.addf %414, %415 : vector<8x128xf32>
    %417 = vector.extract_strided_slice %408 {offsets = [0, 128], sizes = [8, 128], strides = [1, 1]} : vector<8x512xf32> to vector<8x128xf32>
    %cst_164 = arith.constant 5.000000e-01 : f32
    %418 = vector.broadcast %cst_164 : f32 to vector<8x128xf32>
    %419 = arith.mulf %418, %417 : vector<8x128xf32>
    %420 = math.tanh %419 : vector<8x128xf32>
    %cst_165 = arith.constant 5.000000e-01 : f32
    %421 = vector.broadcast %cst_165 : f32 to vector<8x128xf32>
    %422 = arith.mulf %421, %420 : vector<8x128xf32>
    %cst_166 = arith.constant 5.000000e-01 : f32
    %423 = vector.broadcast %cst_166 : f32 to vector<8x128xf32>
    %424 = arith.addf %422, %423 : vector<8x128xf32>
    %425 = vector.extract_strided_slice %408 {offsets = [0, 256], sizes = [8, 128], strides = [1, 1]} : vector<8x512xf32> to vector<8x128xf32>
    %426 = math.tanh %425 : vector<8x128xf32>
    %427 = vector.extract_strided_slice %408 {offsets = [0, 384], sizes = [8, 128], strides = [1, 1]} : vector<8x512xf32> to vector<8x128xf32>
    %cst_167 = arith.constant 5.000000e-01 : f32
    %428 = vector.broadcast %cst_167 : f32 to vector<8x128xf32>
    %429 = arith.mulf %428, %427 : vector<8x128xf32>
    %430 = math.tanh %429 : vector<8x128xf32>
    %cst_168 = arith.constant 5.000000e-01 : f32
    %431 = vector.broadcast %cst_168 : f32 to vector<8x128xf32>
    %432 = arith.mulf %431, %430 : vector<8x128xf32>
    %cst_169 = arith.constant 5.000000e-01 : f32
    %433 = vector.broadcast %cst_169 : f32 to vector<8x128xf32>
    %434 = arith.addf %432, %433 : vector<8x128xf32>
    %435 = arith.mulf %424, %395 : vector<8x128xf32>
    %436 = arith.mulf %416, %426 : vector<8x128xf32>
    %437 = arith.addf %435, %436 : vector<8x128xf32>
    %438 = math.tanh %437 : vector<8x128xf32>
    %439 = arith.mulf %434, %438 : vector<8x128xf32>
    %c3_i32_170 = arith.constant 3 : i32
    %c7_i32_171 = arith.constant 7 : i32
    %440 = arith.subi %c7_i32_171, %c3_i32_170 : i32
    %441 = arith.truncf %439 : vector<8x128xf32> to vector<8x128xbf16>
    %c0_172 = arith.constant 0 : index
    %c0_173 = arith.constant 0 : index
    %442 = vector.load %arg5[%c0_172, %c0_173] : memref<128x516xbf16, #tpu.memory_space<vmem>>, vector<128x516xbf16>
    %cst_174 = arith.constant dense<0.000000e+00> : vector<8x516xf32>
    %443 = tpu.matmul %441, %442, %cst_174 {dimension_numbers = #tpu.dot_dimension_numbers<[1], [0], [0], [1], [0, 0, 1, 1], [], []>} : vector<8x128xbf16>, vector<128x516xbf16>, vector<8x516xf32> -> vector<8x516xf32>
    %444 = arith.addf %443, %313 : vector<8x516xf32>
    %445 = vector.extract_strided_slice %444 {offsets = [0, 512], sizes = [8, 4], strides = [1, 1]} : vector<8x516xf32> to vector<8x4xf32>
    %446 = arith.index_cast %440 : i32 to index
    %c0_175 = arith.constant 0 : index
    %c0_176 = arith.constant 0 : index
    %447 = vector.load %arg7[%446, %c0_175, %c0_176] : memref<8x8x4xf32, #tpu.memory_space<vmem>>, vector<1x8x4xf32>
    %448 = vector.shape_cast %447 : vector<1x8x4xf32> to vector<8x4xf32>
    %449 = vector.shape_cast %445 : vector<8x4xf32> to vector<1x8x4xf32>
    tpu.vector_store %arg7[%446, %c0_175, %c0_176], %449 {strides = array<i32>} : memref<8x8x4xf32, #tpu.memory_space<vmem>>, vector<1x8x4xf32>,
    %450 = vector.extract_strided_slice %444 {offsets = [0, 0], sizes = [8, 512], strides = [1, 1]} : vector<8x516xf32> to vector<8x512xf32>
    %451 = vector.extract_strided_slice %450 {offsets = [0, 0], sizes = [8, 128], strides = [1, 1]} : vector<8x512xf32> to vector<8x128xf32>
    %cst_177 = arith.constant 5.000000e-01 : f32
    %452 = vector.broadcast %cst_177 : f32 to vector<8x128xf32>
    %453 = arith.mulf %452, %451 : vector<8x128xf32>
    %454 = math.tanh %453 : vector<8x128xf32>
    %cst_178 = arith.constant 5.000000e-01 : f32
    %455 = vector.broadcast %cst_178 : f32 to vector<8x128xf32>
    %456 = arith.mulf %455, %454 : vector<8x128xf32>
    %cst_179 = arith.constant 5.000000e-01 : f32
    %457 = vector.broadcast %cst_179 : f32 to vector<8x128xf32>
    %458 = arith.addf %456, %457 : vector<8x128xf32>
    %459 = vector.extract_strided_slice %450 {offsets = [0, 128], sizes = [8, 128], strides = [1, 1]} : vector<8x512xf32> to vector<8x128xf32>
    %cst_180 = arith.constant 5.000000e-01 : f32
    %460 = vector.broadcast %cst_180 : f32 to vector<8x128xf32>
    %461 = arith.mulf %460, %459 : vector<8x128xf32>
    %462 = math.tanh %461 : vector<8x128xf32>
    %cst_181 = arith.constant 5.000000e-01 : f32
    %463 = vector.broadcast %cst_181 : f32 to vector<8x128xf32>
    %464 = arith.mulf %463, %462 : vector<8x128xf32>
    %cst_182 = arith.constant 5.000000e-01 : f32
    %465 = vector.broadcast %cst_182 : f32 to vector<8x128xf32>
    %466 = arith.addf %464, %465 : vector<8x128xf32>
    %467 = vector.extract_strided_slice %450 {offsets = [0, 256], sizes = [8, 128], strides = [1, 1]} : vector<8x512xf32> to vector<8x128xf32>
    %468 = math.tanh %467 : vector<8x128xf32>
    %469 = vector.extract_strided_slice %450 {offsets = [0, 384], sizes = [8, 128], strides = [1, 1]} : vector<8x512xf32> to vector<8x128xf32>
    %cst_183 = arith.constant 5.000000e-01 : f32
    %470 = vector.broadcast %cst_183 : f32 to vector<8x128xf32>
    %471 = arith.mulf %470, %469 : vector<8x128xf32>
    %472 = math.tanh %471 : vector<8x128xf32>
    %cst_184 = arith.constant 5.000000e-01 : f32
    %473 = vector.broadcast %cst_184 : f32 to vector<8x128xf32>
    %474 = arith.mulf %473, %472 : vector<8x128xf32>
    %cst_185 = arith.constant 5.000000e-01 : f32
    %475 = vector.broadcast %cst_185 : f32 to vector<8x128xf32>
    %476 = arith.addf %474, %475 : vector<8x128xf32>
    %477 = arith.mulf %466, %437 : vector<8x128xf32>
    %478 = arith.mulf %458, %468 : vector<8x128xf32>
    %479 = arith.addf %477, %478 : vector<8x128xf32>
    %480 = math.tanh %479 : vector<8x128xf32>
    %481 = arith.mulf %476, %480 : vector<8x128xf32>
    %c4_i32_186 = arith.constant 4 : i32
    %c7_i32_187 = arith.constant 7 : i32
    %482 = arith.subi %c7_i32_187, %c4_i32_186 : i32
    %483 = arith.truncf %481 : vector<8x128xf32> to vector<8x128xbf16>
    %c0_188 = arith.constant 0 : index
    %c0_189 = arith.constant 0 : index
    %484 = vector.load %arg5[%c0_188, %c0_189] : memref<128x516xbf16, #tpu.memory_space<vmem>>, vector<128x516xbf16>
    %cst_190 = arith.constant dense<0.000000e+00> : vector<8x516xf32>
    %485 = tpu.matmul %483, %484, %cst_190 {dimension_numbers = #tpu.dot_dimension_numbers<[1], [0], [0], [1], [0, 0, 1, 1], [], []>} : vector<8x128xbf16>, vector<128x516xbf16>, vector<8x516xf32> -> vector<8x516xf32>
    %486 = arith.addf %485, %313 : vector<8x516xf32>
    %487 = vector.extract_strided_slice %486 {offsets = [0, 512], sizes = [8, 4], strides = [1, 1]} : vector<8x516xf32> to vector<8x4xf32>
    %488 = arith.index_cast %482 : i32 to index
    %c0_191 = arith.constant 0 : index
    %c0_192 = arith.constant 0 : index
    %489 = vector.load %arg7[%488, %c0_191, %c0_192] : memref<8x8x4xf32, #tpu.memory_space<vmem>>, vector<1x8x4xf32>
    %490 = vector.shape_cast %489 : vector<1x8x4xf32> to vector<8x4xf32>
    %491 = vector.shape_cast %487 : vector<8x4xf32> to vector<1x8x4xf32>
    tpu.vector_store %arg7[%488, %c0_191, %c0_192], %491 {strides = array<i32>} : memref<8x8x4xf32, #tpu.memory_space<vmem>>, vector<1x8x4xf32>,
    %492 = vector.extract_strided_slice %486 {offsets = [0, 0], sizes = [8, 512], strides = [1, 1]} : vector<8x516xf32> to vector<8x512xf32>
    %493 = vector.extract_strided_slice %492 {offsets = [0, 0], sizes = [8, 128], strides = [1, 1]} : vector<8x512xf32> to vector<8x128xf32>
    %cst_193 = arith.constant 5.000000e-01 : f32
    %494 = vector.broadcast %cst_193 : f32 to vector<8x128xf32>
    %495 = arith.mulf %494, %493 : vector<8x128xf32>
    %496 = math.tanh %495 : vector<8x128xf32>
    %cst_194 = arith.constant 5.000000e-01 : f32
    %497 = vector.broadcast %cst_194 : f32 to vector<8x128xf32>
    %498 = arith.mulf %497, %496 : vector<8x128xf32>
    %cst_195 = arith.constant 5.000000e-01 : f32
    %499 = vector.broadcast %cst_195 : f32 to vector<8x128xf32>
    %500 = arith.addf %498, %499 : vector<8x128xf32>
    %501 = vector.extract_strided_slice %492 {offsets = [0, 128], sizes = [8, 128], strides = [1, 1]} : vector<8x512xf32> to vector<8x128xf32>
    %cst_196 = arith.constant 5.000000e-01 : f32
    %502 = vector.broadcast %cst_196 : f32 to vector<8x128xf32>
    %503 = arith.mulf %502, %501 : vector<8x128xf32>
    %504 = math.tanh %503 : vector<8x128xf32>
    %cst_197 = arith.constant 5.000000e-01 : f32
    %505 = vector.broadcast %cst_197 : f32 to vector<8x128xf32>
    %506 = arith.mulf %505, %504 : vector<8x128xf32>
    %cst_198 = arith.constant 5.000000e-01 : f32
    %507 = vector.broadcast %cst_198 : f32 to vector<8x128xf32>
    %508 = arith.addf %506, %507 : vector<8x128xf32>
    %509 = vector.extract_strided_slice %492 {offsets = [0, 256], sizes = [8, 128], strides = [1, 1]} : vector<8x512xf32> to vector<8x128xf32>
    %510 = math.tanh %509 : vector<8x128xf32>
    %511 = vector.extract_strided_slice %492 {offsets = [0, 384], sizes = [8, 128], strides = [1, 1]} : vector<8x512xf32> to vector<8x128xf32>
    %cst_199 = arith.constant 5.000000e-01 : f32
    %512 = vector.broadcast %cst_199 : f32 to vector<8x128xf32>
    %513 = arith.mulf %512, %511 : vector<8x128xf32>
    %514 = math.tanh %513 : vector<8x128xf32>
    %cst_200 = arith.constant 5.000000e-01 : f32
    %515 = vector.broadcast %cst_200 : f32 to vector<8x128xf32>
    %516 = arith.mulf %515, %514 : vector<8x128xf32>
    %cst_201 = arith.constant 5.000000e-01 : f32
    %517 = vector.broadcast %cst_201 : f32 to vector<8x128xf32>
    %518 = arith.addf %516, %517 : vector<8x128xf32>
    %519 = arith.mulf %508, %479 : vector<8x128xf32>
    %520 = arith.mulf %500, %510 : vector<8x128xf32>
    %521 = arith.addf %519, %520 : vector<8x128xf32>
    %522 = math.tanh %521 : vector<8x128xf32>
    %523 = arith.mulf %518, %522 : vector<8x128xf32>
    %c5_i32_202 = arith.constant 5 : i32
    %c7_i32_203 = arith.constant 7 : i32
    %524 = arith.subi %c7_i32_203, %c5_i32_202 : i32
    %525 = arith.truncf %523 : vector<8x128xf32> to vector<8x128xbf16>
    %c0_204 = arith.constant 0 : index
    %c0_205 = arith.constant 0 : index
    %526 = vector.load %arg5[%c0_204, %c0_205] : memref<128x516xbf16, #tpu.memory_space<vmem>>, vector<128x516xbf16>
    %cst_206 = arith.constant dense<0.000000e+00> : vector<8x516xf32>
    %527 = tpu.matmul %525, %526, %cst_206 {dimension_numbers = #tpu.dot_dimension_numbers<[1], [0], [0], [1], [0, 0, 1, 1], [], []>} : vector<8x128xbf16>, vector<128x516xbf16>, vector<8x516xf32> -> vector<8x516xf32>
    %528 = arith.addf %527, %313 : vector<8x516xf32>
    %529 = vector.extract_strided_slice %528 {offsets = [0, 512], sizes = [8, 4], strides = [1, 1]} : vector<8x516xf32> to vector<8x4xf32>
    %530 = arith.index_cast %524 : i32 to index
    %c0_207 = arith.constant 0 : index
    %c0_208 = arith.constant 0 : index
    %531 = vector.load %arg7[%530, %c0_207, %c0_208] : memref<8x8x4xf32, #tpu.memory_space<vmem>>, vector<1x8x4xf32>
    %532 = vector.shape_cast %531 : vector<1x8x4xf32> to vector<8x4xf32>
    %533 = vector.shape_cast %529 : vector<8x4xf32> to vector<1x8x4xf32>
    tpu.vector_store %arg7[%530, %c0_207, %c0_208], %533 {strides = array<i32>} : memref<8x8x4xf32, #tpu.memory_space<vmem>>, vector<1x8x4xf32>,
    %534 = vector.extract_strided_slice %528 {offsets = [0, 0], sizes = [8, 512], strides = [1, 1]} : vector<8x516xf32> to vector<8x512xf32>
    %535 = vector.extract_strided_slice %534 {offsets = [0, 0], sizes = [8, 128], strides = [1, 1]} : vector<8x512xf32> to vector<8x128xf32>
    %cst_209 = arith.constant 5.000000e-01 : f32
    %536 = vector.broadcast %cst_209 : f32 to vector<8x128xf32>
    %537 = arith.mulf %536, %535 : vector<8x128xf32>
    %538 = math.tanh %537 : vector<8x128xf32>
    %cst_210 = arith.constant 5.000000e-01 : f32
    %539 = vector.broadcast %cst_210 : f32 to vector<8x128xf32>
    %540 = arith.mulf %539, %538 : vector<8x128xf32>
    %cst_211 = arith.constant 5.000000e-01 : f32
    %541 = vector.broadcast %cst_211 : f32 to vector<8x128xf32>
    %542 = arith.addf %540, %541 : vector<8x128xf32>
    %543 = vector.extract_strided_slice %534 {offsets = [0, 128], sizes = [8, 128], strides = [1, 1]} : vector<8x512xf32> to vector<8x128xf32>
    %cst_212 = arith.constant 5.000000e-01 : f32
    %544 = vector.broadcast %cst_212 : f32 to vector<8x128xf32>
    %545 = arith.mulf %544, %543 : vector<8x128xf32>
    %546 = math.tanh %545 : vector<8x128xf32>
    %cst_213 = arith.constant 5.000000e-01 : f32
    %547 = vector.broadcast %cst_213 : f32 to vector<8x128xf32>
    %548 = arith.mulf %547, %546 : vector<8x128xf32>
    %cst_214 = arith.constant 5.000000e-01 : f32
    %549 = vector.broadcast %cst_214 : f32 to vector<8x128xf32>
    %550 = arith.addf %548, %549 : vector<8x128xf32>
    %551 = vector.extract_strided_slice %534 {offsets = [0, 256], sizes = [8, 128], strides = [1, 1]} : vector<8x512xf32> to vector<8x128xf32>
    %552 = math.tanh %551 : vector<8x128xf32>
    %553 = vector.extract_strided_slice %534 {offsets = [0, 384], sizes = [8, 128], strides = [1, 1]} : vector<8x512xf32> to vector<8x128xf32>
    %cst_215 = arith.constant 5.000000e-01 : f32
    %554 = vector.broadcast %cst_215 : f32 to vector<8x128xf32>
    %555 = arith.mulf %554, %553 : vector<8x128xf32>
    %556 = math.tanh %555 : vector<8x128xf32>
    %cst_216 = arith.constant 5.000000e-01 : f32
    %557 = vector.broadcast %cst_216 : f32 to vector<8x128xf32>
    %558 = arith.mulf %557, %556 : vector<8x128xf32>
    %cst_217 = arith.constant 5.000000e-01 : f32
    %559 = vector.broadcast %cst_217 : f32 to vector<8x128xf32>
    %560 = arith.addf %558, %559 : vector<8x128xf32>
    %561 = arith.mulf %550, %521 : vector<8x128xf32>
    %562 = arith.mulf %542, %552 : vector<8x128xf32>
    %563 = arith.addf %561, %562 : vector<8x128xf32>
    %564 = math.tanh %563 : vector<8x128xf32>
    %565 = arith.mulf %560, %564 : vector<8x128xf32>
    %c6_i32_218 = arith.constant 6 : i32
    %c7_i32_219 = arith.constant 7 : i32
    %566 = arith.subi %c7_i32_219, %c6_i32_218 : i32
    %567 = arith.truncf %565 : vector<8x128xf32> to vector<8x128xbf16>
    %c0_220 = arith.constant 0 : index
    %c0_221 = arith.constant 0 : index
    %568 = vector.load %arg5[%c0_220, %c0_221] : memref<128x516xbf16, #tpu.memory_space<vmem>>, vector<128x516xbf16>
    %cst_222 = arith.constant dense<0.000000e+00> : vector<8x516xf32>
    %569 = tpu.matmul %567, %568, %cst_222 {dimension_numbers = #tpu.dot_dimension_numbers<[1], [0], [0], [1], [0, 0, 1, 1], [], []>} : vector<8x128xbf16>, vector<128x516xbf16>, vector<8x516xf32> -> vector<8x516xf32>
    %570 = arith.addf %569, %313 : vector<8x516xf32>
    %571 = vector.extract_strided_slice %570 {offsets = [0, 512], sizes = [8, 4], strides = [1, 1]} : vector<8x516xf32> to vector<8x4xf32>
    %572 = arith.index_cast %566 : i32 to index
    %c0_223 = arith.constant 0 : index
    %c0_224 = arith.constant 0 : index
    %573 = vector.load %arg7[%572, %c0_223, %c0_224] : memref<8x8x4xf32, #tpu.memory_space<vmem>>, vector<1x8x4xf32>
    %574 = vector.shape_cast %573 : vector<1x8x4xf32> to vector<8x4xf32>
    %575 = vector.shape_cast %571 : vector<8x4xf32> to vector<1x8x4xf32>
    tpu.vector_store %arg7[%572, %c0_223, %c0_224], %575 {strides = array<i32>} : memref<8x8x4xf32, #tpu.memory_space<vmem>>, vector<1x8x4xf32>,
    %576 = vector.extract_strided_slice %570 {offsets = [0, 0], sizes = [8, 512], strides = [1, 1]} : vector<8x516xf32> to vector<8x512xf32>
    %577 = vector.extract_strided_slice %576 {offsets = [0, 0], sizes = [8, 128], strides = [1, 1]} : vector<8x512xf32> to vector<8x128xf32>
    %cst_225 = arith.constant 5.000000e-01 : f32
    %578 = vector.broadcast %cst_225 : f32 to vector<8x128xf32>
    %579 = arith.mulf %578, %577 : vector<8x128xf32>
    %580 = math.tanh %579 : vector<8x128xf32>
    %cst_226 = arith.constant 5.000000e-01 : f32
    %581 = vector.broadcast %cst_226 : f32 to vector<8x128xf32>
    %582 = arith.mulf %581, %580 : vector<8x128xf32>
    %cst_227 = arith.constant 5.000000e-01 : f32
    %583 = vector.broadcast %cst_227 : f32 to vector<8x128xf32>
    %584 = arith.addf %582, %583 : vector<8x128xf32>
    %585 = vector.extract_strided_slice %576 {offsets = [0, 128], sizes = [8, 128], strides = [1, 1]} : vector<8x512xf32> to vector<8x128xf32>
    %cst_228 = arith.constant 5.000000e-01 : f32
    %586 = vector.broadcast %cst_228 : f32 to vector<8x128xf32>
    %587 = arith.mulf %586, %585 : vector<8x128xf32>
    %588 = math.tanh %587 : vector<8x128xf32>
    %cst_229 = arith.constant 5.000000e-01 : f32
    %589 = vector.broadcast %cst_229 : f32 to vector<8x128xf32>
    %590 = arith.mulf %589, %588 : vector<8x128xf32>
    %cst_230 = arith.constant 5.000000e-01 : f32
    %591 = vector.broadcast %cst_230 : f32 to vector<8x128xf32>
    %592 = arith.addf %590, %591 : vector<8x128xf32>
    %593 = vector.extract_strided_slice %576 {offsets = [0, 256], sizes = [8, 128], strides = [1, 1]} : vector<8x512xf32> to vector<8x128xf32>
    %594 = math.tanh %593 : vector<8x128xf32>
    %595 = vector.extract_strided_slice %576 {offsets = [0, 384], sizes = [8, 128], strides = [1, 1]} : vector<8x512xf32> to vector<8x128xf32>
    %cst_231 = arith.constant 5.000000e-01 : f32
    %596 = vector.broadcast %cst_231 : f32 to vector<8x128xf32>
    %597 = arith.mulf %596, %595 : vector<8x128xf32>
    %598 = math.tanh %597 : vector<8x128xf32>
    %cst_232 = arith.constant 5.000000e-01 : f32
    %599 = vector.broadcast %cst_232 : f32 to vector<8x128xf32>
    %600 = arith.mulf %599, %598 : vector<8x128xf32>
    %cst_233 = arith.constant 5.000000e-01 : f32
    %601 = vector.broadcast %cst_233 : f32 to vector<8x128xf32>
    %602 = arith.addf %600, %601 : vector<8x128xf32>
    %603 = arith.mulf %592, %563 : vector<8x128xf32>
    %604 = arith.mulf %584, %594 : vector<8x128xf32>
    %605 = arith.addf %603, %604 : vector<8x128xf32>
    %606 = math.tanh %605 : vector<8x128xf32>
    %607 = arith.mulf %602, %606 : vector<8x128xf32>
    %c7_i32_234 = arith.constant 7 : i32
    %c7_i32_235 = arith.constant 7 : i32
    %608 = arith.subi %c7_i32_235, %c7_i32_234 : i32
    %609 = arith.truncf %607 : vector<8x128xf32> to vector<8x128xbf16>
    %c0_236 = arith.constant 0 : index
    %c0_237 = arith.constant 0 : index
    %610 = vector.load %arg5[%c0_236, %c0_237] : memref<128x516xbf16, #tpu.memory_space<vmem>>, vector<128x516xbf16>
    %cst_238 = arith.constant dense<0.000000e+00> : vector<8x516xf32>
    %611 = tpu.matmul %609, %610, %cst_238 {dimension_numbers = #tpu.dot_dimension_numbers<[1], [0], [0], [1], [0, 0, 1, 1], [], []>} : vector<8x128xbf16>, vector<128x516xbf16>, vector<8x516xf32> -> vector<8x516xf32>
    %612 = arith.addf %611, %313 : vector<8x516xf32>
    %613 = vector.extract_strided_slice %612 {offsets = [0, 512], sizes = [8, 4], strides = [1, 1]} : vector<8x516xf32> to vector<8x4xf32>
    %614 = arith.index_cast %608 : i32 to index
    %c0_239 = arith.constant 0 : index
    %c0_240 = arith.constant 0 : index
    %615 = vector.load %arg7[%614, %c0_239, %c0_240] : memref<8x8x4xf32, #tpu.memory_space<vmem>>, vector<1x8x4xf32>
    %616 = vector.shape_cast %615 : vector<1x8x4xf32> to vector<8x4xf32>
    %617 = vector.shape_cast %613 : vector<8x4xf32> to vector<1x8x4xf32>
    tpu.vector_store %arg7[%614, %c0_239, %c0_240], %617 {strides = array<i32>} : memref<8x8x4xf32, #tpu.memory_space<vmem>>, vector<1x8x4xf32>,
    %618 = vector.extract_strided_slice %612 {offsets = [0, 0], sizes = [8, 512], strides = [1, 1]} : vector<8x516xf32> to vector<8x512xf32>
    %619 = vector.extract_strided_slice %618 {offsets = [0, 0], sizes = [8, 128], strides = [1, 1]} : vector<8x512xf32> to vector<8x128xf32>
    %cst_241 = arith.constant 5.000000e-01 : f32
    %620 = vector.broadcast %cst_241 : f32 to vector<8x128xf32>
    %621 = arith.mulf %620, %619 : vector<8x128xf32>
    %622 = math.tanh %621 : vector<8x128xf32>
    %cst_242 = arith.constant 5.000000e-01 : f32
    %623 = vector.broadcast %cst_242 : f32 to vector<8x128xf32>
    %624 = arith.mulf %623, %622 : vector<8x128xf32>
    %cst_243 = arith.constant 5.000000e-01 : f32
    %625 = vector.broadcast %cst_243 : f32 to vector<8x128xf32>
    %626 = arith.addf %624, %625 : vector<8x128xf32>
    %627 = vector.extract_strided_slice %618 {offsets = [0, 128], sizes = [8, 128], strides = [1, 1]} : vector<8x512xf32> to vector<8x128xf32>
    %cst_244 = arith.constant 5.000000e-01 : f32
    %628 = vector.broadcast %cst_244 : f32 to vector<8x128xf32>
    %629 = arith.mulf %628, %627 : vector<8x128xf32>
    %630 = math.tanh %629 : vector<8x128xf32>
    %cst_245 = arith.constant 5.000000e-01 : f32
    %631 = vector.broadcast %cst_245 : f32 to vector<8x128xf32>
    %632 = arith.mulf %631, %630 : vector<8x128xf32>
    %cst_246 = arith.constant 5.000000e-01 : f32
    %633 = vector.broadcast %cst_246 : f32 to vector<8x128xf32>
    %634 = arith.addf %632, %633 : vector<8x128xf32>
    %635 = vector.extract_strided_slice %618 {offsets = [0, 256], sizes = [8, 128], strides = [1, 1]} : vector<8x512xf32> to vector<8x128xf32>
    %636 = math.tanh %635 : vector<8x128xf32>
    %637 = vector.extract_strided_slice %618 {offsets = [0, 384], sizes = [8, 128], strides = [1, 1]} : vector<8x512xf32> to vector<8x128xf32>
    %cst_247 = arith.constant 5.000000e-01 : f32
    %638 = vector.broadcast %cst_247 : f32 to vector<8x128xf32>
    %639 = arith.mulf %638, %637 : vector<8x128xf32>
    %640 = math.tanh %639 : vector<8x128xf32>
    %cst_248 = arith.constant 5.000000e-01 : f32
    %641 = vector.broadcast %cst_248 : f32 to vector<8x128xf32>
    %642 = arith.mulf %641, %640 : vector<8x128xf32>
    %cst_249 = arith.constant 5.000000e-01 : f32
    %643 = vector.broadcast %cst_249 : f32 to vector<8x128xf32>
    %644 = arith.addf %642, %643 : vector<8x128xf32>
    %645 = arith.mulf %634, %605 : vector<8x128xf32>
    %646 = arith.mulf %626, %636 : vector<8x128xf32>
    %647 = arith.addf %645, %646 : vector<8x128xf32>
    %648 = math.tanh %647 : vector<8x128xf32>
    %649 = arith.mulf %644, %648 : vector<8x128xf32>
    %c8_i32_250 = arith.constant 8 : i32
    return
  }
  func.func @transform_0(%arg0: i32) -> (i32, i32, i32) {
    %c0_i32 = arith.constant 0 : i32
    %c0_i32_0 = arith.constant 0 : i32
    %c0_i32_1 = arith.constant 0 : i32
    return %c0_i32, %arg0, %c0_i32_0 : i32, i32, i32
  }
  func.func @transform_1(%arg0: i32) -> (i32, i32) {
    %c0_i32 = arith.constant 0 : i32
    %c0_i32_0 = arith.constant 0 : i32
    %c0_i32_1 = arith.constant 0 : i32
    return %c0_i32, %c0_i32_0 : i32, i32
  }
  func.func @transform_2(%arg0: i32) -> (i32, i32) {
    %c0_i32 = arith.constant 0 : i32
    %c0_i32_0 = arith.constant 0 : i32
    %c0_i32_1 = arith.constant 0 : i32
    return %c0_i32, %c0_i32_0 : i32, i32
  }
  func.func @transform_3(%arg0: i32) -> (i32, i32) {
    %c0_i32 = arith.constant 0 : i32
    %c0_i32_0 = arith.constant 0 : i32
    %c0_i32_1 = arith.constant 0 : i32
    return %c0_i32, %c0_i32_0 : i32, i32
  }
  func.func @transform_4(%arg0: i32) -> (i32, i32) {
    %c0_i32 = arith.constant 0 : i32
    %c0_i32_0 = arith.constant 0 : i32
    %c0_i32_1 = arith.constant 0 : i32
    return %c0_i32, %c0_i32_0 : i32, i32
  }
  func.func @transform_5(%arg0: i32) -> (i32, i32) {
    %c0_i32 = arith.constant 0 : i32
    %c0_i32_0 = arith.constant 0 : i32
    %c0_i32_1 = arith.constant 0 : i32
    return %c0_i32, %c0_i32_0 : i32, i32
  }
  func.func @transform_6(%arg0: i32) -> (i32, i32, i32) {
    %c0_i32 = arith.constant 0 : i32
    %c0_i32_0 = arith.constant 0 : i32
    %c0_i32_1 = arith.constant 0 : i32
    return %c0_i32, %arg0, %c0_i32_0 : i32, i32, i32
  }
  func.func @transform_7(%arg0: i32) -> (i32, i32) {
    %c0_i32 = arith.constant 0 : i32
    %c0_i32_0 = arith.constant 0 : i32
    return %arg0, %c0_i32 : i32, i32
  }
}

</mosaic_0001>

<llo_original>
// kernel: tpu_custom_call.1
$region0: #{tpu_custom_call.1}
  #allocation0 [shape = 'u32[]', space=smem, size = 0x4, offset = 0x4, fixed_abs, tag = 'smem constant byte address 0x4 - core index']
  #allocation1 [shape = 'u32[144,128]{1,0:T(1,128)}', space=vmem, size = 0x12000, scoped, tag = 'internal scratch']
  #allocation2 [shape = 'f32[8,8,512]{2,1,0:T(8,128)}', space=vmem, size = 0x20000, scoped, tag = 'scratch operand']
  %s0 = inlined_call_operand.vmem [shape: f32[8,8,4], index: 0, kind: input, shape index: {}]
  %s1 = inlined_call_operand.vmem [shape: bf16[4,512], index: 1, kind: input, shape index: {}]
  %s2 = inlined_call_operand.vmem [shape: bf16[128,512], index: 2, kind: input, shape index: {}]
  %s3 = inlined_call_operand.vmem [shape: f32[1,512], index: 3, kind: input, shape index: {}]
  %s4 = inlined_call_operand.vmem [shape: bf16[128,516], index: 4, kind: input, shape index: {}]
  %s5 = inlined_call_operand.vmem [shape: f32[1,516], index: 5, kind: input, shape index: {}]
  %s6 = inlined_call_operand.vmem [shape: f32[8,8,4], index: 6, kind: output, shape index: {0}]
  %s7 = inlined_call_operand.hbm [shape: f32[8,128], index: 7, kind: output, shape index: {1}]
  %8 = xla_tuple %s6, %s7
  %s9 = sld [smem:[#allocation0]]
  $region49: #{tpu_custom_call.1} parent=0
    _
  %s11 = ssub.s32 1, %s9
  %s12 = scalar_select 0, %s11, %s9
  $region1: #{tpu_custom_call.1} parent=0
    #allocation3 [shape = 'u8[4096]{0}', space=vmem, size = 0x1000, scoped, tag = 'output window, operand 1, single buffered']
    #allocation4 [shape = 's32[1]{0}', space=sflag, size = 0x4, scoped, tag = 'scoped memory for tpu_custom_call.1']
    %13 = vsyncpa [#allocation4], 0
    // Predicated region
    $region2: #{tpu_custom_call.1} parent=1 // pred_check
      _
    $region3: #{tpu_custom_call.1} parent=1 // pred_check_branch
      %15 = sbr.rel (0) target = $region5
    $region4: #{tpu_custom_call.1} parent=1 // pred_region
      _
    $region5: #{tpu_custom_call.1} parent=1 // pred_fallthru
      _
    // Predicated region
    $region6: #{tpu_custom_call.1} parent=1 // pred_check
      _
    $region7: #{tpu_custom_call.1} parent=1 // pred_check_branch
      %17 = sbr.rel (0) target = $region9
    $region8: #{tpu_custom_call.1} parent=1 // pred_region
      _
    $region9: #{tpu_custom_call.1} parent=1 // pred_fallthru
      _
    // Predicated region
    $region10: #{tpu_custom_call.1} parent=1 // pred_check
      _
    $region11: #{tpu_custom_call.1} parent=1 // pred_check_branch
      %19 = sbr.rel (0) target = $region13
    $region12: #{tpu_custom_call.1} parent=1 // pred_region
      _
    $region13: #{tpu_custom_call.1} parent=1 // pred_fallthru
      _
    // Predicated region
    $region14: #{tpu_custom_call.1} parent=1 // pred_check
      _
    $region15: #{tpu_custom_call.1} parent=1 // pred_check_branch
      %21 = sbr.rel (0) target = $region17
    $region16: #{tpu_custom_call.1} parent=1 // pred_region
      _
    $region17: #{tpu_custom_call.1} parent=1 // pred_fallthru
      _
    // Predicated region
    $region18: #{tpu_custom_call.1} parent=1 // pred_check
      _
    $region19: #{tpu_custom_call.1} parent=1 // pred_check_branch
      %23 = sbr.rel (0) target = $region21
    $region20: #{tpu_custom_call.1} parent=1 // pred_region
      _
    $region21: #{tpu_custom_call.1} parent=1 // pred_fallthru
      _
    // Predicated region
    $region22: #{tpu_custom_call.1} parent=1 // pred_check
      _
    $region23: #{tpu_custom_call.1} parent=1 // pred_check_branch
      %25 = sbr.rel (0) target = $region25
    $region24: #{tpu_custom_call.1} parent=1 // pred_region
      _
    $region25: #{tpu_custom_call.1} parent=1 // pred_fallthru
      _
    %v27 = vld [vmem:[%s3] sm:$0xf]
    %v29 = vlaneseq
    %v30 = vshrl.u32 %v29, 7
    %v31 = vsub.s32 0, %v30
    %v32 = vrot.slane %v27, %v31
    %v33 = vlaneseq
    %v34 = vshrl.u32 %v33, 7
    %v35 = vsub.s32 1, %v34
    %v36 = vrot.slane %v27, %v35
    %v37 = vlaneseq
    %v38 = vshrl.u32 %v37, 7
    %v39 = vsub.s32 2, %v38
    %v40 = vrot.slane %v27, %v39
    %v41 = vlaneseq
    %v42 = vshrl.u32 %v41, 7
    %v43 = vsub.s32 3, %v42
    %v44 = vrot.slane %v27, %v43
    loop: start=0, step=1, limit=8
    $region26: #{tpu_custom_call.1} parent=1 // loop_pre_header
      _
    $region27: #{tpu_custom_call.1} parent=1 // loop_header
      %s50 = sphi 0, %s54
      %p51 = scmp.ge.s32.totalorder %s50, 8
    $region28: #{tpu_custom_call.1} parent=1 // loop_header_branch
      %53 = sbr.rel (%p51) target = $region32
    $region29: #{tpu_custom_call.1} parent=1 // loop_body
      %s55 = smul.u32 %s50, 8
      %s56 = scalar_lea.vmem %s0, %s55
      %v57 = vld [vmem:[%s56] sm:$0xff]
      %v58 = vpack.c.bf16 %v57, %v57
      %v59 = vld [vmem:[%s1] sm:$0xff]
      %v61 = vcombine.high %v59, %v59
      %v63 = vunpack.c.l.s4 1983009808
      %v64 = vunpack.c.0.s8 %v63
      %v65 = vlaneseq
      %v66 = vshrl.u32 %v65, 7
      %v67 = vsub.s32 %v64, %v66
      %v68 = vrot.slane %v59, %v67
      %v70 = vunpack.c.l.s4 1983009808
      %v71 = vunpack.c.0.s8 %v70
      %v72 = vlaneseq
      %v73 = vshrl.u32 %v72, 7
      %v74 = vsub.s32 %v71, %v73
      %v75 = vrot.slane %v61, %v74
      %v76 = vcombine.high %v68, %v68
      %v77 = vcombine.high %v75, %v75
      %vm78 = vcmask 31744
      %v80 = vsel %vm78, %v58, 0
      %vm82 = vcmask 1041408
      %v84 = vsel %vm82, %v68, 0
      %v87 = vsel %vm82, %v76, 0
      %v90 = vsel %vm82, %v75, 0
      %v93 = vsel %vm82, %v77, 0
      %95 = vmatprep.subr.bf16.mxu0 %v87
      %96 = vmatpush1.bf16.msra.mxu0 %v84
      %97 = vmatprep.subr.bf16.mxu0 0
      %98 = vmatpush1.bf16.msra.mxu0 0
      %99 = vmatprep.subr.bf16.mxu0 0
      %100 = vmatpush1.bf16.msra.mxu0 0
      %101 = vmatprep.subr.bf16.mxu0 0
      %102 = vmatpush1.bf16.msra.mxu0 0
      %103 = vmatprep.subr.bf16.mxu0 0
      %104 = vmatpush1.bf16.msra.mxu0 0
      %105 = vmatprep.subr.bf16.mxu0 0
      %106 = vmatpush1.bf16.msra.mxu0 0
      %107 = vmatprep.subr.bf16.mxu0 0
      %108 = vmatpush1.bf16.msra.mxu0 0
      %109 = vmatprep.subr.bf16.mxu0 0
      %110 = vmatpush1.bf16.msra.mxu0 0
      %111 = vmatprep.subr.bf16.mxu0 0
      %112 = vmatpush1.bf16.msra.mxu0 0
      %113 = vmatprep.subr.bf16.mxu0 0
      %114 = vmatpush1.bf16.msra.mxu0 0
      %115 = vmatprep.subr.bf16.mxu0 0
      %116 = vmatpush1.bf16.msra.mxu0 0
      %117 = vmatprep.subr.bf16.mxu0 0
      %118 = vmatpush1.bf16.msra.mxu0 0
      %119 = vmatprep.subr.bf16.mxu0 0
      %120 = vmatpush1.bf16.msra.mxu0 0
      %121 = vmatprep.subr.bf16.mxu0 0
      %122 = vmatpush1.bf16.msra.mxu0 0
      %123 = vmatprep.subr.bf16.mxu0 0
      %124 = vmatpush1.bf16.msra.mxu0 0
      %125 = vmatprep.subr.bf16.mxu0 0
      %126 = vmatpush1.bf16.msra.mxu0 0
      %127 = vmatprep.mubr.bf16.mxu0 0
      %128 = vmatmul.mubr.bf16.gmra.mrb[0].mxu0 %v80
      %v129 = vpop.f32.mrb[0].mxu0
      %v130 = vadd.f32 %v32, %v129
      %v131 = vpop.f32.mrb[0].mxu0
      %v132 = vadd.f32 %v36, %v131
      %v133 = vpop.f32.mrb[0].mxu0
      %v134 = vpop.f32.mrb[0].mxu0
      %135 = vdwg.mxu0
      %136 = vmatprep.subr.bf16.mxu0 %v93
      %137 = vmatpush1.bf16.msra.mxu0 %v90
      %138 = vmatprep.subr.bf16.mxu0 0
      %139 = vmatpush1.bf16.msra.mxu0 0
      %140 = vmatprep.subr.bf16.mxu0 0
      %141 = vmatpush1.bf16.msra.mxu0 0
      %142 = vmatprep.subr.bf16.mxu0 0
      %143 = vmatpush1.bf16.msra.mxu0 0
      %144 = vmatprep.subr.bf16.mxu0 0
      %145 = vmatpush1.bf16.msra.mxu0 0
      %146 = vmatprep.subr.bf16.mxu0 0
      %147 = vmatpush1.bf16.msra.mxu0 0
      %148 = vmatprep.subr.bf16.mxu0 0
      %149 = vmatpush1.bf16.msra.mxu0 0
      %150 = vmatprep.subr.bf16.mxu0 0
      %151 = vmatpush1.bf16.msra.mxu0 0
      %152 = vmatprep.subr.bf16.mxu0 0
      %153 = vmatpush1.bf16.msra.mxu0 0
      %154 = vmatprep.subr.bf16.mxu0 0
      %155 = vmatpush1.bf16.msra.mxu0 0
      %156 = vmatprep.subr.bf16.mxu0 0
      %157 = vmatpush1.bf16.msra.mxu0 0
      %158 = vmatprep.subr.bf16.mxu0 0
      %159 = vmatpush1.bf16.msra.mxu0 0
      %160 = vmatprep.subr.bf16.mxu0 0
      %161 = vmatpush1.bf16.msra.mxu0 0
      %162 = vmatprep.subr.bf16.mxu0 0
      %163 = vmatpush1.bf16.msra.mxu0 0
      %164 = vmatprep.subr.bf16.mxu0 0
      %165 = vmatpush1.bf16.msra.mxu0 0
      %166 = vmatprep.subr.bf16.mxu0 0
      %167 = vmatpush1.bf16.msra.mxu0 0
      %168 = vmatprep.mubr.bf16.mxu0 0
      %169 = vmatmul.mubr.bf16.gmra.mrb[0].mxu0 %v80
      %v170 = vpop.f32.mrb[0].mxu0
      %v171 = vadd.f32 %v40, %v170
      %v172 = vpop.f32.mrb[0].mxu0
      %v173 = vadd.f32 %v44, %v172
      %v174 = vpop.f32.mrb[0].mxu0
      %v175 = vpop.f32.mrb[0].mxu0
      %176 = vdwg.mxu0
      %s177 = smul.u32 %s50, 4
      %s178 = smul.addr %s177, 8
      %s179 = scalar_lea.vmem [#allocation2], %s178
      %180 = vst [vmem:[%s179] sm:$0xff] %v130
      %181 = vst [vmem:[%s179 + $0x8] sm:$0xff] %v132
      %182 = vst [vmem:[%s179 + $0x10] sm:$0xff] %v171
      %183 = vst [vmem:[%s179 + $0x18] sm:$0xff] %v173
    $region30: #{tpu_custom_call.1} parent=1 // loop_footer
      %s54 = sadd.s32 1, %s50
    $region31: #{tpu_custom_call.1} parent=1 // loop_footer_branch
      %49 = sbr.rel target = $region27
    $region32: #{tpu_custom_call.1} parent=1 // loop_exit
      _
    %v184 = vld [vmem:[#allocation2] sm:$0xff]
    %v185 = vld [vmem:[#allocation2 + $0x8] sm:$0xff]
    %v186 = vld [vmem:[#allocation2 + $0x10] sm:$0xff]
    %v187 = vld [vmem:[#allocation2 + $0x18] sm:$0xff]
    %v188 = vld [vmem:[%s2] sm:$0xff]
    %v189 = vld [vmem:[%s2 + $0x8] sm:$0xff]
    %v190 = vld [vmem:[%s2 + $0x10] sm:$0xff]
    %v191 = vld [vmem:[%s2 + $0x18] sm:$0xff]
    %v192 = vld [vmem:[%s2 + $0x20] sm:$0xff]
    %v193 = vld [vmem:[%s2 + $0x28] sm:$0xff]
    %v194 = vld [vmem:[%s2 + $0x30] sm:$0xff]
    %v195 = vld [vmem:[%s2 + $0x38] sm:$0xff]
    %v196 = vld [vmem:[%s2 + $0x40] sm:$0xff]
    %v197 = vld [vmem:[%s2 + $0x48] sm:$0xff]
    %v198 = vld [vmem:[%s2 + $0x50] sm:$0xff]
    %v199 = vld [vmem:[%s2 + $0x58] sm:$0xff]
    %v200 = vld [vmem:[%s2 + $0x60] sm:$0xff]
    %v201 = vld [vmem:[%s2 + $0x68] sm:$0xff]
    %v202 = vld [vmem:[%s2 + $0x70] sm:$0xff]
    %v203 = vld [vmem:[%s2 + $0x78] sm:$0xff]
    %v204 = vld [vmem:[%s2 + $0x80] sm:$0xff]
    %v205 = vld [vmem:[%s2 + $0x88] sm:$0xff]
    %v206 = vld [vmem:[%s2 + $0x90] sm:$0xff]
    %v207 = vld [vmem:[%s2 + $0x98] sm:$0xff]
    %v208 = vld [vmem:[%s2 + $0xa0] sm:$0xff]
    %v209 = vld [vmem:[%s2 + $0xa8] sm:$0xff]
    %v210 = vld [vmem:[%s2 + $0xb0] sm:$0xff]
    %v211 = vld [vmem:[%s2 + $0xb8] sm:$0xff]
    %v212 = vld [vmem:[%s2 + $0xc0] sm:$0xff]
    %v213 = vld [vmem:[%s2 + $0xc8] sm:$0xff]
    %v214 = vld [vmem:[%s2 + $0xd0] sm:$0xff]
    %v215 = vld [vmem:[%s2 + $0xd8] sm:$0xff]
    %v216 = vld [vmem:[%s2 + $0xe0] sm:$0xff]
    %v217 = vld [vmem:[%s2 + $0xe8] sm:$0xff]
    %v218 = vld [vmem:[%s2 + $0xf0] sm:$0xff]
    %v219 = vld [vmem:[%s2 + $0xf8] sm:$0xff]
    %v252 = vunpack.c.l.b16 %v188
    %v253 = vunpack.c.h.b16 %v188
    %v254 = vunpack.c.l.b16 %v189
    %v255 = vunpack.c.h.b16 %v189
    %v256 = vunpack.c.l.b16 %v190
    %v257 = vunpack.c.h.b16 %v190
    %v258 = vunpack.c.l.b16 %v191
    %v259 = vunpack.c.h.b16 %v191
    %v260 = vunpack.c.l.b16 %v192
    %v261 = vunpack.c.h.b16 %v192
    %v262 = vunpack.c.l.b16 %v193
    %v263 = vunpack.c.h.b16 %v193
    %v264 = vunpack.c.l.b16 %v194
    %v265 = vunpack.c.h.b16 %v194
    %v266 = vunpack.c.l.b16 %v195
    %v267 = vunpack.c.h.b16 %v195
    %v268 = vunpack.c.l.b16 %v196
    %v269 = vunpack.c.h.b16 %v196
    %v270 = vunpack.c.l.b16 %v197
    %v271 = vunpack.c.h.b16 %v197
    %v272 = vunpack.c.l.b16 %v198
    %v273 = vunpack.c.h.b16 %v198
    %v274 = vunpack.c.l.b16 %v199
    %v275 = vunpack.c.h.b16 %v199
    %v276 = vunpack.c.l.b16 %v200
    %v277 = vunpack.c.h.b16 %v200
    %v278 = vunpack.c.l.b16 %v201
    %v279 = vunpack.c.h.b16 %v201
    %v280 = vunpack.c.l.b16 %v202
    %v281 = vunpack.c.h.b16 %v202
    %v282 = vunpack.c.l.b16 %v203
    %v283 = vunpack.c.h.b16 %v203
    %v284 = vunpack.c.l.b16 %v204
    %v285 = vunpack.c.h.b16 %v204
    %v286 = vunpack.c.l.b16 %v205
    %v287 = vunpack.c.h.b16 %v205
    %v288 = vunpack.c.l.b16 %v206
    %v289 = vunpack.c.h.b16 %v206
    %v290 = vunpack.c.l.b16 %v207
    %v291 = vunpack.c.h.b16 %v207
    %v292 = vunpack.c.l.b16 %v208
    %v293 = vunpack.c.h.b16 %v208
    %v294 = vunpack.c.l.b16 %v209
    %v295 = vunpack.c.h.b16 %v209
    %v296 = vunpack.c.l.b16 %v210
    %v297 = vunpack.c.h.b16 %v210
    %v298 = vunpack.c.l.b16 %v211
    %v299 = vunpack.c.h.b16 %v211
    %v300 = vunpack.c.l.b16 %v212
    %v301 = vunpack.c.h.b16 %v212
    %v302 = vunpack.c.l.b16 %v213
    %v303 = vunpack.c.h.b16 %v213
    %v304 = vunpack.c.l.b16 %v214
    %v305 = vunpack.c.h.b16 %v214
    %v306 = vunpack.c.l.b16 %v215
    %v307 = vunpack.c.h.b16 %v215
    %v308 = vunpack.c.l.b16 %v216
    %v309 = vunpack.c.h.b16 %v216
    %v310 = vunpack.c.l.b16 %v217
    %v311 = vunpack.c.h.b16 %v217
    %v312 = vunpack.c.l.b16 %v218
    %v313 = vunpack.c.h.b16 %v218
    %v314 = vunpack.c.l.b16 %v219
    %v315 = vunpack.c.h.b16 %v219
    %v316 = vpack.c.b16 %v256, %v252
    %v317 = vpack.c.b16 %v257, %v253
    %v318 = vpack.c.b16 %v258, %v254
    %v319 = vpack.c.b16 %v259, %v255
    %v320 = vpack.c.b16 %v264, %v260
    %v321 = vpack.c.b16 %v265, %v261
    %v322 = vpack.c.b16 %v266, %v262
    %v323 = vpack.c.b16 %v267, %v263
    %v324 = vpack.c.b16 %v272, %v268
    %v325 = vpack.c.b16 %v273, %v269
    %v326 = vpack.c.b16 %v274, %v270
    %v327 = vpack.c.b16 %v275, %v271
    %v328 = vpack.c.b16 %v280, %v276
    %v329 = vpack.c.b16 %v281, %v277
    %v330 = vpack.c.b16 %v282, %v278
    %v331 = vpack.c.b16 %v283, %v279
    %v332 = vpack.c.b16 %v288, %v284
    %v333 = vpack.c.b16 %v289, %v285
    %v334 = vpack.c.b16 %v290, %v286
    %v335 = vpack.c.b16 %v291, %v287
    %v336 = vpack.c.b16 %v296, %v292
    %v337 = vpack.c.b16 %v297, %v293
    %v338 = vpack.c.b16 %v298, %v294
    %v339 = vpack.c.b16 %v299, %v295
    %v340 = vpack.c.b16 %v304, %v300
    %v341 = vpack.c.b16 %v305, %v301
    %v342 = vpack.c.b16 %v306, %v302
    %v343 = vpack.c.b16 %v307, %v303
    %v344 = vpack.c.b16 %v312, %v308
    %v345 = vpack.c.b16 %v313, %v309
    %v346 = vpack.c.b16 %v314, %v310
    %v347 = vpack.c.b16 %v315, %v311
    %380 = vmatprep.subr.bf16.mxu0 %v317
    %381 = vmatpush1.bf16.msra.mxu0 %v316
    %382 = vmatprep.subr.bf16.mxu0 %v321
    %383 = vmatpush1.bf16.msra.mxu0 %v320
    %384 = vmatprep.subr.bf16.mxu0 %v325
    %385 = vmatpush1.bf16.msra.mxu0 %v324
    %386 = vmatprep.subr.bf16.mxu0 %v329
    %387 = vmatpush1.bf16.msra.mxu0 %v328
    %388 = vmatprep.subr.bf16.mxu0 %v333
    %389 = vmatpush1.bf16.msra.mxu0 %v332
    %390 = vmatprep.subr.bf16.mxu0 %v337
    %391 = vmatpush1.bf16.msra.mxu0 %v336
    %392 = vmatprep.subr.bf16.mxu0 %v341
    %393 = vmatpush1.bf16.msra.mxu0 %v340
    %394 = vmatprep.subr.bf16.mxu0 %v345
    %395 = vmatpush1.bf16.msra.mxu0 %v344
    %396 = vmatprep.subr.bf16.mxu0 0
    %397 = vmatpush1.bf16.msra.mxu0 0
    %398 = vmatprep.subr.bf16.mxu0 0
    %399 = vmatpush1.bf16.msra.mxu0 0
    %400 = vmatprep.subr.bf16.mxu0 0
    %401 = vmatpush1.bf16.msra.mxu0 0
    %402 = vmatprep.subr.bf16.mxu0 0
    %403 = vmatpush1.bf16.msra.mxu0 0
    %404 = vmatprep.subr.bf16.mxu0 0
    %405 = vmatpush1.bf16.msra.mxu0 0
    %406 = vmatprep.subr.bf16.mxu0 0
    %407 = vmatpush1.bf16.msra.mxu0 0
    %408 = vmatprep.subr.bf16.mxu0 0
    %409 = vmatpush1.bf16.msra.mxu0 0
    %410 = vmatprep.subr.bf16.mxu0 0
    %411 = vmatpush1.bf16.msra.mxu0 0
    %412 = vmatprep.mubr.bf16.mxu0 0
    %413 = vmatmul.mubr.bf16.gmra.mrb[0].mxu0 0
    %v414 = vpop.f32.mrb[0].mxu0
    %v415 = vadd.f32 0.0, %v414
    %v416 = vpop.f32.mrb[0].mxu0
    %v417 = vadd.f32 0.0, %v416
    %v418 = vpop.f32.mrb[0].mxu0
    %v419 = vpop.f32.mrb[0].mxu0
    %420 = vdwg.mxu0
    %421 = vmatprep.subr.bf16.mxu0 %v319
    %422 = vmatpush1.bf16.msra.mxu0 %v318
    %423 = vmatprep.subr.bf16.mxu0 %v323
    %424 = vmatpush1.bf16.msra.mxu0 %v322
    %425 = vmatprep.subr.bf16.mxu0 %v327
    %426 = vmatpush1.bf16.msra.mxu0 %v326
    %427 = vmatprep.subr.bf16.mxu0 %v331
    %428 = vmatpush1.bf16.msra.mxu0 %v330
    %429 = vmatprep.subr.bf16.mxu0 %v335
    %430 = vmatpush1.bf16.msra.mxu0 %v334
    %431 = vmatprep.subr.bf16.mxu0 %v339
    %432 = vmatpush1.bf16.msra.mxu0 %v338
    %433 = vmatprep.subr.bf16.mxu0 %v343
    %434 = vmatpush1.bf16.msra.mxu0 %v342
    %435 = vmatprep.subr.bf16.mxu0 %v347
    %436 = vmatpush1.bf16.msra.mxu0 %v346
    %437 = vmatprep.subr.bf16.mxu0 0
    %438 = vmatpush1.bf16.msra.mxu0 0
    %439 = vmatprep.subr.bf16.mxu0 0
    %440 = vmatpush1.bf16.msra.mxu0 0
    %441 = vmatprep.subr.bf16.mxu0 0
    %442 = vmatpush1.bf16.msra.mxu0 0
    %443 = vmatprep.subr.bf16.mxu0 0
    %444 = vmatpush1.bf16.msra.mxu0 0
    %445 = vmatprep.subr.bf16.mxu0 0
    %446 = vmatpush1.bf16.msra.mxu0 0
    %447 = vmatprep.subr.bf16.mxu0 0
    %448 = vmatpush1.bf16.msra.mxu0 0
    %449 = vmatprep.subr.bf16.mxu0 0
    %450 = vmatpush1.bf16.msra.mxu0 0
    %451 = vmatprep.subr.bf16.mxu0 0
    %452 = vmatpush1.bf16.msra.mxu0 0
    %453 = vmatprep.mubr.bf16.mxu0 0
    %454 = vmatmul.mubr.bf16.gmra.mrb[0].mxu0 0
    %v455 = vpop.f32.mrb[0].mxu0
    %v456 = vadd.f32 0.0, %v455
    %v457 = vpop.f32.mrb[0].mxu0
    %v458 = vadd.f32 0.0, %v457
    %v459 = vpop.f32.mrb[0].mxu0
    %v460 = vpop.f32.mrb[0].mxu0
    %461 = vdwg.mxu0
    %v462 = vadd.f32 %v184, %v415
    %v463 = vadd.f32 %v185, %v417
    %v464 = vadd.f32 %v186, %v456
    %v465 = vadd.f32 %v187, %v458
    %v466 = vmul.f32 %v462, 0.5
    %v467 = vtanh.pop %v466
    %v468 = vmul.f32 %v467, 0.5
    %v469 = vadd.f32 %v468, 0.5
    %v470 = vmul.f32 %v463, 0.5
    %v471 = vtanh.pop %v470
    %v472 = vmul.f32 %v471, 0.5
    %v473 = vadd.f32 %v472, 0.5
    %v474 = vtanh.pop %v464
    %v475 = vmul.f32 %v465, 0.5
    %v476 = vtanh.pop %v475
    %v477 = vmul.f32 %v476, 0.5
    %v478 = vadd.f32 %v477, 0.5
    %v479 = vmul.f32 %v473, 0.0
    %v480 = vmul.f32 %v469, %v474
    %v481 = vadd.f32 %v479, %v480
    %v482 = vtanh.pop %v481
    %v483 = vmul.f32 %v478, %v482
    %s484 = scalar_lea.vmem [#allocation2], 32
    %v485 = vld [vmem:[%s484] sm:$0xff]
    %v486 = vld [vmem:[%s484 + $0x8] sm:$0xff]
    %v487 = vld [vmem:[%s484 + $0x10] sm:$0xff]
    %v488 = vld [vmem:[%s484 + $0x18] sm:$0xff]
    %v489 = vpack.c.bf16 %v483, %v483
    %490 = vmatprep.subr.bf16.mxu0 %v317
    %491 = vmatpush1.bf16.msra.mxu0 %v316
    %492 = vmatprep.subr.bf16.mxu0 %v321
    %493 = vmatpush1.bf16.msra.mxu0 %v320
    %494 = vmatprep.subr.bf16.mxu0 %v325
    %495 = vmatpush1.bf16.msra.mxu0 %v324
    %496 = vmatprep.subr.bf16.mxu0 %v329
    %497 = vmatpush1.bf16.msra.mxu0 %v328
    %498 = vmatprep.subr.bf16.mxu0 %v333
    %499 = vmatpush1.bf16.msra.mxu0 %v332
    %500 = vmatprep.subr.bf16.mxu0 %v337
    %501 = vmatpush1.bf16.msra.mxu0 %v336
    %502 = vmatprep.subr.bf16.mxu0 %v341
    %503 = vmatpush1.bf16.msra.mxu0 %v340
    %504 = vmatprep.subr.bf16.mxu0 %v345
    %505 = vmatpush1.bf16.msra.mxu0 %v344
    %506 = vmatprep.subr.bf16.mxu0 0
    %507 = vmatpush1.bf16.msra.mxu0 0
    %508 = vmatprep.subr.bf16.mxu0 0
    %509 = vmatpush1.bf16.msra.mxu0 0
    %510 = vmatprep.subr.bf16.mxu0 0
    %511 = vmatpush1.bf16.msra.mxu0 0
    %512 = vmatprep.subr.bf16.mxu0 0
    %513 = vmatpush1.bf16.msra.mxu0 0
    %514 = vmatprep.subr.bf16.mxu0 0
    %515 = vmatpush1.bf16.msra.mxu0 0
    %516 = vmatprep.subr.bf16.mxu0 0
    %517 = vmatpush1.bf16.msra.mxu0 0
    %518 = vmatprep.subr.bf16.mxu0 0
    %519 = vmatpush1.bf16.msra.mxu0 0
    %520 = vmatprep.subr.bf16.mxu0 0
    %521 = vmatpush1.bf16.msra.mxu0 0
    %522 = vmatprep.mubr.bf16.mxu0 0
    %523 = vmatmul.mubr.bf16.gmra.mrb[0].mxu0 %v489
    %v524 = vpop.f32.mrb[0].mxu0
    %v525 = vadd.f32 0.0, %v524
    %v526 = vpop.f32.mrb[0].mxu0
    %v527 = vadd.f32 0.0, %v526
    %v528 = vpop.f32.mrb[0].mxu0
    %v529 = vpop.f32.mrb[0].mxu0
    %530 = vdwg.mxu0
    %531 = vmatprep.subr.bf16.mxu0 %v319
    %532 = vmatpush1.bf16.msra.mxu0 %v318
    %533 = vmatprep.subr.bf16.mxu0 %v323
    %534 = vmatpush1.bf16.msra.mxu0 %v322
    %535 = vmatprep.subr.bf16.mxu0 %v327
    %536 = vmatpush1.bf16.msra.mxu0 %v326
    %537 = vmatprep.subr.bf16.mxu0 %v331
    %538 = vmatpush1.bf16.msra.mxu0 %v330
    %539 = vmatprep.subr.bf16.mxu0 %v335
    %540 = vmatpush1.bf16.msra.mxu0 %v334
    %541 = vmatprep.subr.bf16.mxu0 %v339
    %542 = vmatpush1.bf16.msra.mxu0 %v338
    %543 = vmatprep.subr.bf16.mxu0 %v343
    %544 = vmatpush1.bf16.msra.mxu0 %v342
    %545 = vmatprep.subr.bf16.mxu0 %v347
    %546 = vmatpush1.bf16.msra.mxu0 %v346
    %547 = vmatprep.subr.bf16.mxu0 0
    %548 = vmatpush1.bf16.msra.mxu0 0
    %549 = vmatprep.subr.bf16.mxu0 0
    %550 = vmatpush1.bf16.msra.mxu0 0
    %551 = vmatprep.subr.bf16.mxu0 0
    %552 = vmatpush1.bf16.msra.mxu0 0
    %553 = vmatprep.subr.bf16.mxu0 0
    %554 = vmatpush1.bf16.msra.mxu0 0
    %555 = vmatprep.subr.bf16.mxu0 0
    %556 = vmatpush1.bf16.msra.mxu0 0
    %557 = vmatprep.subr.bf16.mxu0 0
    %558 = vmatpush1.bf16.msra.mxu0 0
    %559 = vmatprep.subr.bf16.mxu0 0
    %560 = vmatpush1.bf16.msra.mxu0 0
    %561 = vmatprep.subr.bf16.mxu0 0
    %562 = vmatpush1.bf16.msra.mxu0 0
    %563 = vmatprep.mubr.bf16.mxu0 0
    %564 = vmatmul.mubr.bf16.gmra.mrb[0].mxu0 %v489
    %v565 = vpop.f32.mrb[0].mxu0
    %v566 = vadd.f32 0.0, %v565
    %v567 = vpop.f32.mrb[0].mxu0
    %v568 = vadd.f32 0.0, %v567
    %v569 = vpop.f32.mrb[0].mxu0
    %v570 = vpop.f32.mrb[0].mxu0
    %571 = vdwg.mxu0
    %v572 = vadd.f32 %v485, %v525
    %v573 = vadd.f32 %v486, %v527
    %v574 = vadd.f32 %v487, %v566
    %v575 = vadd.f32 %v488, %v568
    %v576 = vmul.f32 %v572, 0.5
    %v577 = vtanh.pop %v576
    %v578 = vmul.f32 %v577, 0.5
    %v579 = vadd.f32 %v578, 0.5
    %v580 = vmul.f32 %v573, 0.5
    %v581 = vtanh.pop %v580
    %v582 = vmul.f32 %v581, 0.5
    %v583 = vadd.f32 %v582, 0.5
    %v584 = vtanh.pop %v574
    %v585 = vmul.f32 %v575, 0.5
    %v586 = vtanh.pop %v585
    %v587 = vmul.f32 %v586, 0.5
    %v588 = vadd.f32 %v587, 0.5
    %v589 = vmul.f32 %v583, %v481
    %v590 = vmul.f32 %v579, %v584
    %v591 = vadd.f32 %v589, %v590
    %v592 = vtanh.pop %v591
    %v593 = vmul.f32 %v588, %v592
    %s594 = scalar_lea.vmem [#allocation2], 64
    %v595 = vld [vmem:[%s594] sm:$0xff]
    %v596 = vld [vmem:[%s594 + $0x8] sm:$0xff]
    %v597 = vld [vmem:[%s594 + $0x10] sm:$0xff]
    %v598 = vld [vmem:[%s594 + $0x18] sm:$0xff]
    %v599 = vpack.c.bf16 %v593, %v593
    %600 = vmatprep.subr.bf16.mxu0 %v317
    %601 = vmatpush1.bf16.msra.mxu0 %v316
    %602 = vmatprep.subr.bf16.mxu0 %v321
    %603 = vmatpush1.bf16.msra.mxu0 %v320
    %604 = vmatprep.subr.bf16.mxu0 %v325
    %605 = vmatpush1.bf16.msra.mxu0 %v324
    %606 = vmatprep.subr.bf16.mxu0 %v329
    %607 = vmatpush1.bf16.msra.mxu0 %v328
    %608 = vmatprep.subr.bf16.mxu0 %v333
    %609 = vmatpush1.bf16.msra.mxu0 %v332
    %610 = vmatprep.subr.bf16.mxu0 %v337
    %611 = vmatpush1.bf16.msra.mxu0 %v336
    %612 = vmatprep.subr.bf16.mxu0 %v341
    %613 = vmatpush1.bf16.msra.mxu0 %v340
    %614 = vmatprep.subr.bf16.mxu0 %v345
    %615 = vmatpush1.bf16.msra.mxu0 %v344
    %616 = vmatprep.subr.bf16.mxu0 0
    %617 = vmatpush1.bf16.msra.mxu0 0
    %618 = vmatprep.subr.bf16.mxu0 0
    %619 = vmatpush1.bf16.msra.mxu0 0
    %620 = vmatprep.subr.bf16.mxu0 0
    %621 = vmatpush1.bf16.msra.mxu0 0
    %622 = vmatprep.subr.bf16.mxu0 0
    %623 = vmatpush1.bf16.msra.mxu0 0
    %624 = vmatprep.subr.bf16.mxu0 0
    %625 = vmatpush1.bf16.msra.mxu0 0
    %626 = vmatprep.subr.bf16.mxu0 0
    %627 = vmatpush1.bf16.msra.mxu0 0
    %628 = vmatprep.subr.bf16.mxu0 0
    %629 = vmatpush1.bf16.msra.mxu0 0
    %630 = vmatprep.subr.bf16.mxu0 0
    %631 = vmatpush1.bf16.msra.mxu0 0
    %632 = vmatprep.mubr.bf16.mxu0 0
    %633 = vmatmul.mubr.bf16.gmra.mrb[0].mxu0 %v599
    %v634 = vpop.f32.mrb[0].mxu0
    %v635 = vadd.f32 0.0, %v634
    %v636 = vpop.f32.mrb[0].mxu0
    %v637 = vadd.f32 0.0, %v636
    %v638 = vpop.f32.mrb[0].mxu0
    %v639 = vpop.f32.mrb[0].mxu0
    %640 = vdwg.mxu0
    %641 = vmatprep.subr.bf16.mxu0 %v319
    %642 = vmatpush1.bf16.msra.mxu0 %v318
    %643 = vmatprep.subr.bf16.mxu0 %v323
    %644 = vmatpush1.bf16.msra.mxu0 %v322
    %645 = vmatprep.subr.bf16.mxu0 %v327
    %646 = vmatpush1.bf16.msra.mxu0 %v326
    %647 = vmatprep.subr.bf16.mxu0 %v331
    %648 = vmatpush1.bf16.msra.mxu0 %v330
    %649 = vmatprep.subr.bf16.mxu0 %v335
    %650 = vmatpush1.bf16.msra.mxu0 %v334
    %651 = vmatprep.subr.bf16.mxu0 %v339
    %652 = vmatpush1.bf16.msra.mxu0 %v338
    %653 = vmatprep.subr.bf16.mxu0 %v343
    %654 = vmatpush1.bf16.msra.mxu0 %v342
    %655 = vmatprep.subr.bf16.mxu0 %v347
    %656 = vmatpush1.bf16.msra.mxu0 %v346
    %657 = vmatprep.subr.bf16.mxu0 0
    %658 = vmatpush1.bf16.msra.mxu0 0
    %659 = vmatprep.subr.bf16.mxu0 0
    %660 = vmatpush1.bf16.msra.mxu0 0
    %661 = vmatprep.subr.bf16.mxu0 0
    %662 = vmatpush1.bf16.msra.mxu0 0
    %663 = vmatprep.subr.bf16.mxu0 0
    %664 = vmatpush1.bf16.msra.mxu0 0
    %665 = vmatprep.subr.bf16.mxu0 0
    %666 = vmatpush1.bf16.msra.mxu0 0
    %667 = vmatprep.subr.bf16.mxu0 0
    %668 = vmatpush1.bf16.msra.mxu0 0
    %669 = vmatprep.subr.bf16.mxu0 0
    %670 = vmatpush1.bf16.msra.mxu0 0
    %671 = vmatprep.subr.bf16.mxu0 0
    %672 = vmatpush1.bf16.msra.mxu0 0
    %673 = vmatprep.mubr.bf16.mxu0 0
    %674 = vmatmul.mubr.bf16.gmra.mrb[0].mxu0 %v599
    %v675 = vpop.f32.mrb[0].mxu0
    %v676 = vadd.f32 0.0, %v675
    %v677 = vpop.f32.mrb[0].mxu0
    %v678 = vadd.f32 0.0, %v677
    %v679 = vpop.f32.mrb[0].mxu0
    %v680 = vpop.f32.mrb[0].mxu0
    %681 = vdwg.mxu0
    %v682 = vadd.f32 %v595, %v635
    %v683 = vadd.f32 %v596, %v637
    %v684 = vadd.f32 %v597, %v676
    %v685 = vadd.f32 %v598, %v678
    %v686 = vmul.f32 %v682, 0.5
    %v687 = vtanh.pop %v686
    %v688 = vmul.f32 %v687, 0.5
    %v689 = vadd.f32 %v688, 0.5
    %v690 = vmul.f32 %v683, 0.5
    %v691 = vtanh.pop %v690
    %v692 = vmul.f32 %v691, 0.5
    %v693 = vadd.f32 %v692, 0.5
    %v694 = vtanh.pop %v684
    %v695 = vmul.f32 %v685, 0.5
    %v696 = vtanh.pop %v695
    %v697 = vmul.f32 %v696, 0.5
    %v698 = vadd.f32 %v697, 0.5
    %v699 = vmul.f32 %v693, %v591
    %v700 = vmul.f32 %v689, %v694
    %v701 = vadd.f32 %v699, %v700
    %v702 = vtanh.pop %v701
    %v703 = vmul.f32 %v698, %v702
    %s704 = scalar_lea.vmem [#allocation2], 96
    %v705 = vld [vmem:[%s704] sm:$0xff]
    %v706 = vld [vmem:[%s704 + $0x8] sm:$0xff]
    %v707 = vld [vmem:[%s704 + $0x10] sm:$0xff]
    %v708 = vld [vmem:[%s704 + $0x18] sm:$0xff]
    %v709 = vpack.c.bf16 %v703, %v703
    %710 = vmatprep.subr.bf16.mxu0 %v317
    %711 = vmatpush1.bf16.msra.mxu0 %v316
    %712 = vmatprep.subr.bf16.mxu0 %v321
    %713 = vmatpush1.bf16.msra.mxu0 %v320
    %714 = vmatprep.subr.bf16.mxu0 %v325
    %715 = vmatpush1.bf16.msra.mxu0 %v324
    %716 = vmatprep.subr.bf16.mxu0 %v329
    %717 = vmatpush1.bf16.msra.mxu0 %v328
    %718 = vmatprep.subr.bf16.mxu0 %v333
    %719 = vmatpush1.bf16.msra.mxu0 %v332
    %720 = vmatprep.subr.bf16.mxu0 %v337
    %721 = vmatpush1.bf16.msra.mxu0 %v336
    %722 = vmatprep.subr.bf16.mxu0 %v341
    %723 = vmatpush1.bf16.msra.mxu0 %v340
    %724 = vmatprep.subr.bf16.mxu0 %v345
    %725 = vmatpush1.bf16.msra.mxu0 %v344
    %726 = vmatprep.subr.bf16.mxu0 0
    %727 = vmatpush1.bf16.msra.mxu0 0
    %728 = vmatprep.subr.bf16.mxu0 0
    %729 = vmatpush1.bf16.msra.mxu0 0
    %730 = vmatprep.subr.bf16.mxu0 0
    %731 = vmatpush1.bf16.msra.mxu0 0
    %732 = vmatprep.subr.bf16.mxu0 0
    %733 = vmatpush1.bf16.msra.mxu0 0
    %734 = vmatprep.subr.bf16.mxu0 0
    %735 = vmatpush1.bf16.msra.mxu0 0
    %736 = vmatprep.subr.bf16.mxu0 0
    %737 = vmatpush1.bf16.msra.mxu0 0
    %738 = vmatprep.subr.bf16.mxu0 0
    %739 = vmatpush1.bf16.msra.mxu0 0
    %740 = vmatprep.subr.bf16.mxu0 0
    %741 = vmatpush1.bf16.msra.mxu0 0
    %742 = vmatprep.mubr.bf16.mxu0 0
    %743 = vmatmul.mubr.bf16.gmra.mrb[0].mxu0 %v709
    %v744 = vpop.f32.mrb[0].mxu0
    %v745 = vadd.f32 0.0, %v744
    %v746 = vpop.f32.mrb[0].mxu0
    %v747 = vadd.f32 0.0, %v746
    %v748 = vpop.f32.mrb[0].mxu0
    %v749 = vpop.f32.mrb[0].mxu0
    %750 = vdwg.mxu0
    %751 = vmatprep.subr.bf16.mxu0 %v319
    %752 = vmatpush1.bf16.msra.mxu0 %v318
    %753 = vmatprep.subr.bf16.mxu0 %v323
    %754 = vmatpush1.bf16.msra.mxu0 %v322
    %755 = vmatprep.subr.bf16.mxu0 %v327
    %756 = vmatpush1.bf16.msra.mxu0 %v326
    %757 = vmatprep.subr.bf16.mxu0 %v331
    %758 = vmatpush1.bf16.msra.mxu0 %v330
    %759 = vmatprep.subr.bf16.mxu0 %v335
    %760 = vmatpush1.bf16.msra.mxu0 %v334
    %761 = vmatprep.subr.bf16.mxu0 %v339
    %762 = vmatpush1.bf16.msra.mxu0 %v338
    %763 = vmatprep.subr.bf16.mxu0 %v343
    %764 = vmatpush1.bf16.msra.mxu0 %v342
    %765 = vmatprep.subr.bf16.mxu0 %v347
    %766 = vmatpush1.bf16.msra.mxu0 %v346
    %767 = vmatprep.subr.bf16.mxu0 0
    %768 = vmatpush1.bf16.msra.mxu0 0
    %769 = vmatprep.subr.bf16.mxu0 0
    %770 = vmatpush1.bf16.msra.mxu0 0
    %771 = vmatprep.subr.bf16.mxu0 0
    %772 = vmatpush1.bf16.msra.mxu0 0
    %773 = vmatprep.subr.bf16.mxu0 0
    %774 = vmatpush1.bf16.msra.mxu0 0
    %775 = vmatprep.subr.bf16.mxu0 0
    %776 = vmatpush1.bf16.msra.mxu0 0
    %777 = vmatprep.subr.bf16.mxu0 0
    %778 = vmatpush1.bf16.msra.mxu0 0
    %779 = vmatprep.subr.bf16.mxu0 0
    %780 = vmatpush1.bf16.msra.mxu0 0
    %781 = vmatprep.subr.bf16.mxu0 0
    %782 = vmatpush1.bf16.msra.mxu0 0
    %783 = vmatprep.mubr.bf16.mxu0 0
    %784 = vmatmul.mubr.bf16.gmra.mrb[0].mxu0 %v709
    %v785 = vpop.f32.mrb[0].mxu0
    %v786 = vadd.f32 0.0, %v785
    %v787 = vpop.f32.mrb[0].mxu0
    %v788 = vadd.f32 0.0, %v787
    %v789 = vpop.f32.mrb[0].mxu0
    %v790 = vpop.f32.mrb[0].mxu0
    %791 = vdwg.mxu0
    %v792 = vadd.f32 %v705, %v745
    %v793 = vadd.f32 %v706, %v747
    %v794 = vadd.f32 %v707, %v786
    %v795 = vadd.f32 %v708, %v788
    %v796 = vmul.f32 %v792, 0.5
    %v797 = vtanh.pop %v796
    %v798 = vmul.f32 %v797, 0.5
    %v799 = vadd.f32 %v798, 0.5
    %v800 = vmul.f32 %v793, 0.5
    %v801 = vtanh.pop %v800
    %v802 = vmul.f32 %v801, 0.5
    %v803 = vadd.f32 %v802, 0.5
    %v804 = vtanh.pop %v794
    %v805 = vmul.f32 %v795, 0.5
    %v806 = vtanh.pop %v805
    %v807 = vmul.f32 %v806, 0.5
    %v808 = vadd.f32 %v807, 0.5
    %v809 = vmul.f32 %v803, %v701
    %v810 = vmul.f32 %v799, %v804
    %v811 = vadd.f32 %v809, %v810
    %v812 = vtanh.pop %v811
    %v813 = vmul.f32 %v808, %v812
    %s814 = scalar_lea.vmem [#allocation2], 128
    %v815 = vld [vmem:[%s814] sm:$0xff]
    %v816 = vld [vmem:[%s814 + $0x8] sm:$0xff]
    %v817 = vld [vmem:[%s814 + $0x10] sm:$0xff]
    %v818 = vld [vmem:[%s814 + $0x18] sm:$0xff]
    %v819 = vpack.c.bf16 %v813, %v813
    %820 = vmatprep.subr.bf16.mxu0 %v317
    %821 = vmatpush1.bf16.msra.mxu0 %v316
    %822 = vmatprep.subr.bf16.mxu0 %v321
    %823 = vmatpush1.bf16.msra.mxu0 %v320
    %824 = vmatprep.subr.bf16.mxu0 %v325
    %825 = vmatpush1.bf16.msra.mxu0 %v324
    %826 = vmatprep.subr.bf16.mxu0 %v329
    %827 = vmatpush1.bf16.msra.mxu0 %v328
    %828 = vmatprep.subr.bf16.mxu0 %v333
    %829 = vmatpush1.bf16.msra.mxu0 %v332
    %830 = vmatprep.subr.bf16.mxu0 %v337
    %831 = vmatpush1.bf16.msra.mxu0 %v336
    %832 = vmatprep.subr.bf16.mxu0 %v341
    %833 = vmatpush1.bf16.msra.mxu0 %v340
    %834 = vmatprep.subr.bf16.mxu0 %v345
    %835 = vmatpush1.bf16.msra.mxu0 %v344
    %836 = vmatprep.subr.bf16.mxu0 0
    %837 = vmatpush1.bf16.msra.mxu0 0
    %838 = vmatprep.subr.bf16.mxu0 0
    %839 = vmatpush1.bf16.msra.mxu0 0
    %840 = vmatprep.subr.bf16.mxu0 0
    %841 = vmatpush1.bf16.msra.mxu0 0
    %842 = vmatprep.subr.bf16.mxu0 0
    %843 = vmatpush1.bf16.msra.mxu0 0
    %844 = vmatprep.subr.bf16.mxu0 0
    %845 = vmatpush1.bf16.msra.mxu0 0
    %846 = vmatprep.subr.bf16.mxu0 0
    %847 = vmatpush1.bf16.msra.mxu0 0
    %848 = vmatprep.subr.bf16.mxu0 0
    %849 = vmatpush1.bf16.msra.mxu0 0
    %850 = vmatprep.subr.bf16.mxu0 0
    %851 = vmatpush1.bf16.msra.mxu0 0
    %852 = vmatprep.mubr.bf16.mxu0 0
    %853 = vmatmul.mubr.bf16.gmra.mrb[0].mxu0 %v819
    %v854 = vpop.f32.mrb[0].mxu0
    %v855 = vadd.f32 0.0, %v854
    %v856 = vpop.f32.mrb[0].mxu0
    %v857 = vadd.f32 0.0, %v856
    %v858 = vpop.f32.mrb[0].mxu0
    %v859 = vpop.f32.mrb[0].mxu0
    %860 = vdwg.mxu0
    %861 = vmatprep.subr.bf16.mxu0 %v319
    %862 = vmatpush1.bf16.msra.mxu0 %v318
    %863 = vmatprep.subr.bf16.mxu0 %v323
    %864 = vmatpush1.bf16.msra.mxu0 %v322
    %865 = vmatprep.subr.bf16.mxu0 %v327
    %866 = vmatpush1.bf16.msra.mxu0 %v326
    %867 = vmatprep.subr.bf16.mxu0 %v331
    %868 = vmatpush1.bf16.msra.mxu0 %v330
    %869 = vmatprep.subr.bf16.mxu0 %v335
    %870 = vmatpush1.bf16.msra.mxu0 %v334
    %871 = vmatprep.subr.bf16.mxu0 %v339
    %872 = vmatpush1.bf16.msra.mxu0 %v338
    %873 = vmatprep.subr.bf16.mxu0 %v343
    %874 = vmatpush1.bf16.msra.mxu0 %v342
    %875 = vmatprep.subr.bf16.mxu0 %v347
    %876 = vmatpush1.bf16.msra.mxu0 %v346
    %877 = vmatprep.subr.bf16.mxu0 0
    %878 = vmatpush1.bf16.msra.mxu0 0
    %879 = vmatprep.subr.bf16.mxu0 0
    %880 = vmatpush1.bf16.msra.mxu0 0
    %881 = vmatprep.subr.bf16.mxu0 0
    %882 = vmatpush1.bf16.msra.mxu0 0
    %883 = vmatprep.subr.bf16.mxu0 0
    %884 = vmatpush1.bf16.msra.mxu0 0
    %885 = vmatprep.subr.bf16.mxu0 0
    %886 = vmatpush1.bf16.msra.mxu0 0
    %887 = vmatprep.subr.bf16.mxu0 0
    %888 = vmatpush1.bf16.msra.mxu0 0
    %889 = vmatprep.subr.bf16.mxu0 0
    %890 = vmatpush1.bf16.msra.mxu0 0
    %891 = vmatprep.subr.bf16.mxu0 0
    %892 = vmatpush1.bf16.msra.mxu0 0
    %893 = vmatprep.mubr.bf16.mxu0 0
    %894 = vmatmul.mubr.bf16.gmra.mrb[0].mxu0 %v819
    %v895 = vpop.f32.mrb[0].mxu0
    %v896 = vadd.f32 0.0, %v895
    %v897 = vpop.f32.mrb[0].mxu0
    %v898 = vadd.f32 0.0, %v897
    %v899 = vpop.f32.mrb[0].mxu0
    %v900 = vpop.f32.mrb[0].mxu0
    %901 = vdwg.mxu0
    %v902 = vadd.f32 %v815, %v855
    %v903 = vadd.f32 %v816, %v857
    %v904 = vadd.f32 %v817, %v896
    %v905 = vadd.f32 %v818, %v898
    %v906 = vmul.f32 %v902, 0.5
    %v907 = vtanh.pop %v906
    %v908 = vmul.f32 %v907, 0.5
    %v909 = vadd.f32 %v908, 0.5
    %v910 = vmul.f32 %v903, 0.5
    %v911 = vtanh.pop %v910
    %v912 = vmul.f32 %v911, 0.5
    %v913 = vadd.f32 %v912, 0.5
    %v914 = vtanh.pop %v904
    %v915 = vmul.f32 %v905, 0.5
    %v916 = vtanh.pop %v915
    %v917 = vmul.f32 %v916, 0.5
    %v918 = vadd.f32 %v917, 0.5
    %v919 = vmul.f32 %v913, %v811
    %v920 = vmul.f32 %v909, %v914
    %v921 = vadd.f32 %v919, %v920
    %v922 = vtanh.pop %v921
    %v923 = vmul.f32 %v918, %v922
    %s924 = scalar_lea.vmem [#allocation2], 160
    %v925 = vld [vmem:[%s924] sm:$0xff]
    %v926 = vld [vmem:[%s924 + $0x8] sm:$0xff]
    %v927 = vld [vmem:[%s924 + $0x10] sm:$0xff]
    %v928 = vld [vmem:[%s924 + $0x18] sm:$0xff]
    %v929 = vpack.c.bf16 %v923, %v923
    %930 = vmatprep.subr.bf16.mxu0 %v317
    %931 = vmatpush1.bf16.msra.mxu0 %v316
    %932 = vmatprep.subr.bf16.mxu0 %v321
    %933 = vmatpush1.bf16.msra.mxu0 %v320
    %934 = vmatprep.subr.bf16.mxu0 %v325
    %935 = vmatpush1.bf16.msra.mxu0 %v324
    %936 = vmatprep.subr.bf16.mxu0 %v329
    %937 = vmatpush1.bf16.msra.mxu0 %v328
    %938 = vmatprep.subr.bf16.mxu0 %v333
    %939 = vmatpush1.bf16.msra.mxu0 %v332
    %940 = vmatprep.subr.bf16.mxu0 %v337
    %941 = vmatpush1.bf16.msra.mxu0 %v336
    %942 = vmatprep.subr.bf16.mxu0 %v341
    %943 = vmatpush1.bf16.msra.mxu0 %v340
    %944 = vmatprep.subr.bf16.mxu0 %v345
    %945 = vmatpush1.bf16.msra.mxu0 %v344
    %946 = vmatprep.subr.bf16.mxu0 0
    %947 = vmatpush1.bf16.msra.mxu0 0
    %948 = vmatprep.subr.bf16.mxu0 0
    %949 = vmatpush1.bf16.msra.mxu0 0
    %950 = vmatprep.subr.bf16.mxu0 0
    %951 = vmatpush1.bf16.msra.mxu0 0
    %952 = vmatprep.subr.bf16.mxu0 0
    %953 = vmatpush1.bf16.msra.mxu0 0
    %954 = vmatprep.subr.bf16.mxu0 0
    %955 = vmatpush1.bf16.msra.mxu0 0
    %956 = vmatprep.subr.bf16.mxu0 0
    %957 = vmatpush1.bf16.msra.mxu0 0
    %958 = vmatprep.subr.bf16.mxu0 0
    %959 = vmatpush1.bf16.msra.mxu0 0
    %960 = vmatprep.subr.bf16.mxu0 0
    %961 = vmatpush1.bf16.msra.mxu0 0
    %962 = vmatprep.mubr.bf16.mxu0 0
    %963 = vmatmul.mubr.bf16.gmra.mrb[0].mxu0 %v929
    %v964 = vpop.f32.mrb[0].mxu0
    %v965 = vadd.f32 0.0, %v964
    %v966 = vpop.f32.mrb[0].mxu0
    %v967 = vadd.f32 0.0, %v966
    %v968 = vpop.f32.mrb[0].mxu0
    %v969 = vpop.f32.mrb[0].mxu0
    %970 = vdwg.mxu0
    %971 = vmatprep.subr.bf16.mxu0 %v319
    %972 = vmatpush1.bf16.msra.mxu0 %v318
    %973 = vmatprep.subr.bf16.mxu0 %v323
    %974 = vmatpush1.bf16.msra.mxu0 %v322
    %975 = vmatprep.subr.bf16.mxu0 %v327
    %976 = vmatpush1.bf16.msra.mxu0 %v326
    %977 = vmatprep.subr.bf16.mxu0 %v331
    %978 = vmatpush1.bf16.msra.mxu0 %v330
    %979 = vmatprep.subr.bf16.mxu0 %v335
    %980 = vmatpush1.bf16.msra.mxu0 %v334
    %981 = vmatprep.subr.bf16.mxu0 %v339
    %982 = vmatpush1.bf16.msra.mxu0 %v338
    %983 = vmatprep.subr.bf16.mxu0 %v343
    %984 = vmatpush1.bf16.msra.mxu0 %v342
    %985 = vmatprep.subr.bf16.mxu0 %v347
    %986 = vmatpush1.bf16.msra.mxu0 %v346
    %987 = vmatprep.subr.bf16.mxu0 0
    %988 = vmatpush1.bf16.msra.mxu0 0
    %989 = vmatprep.subr.bf16.mxu0 0
    %990 = vmatpush1.bf16.msra.mxu0 0
    %991 = vmatprep.subr.bf16.mxu0 0
    %992 = vmatpush1.bf16.msra.mxu0 0
    %993 = vmatprep.subr.bf16.mxu0 0
    %994 = vmatpush1.bf16.msra.mxu0 0
    %995 = vmatprep.subr.bf16.mxu0 0
    %996 = vmatpush1.bf16.msra.mxu0 0
    %997 = vmatprep.subr.bf16.mxu0 0
    %998 = vmatpush1.bf16.msra.mxu0 0
    %999 = vmatprep.subr.bf16.mxu0 0
    %1000 = vmatpush1.bf16.msra.mxu0 0
    %1001 = vmatprep.subr.bf16.mxu0 0
    %1002 = vmatpush1.bf16.msra.mxu0 0
    %1003 = vmatprep.mubr.bf16.mxu0 0
    %1004 = vmatmul.mubr.bf16.gmra.mrb[0].mxu0 %v929
    %v1005 = vpop.f32.mrb[0].mxu0
    %v1006 = vadd.f32 0.0, %v1005
    %v1007 = vpop.f32.mrb[0].mxu0
    %v1008 = vadd.f32 0.0, %v1007
    %v1009 = vpop.f32.mrb[0].mxu0
    %v1010 = vpop.f32.mrb[0].mxu0
    %1011 = vdwg.mxu0
    %v1012 = vadd.f32 %v925, %v965
    %v1013 = vadd.f32 %v926, %v967
    %v1014 = vadd.f32 %v927, %v1006
    %v1015 = vadd.f32 %v928, %v1008
    %v1016 = vmul.f32 %v1012, 0.5
    %v1017 = vtanh.pop %v1016
    %v1018 = vmul.f32 %v1017, 0.5
    %v1019 = vadd.f32 %v1018, 0.5
    %v1020 = vmul.f32 %v1013, 0.5
    %v1021 = vtanh.pop %v1020
    %v1022 = vmul.f32 %v1021, 0.5
    %v1023 = vadd.f32 %v1022, 0.5
    %v1024 = vtanh.pop %v1014
    %v1025 = vmul.f32 %v1015, 0.5
    %v1026 = vtanh.pop %v1025
    %v1027 = vmul.f32 %v1026, 0.5
    %v1028 = vadd.f32 %v1027, 0.5
    %v1029 = vmul.f32 %v1023, %v921
    %v1030 = vmul.f32 %v1019, %v1024
    %v1031 = vadd.f32 %v1029, %v1030
    %v1032 = vtanh.pop %v1031
    %v1033 = vmul.f32 %v1028, %v1032
    %s1034 = scalar_lea.vmem [#allocation2], 192
    %v1035 = vld [vmem:[%s1034] sm:$0xff]
    %v1036 = vld [vmem:[%s1034 + $0x8] sm:$0xff]
    %v1037 = vld [vmem:[%s1034 + $0x10] sm:$0xff]
    %v1038 = vld [vmem:[%s1034 + $0x18] sm:$0xff]
    %v1039 = vpack.c.bf16 %v1033, %v1033
    %1040 = vmatprep.subr.bf16.mxu0 %v317
    %1041 = vmatpush1.bf16.msra.mxu0 %v316
    %1042 = vmatprep.subr.bf16.mxu0 %v321
    %1043 = vmatpush1.bf16.msra.mxu0 %v320
    %1044 = vmatprep.subr.bf16.mxu0 %v325
    %1045 = vmatpush1.bf16.msra.mxu0 %v324
    %1046 = vmatprep.subr.bf16.mxu0 %v329
    %1047 = vmatpush1.bf16.msra.mxu0 %v328
    %1048 = vmatprep.subr.bf16.mxu0 %v333
    %1049 = vmatpush1.bf16.msra.mxu0 %v332
    %1050 = vmatprep.subr.bf16.mxu0 %v337
    %1051 = vmatpush1.bf16.msra.mxu0 %v336
    %1052 = vmatprep.subr.bf16.mxu0 %v341
    %1053 = vmatpush1.bf16.msra.mxu0 %v340
    %1054 = vmatprep.subr.bf16.mxu0 %v345
    %1055 = vmatpush1.bf16.msra.mxu0 %v344
    %1056 = vmatprep.subr.bf16.mxu0 0
    %1057 = vmatpush1.bf16.msra.mxu0 0
    %1058 = vmatprep.subr.bf16.mxu0 0
    %1059 = vmatpush1.bf16.msra.mxu0 0
    %1060 = vmatprep.subr.bf16.mxu0 0
    %1061 = vmatpush1.bf16.msra.mxu0 0
    %1062 = vmatprep.subr.bf16.mxu0 0
    %1063 = vmatpush1.bf16.msra.mxu0 0
    %1064 = vmatprep.subr.bf16.mxu0 0
    %1065 = vmatpush1.bf16.msra.mxu0 0
    %1066 = vmatprep.subr.bf16.mxu0 0
    %1067 = vmatpush1.bf16.msra.mxu0 0
    %1068 = vmatprep.subr.bf16.mxu0 0
    %1069 = vmatpush1.bf16.msra.mxu0 0
    %1070 = vmatprep.subr.bf16.mxu0 0
    %1071 = vmatpush1.bf16.msra.mxu0 0
    %1072 = vmatprep.mubr.bf16.mxu0 0
    %1073 = vmatmul.mubr.bf16.gmra.mrb[0].mxu0 %v1039
    %v1074 = vpop.f32.mrb[0].mxu0
    %v1075 = vadd.f32 0.0, %v1074
    %v1076 = vpop.f32.mrb[0].mxu0
    %v1077 = vadd.f32 0.0, %v1076
    %v1078 = vpop.f32.mrb[0].mxu0
    %v1079 = vpop.f32.mrb[0].mxu0
    %1080 = vdwg.mxu0
    %1081 = vmatprep.subr.bf16.mxu0 %v319
    %1082 = vmatpush1.bf16.msra.mxu0 %v318
    %1083 = vmatprep.subr.bf16.mxu0 %v323
    %1084 = vmatpush1.bf16.msra.mxu0 %v322
    %1085 = vmatprep.subr.bf16.mxu0 %v327
    %1086 = vmatpush1.bf16.msra.mxu0 %v326
    %1087 = vmatprep.subr.bf16.mxu0 %v331
    %1088 = vmatpush1.bf16.msra.mxu0 %v330
    %1089 = vmatprep.subr.bf16.mxu0 %v335
    %1090 = vmatpush1.bf16.msra.mxu0 %v334
    %1091 = vmatprep.subr.bf16.mxu0 %v339
    %1092 = vmatpush1.bf16.msra.mxu0 %v338
    %1093 = vmatprep.subr.bf16.mxu0 %v343
    %1094 = vmatpush1.bf16.msra.mxu0 %v342
    %1095 = vmatprep.subr.bf16.mxu0 %v347
    %1096 = vmatpush1.bf16.msra.mxu0 %v346
    %1097 = vmatprep.subr.bf16.mxu0 0
    %1098 = vmatpush1.bf16.msra.mxu0 0
    %1099 = vmatprep.subr.bf16.mxu0 0
    %1100 = vmatpush1.bf16.msra.mxu0 0
    %1101 = vmatprep.subr.bf16.mxu0 0
    %1102 = vmatpush1.bf16.msra.mxu0 0
    %1103 = vmatprep.subr.bf16.mxu0 0
    %1104 = vmatpush1.bf16.msra.mxu0 0
    %1105 = vmatprep.subr.bf16.mxu0 0
    %1106 = vmatpush1.bf16.msra.mxu0 0
    %1107 = vmatprep.subr.bf16.mxu0 0
    %1108 = vmatpush1.bf16.msra.mxu0 0
    %1109 = vmatprep.subr.bf16.mxu0 0
    %1110 = vmatpush1.bf16.msra.mxu0 0
    %1111 = vmatprep.subr.bf16.mxu0 0
    %1112 = vmatpush1.bf16.msra.mxu0 0
    %1113 = vmatprep.mubr.bf16.mxu0 0
    %1114 = vmatmul.mubr.bf16.gmra.mrb[0].mxu0 %v1039
    %v1115 = vpop.f32.mrb[0].mxu0
    %v1116 = vadd.f32 0.0, %v1115
    %v1117 = vpop.f32.mrb[0].mxu0
    %v1118 = vadd.f32 0.0, %v1117
    %v1119 = vpop.f32.mrb[0].mxu0
    %v1120 = vpop.f32.mrb[0].mxu0
    %1121 = vdwg.mxu0
    %v1122 = vadd.f32 %v1035, %v1075
    %v1123 = vadd.f32 %v1036, %v1077
    %v1124 = vadd.f32 %v1037, %v1116
    %v1125 = vadd.f32 %v1038, %v1118
    %v1126 = vmul.f32 %v1122, 0.5
    %v1127 = vtanh.pop %v1126
    %v1128 = vmul.f32 %v1127, 0.5
    %v1129 = vadd.f32 %v1128, 0.5
    %v1130 = vmul.f32 %v1123, 0.5
    %v1131 = vtanh.pop %v1130
    %v1132 = vmul.f32 %v1131, 0.5
    %v1133 = vadd.f32 %v1132, 0.5
    %v1134 = vtanh.pop %v1124
    %v1135 = vmul.f32 %v1125, 0.5
    %v1136 = vtanh.pop %v1135
    %v1137 = vmul.f32 %v1136, 0.5
    %v1138 = vadd.f32 %v1137, 0.5
    %v1139 = vmul.f32 %v1133, %v1031
    %v1140 = vmul.f32 %v1129, %v1134
    %v1141 = vadd.f32 %v1139, %v1140
    %v1142 = vtanh.pop %v1141
    %v1143 = vmul.f32 %v1138, %v1142
    %s1144 = scalar_lea.vmem [#allocation2], 224
    %v1145 = vld [vmem:[%s1144] sm:$0xff]
    %v1146 = vld [vmem:[%s1144 + $0x8] sm:$0xff]
    %v1147 = vld [vmem:[%s1144 + $0x10] sm:$0xff]
    %v1148 = vld [vmem:[%s1144 + $0x18] sm:$0xff]
    %v1149 = vpack.c.bf16 %v1143, %v1143
    %1150 = vmatprep.subr.bf16.mxu0 %v317
    %1151 = vmatpush1.bf16.msra.mxu0 %v316
    %1152 = vmatprep.subr.bf16.mxu0 %v321
    %1153 = vmatpush1.bf16.msra.mxu0 %v320
    %1154 = vmatprep.subr.bf16.mxu0 %v325
    %1155 = vmatpush1.bf16.msra.mxu0 %v324
    %1156 = vmatprep.subr.bf16.mxu0 %v329
    %1157 = vmatpush1.bf16.msra.mxu0 %v328
    %1158 = vmatprep.subr.bf16.mxu0 %v333
    %1159 = vmatpush1.bf16.msra.mxu0 %v332
    %1160 = vmatprep.subr.bf16.mxu0 %v337
    %1161 = vmatpush1.bf16.msra.mxu0 %v336
    %1162 = vmatprep.subr.bf16.mxu0 %v341
    %1163 = vmatpush1.bf16.msra.mxu0 %v340
    %1164 = vmatprep.subr.bf16.mxu0 %v345
    %1165 = vmatpush1.bf16.msra.mxu0 %v344
    %1166 = vmatprep.subr.bf16.mxu0 0
    %1167 = vmatpush1.bf16.msra.mxu0 0
    %1168 = vmatprep.subr.bf16.mxu0 0
    %1169 = vmatpush1.bf16.msra.mxu0 0
    %1170 = vmatprep.subr.bf16.mxu0 0
    %1171 = vmatpush1.bf16.msra.mxu0 0
    %1172 = vmatprep.subr.bf16.mxu0 0
    %1173 = vmatpush1.bf16.msra.mxu0 0
    %1174 = vmatprep.subr.bf16.mxu0 0
    %1175 = vmatpush1.bf16.msra.mxu0 0
    %1176 = vmatprep.subr.bf16.mxu0 0
    %1177 = vmatpush1.bf16.msra.mxu0 0
    %1178 = vmatprep.subr.bf16.mxu0 0
    %1179 = vmatpush1.bf16.msra.mxu0 0
    %1180 = vmatprep.subr.bf16.mxu0 0
    %1181 = vmatpush1.bf16.msra.mxu0 0
    %1182 = vmatprep.mubr.bf16.mxu0 0
    %1183 = vmatmul.mubr.bf16.gmra.mrb[0].mxu0 %v1149
    %v1184 = vpop.f32.mrb[0].mxu0
    %v1185 = vadd.f32 0.0, %v1184
    %v1186 = vpop.f32.mrb[0].mxu0
    %v1187 = vadd.f32 0.0, %v1186
    %v1188 = vpop.f32.mrb[0].mxu0
    %v1189 = vpop.f32.mrb[0].mxu0
    %1190 = vdwg.mxu0
    %1191 = vmatprep.subr.bf16.mxu0 %v319
    %1192 = vmatpush1.bf16.msra.mxu0 %v318
    %1193 = vmatprep.subr.bf16.mxu0 %v323
    %1194 = vmatpush1.bf16.msra.mxu0 %v322
    %1195 = vmatprep.subr.bf16.mxu0 %v327
    %1196 = vmatpush1.bf16.msra.mxu0 %v326
    %1197 = vmatprep.subr.bf16.mxu0 %v331
    %1198 = vmatpush1.bf16.msra.mxu0 %v330
    %1199 = vmatprep.subr.bf16.mxu0 %v335
    %1200 = vmatpush1.bf16.msra.mxu0 %v334
    %1201 = vmatprep.subr.bf16.mxu0 %v339
    %1202 = vmatpush1.bf16.msra.mxu0 %v338
    %1203 = vmatprep.subr.bf16.mxu0 %v343
    %1204 = vmatpush1.bf16.msra.mxu0 %v342
    %1205 = vmatprep.subr.bf16.mxu0 %v347
    %1206 = vmatpush1.bf16.msra.mxu0 %v346
    %1207 = vmatprep.subr.bf16.mxu0 0
    %1208 = vmatpush1.bf16.msra.mxu0 0
    %1209 = vmatprep.subr.bf16.mxu0 0
    %1210 = vmatpush1.bf16.msra.mxu0 0
    %1211 = vmatprep.subr.bf16.mxu0 0
    %1212 = vmatpush1.bf16.msra.mxu0 0
    %1213 = vmatprep.subr.bf16.mxu0 0
    %1214 = vmatpush1.bf16.msra.mxu0 0
    %1215 = vmatprep.subr.bf16.mxu0 0
    %1216 = vmatpush1.bf16.msra.mxu0 0
    %1217 = vmatprep.subr.bf16.mxu0 0
    %1218 = vmatpush1.bf16.msra.mxu0 0
    %1219 = vmatprep.subr.bf16.mxu0 0
    %1220 = vmatpush1.bf16.msra.mxu0 0
    %1221 = vmatprep.subr.bf16.mxu0 0
    %1222 = vmatpush1.bf16.msra.mxu0 0
    %1223 = vmatprep.mubr.bf16.mxu0 0
    %1224 = vmatmul.mubr.bf16.gmra.mrb[0].mxu0 %v1149
    %v1225 = vpop.f32.mrb[0].mxu0
    %v1226 = vadd.f32 0.0, %v1225
    %v1227 = vpop.f32.mrb[0].mxu0
    %v1228 = vadd.f32 0.0, %v1227
    %v1229 = vpop.f32.mrb[0].mxu0
    %v1230 = vpop.f32.mrb[0].mxu0
    %1231 = vdwg.mxu0
    %v1232 = vadd.f32 %v1145, %v1185
    %v1233 = vadd.f32 %v1146, %v1187
    %v1234 = vadd.f32 %v1147, %v1226
    %v1235 = vadd.f32 %v1148, %v1228
    %v1236 = vmul.f32 %v1232, 0.5
    %v1237 = vtanh.pop %v1236
    %v1238 = vmul.f32 %v1237, 0.5
    %v1239 = vadd.f32 %v1238, 0.5
    %v1240 = vmul.f32 %v1233, 0.5
    %v1241 = vtanh.pop %v1240
    %v1242 = vmul.f32 %v1241, 0.5
    %v1243 = vadd.f32 %v1242, 0.5
    %v1244 = vtanh.pop %v1234
    %v1245 = vmul.f32 %v1235, 0.5
    %v1246 = vtanh.pop %v1245
    %v1247 = vmul.f32 %v1246, 0.5
    %v1248 = vadd.f32 %v1247, 0.5
    %v1249 = vmul.f32 %v1243, %v1141
    %v1250 = vmul.f32 %v1239, %v1244
    %v1251 = vadd.f32 %v1249, %v1250
    %v1252 = vtanh.pop %v1251
    %v1253 = vmul.f32 %v1248, %v1252
    %1254 = vst [vmem:[#allocation3] sm:$0xff] %v1251
    %v1255 = vld [vmem:[%s5] sm:$0x1f]
    %v1257 = vlaneseq
    %v1258 = vshrl.u32 %v1257, 7
    %v1259 = vsub.s32 0, %v1258
    %v1260 = vrot.slane %v1255, %v1259
    %v1261 = vlaneseq
    %v1262 = vshrl.u32 %v1261, 7
    %v1263 = vsub.s32 1, %v1262
    %v1264 = vrot.slane %v1255, %v1263
    %v1265 = vlaneseq
    %v1266 = vshrl.u32 %v1265, 7
    %v1267 = vsub.s32 2, %v1266
    %v1268 = vrot.slane %v1255, %v1267
    %v1269 = vlaneseq
    %v1270 = vshrl.u32 %v1269, 7
    %v1271 = vsub.s32 3, %v1270
    %v1272 = vrot.slane %v1255, %v1271
    %v1273 = vlaneseq
    %v1274 = vshrl.u32 %v1273, 7
    %v1275 = vsub.s32 4, %v1274
    %v1276 = vrot.slane %v1255, %v1275
    %v1282 = vpack.c.bf16 %v1253, %v1253
    %v1283 = vld [vmem:[%s4] sm:$0xff]
    %v1284 = vld [vmem:[%s4 + $0x8] sm:$0xff]
    %v1285 = vld [vmem:[%s4 + $0x10] sm:$0xf]
    %v1286 = vld [vmem:[%s4 + $0x14] sm:$0xff]
    %v1287 = vld [vmem:[%s4 + $0x1c] sm:$0xff]
    %v1288 = vld [vmem:[%s4 + $0x24] sm:$0xf]
    %v1289 = vld [vmem:[%s4 + $0x28] sm:$0xff]
    %v1290 = vld [vmem:[%s4 + $0x30] sm:$0xff]
    %v1291 = vld [vmem:[%s4 + $0x38] sm:$0xf]
    %v1292 = vld [vmem:[%s4 + $0x3c] sm:$0xff]
    %v1293 = vld [vmem:[%s4 + $0x44] sm:$0xff]
    %v1294 = vld [vmem:[%s4 + $0x4c] sm:$0xf]
    %v1295 = vld [vmem:[%s4 + $0x50] sm:$0xff]
    %v1296 = vld [vmem:[%s4 + $0x58] sm:$0xff]
    %v1297 = vld [vmem:[%s4 + $0x60] sm:$0xf]
    %v1298 = vld [vmem:[%s4 + $0x64] sm:$0xff]
    %v1299 = vld [vmem:[%s4 + $0x6c] sm:$0xff]
    %v1300 = vld [vmem:[%s4 + $0x74] sm:$0xf]
    %v1301 = vld [vmem:[%s4 + $0x78] sm:$0xff]
    %v1302 = vld [vmem:[%s4 + $0x80] sm:$0xff]
    %v1303 = vld [vmem:[%s4 + $0x88] sm:$0xf]
    %v1304 = vld [vmem:[%s4 + $0x8c] sm:$0xff]
    %v1305 = vld [vmem:[%s4 + $0x94] sm:$0xff]
    %v1306 = vld [vmem:[%s4 + $0x9c] sm:$0xf]
    %v1307 = vld [vmem:[%s4 + $0xa0] sm:$0xff]
    %v1308 = vld [vmem:[%s4 + $0xa8] sm:$0xff]
    %v1309 = vld [vmem:[%s4 + $0xb0] sm:$0xf]
    %v1310 = vld [vmem:[%s4 + $0xb4] sm:$0xff]
    %v1311 = vld [vmem:[%s4 + $0xbc] sm:$0xff]
    %v1312 = vld [vmem:[%s4 + $0xc4] sm:$0xf]
    %v1313 = vld [vmem:[%s4 + $0xc8] sm:$0xff]
    %v1314 = vld [vmem:[%s4 + $0xd0] sm:$0xff]
    %v1315 = vld [vmem:[%s4 + $0xd8] sm:$0xf]
    %v1316 = vld [vmem:[%s4 + $0xdc] sm:$0xff]
    %v1317 = vld [vmem:[%s4 + $0xe4] sm:$0xff]
    %v1318 = vld [vmem:[%s4 + $0xec] sm:$0xf]
    %v1319 = vld [vmem:[%s4 + $0xf0] sm:$0xff]
    %v1320 = vld [vmem:[%s4 + $0xf8] sm:$0xff]
    %v1321 = vld [vmem:[%s4 + $0x100] sm:$0xf]
    %v1322 = vld [vmem:[%s4 + $0x104] sm:$0xff]
    %v1323 = vld [vmem:[%s4 + $0x10c] sm:$0xff]
    %v1324 = vld [vmem:[%s4 + $0x114] sm:$0xf]
    %v1325 = vld [vmem:[%s4 + $0x118] sm:$0xff]
    %v1326 = vld [vmem:[%s4 + $0x120] sm:$0xff]
    %v1327 = vld [vmem:[%s4 + $0x128] sm:$0xf]
    %v1328 = vld [vmem:[%s4 + $0x12c] sm:$0xff]
    %v1329 = vld [vmem:[%s4 + $0x134] sm:$0xff]
    %v1330 = vld [vmem:[%s4 + $0x13c] sm:$0xf]
    %v1379 = vunpack.c.l.b16 %v1283
    %v1380 = vunpack.c.h.b16 %v1283
    %v1381 = vunpack.c.l.b16 %v1284
    %v1382 = vunpack.c.h.b16 %v1284
    %v1383 = vunpack.c.l.b16 %v1285
    %v1384 = vunpack.c.l.b16 %v1286
    %v1385 = vunpack.c.h.b16 %v1286
    %v1386 = vunpack.c.l.b16 %v1287
    %v1387 = vunpack.c.h.b16 %v1287
    %v1388 = vunpack.c.l.b16 %v1288
    %v1389 = vunpack.c.l.b16 %v1289
    %v1390 = vunpack.c.h.b16 %v1289
    %v1391 = vunpack.c.l.b16 %v1290
    %v1392 = vunpack.c.h.b16 %v1290
    %v1393 = vunpack.c.l.b16 %v1291
    %v1394 = vunpack.c.l.b16 %v1292
    %v1395 = vunpack.c.h.b16 %v1292
    %v1396 = vunpack.c.l.b16 %v1293
    %v1397 = vunpack.c.h.b16 %v1293
    %v1398 = vunpack.c.l.b16 %v1294
    %v1399 = vunpack.c.l.b16 %v1295
    %v1400 = vunpack.c.h.b16 %v1295
    %v1401 = vunpack.c.l.b16 %v1296
    %v1402 = vunpack.c.h.b16 %v1296
    %v1403 = vunpack.c.l.b16 %v1297
    %v1404 = vunpack.c.l.b16 %v1298
    %v1405 = vunpack.c.h.b16 %v1298
    %v1406 = vunpack.c.l.b16 %v1299
    %v1407 = vunpack.c.h.b16 %v1299
    %v1408 = vunpack.c.l.b16 %v1300
    %v1409 = vunpack.c.l.b16 %v1301
    %v1410 = vunpack.c.h.b16 %v1301
    %v1411 = vunpack.c.l.b16 %v1302
    %v1412 = vunpack.c.h.b16 %v1302
    %v1413 = vunpack.c.l.b16 %v1303
    %v1414 = vunpack.c.l.b16 %v1304
    %v1415 = vunpack.c.h.b16 %v1304
    %v1416 = vunpack.c.l.b16 %v1305
    %v1417 = vunpack.c.h.b16 %v1305
    %v1418 = vunpack.c.l.b16 %v1306
    %v1419 = vunpack.c.l.b16 %v1307
    %v1420 = vunpack.c.h.b16 %v1307
    %v1421 = vunpack.c.l.b16 %v1308
    %v1422 = vunpack.c.h.b16 %v1308
    %v1423 = vunpack.c.l.b16 %v1309
    %v1424 = vunpack.c.l.b16 %v1310
    %v1425 = vunpack.c.h.b16 %v1310
    %v1426 = vunpack.c.l.b16 %v1311
    %v1427 = vunpack.c.h.b16 %v1311
    %v1428 = vunpack.c.l.b16 %v1312
    %v1429 = vunpack.c.l.b16 %v1313
    %v1430 = vunpack.c.h.b16 %v1313
    %v1431 = vunpack.c.l.b16 %v1314
    %v1432 = vunpack.c.h.b16 %v1314
    %v1433 = vunpack.c.l.b16 %v1315
    %v1434 = vunpack.c.l.b16 %v1316
    %v1435 = vunpack.c.h.b16 %v1316
    %v1436 = vunpack.c.l.b16 %v1317
    %v1437 = vunpack.c.h.b16 %v1317
    %v1438 = vunpack.c.l.b16 %v1318
    %v1439 = vunpack.c.l.b16 %v1319
    %v1440 = vunpack.c.h.b16 %v1319
    %v1441 = vunpack.c.l.b16 %v1320
    %v1442 = vunpack.c.h.b16 %v1320
    %v1443 = vunpack.c.l.b16 %v1321
    %v1444 = vunpack.c.l.b16 %v1322
    %v1445 = vunpack.c.h.b16 %v1322
    %v1446 = vunpack.c.l.b16 %v1323
    %v1447 = vunpack.c.h.b16 %v1323
    %v1448 = vunpack.c.l.b16 %v1324
    %v1449 = vunpack.c.l.b16 %v1325
    %v1450 = vunpack.c.h.b16 %v1325
    %v1451 = vunpack.c.l.b16 %v1326
    %v1452 = vunpack.c.h.b16 %v1326
    %v1453 = vunpack.c.l.b16 %v1327
    %v1454 = vunpack.c.l.b16 %v1328
    %v1455 = vunpack.c.h.b16 %v1328
    %v1456 = vunpack.c.l.b16 %v1329
    %v1457 = vunpack.c.h.b16 %v1329
    %v1458 = vunpack.c.l.b16 %v1330
    %v1459 = vpack.c.b16 %v1384, %v1379
    %v1460 = vpack.c.b16 %v1385, %v1380
    %v1461 = vpack.c.b16 %v1386, %v1381
    %v1462 = vpack.c.b16 %v1387, %v1382
    %v1463 = vpack.c.b16 %v1388, %v1383
    %v1464 = vpack.c.b16 %v1394, %v1389
    %v1465 = vpack.c.b16 %v1395, %v1390
    %v1466 = vpack.c.b16 %v1396, %v1391
    %v1467 = vpack.c.b16 %v1397, %v1392
    %v1468 = vpack.c.b16 %v1398, %v1393
    %v1469 = vpack.c.b16 %v1404, %v1399
    %v1470 = vpack.c.b16 %v1405, %v1400
    %v1471 = vpack.c.b16 %v1406, %v1401
    %v1472 = vpack.c.b16 %v1407, %v1402
    %v1473 = vpack.c.b16 %v1408, %v1403
    %v1474 = vpack.c.b16 %v1414, %v1409
    %v1475 = vpack.c.b16 %v1415, %v1410
    %v1476 = vpack.c.b16 %v1416, %v1411
    %v1477 = vpack.c.b16 %v1417, %v1412
    %v1478 = vpack.c.b16 %v1418, %v1413
    %v1479 = vpack.c.b16 %v1424, %v1419
    %v1480 = vpack.c.b16 %v1425, %v1420
    %v1481 = vpack.c.b16 %v1426, %v1421
    %v1482 = vpack.c.b16 %v1427, %v1422
    %v1483 = vpack.c.b16 %v1428, %v1423
    %v1484 = vpack.c.b16 %v1434, %v1429
    %v1485 = vpack.c.b16 %v1435, %v1430
    %v1486 = vpack.c.b16 %v1436, %v1431
    %v1487 = vpack.c.b16 %v1437, %v1432
    %v1488 = vpack.c.b16 %v1438, %v1433
    %v1489 = vpack.c.b16 %v1444, %v1439
    %v1490 = vpack.c.b16 %v1445, %v1440
    %v1491 = vpack.c.b16 %v1446, %v1441
    %v1492 = vpack.c.b16 %v1447, %v1442
    %v1493 = vpack.c.b16 %v1448, %v1443
    %v1494 = vpack.c.b16 %v1454, %v1449
    %v1495 = vpack.c.b16 %v1455, %v1450
    %v1496 = vpack.c.b16 %v1456, %v1451
    %v1497 = vpack.c.b16 %v1457, %v1452
    %v1498 = vpack.c.b16 %v1458, %v1453
    %1539 = vmatprep.subr.bf16.mxu0 %v1460
    %1540 = vmatpush1.bf16.msra.mxu0 %v1459
    %1541 = vmatprep.subr.bf16.mxu0 %v1465
    %1542 = vmatpush1.bf16.msra.mxu0 %v1464
    %1543 = vmatprep.subr.bf16.mxu0 %v1470
    %1544 = vmatpush1.bf16.msra.mxu0 %v1469
    %1545 = vmatprep.subr.bf16.mxu0 %v1475
    %1546 = vmatpush1.bf16.msra.mxu0 %v1474
    %1547 = vmatprep.subr.bf16.mxu0 %v1480
    %1548 = vmatpush1.bf16.msra.mxu0 %v1479
    %1549 = vmatprep.subr.bf16.mxu0 %v1485
    %1550 = vmatpush1.bf16.msra.mxu0 %v1484
    %1551 = vmatprep.subr.bf16.mxu0 %v1490
    %1552 = vmatpush1.bf16.msra.mxu0 %v1489
    %1553 = vmatprep.subr.bf16.mxu0 %v1495
    %1554 = vmatpush1.bf16.msra.mxu0 %v1494
    %1555 = vmatprep.subr.bf16.mxu0 0
    %1556 = vmatpush1.bf16.msra.mxu0 0
    %1557 = vmatprep.subr.bf16.mxu0 0
    %1558 = vmatpush1.bf16.msra.mxu0 0
    %1559 = vmatprep.subr.bf16.mxu0 0
    %1560 = vmatpush1.bf16.msra.mxu0 0
    %1561 = vmatprep.subr.bf16.mxu0 0
    %1562 = vmatpush1.bf16.msra.mxu0 0
    %1563 = vmatprep.subr.bf16.mxu0 0
    %1564 = vmatpush1.bf16.msra.mxu0 0
    %1565 = vmatprep.subr.bf16.mxu0 0
    %1566 = vmatpush1.bf16.msra.mxu0 0
    %1567 = vmatprep.subr.bf16.mxu0 0
    %1568 = vmatpush1.bf16.msra.mxu0 0
    %1569 = vmatprep.subr.bf16.mxu0 0
    %1570 = vmatpush1.bf16.msra.mxu0 0
    %1571 = vmatprep.mubr.bf16.mxu0 0
    %1572 = vmatmul.mubr.bf16.gmra.mrb[0].mxu0 %v1282
    %v1573 = vpop.f32.mrb[0].mxu0
    %v1574 = vadd.f32 %v1260, %v1573
    %v1575 = vpop.f32.mrb[0].mxu0
    %v1576 = vadd.f32 %v1264, %v1575
    %v1577 = vpop.f32.mrb[0].mxu0
    %v1578 = vpop.f32.mrb[0].mxu0
    %1579 = vdwg.mxu0
    %1580 = vmatprep.subr.bf16.mxu0 %v1462
    %1581 = vmatpush1.bf16.msra.mxu0 %v1461
    %1582 = vmatprep.subr.bf16.mxu0 %v1467
    %1583 = vmatpush1.bf16.msra.mxu0 %v1466
    %1584 = vmatprep.subr.bf16.mxu0 %v1472
    %1585 = vmatpush1.bf16.msra.mxu0 %v1471
    %1586 = vmatprep.subr.bf16.mxu0 %v1477
    %1587 = vmatpush1.bf16.msra.mxu0 %v1476
    %1588 = vmatprep.subr.bf16.mxu0 %v1482
    %1589 = vmatpush1.bf16.msra.mxu0 %v1481
    %1590 = vmatprep.subr.bf16.mxu0 %v1487
    %1591 = vmatpush1.bf16.msra.mxu0 %v1486
    %1592 = vmatprep.subr.bf16.mxu0 %v1492
    %1593 = vmatpush1.bf16.msra.mxu0 %v1491
    %1594 = vmatprep.subr.bf16.mxu0 %v1497
    %1595 = vmatpush1.bf16.msra.mxu0 %v1496
    %1596 = vmatprep.subr.bf16.mxu0 0
    %1597 = vmatpush1.bf16.msra.mxu0 0
    %1598 = vmatprep.subr.bf16.mxu0 0
    %1599 = vmatpush1.bf16.msra.mxu0 0
    %1600 = vmatprep.subr.bf16.mxu0 0
    %1601 = vmatpush1.bf16.msra.mxu0 0
    %1602 = vmatprep.subr.bf16.mxu0 0
    %1603 = vmatpush1.bf16.msra.mxu0 0
    %1604 = vmatprep.subr.bf16.mxu0 0
    %1605 = vmatpush1.bf16.msra.mxu0 0
    %1606 = vmatprep.subr.bf16.mxu0 0
    %1607 = vmatpush1.bf16.msra.mxu0 0
    %1608 = vmatprep.subr.bf16.mxu0 0
    %1609 = vmatpush1.bf16.msra.mxu0 0
    %1610 = vmatprep.subr.bf16.mxu0 0
    %1611 = vmatpush1.bf16.msra.mxu0 0
    %1612 = vmatprep.mubr.bf16.mxu0 0
    %1613 = vmatmul.mubr.bf16.gmra.mrb[0].mxu0 %v1282
    %v1614 = vpop.f32.mrb[0].mxu0
    %v1615 = vadd.f32 %v1268, %v1614
    %v1616 = vpop.f32.mrb[0].mxu0
    %v1617 = vadd.f32 %v1272, %v1616
    %v1618 = vpop.f32.mrb[0].mxu0
    %v1619 = vpop.f32.mrb[0].mxu0
    %1620 = vdwg.mxu0
    %1621 = vmatprep.subr.bf16.mxu0 0
    %1622 = vmatpush1.bf16.msra.mxu0 %v1463
    %1623 = vmatprep.subr.bf16.mxu0 0
    %1624 = vmatpush1.bf16.msra.mxu0 %v1468
    %1625 = vmatprep.subr.bf16.mxu0 0
    %1626 = vmatpush1.bf16.msra.mxu0 %v1473
    %1627 = vmatprep.subr.bf16.mxu0 0
    %1628 = vmatpush1.bf16.msra.mxu0 %v1478
    %1629 = vmatprep.subr.bf16.mxu0 0
    %1630 = vmatpush1.bf16.msra.mxu0 %v1483
    %1631 = vmatprep.subr.bf16.mxu0 0
    %1632 = vmatpush1.bf16.msra.mxu0 %v1488
    %1633 = vmatprep.subr.bf16.mxu0 0
    %1634 = vmatpush1.bf16.msra.mxu0 %v1493
    %1635 = vmatprep.subr.bf16.mxu0 0
    %1636 = vmatpush1.bf16.msra.mxu0 %v1498
    %1637 = vmatprep.subr.bf16.mxu0 0
    %1638 = vmatpush1.bf16.msra.mxu0 0
    %1639 = vmatprep.subr.bf16.mxu0 0
    %1640 = vmatpush1.bf16.msra.mxu0 0
    %1641 = vmatprep.subr.bf16.mxu0 0
    %1642 = vmatpush1.bf16.msra.mxu0 0
    %1643 = vmatprep.subr.bf16.mxu0 0
    %1644 = vmatpush1.bf16.msra.mxu0 0
    %1645 = vmatprep.subr.bf16.mxu0 0
    %1646 = vmatpush1.bf16.msra.mxu0 0
    %1647 = vmatprep.subr.bf16.mxu0 0
    %1648 = vmatpush1.bf16.msra.mxu0 0
    %1649 = vmatprep.subr.bf16.mxu0 0
    %1650 = vmatpush1.bf16.msra.mxu0 0
    %1651 = vmatprep.subr.bf16.mxu0 0
    %1652 = vmatpush1.bf16.msra.mxu0 0
    %1653 = vmatprep.mubr.bf16.mxu0 0
    %1654 = vmatmul.mubr.bf16.gmra.mrb[0].mxu0 %v1282
    %v1655 = vpop.f32.mrb[0].mxu0
    %v1656 = vadd.f32 %v1276, %v1655
    %v1657 = vpop.f32.mrb[0].mxu0
    %v1658 = vpop.f32.mrb[0].mxu0
    %v1659 = vpop.f32.mrb[0].mxu0
    %1660 = vdwg.mxu0
    %s1661 = scalar_lea.vmem %s6, 56
    %vm1662 = vcmask 31744
    %1663 = vst.msk [vmem:[%s1661] sm:$0xff] %vm1662, %v1656
    %v1664 = vmul.f32 %v1574, 0.5
    %v1665 = vtanh.pop %v1664
    %v1666 = vmul.f32 %v1665, 0.5
    %v1667 = vadd.f32 %v1666, 0.5
    %v1668 = vmul.f32 %v1576, 0.5
    %v1669 = vtanh.pop %v1668
    %v1670 = vmul.f32 %v1669, 0.5
    %v1671 = vadd.f32 %v1670, 0.5
    %v1672 = vtanh.pop %v1615
    %v1673 = vmul.f32 %v1617, 0.5
    %v1674 = vtanh.pop %v1673
    %v1675 = vmul.f32 %v1674, 0.5
    %v1676 = vadd.f32 %v1675, 0.5
    %v1677 = vmul.f32 %v1671, %v1251
    %v1678 = vmul.f32 %v1667, %v1672
    %v1679 = vadd.f32 %v1677, %v1678
    %v1680 = vtanh.pop %v1679
    %v1681 = vmul.f32 %v1676, %v1680
    %v1682 = vpack.c.bf16 %v1681, %v1681
    %v1683 = vld [vmem:[%s4] sm:$0xff]
    %v1684 = vld [vmem:[%s4 + $0x8] sm:$0xff]
    %v1685 = vld [vmem:[%s4 + $0x10] sm:$0xf]
    %v1686 = vld [vmem:[%s4 + $0x14] sm:$0xff]
    %v1687 = vld [vmem:[%s4 + $0x1c] sm:$0xff]
    %v1688 = vld [vmem:[%s4 + $0x24] sm:$0xf]
    %v1689 = vld [vmem:[%s4 + $0x28] sm:$0xff]
    %v1690 = vld [vmem:[%s4 + $0x30] sm:$0xff]
    %v1691 = vld [vmem:[%s4 + $0x38] sm:$0xf]
    %v1692 = vld [vmem:[%s4 + $0x3c] sm:$0xff]
    %v1693 = vld [vmem:[%s4 + $0x44] sm:$0xff]
    %v1694 = vld [vmem:[%s4 + $0x4c] sm:$0xf]
    %v1695 = vld [vmem:[%s4 + $0x50] sm:$0xff]
    %v1696 = vld [vmem:[%s4 + $0x58] sm:$0xff]
    %v1697 = vld [vmem:[%s4 + $0x60] sm:$0xf]
    %v1698 = vld [vmem:[%s4 + $0x64] sm:$0xff]
    %v1699 = vld [vmem:[%s4 + $0x6c] sm:$0xff]
    %v1700 = vld [vmem:[%s4 + $0x74] sm:$0xf]
    %v1701 = vld [vmem:[%s4 + $0x78] sm:$0xff]
    %v1702 = vld [vmem:[%s4 + $0x80] sm:$0xff]
    %v1703 = vld [vmem:[%s4 + $0x88] sm:$0xf]
    %v1704 = vld [vmem:[%s4 + $0x8c] sm:$0xff]
    %v1705 = vld [vmem:[%s4 + $0x94] sm:$0xff]
    %v1706 = vld [vmem:[%s4 + $0x9c] sm:$0xf]
    %v1707 = vld [vmem:[%s4 + $0xa0] sm:$0xff]
    %v1708 = vld [vmem:[%s4 + $0xa8] sm:$0xff]
    %v1709 = vld [vmem:[%s4 + $0xb0] sm:$0xf]
    %v1710 = vld [vmem:[%s4 + $0xb4] sm:$0xff]
    %v1711 = vld [vmem:[%s4 + $0xbc] sm:$0xff]
    %v1712 = vld [vmem:[%s4 + $0xc4] sm:$0xf]
    %v1713 = vld [vmem:[%s4 + $0xc8] sm:$0xff]
    %v1714 = vld [vmem:[%s4 + $0xd0] sm:$0xff]
    %v1715 = vld [vmem:[%s4 + $0xd8] sm:$0xf]
    %v1716 = vld [vmem:[%s4 + $0xdc] sm:$0xff]
    %v1717 = vld [vmem:[%s4 + $0xe4] sm:$0xff]
    %v1718 = vld [vmem:[%s4 + $0xec] sm:$0xf]
    %v1719 = vld [vmem:[%s4 + $0xf0] sm:$0xff]
    %v1720 = vld [vmem:[%s4 + $0xf8] sm:$0xff]
    %v1721 = vld [vmem:[%s4 + $0x100] sm:$0xf]
    %v1722 = vld [vmem:[%s4 + $0x104] sm:$0xff]
    %v1723 = vld [vmem:[%s4 + $0x10c] sm:$0xff]
    %v1724 = vld [vmem:[%s4 + $0x114] sm:$0xf]
    %v1725 = vld [vmem:[%s4 + $0x118] sm:$0xff]
    %v1726 = vld [vmem:[%s4 + $0x120] sm:$0xff]
    %v1727 = vld [vmem:[%s4 + $0x128] sm:$0xf]
    %v1728 = vld [vmem:[%s4 + $0x12c] sm:$0xff]
    %v1729 = vld [vmem:[%s4 + $0x134] sm:$0xff]
    %v1730 = vld [vmem:[%s4 + $0x13c] sm:$0xf]
    %v1779 = vunpack.c.l.b16 %v1683
    %v1780 = vunpack.c.h.b16 %v1683
    %v1781 = vunpack.c.l.b16 %v1684
    %v1782 = vunpack.c.h.b16 %v1684
    %v1783 = vunpack.c.l.b16 %v1685
    %v1784 = vunpack.c.l.b16 %v1686
    %v1785 = vunpack.c.h.b16 %v1686
    %v1786 = vunpack.c.l.b16 %v1687
    %v1787 = vunpack.c.h.b16 %v1687
    %v1788 = vunpack.c.l.b16 %v1688
    %v1789 = vunpack.c.l.b16 %v1689
    %v1790 = vunpack.c.h.b16 %v1689
    %v1791 = vunpack.c.l.b16 %v1690
    %v1792 = vunpack.c.h.b16 %v1690
    %v1793 = vunpack.c.l.b16 %v1691
    %v1794 = vunpack.c.l.b16 %v1692
    %v1795 = vunpack.c.h.b16 %v1692
    %v1796 = vunpack.c.l.b16 %v1693
    %v1797 = vunpack.c.h.b16 %v1693
    %v1798 = vunpack.c.l.b16 %v1694
    %v1799 = vunpack.c.l.b16 %v1695
    %v1800 = vunpack.c.h.b16 %v1695
    %v1801 = vunpack.c.l.b16 %v1696
    %v1802 = vunpack.c.h.b16 %v1696
    %v1803 = vunpack.c.l.b16 %v1697
    %v1804 = vunpack.c.l.b16 %v1698
    %v1805 = vunpack.c.h.b16 %v1698
    %v1806 = vunpack.c.l.b16 %v1699
    %v1807 = vunpack.c.h.b16 %v1699
    %v1808 = vunpack.c.l.b16 %v1700
    %v1809 = vunpack.c.l.b16 %v1701
    %v1810 = vunpack.c.h.b16 %v1701
    %v1811 = vunpack.c.l.b16 %v1702
    %v1812 = vunpack.c.h.b16 %v1702
    %v1813 = vunpack.c.l.b16 %v1703
    %v1814 = vunpack.c.l.b16 %v1704
    %v1815 = vunpack.c.h.b16 %v1704
    %v1816 = vunpack.c.l.b16 %v1705
    %v1817 = vunpack.c.h.b16 %v1705
    %v1818 = vunpack.c.l.b16 %v1706
    %v1819 = vunpack.c.l.b16 %v1707
    %v1820 = vunpack.c.h.b16 %v1707
    %v1821 = vunpack.c.l.b16 %v1708
    %v1822 = vunpack.c.h.b16 %v1708
    %v1823 = vunpack.c.l.b16 %v1709
    %v1824 = vunpack.c.l.b16 %v1710
    %v1825 = vunpack.c.h.b16 %v1710
    %v1826 = vunpack.c.l.b16 %v1711
    %v1827 = vunpack.c.h.b16 %v1711
    %v1828 = vunpack.c.l.b16 %v1712
    %v1829 = vunpack.c.l.b16 %v1713
    %v1830 = vunpack.c.h.b16 %v1713
    %v1831 = vunpack.c.l.b16 %v1714
    %v1832 = vunpack.c.h.b16 %v1714
    %v1833 = vunpack.c.l.b16 %v1715
    %v1834 = vunpack.c.l.b16 %v1716
    %v1835 = vunpack.c.h.b16 %v1716
    %v1836 = vunpack.c.l.b16 %v1717
    %v1837 = vunpack.c.h.b16 %v1717
    %v1838 = vunpack.c.l.b16 %v1718
    %v1839 = vunpack.c.l.b16 %v1719
    %v1840 = vunpack.c.h.b16 %v1719
    %v1841 = vunpack.c.l.b16 %v1720
    %v1842 = vunpack.c.h.b16 %v1720
    %v1843 = vunpack.c.l.b16 %v1721
    %v1844 = vunpack.c.l.b16 %v1722
    %v1845 = vunpack.c.h.b16 %v1722
    %v1846 = vunpack.c.l.b16 %v1723
    %v1847 = vunpack.c.h.b16 %v1723
    %v1848 = vunpack.c.l.b16 %v1724
    %v1849 = vunpack.c.l.b16 %v1725
    %v1850 = vunpack.c.h.b16 %v1725
    %v1851 = vunpack.c.l.b16 %v1726
    %v1852 = vunpack.c.h.b16 %v1726
    %v1853 = vunpack.c.l.b16 %v1727
    %v1854 = vunpack.c.l.b16 %v1728
    %v1855 = vunpack.c.h.b16 %v1728
    %v1856 = vunpack.c.l.b16 %v1729
    %v1857 = vunpack.c.h.b16 %v1729
    %v1858 = vunpack.c.l.b16 %v1730
    %v1859 = vpack.c.b16 %v1784, %v1779
    %v1860 = vpack.c.b16 %v1785, %v1780
    %v1861 = vpack.c.b16 %v1786, %v1781
    %v1862 = vpack.c.b16 %v1787, %v1782
    %v1863 = vpack.c.b16 %v1788, %v1783
    %v1864 = vpack.c.b16 %v1794, %v1789
    %v1865 = vpack.c.b16 %v1795, %v1790
    %v1866 = vpack.c.b16 %v1796, %v1791
    %v1867 = vpack.c.b16 %v1797, %v1792
    %v1868 = vpack.c.b16 %v1798, %v1793
    %v1869 = vpack.c.b16 %v1804, %v1799
    %v1870 = vpack.c.b16 %v1805, %v1800
    %v1871 = vpack.c.b16 %v1806, %v1801
    %v1872 = vpack.c.b16 %v1807, %v1802
    %v1873 = vpack.c.b16 %v1808, %v1803
    %v1874 = vpack.c.b16 %v1814, %v1809
    %v1875 = vpack.c.b16 %v1815, %v1810
    %v1876 = vpack.c.b16 %v1816, %v1811
    %v1877 = vpack.c.b16 %v1817, %v1812
    %v1878 = vpack.c.b16 %v1818, %v1813
    %v1879 = vpack.c.b16 %v1824, %v1819
    %v1880 = vpack.c.b16 %v1825, %v1820
    %v1881 = vpack.c.b16 %v1826, %v1821
    %v1882 = vpack.c.b16 %v1827, %v1822
    %v1883 = vpack.c.b16 %v1828, %v1823
    %v1884 = vpack.c.b16 %v1834, %v1829
    %v1885 = vpack.c.b16 %v1835, %v1830
    %v1886 = vpack.c.b16 %v1836, %v1831
    %v1887 = vpack.c.b16 %v1837, %v1832
    %v1888 = vpack.c.b16 %v1838, %v1833
    %v1889 = vpack.c.b16 %v1844, %v1839
    %v1890 = vpack.c.b16 %v1845, %v1840
    %v1891 = vpack.c.b16 %v1846, %v1841
    %v1892 = vpack.c.b16 %v1847, %v1842
    %v1893 = vpack.c.b16 %v1848, %v1843
    %v1894 = vpack.c.b16 %v1854, %v1849
    %v1895 = vpack.c.b16 %v1855, %v1850
    %v1896 = vpack.c.b16 %v1856, %v1851
    %v1897 = vpack.c.b16 %v1857, %v1852
    %v1898 = vpack.c.b16 %v1858, %v1853
    %1939 = vmatprep.subr.bf16.mxu0 %v1860
    %1940 = vmatpush1.bf16.msra.mxu0 %v1859
    %1941 = vmatprep.subr.bf16.mxu0 %v1865
    %1942 = vmatpush1.bf16.msra.mxu0 %v1864
    %1943 = vmatprep.subr.bf16.mxu0 %v1870
    %1944 = vmatpush1.bf16.msra.mxu0 %v1869
    %1945 = vmatprep.subr.bf16.mxu0 %v1875
    %1946 = vmatpush1.bf16.msra.mxu0 %v1874
    %1947 = vmatprep.subr.bf16.mxu0 %v1880
    %1948 = vmatpush1.bf16.msra.mxu0 %v1879
    %1949 = vmatprep.subr.bf16.mxu0 %v1885
    %1950 = vmatpush1.bf16.msra.mxu0 %v1884
    %1951 = vmatprep.subr.bf16.mxu0 %v1890
    %1952 = vmatpush1.bf16.msra.mxu0 %v1889
    %1953 = vmatprep.subr.bf16.mxu0 %v1895
    %1954 = vmatpush1.bf16.msra.mxu0 %v1894
    %1955 = vmatprep.subr.bf16.mxu0 0
    %1956 = vmatpush1.bf16.msra.mxu0 0
    %1957 = vmatprep.subr.bf16.mxu0 0
    %1958 = vmatpush1.bf16.msra.mxu0 0
    %1959 = vmatprep.subr.bf16.mxu0 0
    %1960 = vmatpush1.bf16.msra.mxu0 0
    %1961 = vmatprep.subr.bf16.mxu0 0
    %1962 = vmatpush1.bf16.msra.mxu0 0
    %1963 = vmatprep.subr.bf16.mxu0 0
    %1964 = vmatpush1.bf16.msra.mxu0 0
    %1965 = vmatprep.subr.bf16.mxu0 0
    %1966 = vmatpush1.bf16.msra.mxu0 0
    %1967 = vmatprep.subr.bf16.mxu0 0
    %1968 = vmatpush1.bf16.msra.mxu0 0
    %1969 = vmatprep.subr.bf16.mxu0 0
    %1970 = vmatpush1.bf16.msra.mxu0 0
    %1971 = vmatprep.mubr.bf16.mxu0 0
    %1972 = vmatmul.mubr.bf16.gmra.mrb[0].mxu0 %v1682
    %v1973 = vpop.f32.mrb[0].mxu0
    %v1974 = vadd.f32 %v1260, %v1973
    %v1975 = vpop.f32.mrb[0].mxu0
    %v1976 = vadd.f32 %v1264, %v1975
    %v1977 = vpop.f32.mrb[0].mxu0
    %v1978 = vpop.f32.mrb[0].mxu0
    %1979 = vdwg.mxu0
    %1980 = vmatprep.subr.bf16.mxu0 %v1862
    %1981 = vmatpush1.bf16.msra.mxu0 %v1861
    %1982 = vmatprep.subr.bf16.mxu0 %v1867
    %1983 = vmatpush1.bf16.msra.mxu0 %v1866
    %1984 = vmatprep.subr.bf16.mxu0 %v1872
    %1985 = vmatpush1.bf16.msra.mxu0 %v1871
    %1986 = vmatprep.subr.bf16.mxu0 %v1877
    %1987 = vmatpush1.bf16.msra.mxu0 %v1876
    %1988 = vmatprep.subr.bf16.mxu0 %v1882
    %1989 = vmatpush1.bf16.msra.mxu0 %v1881
    %1990 = vmatprep.subr.bf16.mxu0 %v1887
    %1991 = vmatpush1.bf16.msra.mxu0 %v1886
    %1992 = vmatprep.subr.bf16.mxu0 %v1892
    %1993 = vmatpush1.bf16.msra.mxu0 %v1891
    %1994 = vmatprep.subr.bf16.mxu0 %v1897
    %1995 = vmatpush1.bf16.msra.mxu0 %v1896
    %1996 = vmatprep.subr.bf16.mxu0 0
    %1997 = vmatpush1.bf16.msra.mxu0 0
    %1998 = vmatprep.subr.bf16.mxu0 0
    %1999 = vmatpush1.bf16.msra.mxu0 0
    %2000 = vmatprep.subr.bf16.mxu0 0
    %2001 = vmatpush1.bf16.msra.mxu0 0
    %2002 = vmatprep.subr.bf16.mxu0 0
    %2003 = vmatpush1.bf16.msra.mxu0 0
    %2004 = vmatprep.subr.bf16.mxu0 0
    %2005 = vmatpush1.bf16.msra.mxu0 0
    %2006 = vmatprep.subr.bf16.mxu0 0
    %2007 = vmatpush1.bf16.msra.mxu0 0
    %2008 = vmatprep.subr.bf16.mxu0 0
    %2009 = vmatpush1.bf16.msra.mxu0 0
    %2010 = vmatprep.subr.bf16.mxu0 0
    %2011 = vmatpush1.bf16.msra.mxu0 0
    %2012 = vmatprep.mubr.bf16.mxu0 0
    %2013 = vmatmul.mubr.bf16.gmra.mrb[0].mxu0 %v1682
    %v2014 = vpop.f32.mrb[0].mxu0
    %v2015 = vadd.f32 %v1268, %v2014
    %v2016 = vpop.f32.mrb[0].mxu0
    %v2017 = vadd.f32 %v1272, %v2016
    %v2018 = vpop.f32.mrb[0].mxu0
    %v2019 = vpop.f32.mrb[0].mxu0
    %2020 = vdwg.mxu0
    %2021 = vmatprep.subr.bf16.mxu0 0
    %2022 = vmatpush1.bf16.msra.mxu0 %v1863
    %2023 = vmatprep.subr.bf16.mxu0 0
    %2024 = vmatpush1.bf16.msra.mxu0 %v1868
    %2025 = vmatprep.subr.bf16.mxu0 0
    %2026 = vmatpush1.bf16.msra.mxu0 %v1873
    %2027 = vmatprep.subr.bf16.mxu0 0
    %2028 = vmatpush1.bf16.msra.mxu0 %v1878
    %2029 = vmatprep.subr.bf16.mxu0 0
    %2030 = vmatpush1.bf16.msra.mxu0 %v1883
    %2031 = vmatprep.subr.bf16.mxu0 0
    %2032 = vmatpush1.bf16.msra.mxu0 %v1888
    %2033 = vmatprep.subr.bf16.mxu0 0
    %2034 = vmatpush1.bf16.msra.mxu0 %v1893
    %2035 = vmatprep.subr.bf16.mxu0 0
    %2036 = vmatpush1.bf16.msra.mxu0 %v1898
    %2037 = vmatprep.subr.bf16.mxu0 0
    %2038 = vmatpush1.bf16.msra.mxu0 0
    %2039 = vmatprep.subr.bf16.mxu0 0
    %2040 = vmatpush1.bf16.msra.mxu0 0
    %2041 = vmatprep.subr.bf16.mxu0 0
    %2042 = vmatpush1.bf16.msra.mxu0 0
    %2043 = vmatprep.subr.bf16.mxu0 0
    %2044 = vmatpush1.bf16.msra.mxu0 0
    %2045 = vmatprep.subr.bf16.mxu0 0
    %2046 = vmatpush1.bf16.msra.mxu0 0
    %2047 = vmatprep.subr.bf16.mxu0 0
    %2048 = vmatpush1.bf16.msra.mxu0 0
    %2049 = vmatprep.subr.bf16.mxu0 0
    %2050 = vmatpush1.bf16.msra.mxu0 0
    %2051 = vmatprep.subr.bf16.mxu0 0
    %2052 = vmatpush1.bf16.msra.mxu0 0
    %2053 = vmatprep.mubr.bf16.mxu0 0
    %2054 = vmatmul.mubr.bf16.gmra.mrb[0].mxu0 %v1682
    %v2055 = vpop.f32.mrb[0].mxu0
    %v2056 = vadd.f32 %v1276, %v2055
    %v2057 = vpop.f32.mrb[0].mxu0
    %v2058 = vpop.f32.mrb[0].mxu0
    %v2059 = vpop.f32.mrb[0].mxu0
    %2060 = vdwg.mxu0
    %s2061 = scalar_lea.vmem %s6, 48
    %2062 = vst.msk [vmem:[%s2061] sm:$0xff] %vm1662, %v2056
    %v2063 = vmul.f32 %v1974, 0.5
    %v2064 = vtanh.pop %v2063
    %v2065 = vmul.f32 %v2064, 0.5
    %v2066 = vadd.f32 %v2065, 0.5
    %v2067 = vmul.f32 %v1976, 0.5
    %v2068 = vtanh.pop %v2067
    %v2069 = vmul.f32 %v2068, 0.5
    %v2070 = vadd.f32 %v2069, 0.5
    %v2071 = vtanh.pop %v2015
    %v2072 = vmul.f32 %v2017, 0.5
    %v2073 = vtanh.pop %v2072
    %v2074 = vmul.f32 %v2073, 0.5
    %v2075 = vadd.f32 %v2074, 0.5
    %v2076 = vmul.f32 %v2070, %v1679
    %v2077 = vmul.f32 %v2066, %v2071
    %v2078 = vadd.f32 %v2076, %v2077
    %v2079 = vtanh.pop %v2078
    %v2080 = vmul.f32 %v2075, %v2079
    %v2081 = vpack.c.bf16 %v2080, %v2080
    %v2082 = vld [vmem:[%s4] sm:$0xff]
    %v2083 = vld [vmem:[%s4 + $0x8] sm:$0xff]
    %v2084 = vld [vmem:[%s4 + $0x10] sm:$0xf]
    %v2085 = vld [vmem:[%s4 + $0x14] sm:$0xff]
    %v2086 = vld [vmem:[%s4 + $0x1c] sm:$0xff]
    %v2087 = vld [vmem:[%s4 + $0x24] sm:$0xf]
    %v2088 = vld [vmem:[%s4 + $0x28] sm:$0xff]
    %v2089 = vld [vmem:[%s4 + $0x30] sm:$0xff]
    %v2090 = vld [vmem:[%s4 + $0x38] sm:$0xf]
    %v2091 = vld [vmem:[%s4 + $0x3c] sm:$0xff]
    %v2092 = vld [vmem:[%s4 + $0x44] sm:$0xff]
    %v2093 = vld [vmem:[%s4 + $0x4c] sm:$0xf]
    %v2094 = vld [vmem:[%s4 + $0x50] sm:$0xff]
    %v2095 = vld [vmem:[%s4 + $0x58] sm:$0xff]
    %v2096 = vld [vmem:[%s4 + $0x60] sm:$0xf]
    %v2097 = vld [vmem:[%s4 + $0x64] sm:$0xff]
    %v2098 = vld [vmem:[%s4 + $0x6c] sm:$0xff]
    %v2099 = vld [vmem:[%s4 + $0x74] sm:$0xf]
    %v2100 = vld [vmem:[%s4 + $0x78] sm:$0xff]
    %v2101 = vld [vmem:[%s4 + $0x80] sm:$0xff]
    %v2102 = vld [vmem:[%s4 + $0x88] sm:$0xf]
    %v2103 = vld [vmem:[%s4 + $0x8c] sm:$0xff]
    %v2104 = vld [vmem:[%s4 + $0x94] sm:$0xff]
    %v2105 = vld [vmem:[%s4 + $0x9c] sm:$0xf]
    %v2106 = vld [vmem:[%s4 + $0xa0] sm:$0xff]
    %v2107 = vld [vmem:[%s4 + $0xa8] sm:$0xff]
    %v2108 = vld [vmem:[%s4 + $0xb0] sm:$0xf]
    %v2109 = vld [vmem:[%s4 + $0xb4] sm:$0xff]
    %v2110 = vld [vmem:[%s4 + $0xbc] sm:$0xff]
    %v2111 = vld [vmem:[%s4 + $0xc4] sm:$0xf]
    %v2112 = vld [vmem:[%s4 + $0xc8] sm:$0xff]
    %v2113 = vld [vmem:[%s4 + $0xd0] sm:$0xff]
    %v2114 = vld [vmem:[%s4 + $0xd8] sm:$0xf]
    %v2115 = vld [vmem:[%s4 + $0xdc] sm:$0xff]
    %v2116 = vld [vmem:[%s4 + $0xe4] sm:$0xff]
    %v2117 = vld [vmem:[%s4 + $0xec] sm:$0xf]
    %v2118 = vld [vmem:[%s4 + $0xf0] sm:$0xff]
    %v2119 = vld [vmem:[%s4 + $0xf8] sm:$0xff]
    %v2120 = vld [vmem:[%s4 + $0x100] sm:$0xf]
    %v2121 = vld [vmem:[%s4 + $0x104] sm:$0xff]
    %v2122 = vld [vmem:[%s4 + $0x10c] sm:$0xff]
    %v2123 = vld [vmem:[%s4 + $0x114] sm:$0xf]
    %v2124 = vld [vmem:[%s4 + $0x118] sm:$0xff]
    %v2125 = vld [vmem:[%s4 + $0x120] sm:$0xff]
    %v2126 = vld [vmem:[%s4 + $0x128] sm:$0xf]
    %v2127 = vld [vmem:[%s4 + $0x12c] sm:$0xff]
    %v2128 = vld [vmem:[%s4 + $0x134] sm:$0xff]
    %v2129 = vld [vmem:[%s4 + $0x13c] sm:$0xf]
    %v2178 = vunpack.c.l.b16 %v2082
    %v2179 = vunpack.c.h.b16 %v2082
    %v2180 = vunpack.c.l.b16 %v2083
    %v2181 = vunpack.c.h.b16 %v2083
    %v2182 = vunpack.c.l.b16 %v2084
    %v2183 = vunpack.c.l.b16 %v2085
    %v2184 = vunpack.c.h.b16 %v2085
    %v2185 = vunpack.c.l.b16 %v2086
    %v2186 = vunpack.c.h.b16 %v2086
    %v2187 = vunpack.c.l.b16 %v2087
    %v2188 = vunpack.c.l.b16 %v2088
    %v2189 = vunpack.c.h.b16 %v2088
    %v2190 = vunpack.c.l.b16 %v2089
    %v2191 = vunpack.c.h.b16 %v2089
    %v2192 = vunpack.c.l.b16 %v2090
    %v2193 = vunpack.c.l.b16 %v2091
    %v2194 = vunpack.c.h.b16 %v2091
    %v2195 = vunpack.c.l.b16 %v2092
    %v2196 = vunpack.c.h.b16 %v2092
    %v2197 = vunpack.c.l.b16 %v2093
    %v2198 = vunpack.c.l.b16 %v2094
    %v2199 = vunpack.c.h.b16 %v2094
    %v2200 = vunpack.c.l.b16 %v2095
    %v2201 = vunpack.c.h.b16 %v2095
    %v2202 = vunpack.c.l.b16 %v2096
    %v2203 = vunpack.c.l.b16 %v2097
    %v2204 = vunpack.c.h.b16 %v2097
    %v2205 = vunpack.c.l.b16 %v2098
    %v2206 = vunpack.c.h.b16 %v2098
    %v2207 = vunpack.c.l.b16 %v2099
    %v2208 = vunpack.c.l.b16 %v2100
    %v2209 = vunpack.c.h.b16 %v2100
    %v2210 = vunpack.c.l.b16 %v2101
    %v2211 = vunpack.c.h.b16 %v2101
    %v2212 = vunpack.c.l.b16 %v2102
    %v2213 = vunpack.c.l.b16 %v2103
    %v2214 = vunpack.c.h.b16 %v2103
    %v2215 = vunpack.c.l.b16 %v2104
    %v2216 = vunpack.c.h.b16 %v2104
    %v2217 = vunpack.c.l.b16 %v2105
    %v2218 = vunpack.c.l.b16 %v2106
    %v2219 = vunpack.c.h.b16 %v2106
    %v2220 = vunpack.c.l.b16 %v2107
    %v2221 = vunpack.c.h.b16 %v2107
    %v2222 = vunpack.c.l.b16 %v2108
    %v2223 = vunpack.c.l.b16 %v2109
    %v2224 = vunpack.c.h.b16 %v2109
    %v2225 = vunpack.c.l.b16 %v2110
    %v2226 = vunpack.c.h.b16 %v2110
    %v2227 = vunpack.c.l.b16 %v2111
    %v2228 = vunpack.c.l.b16 %v2112
    %v2229 = vunpack.c.h.b16 %v2112
    %v2230 = vunpack.c.l.b16 %v2113
    %v2231 = vunpack.c.h.b16 %v2113
    %v2232 = vunpack.c.l.b16 %v2114
    %v2233 = vunpack.c.l.b16 %v2115
    %v2234 = vunpack.c.h.b16 %v2115
    %v2235 = vunpack.c.l.b16 %v2116
    %v2236 = vunpack.c.h.b16 %v2116
    %v2237 = vunpack.c.l.b16 %v2117
    %v2238 = vunpack.c.l.b16 %v2118
    %v2239 = vunpack.c.h.b16 %v2118
    %v2240 = vunpack.c.l.b16 %v2119
    %v2241 = vunpack.c.h.b16 %v2119
    %v2242 = vunpack.c.l.b16 %v2120
    %v2243 = vunpack.c.l.b16 %v2121
    %v2244 = vunpack.c.h.b16 %v2121
    %v2245 = vunpack.c.l.b16 %v2122
    %v2246 = vunpack.c.h.b16 %v2122
    %v2247 = vunpack.c.l.b16 %v2123
    %v2248 = vunpack.c.l.b16 %v2124
    %v2249 = vunpack.c.h.b16 %v2124
    %v2250 = vunpack.c.l.b16 %v2125
    %v2251 = vunpack.c.h.b16 %v2125
    %v2252 = vunpack.c.l.b16 %v2126
    %v2253 = vunpack.c.l.b16 %v2127
    %v2254 = vunpack.c.h.b16 %v2127
    %v2255 = vunpack.c.l.b16 %v2128
    %v2256 = vunpack.c.h.b16 %v2128
    %v2257 = vunpack.c.l.b16 %v2129
    %v2258 = vpack.c.b16 %v2183, %v2178
    %v2259 = vpack.c.b16 %v2184, %v2179
    %v2260 = vpack.c.b16 %v2185, %v2180
    %v2261 = vpack.c.b16 %v2186, %v2181
    %v2262 = vpack.c.b16 %v2187, %v2182
    %v2263 = vpack.c.b16 %v2193, %v2188
    %v2264 = vpack.c.b16 %v2194, %v2189
    %v2265 = vpack.c.b16 %v2195, %v2190
    %v2266 = vpack.c.b16 %v2196, %v2191
    %v2267 = vpack.c.b16 %v2197, %v2192
    %v2268 = vpack.c.b16 %v2203, %v2198
    %v2269 = vpack.c.b16 %v2204, %v2199
    %v2270 = vpack.c.b16 %v2205, %v2200
    %v2271 = vpack.c.b16 %v2206, %v2201
    %v2272 = vpack.c.b16 %v2207, %v2202
    %v2273 = vpack.c.b16 %v2213, %v2208
    %v2274 = vpack.c.b16 %v2214, %v2209
    %v2275 = vpack.c.b16 %v2215, %v2210
    %v2276 = vpack.c.b16 %v2216, %v2211
    %v2277 = vpack.c.b16 %v2217, %v2212
    %v2278 = vpack.c.b16 %v2223, %v2218
    %v2279 = vpack.c.b16 %v2224, %v2219
    %v2280 = vpack.c.b16 %v2225, %v2220
    %v2281 = vpack.c.b16 %v2226, %v2221
    %v2282 = vpack.c.b16 %v2227, %v2222
    %v2283 = vpack.c.b16 %v2233, %v2228
    %v2284 = vpack.c.b16 %v2234, %v2229
    %v2285 = vpack.c.b16 %v2235, %v2230
    %v2286 = vpack.c.b16 %v2236, %v2231
    %v2287 = vpack.c.b16 %v2237, %v2232
    %v2288 = vpack.c.b16 %v2243, %v2238
    %v2289 = vpack.c.b16 %v2244, %v2239
    %v2290 = vpack.c.b16 %v2245, %v2240
    %v2291 = vpack.c.b16 %v2246, %v2241
    %v2292 = vpack.c.b16 %v2247, %v2242
    %v2293 = vpack.c.b16 %v2253, %v2248
    %v2294 = vpack.c.b16 %v2254, %v2249
    %v2295 = vpack.c.b16 %v2255, %v2250
    %v2296 = vpack.c.b16 %v2256, %v2251
    %v2297 = vpack.c.b16 %v2257, %v2252
    %2338 = vmatprep.subr.bf16.mxu0 %v2259
    %2339 = vmatpush1.bf16.msra.mxu0 %v2258
    %2340 = vmatprep.subr.bf16.mxu0 %v2264
    %2341 = vmatpush1.bf16.msra.mxu0 %v2263
    %2342 = vmatprep.subr.bf16.mxu0 %v2269
    %2343 = vmatpush1.bf16.msra.mxu0 %v2268
    %2344 = vmatprep.subr.bf16.mxu0 %v2274
    %2345 = vmatpush1.bf16.msra.mxu0 %v2273
    %2346 = vmatprep.subr.bf16.mxu0 %v2279
    %2347 = vmatpush1.bf16.msra.mxu0 %v2278
    %2348 = vmatprep.subr.bf16.mxu0 %v2284
    %2349 = vmatpush1.bf16.msra.mxu0 %v2283
    %2350 = vmatprep.subr.bf16.mxu0 %v2289
    %2351 = vmatpush1.bf16.msra.mxu0 %v2288
    %2352 = vmatprep.subr.bf16.mxu0 %v2294
    %2353 = vmatpush1.bf16.msra.mxu0 %v2293
    %2354 = vmatprep.subr.bf16.mxu0 0
    %2355 = vmatpush1.bf16.msra.mxu0 0
    %2356 = vmatprep.subr.bf16.mxu0 0
    %2357 = vmatpush1.bf16.msra.mxu0 0
    %2358 = vmatprep.subr.bf16.mxu0 0
    %2359 = vmatpush1.bf16.msra.mxu0 0
    %2360 = vmatprep.subr.bf16.mxu0 0
    %2361 = vmatpush1.bf16.msra.mxu0 0
    %2362 = vmatprep.subr.bf16.mxu0 0
    %2363 = vmatpush1.bf16.msra.mxu0 0
    %2364 = vmatprep.subr.bf16.mxu0 0
    %2365 = vmatpush1.bf16.msra.mxu0 0
    %2366 = vmatprep.subr.bf16.mxu0 0
    %2367 = vmatpush1.bf16.msra.mxu0 0
    %2368 = vmatprep.subr.bf16.mxu0 0
    %2369 = vmatpush1.bf16.msra.mxu0 0
    %2370 = vmatprep.mubr.bf16.mxu0 0
    %2371 = vmatmul.mubr.bf16.gmra.mrb[0].mxu0 %v2081
    %v2372 = vpop.f32.mrb[0].mxu0
    %v2373 = vadd.f32 %v1260, %v2372
    %v2374 = vpop.f32.mrb[0].mxu0
    %v2375 = vadd.f32 %v1264, %v2374
    %v2376 = vpop.f32.mrb[0].mxu0
    %v2377 = vpop.f32.mrb[0].mxu0
    %2378 = vdwg.mxu0
    %2379 = vmatprep.subr.bf16.mxu0 %v2261
    %2380 = vmatpush1.bf16.msra.mxu0 %v2260
    %2381 = vmatprep.subr.bf16.mxu0 %v2266
    %2382 = vmatpush1.bf16.msra.mxu0 %v2265
    %2383 = vmatprep.subr.bf16.mxu0 %v2271
    %2384 = vmatpush1.bf16.msra.mxu0 %v2270
    %2385 = vmatprep.subr.bf16.mxu0 %v2276
    %2386 = vmatpush1.bf16.msra.mxu0 %v2275
    %2387 = vmatprep.subr.bf16.mxu0 %v2281
    %2388 = vmatpush1.bf16.msra.mxu0 %v2280
    %2389 = vmatprep.subr.bf16.mxu0 %v2286
    %2390 = vmatpush1.bf16.msra.mxu0 %v2285
    %2391 = vmatprep.subr.bf16.mxu0 %v2291
    %2392 = vmatpush1.bf16.msra.mxu0 %v2290
    %2393 = vmatprep.subr.bf16.mxu0 %v2296
    %2394 = vmatpush1.bf16.msra.mxu0 %v2295
    %2395 = vmatprep.subr.bf16.mxu0 0
    %2396 = vmatpush1.bf16.msra.mxu0 0
    %2397 = vmatprep.subr.bf16.mxu0 0
    %2398 = vmatpush1.bf16.msra.mxu0 0
    %2399 = vmatprep.subr.bf16.mxu0 0
    %2400 = vmatpush1.bf16.msra.mxu0 0
    %2401 = vmatprep.subr.bf16.mxu0 0
    %2402 = vmatpush1.bf16.msra.mxu0 0
    %2403 = vmatprep.subr.bf16.mxu0 0
    %2404 = vmatpush1.bf16.msra.mxu0 0
    %2405 = vmatprep.subr.bf16.mxu0 0
    %2406 = vmatpush1.bf16.msra.mxu0 0
    %2407 = vmatprep.subr.bf16.mxu0 0
    %2408 = vmatpush1.bf16.msra.mxu0 0
    %2409 = vmatprep.subr.bf16.mxu0 0
    %2410 = vmatpush1.bf16.msra.mxu0 0
    %2411 = vmatprep.mubr.bf16.mxu0 0
    %2412 = vmatmul.mubr.bf16.gmra.mrb[0].mxu0 %v2081
    %v2413 = vpop.f32.mrb[0].mxu0
    %v2414 = vadd.f32 %v1268, %v2413
    %v2415 = vpop.f32.mrb[0].mxu0
    %v2416 = vadd.f32 %v1272, %v2415
    %v2417 = vpop.f32.mrb[0].mxu0
    %v2418 = vpop.f32.mrb[0].mxu0
    %2419 = vdwg.mxu0
    %2420 = vmatprep.subr.bf16.mxu0 0
    %2421 = vmatpush1.bf16.msra.mxu0 %v2262
    %2422 = vmatprep.subr.bf16.mxu0 0
    %2423 = vmatpush1.bf16.msra.mxu0 %v2267
    %2424 = vmatprep.subr.bf16.mxu0 0
    %2425 = vmatpush1.bf16.msra.mxu0 %v2272
    %2426 = vmatprep.subr.bf16.mxu0 0
    %2427 = vmatpush1.bf16.msra.mxu0 %v2277
    %2428 = vmatprep.subr.bf16.mxu0 0
    %2429 = vmatpush1.bf16.msra.mxu0 %v2282
    %2430 = vmatprep.subr.bf16.mxu0 0
    %2431 = vmatpush1.bf16.msra.mxu0 %v2287
    %2432 = vmatprep.subr.bf16.mxu0 0
    %2433 = vmatpush1.bf16.msra.mxu0 %v2292
    %2434 = vmatprep.subr.bf16.mxu0 0
    %2435 = vmatpush1.bf16.msra.mxu0 %v2297
    %2436 = vmatprep.subr.bf16.mxu0 0
    %2437 = vmatpush1.bf16.msra.mxu0 0
    %2438 = vmatprep.subr.bf16.mxu0 0
    %2439 = vmatpush1.bf16.msra.mxu0 0
    %2440 = vmatprep.subr.bf16.mxu0 0
    %2441 = vmatpush1.bf16.msra.mxu0 0
    %2442 = vmatprep.subr.bf16.mxu0 0
    %2443 = vmatpush1.bf16.msra.mxu0 0
    %2444 = vmatprep.subr.bf16.mxu0 0
    %2445 = vmatpush1.bf16.msra.mxu0 0
    %2446 = vmatprep.subr.bf16.mxu0 0
    %2447 = vmatpush1.bf16.msra.mxu0 0
    %2448 = vmatprep.subr.bf16.mxu0 0
    %2449 = vmatpush1.bf16.msra.mxu0 0
    %2450 = vmatprep.subr.bf16.mxu0 0
    %2451 = vmatpush1.bf16.msra.mxu0 0
    %2452 = vmatprep.mubr.bf16.mxu0 0
    %2453 = vmatmul.mubr.bf16.gmra.mrb[0].mxu0 %v2081
    %v2454 = vpop.f32.mrb[0].mxu0
    %v2455 = vadd.f32 %v1276, %v2454
    %v2456 = vpop.f32.mrb[0].mxu0
    %v2457 = vpop.f32.mrb[0].mxu0
    %v2458 = vpop.f32.mrb[0].mxu0
    %2459 = vdwg.mxu0
    %s2460 = scalar_lea.vmem %s6, 40
    %2461 = vst.msk [vmem:[%s2460] sm:$0xff] %vm1662, %v2455
    %v2462 = vmul.f32 %v2373, 0.5
    %v2463 = vtanh.pop %v2462
    %v2464 = vmul.f32 %v2463, 0.5
    %v2465 = vadd.f32 %v2464, 0.5
    %v2466 = vmul.f32 %v2375, 0.5
    %v2467 = vtanh.pop %v2466
    %v2468 = vmul.f32 %v2467, 0.5
    %v2469 = vadd.f32 %v2468, 0.5
    %v2470 = vtanh.pop %v2414
    %v2471 = vmul.f32 %v2416, 0.5
    %v2472 = vtanh.pop %v2471
    %v2473 = vmul.f32 %v2472, 0.5
    %v2474 = vadd.f32 %v2473, 0.5
    %v2475 = vmul.f32 %v2469, %v2078
    %v2476 = vmul.f32 %v2465, %v2470
    %v2477 = vadd.f32 %v2475, %v2476
    %v2478 = vtanh.pop %v2477
    %v2479 = vmul.f32 %v2474, %v2478
    %v2480 = vpack.c.bf16 %v2479, %v2479
    %v2481 = vld [vmem:[%s4] sm:$0xff]
    %v2482 = vld [vmem:[%s4 + $0x8] sm:$0xff]
    %v2483 = vld [vmem:[%s4 + $0x10] sm:$0xf]
    %v2484 = vld [vmem:[%s4 + $0x14] sm:$0xff]
    %v2485 = vld [vmem:[%s4 + $0x1c] sm:$0xff]
    %v2486 = vld [vmem:[%s4 + $0x24] sm:$0xf]
    %v2487 = vld [vmem:[%s4 + $0x28] sm:$0xff]
    %v2488 = vld [vmem:[%s4 + $0x30] sm:$0xff]
    %v2489 = vld [vmem:[%s4 + $0x38] sm:$0xf]
    %v2490 = vld [vmem:[%s4 + $0x3c] sm:$0xff]
    %v2491 = vld [vmem:[%s4 + $0x44] sm:$0xff]
    %v2492 = vld [vmem:[%s4 + $0x4c] sm:$0xf]
    %v2493 = vld [vmem:[%s4 + $0x50] sm:$0xff]
    %v2494 = vld [vmem:[%s4 + $0x58] sm:$0xff]
    %v2495 = vld [vmem:[%s4 + $0x60] sm:$0xf]
    %v2496 = vld [vmem:[%s4 + $0x64] sm:$0xff]
    %v2497 = vld [vmem:[%s4 + $0x6c] sm:$0xff]
    %v2498 = vld [vmem:[%s4 + $0x74] sm:$0xf]
    %v2499 = vld [vmem:[%s4 + $0x78] sm:$0xff]
    %v2500 = vld [vmem:[%s4 + $0x80] sm:$0xff]
    %v2501 = vld [vmem:[%s4 + $0x88] sm:$0xf]
    %v2502 = vld [vmem:[%s4 + $0x8c] sm:$0xff]
    %v2503 = vld [vmem:[%s4 + $0x94] sm:$0xff]
    %v2504 = vld [vmem:[%s4 + $0x9c] sm:$0xf]
    %v2505 = vld [vmem:[%s4 + $0xa0] sm:$0xff]
    %v2506 = vld [vmem:[%s4 + $0xa8] sm:$0xff]
    %v2507 = vld [vmem:[%s4 + $0xb0] sm:$0xf]
    %v2508 = vld [vmem:[%s4 + $0xb4] sm:$0xff]
    %v2509 = vld [vmem:[%s4 + $0xbc] sm:$0xff]
    %v2510 = vld [vmem:[%s4 + $0xc4] sm:$0xf]
    %v2511 = vld [vmem:[%s4 + $0xc8] sm:$0xff]
    %v2512 = vld [vmem:[%s4 + $0xd0] sm:$0xff]
    %v2513 = vld [vmem:[%s4 + $0xd8] sm:$0xf]
    %v2514 = vld [vmem:[%s4 + $0xdc] sm:$0xff]
    %v2515 = vld [vmem:[%s4 + $0xe4] sm:$0xff]
    %v2516 = vld [vmem:[%s4 + $0xec] sm:$0xf]
    %v2517 = vld [vmem:[%s4 + $0xf0] sm:$0xff]
    %v2518 = vld [vmem:[%s4 + $0xf8] sm:$0xff]
    %v2519 = vld [vmem:[%s4 + $0x100] sm:$0xf]
    %v2520 = vld [vmem:[%s4 + $0x104] sm:$0xff]
    %v2521 = vld [vmem:[%s4 + $0x10c] sm:$0xff]
    %v2522 = vld [vmem:[%s4 + $0x114] sm:$0xf]
    %v2523 = vld [vmem:[%s4 + $0x118] sm:$0xff]
    %v2524 = vld [vmem:[%s4 + $0x120] sm:$0xff]
    %v2525 = vld [vmem:[%s4 + $0x128] sm:$0xf]
    %v2526 = vld [vmem:[%s4 + $0x12c] sm:$0xff]
    %v2527 = vld [vmem:[%s4 + $0x134] sm:$0xff]
    %v2528 = vld [vmem:[%s4 + $0x13c] sm:$0xf]
    %v2577 = vunpack.c.l.b16 %v2481
    %v2578 = vunpack.c.h.b16 %v2481
    %v2579 = vunpack.c.l.b16 %v2482
    %v2580 = vunpack.c.h.b16 %v2482
    %v2581 = vunpack.c.l.b16 %v2483
    %v2582 = vunpack.c.l.b16 %v2484
    %v2583 = vunpack.c.h.b16 %v2484
    %v2584 = vunpack.c.l.b16 %v2485
    %v2585 = vunpack.c.h.b16 %v2485
    %v2586 = vunpack.c.l.b16 %v2486
    %v2587 = vunpack.c.l.b16 %v2487
    %v2588 = vunpack.c.h.b16 %v2487
    %v2589 = vunpack.c.l.b16 %v2488
    %v2590 = vunpack.c.h.b16 %v2488
    %v2591 = vunpack.c.l.b16 %v2489
    %v2592 = vunpack.c.l.b16 %v2490
    %v2593 = vunpack.c.h.b16 %v2490
    %v2594 = vunpack.c.l.b16 %v2491
    %v2595 = vunpack.c.h.b16 %v2491
    %v2596 = vunpack.c.l.b16 %v2492
    %v2597 = vunpack.c.l.b16 %v2493
    %v2598 = vunpack.c.h.b16 %v2493
    %v2599 = vunpack.c.l.b16 %v2494
    %v2600 = vunpack.c.h.b16 %v2494
    %v2601 = vunpack.c.l.b16 %v2495
    %v2602 = vunpack.c.l.b16 %v2496
    %v2603 = vunpack.c.h.b16 %v2496
    %v2604 = vunpack.c.l.b16 %v2497
    %v2605 = vunpack.c.h.b16 %v2497
    %v2606 = vunpack.c.l.b16 %v2498
    %v2607 = vunpack.c.l.b16 %v2499
    %v2608 = vunpack.c.h.b16 %v2499
    %v2609 = vunpack.c.l.b16 %v2500
    %v2610 = vunpack.c.h.b16 %v2500
    %v2611 = vunpack.c.l.b16 %v2501
    %v2612 = vunpack.c.l.b16 %v2502
    %v2613 = vunpack.c.h.b16 %v2502
    %v2614 = vunpack.c.l.b16 %v2503
    %v2615 = vunpack.c.h.b16 %v2503
    %v2616 = vunpack.c.l.b16 %v2504
    %v2617 = vunpack.c.l.b16 %v2505
    %v2618 = vunpack.c.h.b16 %v2505
    %v2619 = vunpack.c.l.b16 %v2506
    %v2620 = vunpack.c.h.b16 %v2506
    %v2621 = vunpack.c.l.b16 %v2507
    %v2622 = vunpack.c.l.b16 %v2508
    %v2623 = vunpack.c.h.b16 %v2508
    %v2624 = vunpack.c.l.b16 %v2509
    %v2625 = vunpack.c.h.b16 %v2509
    %v2626 = vunpack.c.l.b16 %v2510
    %v2627 = vunpack.c.l.b16 %v2511
    %v2628 = vunpack.c.h.b16 %v2511
    %v2629 = vunpack.c.l.b16 %v2512
    %v2630 = vunpack.c.h.b16 %v2512
    %v2631 = vunpack.c.l.b16 %v2513
    %v2632 = vunpack.c.l.b16 %v2514
    %v2633 = vunpack.c.h.b16 %v2514
    %v2634 = vunpack.c.l.b16 %v2515
    %v2635 = vunpack.c.h.b16 %v2515
    %v2636 = vunpack.c.l.b16 %v2516
    %v2637 = vunpack.c.l.b16 %v2517
    %v2638 = vunpack.c.h.b16 %v2517
    %v2639 = vunpack.c.l.b16 %v2518
    %v2640 = vunpack.c.h.b16 %v2518
    %v2641 = vunpack.c.l.b16 %v2519
    %v2642 = vunpack.c.l.b16 %v2520
    %v2643 = vunpack.c.h.b16 %v2520
    %v2644 = vunpack.c.l.b16 %v2521
    %v2645 = vunpack.c.h.b16 %v2521
    %v2646 = vunpack.c.l.b16 %v2522
    %v2647 = vunpack.c.l.b16 %v2523
    %v2648 = vunpack.c.h.b16 %v2523
    %v2649 = vunpack.c.l.b16 %v2524
    %v2650 = vunpack.c.h.b16 %v2524
    %v2651 = vunpack.c.l.b16 %v2525
    %v2652 = vunpack.c.l.b16 %v2526
    %v2653 = vunpack.c.h.b16 %v2526
    %v2654 = vunpack.c.l.b16 %v2527
    %v2655 = vunpack.c.h.b16 %v2527
    %v2656 = vunpack.c.l.b16 %v2528
    %v2657 = vpack.c.b16 %v2582, %v2577
    %v2658 = vpack.c.b16 %v2583, %v2578
    %v2659 = vpack.c.b16 %v2584, %v2579
    %v2660 = vpack.c.b16 %v2585, %v2580
    %v2661 = vpack.c.b16 %v2586, %v2581
    %v2662 = vpack.c.b16 %v2592, %v2587
    %v2663 = vpack.c.b16 %v2593, %v2588
    %v2664 = vpack.c.b16 %v2594, %v2589
    %v2665 = vpack.c.b16 %v2595, %v2590
    %v2666 = vpack.c.b16 %v2596, %v2591
    %v2667 = vpack.c.b16 %v2602, %v2597
    %v2668 = vpack.c.b16 %v2603, %v2598
    %v2669 = vpack.c.b16 %v2604, %v2599
    %v2670 = vpack.c.b16 %v2605, %v2600
    %v2671 = vpack.c.b16 %v2606, %v2601
    %v2672 = vpack.c.b16 %v2612, %v2607
    %v2673 = vpack.c.b16 %v2613, %v2608
    %v2674 = vpack.c.b16 %v2614, %v2609
    %v2675 = vpack.c.b16 %v2615, %v2610
    %v2676 = vpack.c.b16 %v2616, %v2611
    %v2677 = vpack.c.b16 %v2622, %v2617
    %v2678 = vpack.c.b16 %v2623, %v2618
    %v2679 = vpack.c.b16 %v2624, %v2619
    %v2680 = vpack.c.b16 %v2625, %v2620
    %v2681 = vpack.c.b16 %v2626, %v2621
    %v2682 = vpack.c.b16 %v2632, %v2627
    %v2683 = vpack.c.b16 %v2633, %v2628
    %v2684 = vpack.c.b16 %v2634, %v2629
    %v2685 = vpack.c.b16 %v2635, %v2630
    %v2686 = vpack.c.b16 %v2636, %v2631
    %v2687 = vpack.c.b16 %v2642, %v2637
    %v2688 = vpack.c.b16 %v2643, %v2638
    %v2689 = vpack.c.b16 %v2644, %v2639
    %v2690 = vpack.c.b16 %v2645, %v2640
    %v2691 = vpack.c.b16 %v2646, %v2641
    %v2692 = vpack.c.b16 %v2652, %v2647
    %v2693 = vpack.c.b16 %v2653, %v2648
    %v2694 = vpack.c.b16 %v2654, %v2649
    %v2695 = vpack.c.b16 %v2655, %v2650
    %v2696 = vpack.c.b16 %v2656, %v2651
    %2737 = vmatprep.subr.bf16.mxu0 %v2658
    %2738 = vmatpush1.bf16.msra.mxu0 %v2657
    %2739 = vmatprep.subr.bf16.mxu0 %v2663
    %2740 = vmatpush1.bf16.msra.mxu0 %v2662
    %2741 = vmatprep.subr.bf16.mxu0 %v2668
    %2742 = vmatpush1.bf16.msra.mxu0 %v2667
    %2743 = vmatprep.subr.bf16.mxu0 %v2673
    %2744 = vmatpush1.bf16.msra.mxu0 %v2672
    %2745 = vmatprep.subr.bf16.mxu0 %v2678
    %2746 = vmatpush1.bf16.msra.mxu0 %v2677
    %2747 = vmatprep.subr.bf16.mxu0 %v2683
    %2748 = vmatpush1.bf16.msra.mxu0 %v2682
    %2749 = vmatprep.subr.bf16.mxu0 %v2688
    %2750 = vmatpush1.bf16.msra.mxu0 %v2687
    %2751 = vmatprep.subr.bf16.mxu0 %v2693
    %2752 = vmatpush1.bf16.msra.mxu0 %v2692
    %2753 = vmatprep.subr.bf16.mxu0 0
    %2754 = vmatpush1.bf16.msra.mxu0 0
    %2755 = vmatprep.subr.bf16.mxu0 0
    %2756 = vmatpush1.bf16.msra.mxu0 0
    %2757 = vmatprep.subr.bf16.mxu0 0
    %2758 = vmatpush1.bf16.msra.mxu0 0
    %2759 = vmatprep.subr.bf16.mxu0 0
    %2760 = vmatpush1.bf16.msra.mxu0 0
    %2761 = vmatprep.subr.bf16.mxu0 0
    %2762 = vmatpush1.bf16.msra.mxu0 0
    %2763 = vmatprep.subr.bf16.mxu0 0
    %2764 = vmatpush1.bf16.msra.mxu0 0
    %2765 = vmatprep.subr.bf16.mxu0 0
    %2766 = vmatpush1.bf16.msra.mxu0 0
    %2767 = vmatprep.subr.bf16.mxu0 0
    %2768 = vmatpush1.bf16.msra.mxu0 0
    %2769 = vmatprep.mubr.bf16.mxu0 0
    %2770 = vmatmul.mubr.bf16.gmra.mrb[0].mxu0 %v2480
    %v2771 = vpop.f32.mrb[0].mxu0
    %v2772 = vadd.f32 %v1260, %v2771
    %v2773 = vpop.f32.mrb[0].mxu0
    %v2774 = vadd.f32 %v1264, %v2773
    %v2775 = vpop.f32.mrb[0].mxu0
    %v2776 = vpop.f32.mrb[0].mxu0
    %2777 = vdwg.mxu0
    %2778 = vmatprep.subr.bf16.mxu0 %v2660
    %2779 = vmatpush1.bf16.msra.mxu0 %v2659
    %2780 = vmatprep.subr.bf16.mxu0 %v2665
    %2781 = vmatpush1.bf16.msra.mxu0 %v2664
    %2782 = vmatprep.subr.bf16.mxu0 %v2670
    %2783 = vmatpush1.bf16.msra.mxu0 %v2669
    %2784 = vmatprep.subr.bf16.mxu0 %v2675
    %2785 = vmatpush1.bf16.msra.mxu0 %v2674
    %2786 = vmatprep.subr.bf16.mxu0 %v2680
    %2787 = vmatpush1.bf16.msra.mxu0 %v2679
    %2788 = vmatprep.subr.bf16.mxu0 %v2685
    %2789 = vmatpush1.bf16.msra.mxu0 %v2684
    %2790 = vmatprep.subr.bf16.mxu0 %v2690
    %2791 = vmatpush1.bf16.msra.mxu0 %v2689
    %2792 = vmatprep.subr.bf16.mxu0 %v2695
    %2793 = vmatpush1.bf16.msra.mxu0 %v2694
    %2794 = vmatprep.subr.bf16.mxu0 0
    %2795 = vmatpush1.bf16.msra.mxu0 0
    %2796 = vmatprep.subr.bf16.mxu0 0
    %2797 = vmatpush1.bf16.msra.mxu0 0
    %2798 = vmatprep.subr.bf16.mxu0 0
    %2799 = vmatpush1.bf16.msra.mxu0 0
    %2800 = vmatprep.subr.bf16.mxu0 0
    %2801 = vmatpush1.bf16.msra.mxu0 0
    %2802 = vmatprep.subr.bf16.mxu0 0
    %2803 = vmatpush1.bf16.msra.mxu0 0
    %2804 = vmatprep.subr.bf16.mxu0 0
    %2805 = vmatpush1.bf16.msra.mxu0 0
    %2806 = vmatprep.subr.bf16.mxu0 0
    %2807 = vmatpush1.bf16.msra.mxu0 0
    %2808 = vmatprep.subr.bf16.mxu0 0
    %2809 = vmatpush1.bf16.msra.mxu0 0
    %2810 = vmatprep.mubr.bf16.mxu0 0
    %2811 = vmatmul.mubr.bf16.gmra.mrb[0].mxu0 %v2480
    %v2812 = vpop.f32.mrb[0].mxu0
    %v2813 = vadd.f32 %v1268, %v2812
    %v2814 = vpop.f32.mrb[0].mxu0
    %v2815 = vadd.f32 %v1272, %v2814
    %v2816 = vpop.f32.mrb[0].mxu0
    %v2817 = vpop.f32.mrb[0].mxu0
    %2818 = vdwg.mxu0
    %2819 = vmatprep.subr.bf16.mxu0 0
    %2820 = vmatpush1.bf16.msra.mxu0 %v2661
    %2821 = vmatprep.subr.bf16.mxu0 0
    %2822 = vmatpush1.bf16.msra.mxu0 %v2666
    %2823 = vmatprep.subr.bf16.mxu0 0
    %2824 = vmatpush1.bf16.msra.mxu0 %v2671
    %2825 = vmatprep.subr.bf16.mxu0 0
    %2826 = vmatpush1.bf16.msra.mxu0 %v2676
    %2827 = vmatprep.subr.bf16.mxu0 0
    %2828 = vmatpush1.bf16.msra.mxu0 %v2681
    %2829 = vmatprep.subr.bf16.mxu0 0
    %2830 = vmatpush1.bf16.msra.mxu0 %v2686
    %2831 = vmatprep.subr.bf16.mxu0 0
    %2832 = vmatpush1.bf16.msra.mxu0 %v2691
    %2833 = vmatprep.subr.bf16.mxu0 0
    %2834 = vmatpush1.bf16.msra.mxu0 %v2696
    %2835 = vmatprep.subr.bf16.mxu0 0
    %2836 = vmatpush1.bf16.msra.mxu0 0
    %2837 = vmatprep.subr.bf16.mxu0 0
    %2838 = vmatpush1.bf16.msra.mxu0 0
    %2839 = vmatprep.subr.bf16.mxu0 0
    %2840 = vmatpush1.bf16.msra.mxu0 0
    %2841 = vmatprep.subr.bf16.mxu0 0
    %2842 = vmatpush1.bf16.msra.mxu0 0
    %2843 = vmatprep.subr.bf16.mxu0 0
    %2844 = vmatpush1.bf16.msra.mxu0 0
    %2845 = vmatprep.subr.bf16.mxu0 0
    %2846 = vmatpush1.bf16.msra.mxu0 0
    %2847 = vmatprep.subr.bf16.mxu0 0
    %2848 = vmatpush1.bf16.msra.mxu0 0
    %2849 = vmatprep.subr.bf16.mxu0 0
    %2850 = vmatpush1.bf16.msra.mxu0 0
    %2851 = vmatprep.mubr.bf16.mxu0 0
    %2852 = vmatmul.mubr.bf16.gmra.mrb[0].mxu0 %v2480
    %v2853 = vpop.f32.mrb[0].mxu0
    %v2854 = vadd.f32 %v1276, %v2853
    %v2855 = vpop.f32.mrb[0].mxu0
    %v2856 = vpop.f32.mrb[0].mxu0
    %v2857 = vpop.f32.mrb[0].mxu0
    %2858 = vdwg.mxu0
    %s2859 = scalar_lea.vmem %s6, 32
    %2860 = vst.msk [vmem:[%s2859] sm:$0xff] %vm1662, %v2854
    %v2861 = vmul.f32 %v2772, 0.5
    %v2862 = vtanh.pop %v2861
    %v2863 = vmul.f32 %v2862, 0.5
    %v2864 = vadd.f32 %v2863, 0.5
    %v2865 = vmul.f32 %v2774, 0.5
    %v2866 = vtanh.pop %v2865
    %v2867 = vmul.f32 %v2866, 0.5
    %v2868 = vadd.f32 %v2867, 0.5
    %v2869 = vtanh.pop %v2813
    %v2870 = vmul.f32 %v2815, 0.5
    %v2871 = vtanh.pop %v2870
    %v2872 = vmul.f32 %v2871, 0.5
    %v2873 = vadd.f32 %v2872, 0.5
    %v2874 = vmul.f32 %v2868, %v2477
    %v2875 = vmul.f32 %v2864, %v2869
    %v2876 = vadd.f32 %v2874, %v2875
    %v2877 = vtanh.pop %v2876
    %v2878 = vmul.f32 %v2873, %v2877
    %v2879 = vpack.c.bf16 %v2878, %v2878
    %v2880 = vld [vmem:[%s4] sm:$0xff]
    %v2881 = vld [vmem:[%s4 + $0x8] sm:$0xff]
    %v2882 = vld [vmem:[%s4 + $0x10] sm:$0xf]
    %v2883 = vld [vmem:[%s4 + $0x14] sm:$0xff]
    %v2884 = vld [vmem:[%s4 + $0x1c] sm:$0xff]
    %v2885 = vld [vmem:[%s4 + $0x24] sm:$0xf]
    %v2886 = vld [vmem:[%s4 + $0x28] sm:$0xff]
    %v2887 = vld [vmem:[%s4 + $0x30] sm:$0xff]
    %v2888 = vld [vmem:[%s4 + $0x38] sm:$0xf]
    %v2889 = vld [vmem:[%s4 + $0x3c] sm:$0xff]
    %v2890 = vld [vmem:[%s4 + $0x44] sm:$0xff]
    %v2891 = vld [vmem:[%s4 + $0x4c] sm:$0xf]
    %v2892 = vld [vmem:[%s4 + $0x50] sm:$0xff]
    %v2893 = vld [vmem:[%s4 + $0x58] sm:$0xff]
    %v2894 = vld [vmem:[%s4 + $0x60] sm:$0xf]
    %v2895 = vld [vmem:[%s4 + $0x64] sm:$0xff]
    %v2896 = vld [vmem:[%s4 + $0x6c] sm:$0xff]
    %v2897 = vld [vmem:[%s4 + $0x74] sm:$0xf]
    %v2898 = vld [vmem:[%s4 + $0x78] sm:$0xff]
    %v2899 = vld [vmem:[%s4 + $0x80] sm:$0xff]
    %v2900 = vld [vmem:[%s4 + $0x88] sm:$0xf]
    %v2901 = vld [vmem:[%s4 + $0x8c] sm:$0xff]
    %v2902 = vld [vmem:[%s4 + $0x94] sm:$0xff]
    %v2903 = vld [vmem:[%s4 + $0x9c] sm:$0xf]
    %v2904 = vld [vmem:[%s4 + $0xa0] sm:$0xff]
    %v2905 = vld [vmem:[%s4 + $0xa8] sm:$0xff]
    %v2906 = vld [vmem:[%s4 + $0xb0] sm:$0xf]
    %v2907 = vld [vmem:[%s4 + $0xb4] sm:$0xff]
    %v2908 = vld [vmem:[%s4 + $0xbc] sm:$0xff]
    %v2909 = vld [vmem:[%s4 + $0xc4] sm:$0xf]
    %v2910 = vld [vmem:[%s4 + $0xc8] sm:$0xff]
    %v2911 = vld [vmem:[%s4 + $0xd0] sm:$0xff]
    %v2912 = vld [vmem:[%s4 + $0xd8] sm:$0xf]
    %v2913 = vld [vmem:[%s4 + $0xdc] sm:$0xff]
    %v2914 = vld [vmem:[%s4 + $0xe4] sm:$0xff]
    %v2915 = vld [vmem:[%s4 + $0xec] sm:$0xf]
    %v2916 = vld [vmem:[%s4 + $0xf0] sm:$0xff]
    %v2917 = vld [vmem:[%s4 + $0xf8] sm:$0xff]
    %v2918 = vld [vmem:[%s4 + $0x100] sm:$0xf]
    %v2919 = vld [vmem:[%s4 + $0x104] sm:$0xff]
    %v2920 = vld [vmem:[%s4 + $0x10c] sm:$0xff]
    %v2921 = vld [vmem:[%s4 + $0x114] sm:$0xf]
    %v2922 = vld [vmem:[%s4 + $0x118] sm:$0xff]
    %v2923 = vld [vmem:[%s4 + $0x120] sm:$0xff]
    %v2924 = vld [vmem:[%s4 + $0x128] sm:$0xf]
    %v2925 = vld [vmem:[%s4 + $0x12c] sm:$0xff]
    %v2926 = vld [vmem:[%s4 + $0x134] sm:$0xff]
    %v2927 = vld [vmem:[%s4 + $0x13c] sm:$0xf]
    %v2976 = vunpack.c.l.b16 %v2880
    %v2977 = vunpack.c.h.b16 %v2880
    %v2978 = vunpack.c.l.b16 %v2881
    %v2979 = vunpack.c.h.b16 %v2881
    %v2980 = vunpack.c.l.b16 %v2882
    %v2981 = vunpack.c.l.b16 %v2883
    %v2982 = vunpack.c.h.b16 %v2883
    %v2983 = vunpack.c.l.b16 %v2884
    %v2984 = vunpack.c.h.b16 %v2884
    %v2985 = vunpack.c.l.b16 %v2885
    %v2986 = vunpack.c.l.b16 %v2886
    %v2987 = vunpack.c.h.b16 %v2886
    %v2988 = vunpack.c.l.b16 %v2887
    %v2989 = vunpack.c.h.b16 %v2887
    %v2990 = vunpack.c.l.b16 %v2888
    %v2991 = vunpack.c.l.b16 %v2889
    %v2992 = vunpack.c.h.b16 %v2889
    %v2993 = vunpack.c.l.b16 %v2890
    %v2994 = vunpack.c.h.b16 %v2890
    %v2995 = vunpack.c.l.b16 %v2891
    %v2996 = vunpack.c.l.b16 %v2892
    %v2997 = vunpack.c.h.b16 %v2892
    %v2998 = vunpack.c.l.b16 %v2893
    %v2999 = vunpack.c.h.b16 %v2893
    %v3000 = vunpack.c.l.b16 %v2894
    %v3001 = vunpack.c.l.b16 %v2895
    %v3002 = vunpack.c.h.b16 %v2895
    %v3003 = vunpack.c.l.b16 %v2896
    %v3004 = vunpack.c.h.b16 %v2896
    %v3005 = vunpack.c.l.b16 %v2897
    %v3006 = vunpack.c.l.b16 %v2898
    %v3007 = vunpack.c.h.b16 %v2898
    %v3008 = vunpack.c.l.b16 %v2899
    %v3009 = vunpack.c.h.b16 %v2899
    %v3010 = vunpack.c.l.b16 %v2900
    %v3011 = vunpack.c.l.b16 %v2901
    %v3012 = vunpack.c.h.b16 %v2901
    %v3013 = vunpack.c.l.b16 %v2902
    %v3014 = vunpack.c.h.b16 %v2902
    %v3015 = vunpack.c.l.b16 %v2903
    %v3016 = vunpack.c.l.b16 %v2904
    %v3017 = vunpack.c.h.b16 %v2904
    %v3018 = vunpack.c.l.b16 %v2905
    %v3019 = vunpack.c.h.b16 %v2905
    %v3020 = vunpack.c.l.b16 %v2906
    %v3021 = vunpack.c.l.b16 %v2907
    %v3022 = vunpack.c.h.b16 %v2907
    %v3023 = vunpack.c.l.b16 %v2908
    %v3024 = vunpack.c.h.b16 %v2908
    %v3025 = vunpack.c.l.b16 %v2909
    %v3026 = vunpack.c.l.b16 %v2910
    %v3027 = vunpack.c.h.b16 %v2910
    %v3028 = vunpack.c.l.b16 %v2911
    %v3029 = vunpack.c.h.b16 %v2911
    %v3030 = vunpack.c.l.b16 %v2912
    %v3031 = vunpack.c.l.b16 %v2913
    %v3032 = vunpack.c.h.b16 %v2913
    %v3033 = vunpack.c.l.b16 %v2914
    %v3034 = vunpack.c.h.b16 %v2914
    %v3035 = vunpack.c.l.b16 %v2915
    %v3036 = vunpack.c.l.b16 %v2916
    %v3037 = vunpack.c.h.b16 %v2916
    %v3038 = vunpack.c.l.b16 %v2917
    %v3039 = vunpack.c.h.b16 %v2917
    %v3040 = vunpack.c.l.b16 %v2918
    %v3041 = vunpack.c.l.b16 %v2919
    %v3042 = vunpack.c.h.b16 %v2919
    %v3043 = vunpack.c.l.b16 %v2920
    %v3044 = vunpack.c.h.b16 %v2920
    %v3045 = vunpack.c.l.b16 %v2921
    %v3046 = vunpack.c.l.b16 %v2922
    %v3047 = vunpack.c.h.b16 %v2922
    %v3048 = vunpack.c.l.b16 %v2923
    %v3049 = vunpack.c.h.b16 %v2923
    %v3050 = vunpack.c.l.b16 %v2924
    %v3051 = vunpack.c.l.b16 %v2925
    %v3052 = vunpack.c.h.b16 %v2925
    %v3053 = vunpack.c.l.b16 %v2926
    %v3054 = vunpack.c.h.b16 %v2926
    %v3055 = vunpack.c.l.b16 %v2927
    %v3056 = vpack.c.b16 %v2981, %v2976
    %v3057 = vpack.c.b16 %v2982, %v2977
    %v3058 = vpack.c.b16 %v2983, %v2978
    %v3059 = vpack.c.b16 %v2984, %v2979
    %v3060 = vpack.c.b16 %v2985, %v2980
    %v3061 = vpack.c.b16 %v2991, %v2986
    %v3062 = vpack.c.b16 %v2992, %v2987
    %v3063 = vpack.c.b16 %v2993, %v2988
    %v3064 = vpack.c.b16 %v2994, %v2989
    %v3065 = vpack.c.b16 %v2995, %v2990
    %v3066 = vpack.c.b16 %v3001, %v2996
    %v3067 = vpack.c.b16 %v3002, %v2997
    %v3068 = vpack.c.b16 %v3003, %v2998
    %v3069 = vpack.c.b16 %v3004, %v2999
    %v3070 = vpack.c.b16 %v3005, %v3000
    %v3071 = vpack.c.b16 %v3011, %v3006
    %v3072 = vpack.c.b16 %v3012, %v3007
    %v3073 = vpack.c.b16 %v3013, %v3008
    %v3074 = vpack.c.b16 %v3014, %v3009
    %v3075 = vpack.c.b16 %v3015, %v3010
    %v3076 = vpack.c.b16 %v3021, %v3016
    %v3077 = vpack.c.b16 %v3022, %v3017
    %v3078 = vpack.c.b16 %v3023, %v3018
    %v3079 = vpack.c.b16 %v3024, %v3019
    %v3080 = vpack.c.b16 %v3025, %v3020
    %v3081 = vpack.c.b16 %v3031, %v3026
    %v3082 = vpack.c.b16 %v3032, %v3027
    %v3083 = vpack.c.b16 %v3033, %v3028
    %v3084 = vpack.c.b16 %v3034, %v3029
    %v3085 = vpack.c.b16 %v3035, %v3030
    %v3086 = vpack.c.b16 %v3041, %v3036
    %v3087 = vpack.c.b16 %v3042, %v3037
    %v3088 = vpack.c.b16 %v3043, %v3038
    %v3089 = vpack.c.b16 %v3044, %v3039
    %v3090 = vpack.c.b16 %v3045, %v3040
    %v3091 = vpack.c.b16 %v3051, %v3046
    %v3092 = vpack.c.b16 %v3052, %v3047
    %v3093 = vpack.c.b16 %v3053, %v3048
    %v3094 = vpack.c.b16 %v3054, %v3049
    %v3095 = vpack.c.b16 %v3055, %v3050
    %3136 = vmatprep.subr.bf16.mxu0 %v3057
    %3137 = vmatpush1.bf16.msra.mxu0 %v3056
    %3138 = vmatprep.subr.bf16.mxu0 %v3062
    %3139 = vmatpush1.bf16.msra.mxu0 %v3061
    %3140 = vmatprep.subr.bf16.mxu0 %v3067
    %3141 = vmatpush1.bf16.msra.mxu0 %v3066
    %3142 = vmatprep.subr.bf16.mxu0 %v3072
    %3143 = vmatpush1.bf16.msra.mxu0 %v3071
    %3144 = vmatprep.subr.bf16.mxu0 %v3077
    %3145 = vmatpush1.bf16.msra.mxu0 %v3076
    %3146 = vmatprep.subr.bf16.mxu0 %v3082
    %3147 = vmatpush1.bf16.msra.mxu0 %v3081
    %3148 = vmatprep.subr.bf16.mxu0 %v3087
    %3149 = vmatpush1.bf16.msra.mxu0 %v3086
    %3150 = vmatprep.subr.bf16.mxu0 %v3092
    %3151 = vmatpush1.bf16.msra.mxu0 %v3091
    %3152 = vmatprep.subr.bf16.mxu0 0
    %3153 = vmatpush1.bf16.msra.mxu0 0
    %3154 = vmatprep.subr.bf16.mxu0 0
    %3155 = vmatpush1.bf16.msra.mxu0 0
    %3156 = vmatprep.subr.bf16.mxu0 0
    %3157 = vmatpush1.bf16.msra.mxu0 0
    %3158 = vmatprep.subr.bf16.mxu0 0
    %3159 = vmatpush1.bf16.msra.mxu0 0
    %3160 = vmatprep.subr.bf16.mxu0 0
    %3161 = vmatpush1.bf16.msra.mxu0 0
    %3162 = vmatprep.subr.bf16.mxu0 0
    %3163 = vmatpush1.bf16.msra.mxu0 0
    %3164 = vmatprep.subr.bf16.mxu0 0
    %3165 = vmatpush1.bf16.msra.mxu0 0
    %3166 = vmatprep.subr.bf16.mxu0 0
    %3167 = vmatpush1.bf16.msra.mxu0 0
    %3168 = vmatprep.mubr.bf16.mxu0 0
    %3169 = vmatmul.mubr.bf16.gmra.mrb[0].mxu0 %v2879
    %v3170 = vpop.f32.mrb[0].mxu0
    %v3171 = vadd.f32 %v1260, %v3170
    %v3172 = vpop.f32.mrb[0].mxu0
    %v3173 = vadd.f32 %v1264, %v3172
    %v3174 = vpop.f32.mrb[0].mxu0
    %v3175 = vpop.f32.mrb[0].mxu0
    %3176 = vdwg.mxu0
    %3177 = vmatprep.subr.bf16.mxu0 %v3059
    %3178 = vmatpush1.bf16.msra.mxu0 %v3058
    %3179 = vmatprep.subr.bf16.mxu0 %v3064
    %3180 = vmatpush1.bf16.msra.mxu0 %v3063
    %3181 = vmatprep.subr.bf16.mxu0 %v3069
    %3182 = vmatpush1.bf16.msra.mxu0 %v3068
    %3183 = vmatprep.subr.bf16.mxu0 %v3074
    %3184 = vmatpush1.bf16.msra.mxu0 %v3073
    %3185 = vmatprep.subr.bf16.mxu0 %v3079
    %3186 = vmatpush1.bf16.msra.mxu0 %v3078
    %3187 = vmatprep.subr.bf16.mxu0 %v3084
    %3188 = vmatpush1.bf16.msra.mxu0 %v3083
    %3189 = vmatprep.subr.bf16.mxu0 %v3089
    %3190 = vmatpush1.bf16.msra.mxu0 %v3088
    %3191 = vmatprep.subr.bf16.mxu0 %v3094
    %3192 = vmatpush1.bf16.msra.mxu0 %v3093
    %3193 = vmatprep.subr.bf16.mxu0 0
    %3194 = vmatpush1.bf16.msra.mxu0 0
    %3195 = vmatprep.subr.bf16.mxu0 0
    %3196 = vmatpush1.bf16.msra.mxu0 0
    %3197 = vmatprep.subr.bf16.mxu0 0
    %3198 = vmatpush1.bf16.msra.mxu0 0
    %3199 = vmatprep.subr.bf16.mxu0 0
    %3200 = vmatpush1.bf16.msra.mxu0 0
    %3201 = vmatprep.subr.bf16.mxu0 0
    %3202 = vmatpush1.bf16.msra.mxu0 0
    %3203 = vmatprep.subr.bf16.mxu0 0
    %3204 = vmatpush1.bf16.msra.mxu0 0
    %3205 = vmatprep.subr.bf16.mxu0 0
    %3206 = vmatpush1.bf16.msra.mxu0 0
    %3207 = vmatprep.subr.bf16.mxu0 0
    %3208 = vmatpush1.bf16.msra.mxu0 0
    %3209 = vmatprep.mubr.bf16.mxu0 0
    %3210 = vmatmul.mubr.bf16.gmra.mrb[0].mxu0 %v2879
    %v3211 = vpop.f32.mrb[0].mxu0
    %v3212 = vadd.f32 %v1268, %v3211
    %v3213 = vpop.f32.mrb[0].mxu0
    %v3214 = vadd.f32 %v1272, %v3213
    %v3215 = vpop.f32.mrb[0].mxu0
    %v3216 = vpop.f32.mrb[0].mxu0
    %3217 = vdwg.mxu0
    %3218 = vmatprep.subr.bf16.mxu0 0
    %3219 = vmatpush1.bf16.msra.mxu0 %v3060
    %3220 = vmatprep.subr.bf16.mxu0 0
    %3221 = vmatpush1.bf16.msra.mxu0 %v3065
    %3222 = vmatprep.subr.bf16.mxu0 0
    %3223 = vmatpush1.bf16.msra.mxu0 %v3070
    %3224 = vmatprep.subr.bf16.mxu0 0
    %3225 = vmatpush1.bf16.msra.mxu0 %v3075
    %3226 = vmatprep.subr.bf16.mxu0 0
    %3227 = vmatpush1.bf16.msra.mxu0 %v3080
    %3228 = vmatprep.subr.bf16.mxu0 0
    %3229 = vmatpush1.bf16.msra.mxu0 %v3085
    %3230 = vmatprep.subr.bf16.mxu0 0
    %3231 = vmatpush1.bf16.msra.mxu0 %v3090
    %3232 = vmatprep.subr.bf16.mxu0 0
    %3233 = vmatpush1.bf16.msra.mxu0 %v3095
    %3234 = vmatprep.subr.bf16.mxu0 0
    %3235 = vmatpush1.bf16.msra.mxu0 0
    %3236 = vmatprep.subr.bf16.mxu0 0
    %3237 = vmatpush1.bf16.msra.mxu0 0
    %3238 = vmatprep.subr.bf16.mxu0 0
    %3239 = vmatpush1.bf16.msra.mxu0 0
    %3240 = vmatprep.subr.bf16.mxu0 0
    %3241 = vmatpush1.bf16.msra.mxu0 0
    %3242 = vmatprep.subr.bf16.mxu0 0
    %3243 = vmatpush1.bf16.msra.mxu0 0
    %3244 = vmatprep.subr.bf16.mxu0 0
    %3245 = vmatpush1.bf16.msra.mxu0 0
    %3246 = vmatprep.subr.bf16.mxu0 0
    %3247 = vmatpush1.bf16.msra.mxu0 0
    %3248 = vmatprep.subr.bf16.mxu0 0
    %3249 = vmatpush1.bf16.msra.mxu0 0
    %3250 = vmatprep.mubr.bf16.mxu0 0
    %3251 = vmatmul.mubr.bf16.gmra.mrb[0].mxu0 %v2879
    %v3252 = vpop.f32.mrb[0].mxu0
    %v3253 = vadd.f32 %v1276, %v3252
    %v3254 = vpop.f32.mrb[0].mxu0
    %v3255 = vpop.f32.mrb[0].mxu0
    %v3256 = vpop.f32.mrb[0].mxu0
    %3257 = vdwg.mxu0
    %s3258 = scalar_lea.vmem %s6, 24
    %3259 = vst.msk [vmem:[%s3258] sm:$0xff] %vm1662, %v3253
    %v3260 = vmul.f32 %v3171, 0.5
    %v3261 = vtanh.pop %v3260
    %v3262 = vmul.f32 %v3261, 0.5
    %v3263 = vadd.f32 %v3262, 0.5
    %v3264 = vmul.f32 %v3173, 0.5
    %v3265 = vtanh.pop %v3264
    %v3266 = vmul.f32 %v3265, 0.5
    %v3267 = vadd.f32 %v3266, 0.5
    %v3268 = vtanh.pop %v3212
    %v3269 = vmul.f32 %v3214, 0.5
    %v3270 = vtanh.pop %v3269
    %v3271 = vmul.f32 %v3270, 0.5
    %v3272 = vadd.f32 %v3271, 0.5
    %v3273 = vmul.f32 %v3267, %v2876
    %v3274 = vmul.f32 %v3263, %v3268
    %v3275 = vadd.f32 %v3273, %v3274
    %v3276 = vtanh.pop %v3275
    %v3277 = vmul.f32 %v3272, %v3276
    %v3278 = vpack.c.bf16 %v3277, %v3277
    %v3279 = vld [vmem:[%s4] sm:$0xff]
    %v3280 = vld [vmem:[%s4 + $0x8] sm:$0xff]
    %v3281 = vld [vmem:[%s4 + $0x10] sm:$0xf]
    %v3282 = vld [vmem:[%s4 + $0x14] sm:$0xff]
    %v3283 = vld [vmem:[%s4 + $0x1c] sm:$0xff]
    %v3284 = vld [vmem:[%s4 + $0x24] sm:$0xf]
    %v3285 = vld [vmem:[%s4 + $0x28] sm:$0xff]
    %v3286 = vld [vmem:[%s4 + $0x30] sm:$0xff]
    %v3287 = vld [vmem:[%s4 + $0x38] sm:$0xf]
    %v3288 = vld [vmem:[%s4 + $0x3c] sm:$0xff]
    %v3289 = vld [vmem:[%s4 + $0x44] sm:$0xff]
    %v3290 = vld [vmem:[%s4 + $0x4c] sm:$0xf]
    %v3291 = vld [vmem:[%s4 + $0x50] sm:$0xff]
    %v3292 = vld [vmem:[%s4 + $0x58] sm:$0xff]
    %v3293 = vld [vmem:[%s4 + $0x60] sm:$0xf]
    %v3294 = vld [vmem:[%s4 + $0x64] sm:$0xff]
    %v3295 = vld [vmem:[%s4 + $0x6c] sm:$0xff]
    %v3296 = vld [vmem:[%s4 + $0x74] sm:$0xf]
    %v3297 = vld [vmem:[%s4 + $0x78] sm:$0xff]
    %v3298 = vld [vmem:[%s4 + $0x80] sm:$0xff]
    %v3299 = vld [vmem:[%s4 + $0x88] sm:$0xf]
    %v3300 = vld [vmem:[%s4 + $0x8c] sm:$0xff]
    %v3301 = vld [vmem:[%s4 + $0x94] sm:$0xff]
    %v3302 = vld [vmem:[%s4 + $0x9c] sm:$0xf]
    %v3303 = vld [vmem:[%s4 + $0xa0] sm:$0xff]
    %v3304 = vld [vmem:[%s4 + $0xa8] sm:$0xff]
    %v3305 = vld [vmem:[%s4 + $0xb0] sm:$0xf]
    %v3306 = vld [vmem:[%s4 + $0xb4] sm:$0xff]
    %v3307 = vld [vmem:[%s4 + $0xbc] sm:$0xff]
    %v3308 = vld [vmem:[%s4 + $0xc4] sm:$0xf]
    %v3309 = vld [vmem:[%s4 + $0xc8] sm:$0xff]
    %v3310 = vld [vmem:[%s4 + $0xd0] sm:$0xff]
    %v3311 = vld [vmem:[%s4 + $0xd8] sm:$0xf]
    %v3312 = vld [vmem:[%s4 + $0xdc] sm:$0xff]
    %v3313 = vld [vmem:[%s4 + $0xe4] sm:$0xff]
    %v3314 = vld [vmem:[%s4 + $0xec] sm:$0xf]
    %v3315 = vld [vmem:[%s4 + $0xf0] sm:$0xff]
    %v3316 = vld [vmem:[%s4 + $0xf8] sm:$0xff]
    %v3317 = vld [vmem:[%s4 + $0x100] sm:$0xf]
    %v3318 = vld [vmem:[%s4 + $0x104] sm:$0xff]
    %v3319 = vld [vmem:[%s4 + $0x10c] sm:$0xff]
    %v3320 = vld [vmem:[%s4 + $0x114] sm:$0xf]
    %v3321 = vld [vmem:[%s4 + $0x118] sm:$0xff]
    %v3322 = vld [vmem:[%s4 + $0x120] sm:$0xff]
    %v3323 = vld [vmem:[%s4 + $0x128] sm:$0xf]
    %v3324 = vld [vmem:[%s4 + $0x12c] sm:$0xff]
    %v3325 = vld [vmem:[%s4 + $0x134] sm:$0xff]
    %v3326 = vld [vmem:[%s4 + $0x13c] sm:$0xf]
    %v3375 = vunpack.c.l.b16 %v3279
    %v3376 = vunpack.c.h.b16 %v3279
    %v3377 = vunpack.c.l.b16 %v3280
    %v3378 = vunpack.c.h.b16 %v3280
    %v3379 = vunpack.c.l.b16 %v3281
    %v3380 = vunpack.c.l.b16 %v3282
    %v3381 = vunpack.c.h.b16 %v3282
    %v3382 = vunpack.c.l.b16 %v3283
    %v3383 = vunpack.c.h.b16 %v3283
    %v3384 = vunpack.c.l.b16 %v3284
    %v3385 = vunpack.c.l.b16 %v3285
    %v3386 = vunpack.c.h.b16 %v3285
    %v3387 = vunpack.c.l.b16 %v3286
    %v3388 = vunpack.c.h.b16 %v3286
    %v3389 = vunpack.c.l.b16 %v3287
    %v3390 = vunpack.c.l.b16 %v3288
    %v3391 = vunpack.c.h.b16 %v3288
    %v3392 = vunpack.c.l.b16 %v3289
    %v3393 = vunpack.c.h.b16 %v3289
    %v3394 = vunpack.c.l.b16 %v3290
    %v3395 = vunpack.c.l.b16 %v3291
    %v3396 = vunpack.c.h.b16 %v3291
    %v3397 = vunpack.c.l.b16 %v3292
    %v3398 = vunpack.c.h.b16 %v3292
    %v3399 = vunpack.c.l.b16 %v3293
    %v3400 = vunpack.c.l.b16 %v3294
    %v3401 = vunpack.c.h.b16 %v3294
    %v3402 = vunpack.c.l.b16 %v3295
    %v3403 = vunpack.c.h.b16 %v3295
    %v3404 = vunpack.c.l.b16 %v3296
    %v3405 = vunpack.c.l.b16 %v3297
    %v3406 = vunpack.c.h.b16 %v3297
    %v3407 = vunpack.c.l.b16 %v3298
    %v3408 = vunpack.c.h.b16 %v3298
    %v3409 = vunpack.c.l.b16 %v3299
    %v3410 = vunpack.c.l.b16 %v3300
    %v3411 = vunpack.c.h.b16 %v3300
    %v3412 = vunpack.c.l.b16 %v3301
    %v3413 = vunpack.c.h.b16 %v3301
    %v3414 = vunpack.c.l.b16 %v3302
    %v3415 = vunpack.c.l.b16 %v3303
    %v3416 = vunpack.c.h.b16 %v3303
    %v3417 = vunpack.c.l.b16 %v3304
    %v3418 = vunpack.c.h.b16 %v3304
    %v3419 = vunpack.c.l.b16 %v3305
    %v3420 = vunpack.c.l.b16 %v3306
    %v3421 = vunpack.c.h.b16 %v3306
    %v3422 = vunpack.c.l.b16 %v3307
    %v3423 = vunpack.c.h.b16 %v3307
    %v3424 = vunpack.c.l.b16 %v3308
    %v3425 = vunpack.c.l.b16 %v3309
    %v3426 = vunpack.c.h.b16 %v3309
    %v3427 = vunpack.c.l.b16 %v3310
    %v3428 = vunpack.c.h.b16 %v3310
    %v3429 = vunpack.c.l.b16 %v3311
    %v3430 = vunpack.c.l.b16 %v3312
    %v3431 = vunpack.c.h.b16 %v3312
    %v3432 = vunpack.c.l.b16 %v3313
    %v3433 = vunpack.c.h.b16 %v3313
    %v3434 = vunpack.c.l.b16 %v3314
    %v3435 = vunpack.c.l.b16 %v3315
    %v3436 = vunpack.c.h.b16 %v3315
    %v3437 = vunpack.c.l.b16 %v3316
    %v3438 = vunpack.c.h.b16 %v3316
    %v3439 = vunpack.c.l.b16 %v3317
    %v3440 = vunpack.c.l.b16 %v3318
    %v3441 = vunpack.c.h.b16 %v3318
    %v3442 = vunpack.c.l.b16 %v3319
    %v3443 = vunpack.c.h.b16 %v3319
    %v3444 = vunpack.c.l.b16 %v3320
    %v3445 = vunpack.c.l.b16 %v3321
    %v3446 = vunpack.c.h.b16 %v3321
    %v3447 = vunpack.c.l.b16 %v3322
    %v3448 = vunpack.c.h.b16 %v3322
    %v3449 = vunpack.c.l.b16 %v3323
    %v3450 = vunpack.c.l.b16 %v3324
    %v3451 = vunpack.c.h.b16 %v3324
    %v3452 = vunpack.c.l.b16 %v3325
    %v3453 = vunpack.c.h.b16 %v3325
    %v3454 = vunpack.c.l.b16 %v3326
    %v3455 = vpack.c.b16 %v3380, %v3375
    %v3456 = vpack.c.b16 %v3381, %v3376
    %v3457 = vpack.c.b16 %v3382, %v3377
    %v3458 = vpack.c.b16 %v3383, %v3378
    %v3459 = vpack.c.b16 %v3384, %v3379
    %v3460 = vpack.c.b16 %v3390, %v3385
    %v3461 = vpack.c.b16 %v3391, %v3386
    %v3462 = vpack.c.b16 %v3392, %v3387
    %v3463 = vpack.c.b16 %v3393, %v3388
    %v3464 = vpack.c.b16 %v3394, %v3389
    %v3465 = vpack.c.b16 %v3400, %v3395
    %v3466 = vpack.c.b16 %v3401, %v3396
    %v3467 = vpack.c.b16 %v3402, %v3397
    %v3468 = vpack.c.b16 %v3403, %v3398
    %v3469 = vpack.c.b16 %v3404, %v3399
    %v3470 = vpack.c.b16 %v3410, %v3405
    %v3471 = vpack.c.b16 %v3411, %v3406
    %v3472 = vpack.c.b16 %v3412, %v3407
    %v3473 = vpack.c.b16 %v3413, %v3408
    %v3474 = vpack.c.b16 %v3414, %v3409
    %v3475 = vpack.c.b16 %v3420, %v3415
    %v3476 = vpack.c.b16 %v3421, %v3416
    %v3477 = vpack.c.b16 %v3422, %v3417
    %v3478 = vpack.c.b16 %v3423, %v3418
    %v3479 = vpack.c.b16 %v3424, %v3419
    %v3480 = vpack.c.b16 %v3430, %v3425
    %v3481 = vpack.c.b16 %v3431, %v3426
    %v3482 = vpack.c.b16 %v3432, %v3427
    %v3483 = vpack.c.b16 %v3433, %v3428
    %v3484 = vpack.c.b16 %v3434, %v3429
    %v3485 = vpack.c.b16 %v3440, %v3435
    %v3486 = vpack.c.b16 %v3441, %v3436
    %v3487 = vpack.c.b16 %v3442, %v3437
    %v3488 = vpack.c.b16 %v3443, %v3438
    %v3489 = vpack.c.b16 %v3444, %v3439
    %v3490 = vpack.c.b16 %v3450, %v3445
    %v3491 = vpack.c.b16 %v3451, %v3446
    %v3492 = vpack.c.b16 %v3452, %v3447
    %v3493 = vpack.c.b16 %v3453, %v3448
    %v3494 = vpack.c.b16 %v3454, %v3449
    %3535 = vmatprep.subr.bf16.mxu0 %v3456
    %3536 = vmatpush1.bf16.msra.mxu0 %v3455
    %3537 = vmatprep.subr.bf16.mxu0 %v3461
    %3538 = vmatpush1.bf16.msra.mxu0 %v3460
    %3539 = vmatprep.subr.bf16.mxu0 %v3466
    %3540 = vmatpush1.bf16.msra.mxu0 %v3465
    %3541 = vmatprep.subr.bf16.mxu0 %v3471
    %3542 = vmatpush1.bf16.msra.mxu0 %v3470
    %3543 = vmatprep.subr.bf16.mxu0 %v3476
    %3544 = vmatpush1.bf16.msra.mxu0 %v3475
    %3545 = vmatprep.subr.bf16.mxu0 %v3481
    %3546 = vmatpush1.bf16.msra.mxu0 %v3480
    %3547 = vmatprep.subr.bf16.mxu0 %v3486
    %3548 = vmatpush1.bf16.msra.mxu0 %v3485
    %3549 = vmatprep.subr.bf16.mxu0 %v3491
    %3550 = vmatpush1.bf16.msra.mxu0 %v3490
    %3551 = vmatprep.subr.bf16.mxu0 0
    %3552 = vmatpush1.bf16.msra.mxu0 0
    %3553 = vmatprep.subr.bf16.mxu0 0
    %3554 = vmatpush1.bf16.msra.mxu0 0
    %3555 = vmatprep.subr.bf16.mxu0 0
    %3556 = vmatpush1.bf16.msra.mxu0 0
    %3557 = vmatprep.subr.bf16.mxu0 0
    %3558 = vmatpush1.bf16.msra.mxu0 0
    %3559 = vmatprep.subr.bf16.mxu0 0
    %3560 = vmatpush1.bf16.msra.mxu0 0
    %3561 = vmatprep.subr.bf16.mxu0 0
    %3562 = vmatpush1.bf16.msra.mxu0 0
    %3563 = vmatprep.subr.bf16.mxu0 0
    %3564 = vmatpush1.bf16.msra.mxu0 0
    %3565 = vmatprep.subr.bf16.mxu0 0
    %3566 = vmatpush1.bf16.msra.mxu0 0
    %3567 = vmatprep.mubr.bf16.mxu0 0
    %3568 = vmatmul.mubr.bf16.gmra.mrb[0].mxu0 %v3278
    %v3569 = vpop.f32.mrb[0].mxu0
    %v3570 = vadd.f32 %v1260, %v3569
    %v3571 = vpop.f32.mrb[0].mxu0
    %v3572 = vadd.f32 %v1264, %v3571
    %v3573 = vpop.f32.mrb[0].mxu0
    %v3574 = vpop.f32.mrb[0].mxu0
    %3575 = vdwg.mxu0
    %3576 = vmatprep.subr.bf16.mxu0 %v3458
    %3577 = vmatpush1.bf16.msra.mxu0 %v3457
    %3578 = vmatprep.subr.bf16.mxu0 %v3463
    %3579 = vmatpush1.bf16.msra.mxu0 %v3462
    %3580 = vmatprep.subr.bf16.mxu0 %v3468
    %3581 = vmatpush1.bf16.msra.mxu0 %v3467
    %3582 = vmatprep.subr.bf16.mxu0 %v3473
    %3583 = vmatpush1.bf16.msra.mxu0 %v3472
    %3584 = vmatprep.subr.bf16.mxu0 %v3478
    %3585 = vmatpush1.bf16.msra.mxu0 %v3477
    %3586 = vmatprep.subr.bf16.mxu0 %v3483
    %3587 = vmatpush1.bf16.msra.mxu0 %v3482
    %3588 = vmatprep.subr.bf16.mxu0 %v3488
    %3589 = vmatpush1.bf16.msra.mxu0 %v3487
    %3590 = vmatprep.subr.bf16.mxu0 %v3493
    %3591 = vmatpush1.bf16.msra.mxu0 %v3492
    %3592 = vmatprep.subr.bf16.mxu0 0
    %3593 = vmatpush1.bf16.msra.mxu0 0
    %3594 = vmatprep.subr.bf16.mxu0 0
    %3595 = vmatpush1.bf16.msra.mxu0 0
    %3596 = vmatprep.subr.bf16.mxu0 0
    %3597 = vmatpush1.bf16.msra.mxu0 0
    %3598 = vmatprep.subr.bf16.mxu0 0
    %3599 = vmatpush1.bf16.msra.mxu0 0
    %3600 = vmatprep.subr.bf16.mxu0 0
    %3601 = vmatpush1.bf16.msra.mxu0 0
    %3602 = vmatprep.subr.bf16.mxu0 0
    %3603 = vmatpush1.bf16.msra.mxu0 0
    %3604 = vmatprep.subr.bf16.mxu0 0
    %3605 = vmatpush1.bf16.msra.mxu0 0
    %3606 = vmatprep.subr.bf16.mxu0 0
    %3607 = vmatpush1.bf16.msra.mxu0 0
    %3608 = vmatprep.mubr.bf16.mxu0 0
    %3609 = vmatmul.mubr.bf16.gmra.mrb[0].mxu0 %v3278
    %v3610 = vpop.f32.mrb[0].mxu0
    %v3611 = vadd.f32 %v1268, %v3610
    %v3612 = vpop.f32.mrb[0].mxu0
    %v3613 = vadd.f32 %v1272, %v3612
    %v3614 = vpop.f32.mrb[0].mxu0
    %v3615 = vpop.f32.mrb[0].mxu0
    %3616 = vdwg.mxu0
    %3617 = vmatprep.subr.bf16.mxu0 0
    %3618 = vmatpush1.bf16.msra.mxu0 %v3459
    %3619 = vmatprep.subr.bf16.mxu0 0
    %3620 = vmatpush1.bf16.msra.mxu0 %v3464
    %3621 = vmatprep.subr.bf16.mxu0 0
    %3622 = vmatpush1.bf16.msra.mxu0 %v3469
    %3623 = vmatprep.subr.bf16.mxu0 0
    %3624 = vmatpush1.bf16.msra.mxu0 %v3474
    %3625 = vmatprep.subr.bf16.mxu0 0
    %3626 = vmatpush1.bf16.msra.mxu0 %v3479
    %3627 = vmatprep.subr.bf16.mxu0 0
    %3628 = vmatpush1.bf16.msra.mxu0 %v3484
    %3629 = vmatprep.subr.bf16.mxu0 0
    %3630 = vmatpush1.bf16.msra.mxu0 %v3489
    %3631 = vmatprep.subr.bf16.mxu0 0
    %3632 = vmatpush1.bf16.msra.mxu0 %v3494
    %3633 = vmatprep.subr.bf16.mxu0 0
    %3634 = vmatpush1.bf16.msra.mxu0 0
    %3635 = vmatprep.subr.bf16.mxu0 0
    %3636 = vmatpush1.bf16.msra.mxu0 0
    %3637 = vmatprep.subr.bf16.mxu0 0
    %3638 = vmatpush1.bf16.msra.mxu0 0
    %3639 = vmatprep.subr.bf16.mxu0 0
    %3640 = vmatpush1.bf16.msra.mxu0 0
    %3641 = vmatprep.subr.bf16.mxu0 0
    %3642 = vmatpush1.bf16.msra.mxu0 0
    %3643 = vmatprep.subr.bf16.mxu0 0
    %3644 = vmatpush1.bf16.msra.mxu0 0
    %3645 = vmatprep.subr.bf16.mxu0 0
    %3646 = vmatpush1.bf16.msra.mxu0 0
    %3647 = vmatprep.subr.bf16.mxu0 0
    %3648 = vmatpush1.bf16.msra.mxu0 0
    %3649 = vmatprep.mubr.bf16.mxu0 0
    %3650 = vmatmul.mubr.bf16.gmra.mrb[0].mxu0 %v3278
    %v3651 = vpop.f32.mrb[0].mxu0
    %v3652 = vadd.f32 %v1276, %v3651
    %v3653 = vpop.f32.mrb[0].mxu0
    %v3654 = vpop.f32.mrb[0].mxu0
    %v3655 = vpop.f32.mrb[0].mxu0
    %3656 = vdwg.mxu0
    %s3657 = scalar_lea.vmem %s6, 16
    %3658 = vst.msk [vmem:[%s3657] sm:$0xff] %vm1662, %v3652
    %v3659 = vmul.f32 %v3570, 0.5
    %v3660 = vtanh.pop %v3659
    %v3661 = vmul.f32 %v3660, 0.5
    %v3662 = vadd.f32 %v3661, 0.5
    %v3663 = vmul.f32 %v3572, 0.5
    %v3664 = vtanh.pop %v3663
    %v3665 = vmul.f32 %v3664, 0.5
    %v3666 = vadd.f32 %v3665, 0.5
    %v3667 = vtanh.pop %v3611
    %v3668 = vmul.f32 %v3613, 0.5
    %v3669 = vtanh.pop %v3668
    %v3670 = vmul.f32 %v3669, 0.5
    %v3671 = vadd.f32 %v3670, 0.5
    %v3672 = vmul.f32 %v3666, %v3275
    %v3673 = vmul.f32 %v3662, %v3667
    %v3674 = vadd.f32 %v3672, %v3673
    %v3675 = vtanh.pop %v3674
    %v3676 = vmul.f32 %v3671, %v3675
    %v3677 = vpack.c.bf16 %v3676, %v3676
    %v3678 = vld [vmem:[%s4] sm:$0xff]
    %v3679 = vld [vmem:[%s4 + $0x8] sm:$0xff]
    %v3680 = vld [vmem:[%s4 + $0x10] sm:$0xf]
    %v3681 = vld [vmem:[%s4 + $0x14] sm:$0xff]
    %v3682 = vld [vmem:[%s4 + $0x1c] sm:$0xff]
    %v3683 = vld [vmem:[%s4 + $0x24] sm:$0xf]
    %v3684 = vld [vmem:[%s4 + $0x28] sm:$0xff]
    %v3685 = vld [vmem:[%s4 + $0x30] sm:$0xff]
    %v3686 = vld [vmem:[%s4 + $0x38] sm:$0xf]
    %v3687 = vld [vmem:[%s4 + $0x3c] sm:$0xff]
    %v3688 = vld [vmem:[%s4 + $0x44] sm:$0xff]
    %v3689 = vld [vmem:[%s4 + $0x4c] sm:$0xf]
    %v3690 = vld [vmem:[%s4 + $0x50] sm:$0xff]
    %v3691 = vld [vmem:[%s4 + $0x58] sm:$0xff]
    %v3692 = vld [vmem:[%s4 + $0x60] sm:$0xf]
    %v3693 = vld [vmem:[%s4 + $0x64] sm:$0xff]
    %v3694 = vld [vmem:[%s4 + $0x6c] sm:$0xff]
    %v3695 = vld [vmem:[%s4 + $0x74] sm:$0xf]
    %v3696 = vld [vmem:[%s4 + $0x78] sm:$0xff]
    %v3697 = vld [vmem:[%s4 + $0x80] sm:$0xff]
    %v3698 = vld [vmem:[%s4 + $0x88] sm:$0xf]
    %v3699 = vld [vmem:[%s4 + $0x8c] sm:$0xff]
    %v3700 = vld [vmem:[%s4 + $0x94] sm:$0xff]
    %v3701 = vld [vmem:[%s4 + $0x9c] sm:$0xf]
    %v3702 = vld [vmem:[%s4 + $0xa0] sm:$0xff]
    %v3703 = vld [vmem:[%s4 + $0xa8] sm:$0xff]
    %v3704 = vld [vmem:[%s4 + $0xb0] sm:$0xf]
    %v3705 = vld [vmem:[%s4 + $0xb4] sm:$0xff]
    %v3706 = vld [vmem:[%s4 + $0xbc] sm:$0xff]
    %v3707 = vld [vmem:[%s4 + $0xc4] sm:$0xf]
    %v3708 = vld [vmem:[%s4 + $0xc8] sm:$0xff]
    %v3709 = vld [vmem:[%s4 + $0xd0] sm:$0xff]
    %v3710 = vld [vmem:[%s4 + $0xd8] sm:$0xf]
    %v3711 = vld [vmem:[%s4 + $0xdc] sm:$0xff]
    %v3712 = vld [vmem:[%s4 + $0xe4] sm:$0xff]
    %v3713 = vld [vmem:[%s4 + $0xec] sm:$0xf]
    %v3714 = vld [vmem:[%s4 + $0xf0] sm:$0xff]
    %v3715 = vld [vmem:[%s4 + $0xf8] sm:$0xff]
    %v3716 = vld [vmem:[%s4 + $0x100] sm:$0xf]
    %v3717 = vld [vmem:[%s4 + $0x104] sm:$0xff]
    %v3718 = vld [vmem:[%s4 + $0x10c] sm:$0xff]
    %v3719 = vld [vmem:[%s4 + $0x114] sm:$0xf]
    %v3720 = vld [vmem:[%s4 + $0x118] sm:$0xff]
    %v3721 = vld [vmem:[%s4 + $0x120] sm:$0xff]
    %v3722 = vld [vmem:[%s4 + $0x128] sm:$0xf]
    %v3723 = vld [vmem:[%s4 + $0x12c] sm:$0xff]
    %v3724 = vld [vmem:[%s4 + $0x134] sm:$0xff]
    %v3725 = vld [vmem:[%s4 + $0x13c] sm:$0xf]
    %v3774 = vunpack.c.l.b16 %v3678
    %v3775 = vunpack.c.h.b16 %v3678
    %v3776 = vunpack.c.l.b16 %v3679
    %v3777 = vunpack.c.h.b16 %v3679
    %v3778 = vunpack.c.l.b16 %v3680
    %v3779 = vunpack.c.l.b16 %v3681
    %v3780 = vunpack.c.h.b16 %v3681
    %v3781 = vunpack.c.l.b16 %v3682
    %v3782 = vunpack.c.h.b16 %v3682
    %v3783 = vunpack.c.l.b16 %v3683
    %v3784 = vunpack.c.l.b16 %v3684
    %v3785 = vunpack.c.h.b16 %v3684
    %v3786 = vunpack.c.l.b16 %v3685
    %v3787 = vunpack.c.h.b16 %v3685
    %v3788 = vunpack.c.l.b16 %v3686
    %v3789 = vunpack.c.l.b16 %v3687
    %v3790 = vunpack.c.h.b16 %v3687
    %v3791 = vunpack.c.l.b16 %v3688
    %v3792 = vunpack.c.h.b16 %v3688
    %v3793 = vunpack.c.l.b16 %v3689
    %v3794 = vunpack.c.l.b16 %v3690
    %v3795 = vunpack.c.h.b16 %v3690
    %v3796 = vunpack.c.l.b16 %v3691
    %v3797 = vunpack.c.h.b16 %v3691
    %v3798 = vunpack.c.l.b16 %v3692
    %v3799 = vunpack.c.l.b16 %v3693
    %v3800 = vunpack.c.h.b16 %v3693
    %v3801 = vunpack.c.l.b16 %v3694
    %v3802 = vunpack.c.h.b16 %v3694
    %v3803 = vunpack.c.l.b16 %v3695
    %v3804 = vunpack.c.l.b16 %v3696
    %v3805 = vunpack.c.h.b16 %v3696
    %v3806 = vunpack.c.l.b16 %v3697
    %v3807 = vunpack.c.h.b16 %v3697
    %v3808 = vunpack.c.l.b16 %v3698
    %v3809 = vunpack.c.l.b16 %v3699
    %v3810 = vunpack.c.h.b16 %v3699
    %v3811 = vunpack.c.l.b16 %v3700
    %v3812 = vunpack.c.h.b16 %v3700
    %v3813 = vunpack.c.l.b16 %v3701
    %v3814 = vunpack.c.l.b16 %v3702
    %v3815 = vunpack.c.h.b16 %v3702
    %v3816 = vunpack.c.l.b16 %v3703
    %v3817 = vunpack.c.h.b16 %v3703
    %v3818 = vunpack.c.l.b16 %v3704
    %v3819 = vunpack.c.l.b16 %v3705
    %v3820 = vunpack.c.h.b16 %v3705
    %v3821 = vunpack.c.l.b16 %v3706
    %v3822 = vunpack.c.h.b16 %v3706
    %v3823 = vunpack.c.l.b16 %v3707
    %v3824 = vunpack.c.l.b16 %v3708
    %v3825 = vunpack.c.h.b16 %v3708
    %v3826 = vunpack.c.l.b16 %v3709
    %v3827 = vunpack.c.h.b16 %v3709
    %v3828 = vunpack.c.l.b16 %v3710
    %v3829 = vunpack.c.l.b16 %v3711
    %v3830 = vunpack.c.h.b16 %v3711
    %v3831 = vunpack.c.l.b16 %v3712
    %v3832 = vunpack.c.h.b16 %v3712
    %v3833 = vunpack.c.l.b16 %v3713
    %v3834 = vunpack.c.l.b16 %v3714
    %v3835 = vunpack.c.h.b16 %v3714
    %v3836 = vunpack.c.l.b16 %v3715
    %v3837 = vunpack.c.h.b16 %v3715
    %v3838 = vunpack.c.l.b16 %v3716
    %v3839 = vunpack.c.l.b16 %v3717
    %v3840 = vunpack.c.h.b16 %v3717
    %v3841 = vunpack.c.l.b16 %v3718
    %v3842 = vunpack.c.h.b16 %v3718
    %v3843 = vunpack.c.l.b16 %v3719
    %v3844 = vunpack.c.l.b16 %v3720
    %v3845 = vunpack.c.h.b16 %v3720
    %v3846 = vunpack.c.l.b16 %v3721
    %v3847 = vunpack.c.h.b16 %v3721
    %v3848 = vunpack.c.l.b16 %v3722
    %v3849 = vunpack.c.l.b16 %v3723
    %v3850 = vunpack.c.h.b16 %v3723
    %v3851 = vunpack.c.l.b16 %v3724
    %v3852 = vunpack.c.h.b16 %v3724
    %v3853 = vunpack.c.l.b16 %v3725
    %v3854 = vpack.c.b16 %v3779, %v3774
    %v3855 = vpack.c.b16 %v3780, %v3775
    %v3856 = vpack.c.b16 %v3781, %v3776
    %v3857 = vpack.c.b16 %v3782, %v3777
    %v3858 = vpack.c.b16 %v3783, %v3778
    %v3859 = vpack.c.b16 %v3789, %v3784
    %v3860 = vpack.c.b16 %v3790, %v3785
    %v3861 = vpack.c.b16 %v3791, %v3786
    %v3862 = vpack.c.b16 %v3792, %v3787
    %v3863 = vpack.c.b16 %v3793, %v3788
    %v3864 = vpack.c.b16 %v3799, %v3794
    %v3865 = vpack.c.b16 %v3800, %v3795
    %v3866 = vpack.c.b16 %v3801, %v3796
    %v3867 = vpack.c.b16 %v3802, %v3797
    %v3868 = vpack.c.b16 %v3803, %v3798
    %v3869 = vpack.c.b16 %v3809, %v3804
    %v3870 = vpack.c.b16 %v3810, %v3805
    %v3871 = vpack.c.b16 %v3811, %v3806
    %v3872 = vpack.c.b16 %v3812, %v3807
    %v3873 = vpack.c.b16 %v3813, %v3808
    %v3874 = vpack.c.b16 %v3819, %v3814
    %v3875 = vpack.c.b16 %v3820, %v3815
    %v3876 = vpack.c.b16 %v3821, %v3816
    %v3877 = vpack.c.b16 %v3822, %v3817
    %v3878 = vpack.c.b16 %v3823, %v3818
    %v3879 = vpack.c.b16 %v3829, %v3824
    %v3880 = vpack.c.b16 %v3830, %v3825
    %v3881 = vpack.c.b16 %v3831, %v3826
    %v3882 = vpack.c.b16 %v3832, %v3827
    %v3883 = vpack.c.b16 %v3833, %v3828
    %v3884 = vpack.c.b16 %v3839, %v3834
    %v3885 = vpack.c.b16 %v3840, %v3835
    %v3886 = vpack.c.b16 %v3841, %v3836
    %v3887 = vpack.c.b16 %v3842, %v3837
    %v3888 = vpack.c.b16 %v3843, %v3838
    %v3889 = vpack.c.b16 %v3849, %v3844
    %v3890 = vpack.c.b16 %v3850, %v3845
    %v3891 = vpack.c.b16 %v3851, %v3846
    %v3892 = vpack.c.b16 %v3852, %v3847
    %v3893 = vpack.c.b16 %v3853, %v3848
    %3934 = vmatprep.subr.bf16.mxu0 %v3855
    %3935 = vmatpush1.bf16.msra.mxu0 %v3854
    %3936 = vmatprep.subr.bf16.mxu0 %v3860
    %3937 = vmatpush1.bf16.msra.mxu0 %v3859
    %3938 = vmatprep.subr.bf16.mxu0 %v3865
    %3939 = vmatpush1.bf16.msra.mxu0 %v3864
    %3940 = vmatprep.subr.bf16.mxu0 %v3870
    %3941 = vmatpush1.bf16.msra.mxu0 %v3869
    %3942 = vmatprep.subr.bf16.mxu0 %v3875
    %3943 = vmatpush1.bf16.msra.mxu0 %v3874
    %3944 = vmatprep.subr.bf16.mxu0 %v3880
    %3945 = vmatpush1.bf16.msra.mxu0 %v3879
    %3946 = vmatprep.subr.bf16.mxu0 %v3885
    %3947 = vmatpush1.bf16.msra.mxu0 %v3884
    %3948 = vmatprep.subr.bf16.mxu0 %v3890
    %3949 = vmatpush1.bf16.msra.mxu0 %v3889
    %3950 = vmatprep.subr.bf16.mxu0 0
    %3951 = vmatpush1.bf16.msra.mxu0 0
    %3952 = vmatprep.subr.bf16.mxu0 0
    %3953 = vmatpush1.bf16.msra.mxu0 0
    %3954 = vmatprep.subr.bf16.mxu0 0
    %3955 = vmatpush1.bf16.msra.mxu0 0
    %3956 = vmatprep.subr.bf16.mxu0 0
    %3957 = vmatpush1.bf16.msra.mxu0 0
    %3958 = vmatprep.subr.bf16.mxu0 0
    %3959 = vmatpush1.bf16.msra.mxu0 0
    %3960 = vmatprep.subr.bf16.mxu0 0
    %3961 = vmatpush1.bf16.msra.mxu0 0
    %3962 = vmatprep.subr.bf16.mxu0 0
    %3963 = vmatpush1.bf16.msra.mxu0 0
    %3964 = vmatprep.subr.bf16.mxu0 0
    %3965 = vmatpush1.bf16.msra.mxu0 0
    %3966 = vmatprep.mubr.bf16.mxu0 0
    %3967 = vmatmul.mubr.bf16.gmra.mrb[0].mxu0 %v3677
    %v3968 = vpop.f32.mrb[0].mxu0
    %v3969 = vadd.f32 %v1260, %v3968
    %v3970 = vpop.f32.mrb[0].mxu0
    %v3971 = vadd.f32 %v1264, %v3970
    %v3972 = vpop.f32.mrb[0].mxu0
    %v3973 = vpop.f32.mrb[0].mxu0
    %3974 = vdwg.mxu0
    %3975 = vmatprep.subr.bf16.mxu0 %v3857
    %3976 = vmatpush1.bf16.msra.mxu0 %v3856
    %3977 = vmatprep.subr.bf16.mxu0 %v3862
    %3978 = vmatpush1.bf16.msra.mxu0 %v3861
    %3979 = vmatprep.subr.bf16.mxu0 %v3867
    %3980 = vmatpush1.bf16.msra.mxu0 %v3866
    %3981 = vmatprep.subr.bf16.mxu0 %v3872
    %3982 = vmatpush1.bf16.msra.mxu0 %v3871
    %3983 = vmatprep.subr.bf16.mxu0 %v3877
    %3984 = vmatpush1.bf16.msra.mxu0 %v3876
    %3985 = vmatprep.subr.bf16.mxu0 %v3882
    %3986 = vmatpush1.bf16.msra.mxu0 %v3881
    %3987 = vmatprep.subr.bf16.mxu0 %v3887
    %3988 = vmatpush1.bf16.msra.mxu0 %v3886
    %3989 = vmatprep.subr.bf16.mxu0 %v3892
    %3990 = vmatpush1.bf16.msra.mxu0 %v3891
    %3991 = vmatprep.subr.bf16.mxu0 0
    %3992 = vmatpush1.bf16.msra.mxu0 0
    %3993 = vmatprep.subr.bf16.mxu0 0
    %3994 = vmatpush1.bf16.msra.mxu0 0
    %3995 = vmatprep.subr.bf16.mxu0 0
    %3996 = vmatpush1.bf16.msra.mxu0 0
    %3997 = vmatprep.subr.bf16.mxu0 0
    %3998 = vmatpush1.bf16.msra.mxu0 0
    %3999 = vmatprep.subr.bf16.mxu0 0
    %4000 = vmatpush1.bf16.msra.mxu0 0
    %4001 = vmatprep.subr.bf16.mxu0 0
    %4002 = vmatpush1.bf16.msra.mxu0 0
    %4003 = vmatprep.subr.bf16.mxu0 0
    %4004 = vmatpush1.bf16.msra.mxu0 0
    %4005 = vmatprep.subr.bf16.mxu0 0
    %4006 = vmatpush1.bf16.msra.mxu0 0
    %4007 = vmatprep.mubr.bf16.mxu0 0
    %4008 = vmatmul.mubr.bf16.gmra.mrb[0].mxu0 %v3677
    %v4009 = vpop.f32.mrb[0].mxu0
    %v4010 = vadd.f32 %v1268, %v4009
    %v4011 = vpop.f32.mrb[0].mxu0
    %v4012 = vadd.f32 %v1272, %v4011
    %v4013 = vpop.f32.mrb[0].mxu0
    %v4014 = vpop.f32.mrb[0].mxu0
    %4015 = vdwg.mxu0
    %4016 = vmatprep.subr.bf16.mxu0 0
    %4017 = vmatpush1.bf16.msra.mxu0 %v3858
    %4018 = vmatprep.subr.bf16.mxu0 0
    %4019 = vmatpush1.bf16.msra.mxu0 %v3863
    %4020 = vmatprep.subr.bf16.mxu0 0
    %4021 = vmatpush1.bf16.msra.mxu0 %v3868
    %4022 = vmatprep.subr.bf16.mxu0 0
    %4023 = vmatpush1.bf16.msra.mxu0 %v3873
    %4024 = vmatprep.subr.bf16.mxu0 0
    %4025 = vmatpush1.bf16.msra.mxu0 %v3878
    %4026 = vmatprep.subr.bf16.mxu0 0
    %4027 = vmatpush1.bf16.msra.mxu0 %v3883
    %4028 = vmatprep.subr.bf16.mxu0 0
    %4029 = vmatpush1.bf16.msra.mxu0 %v3888
    %4030 = vmatprep.subr.bf16.mxu0 0
    %4031 = vmatpush1.bf16.msra.mxu0 %v3893
    %4032 = vmatprep.subr.bf16.mxu0 0
    %4033 = vmatpush1.bf16.msra.mxu0 0
    %4034 = vmatprep.subr.bf16.mxu0 0
    %4035 = vmatpush1.bf16.msra.mxu0 0
    %4036 = vmatprep.subr.bf16.mxu0 0
    %4037 = vmatpush1.bf16.msra.mxu0 0
    %4038 = vmatprep.subr.bf16.mxu0 0
    %4039 = vmatpush1.bf16.msra.mxu0 0
    %4040 = vmatprep.subr.bf16.mxu0 0
    %4041 = vmatpush1.bf16.msra.mxu0 0
    %4042 = vmatprep.subr.bf16.mxu0 0
    %4043 = vmatpush1.bf16.msra.mxu0 0
    %4044 = vmatprep.subr.bf16.mxu0 0
    %4045 = vmatpush1.bf16.msra.mxu0 0
    %4046 = vmatprep.subr.bf16.mxu0 0
    %4047 = vmatpush1.bf16.msra.mxu0 0
    %4048 = vmatprep.mubr.bf16.mxu0 0
    %4049 = vmatmul.mubr.bf16.gmra.mrb[0].mxu0 %v3677
    %v4050 = vpop.f32.mrb[0].mxu0
    %v4051 = vadd.f32 %v1276, %v4050
    %v4052 = vpop.f32.mrb[0].mxu0
    %v4053 = vpop.f32.mrb[0].mxu0
    %v4054 = vpop.f32.mrb[0].mxu0
    %4055 = vdwg.mxu0
    %s4056 = scalar_lea.vmem %s6, 8
    %4057 = vst.msk [vmem:[%s4056] sm:$0xff] %vm1662, %v4051
    %v4058 = vmul.f32 %v3969, 0.5
    %v4059 = vtanh.pop %v4058
    %v4060 = vmul.f32 %v4059, 0.5
    %v4061 = vadd.f32 %v4060, 0.5
    %v4062 = vmul.f32 %v3971, 0.5
    %v4063 = vtanh.pop %v4062
    %v4064 = vmul.f32 %v4063, 0.5
    %v4065 = vadd.f32 %v4064, 0.5
    %v4066 = vtanh.pop %v4010
    %v4067 = vmul.f32 %v4012, 0.5
    %v4068 = vtanh.pop %v4067
    %v4069 = vmul.f32 %v4068, 0.5
    %v4070 = vadd.f32 %v4069, 0.5
    %v4071 = vmul.f32 %v4065, %v3674
    %v4072 = vmul.f32 %v4061, %v4066
    %v4073 = vadd.f32 %v4071, %v4072
    %v4074 = vtanh.pop %v4073
    %v4075 = vmul.f32 %v4070, %v4074
    %v4076 = vpack.c.bf16 %v4075, %v4075
    %v4077 = vld [vmem:[%s4 + $0x10] sm:$0xf]
    %v4078 = vld [vmem:[%s4 + $0x24] sm:$0xf]
    %v4079 = vld [vmem:[%s4 + $0x38] sm:$0xf]
    %v4080 = vld [vmem:[%s4 + $0x4c] sm:$0xf]
    %v4081 = vld [vmem:[%s4 + $0x60] sm:$0xf]
    %v4082 = vld [vmem:[%s4 + $0x74] sm:$0xf]
    %v4083 = vld [vmem:[%s4 + $0x88] sm:$0xf]
    %v4084 = vld [vmem:[%s4 + $0x9c] sm:$0xf]
    %v4085 = vld [vmem:[%s4 + $0xb0] sm:$0xf]
    %v4086 = vld [vmem:[%s4 + $0xc4] sm:$0xf]
    %v4087 = vld [vmem:[%s4 + $0xd8] sm:$0xf]
    %v4088 = vld [vmem:[%s4 + $0xec] sm:$0xf]
    %v4089 = vld [vmem:[%s4 + $0x100] sm:$0xf]
    %v4090 = vld [vmem:[%s4 + $0x114] sm:$0xf]
    %v4091 = vld [vmem:[%s4 + $0x128] sm:$0xf]
    %v4092 = vld [vmem:[%s4 + $0x13c] sm:$0xf]
    %v4109 = vunpack.c.l.b16 %v4077
    %v4110 = vunpack.c.l.b16 %v4078
    %v4111 = vunpack.c.l.b16 %v4079
    %v4112 = vunpack.c.l.b16 %v4080
    %v4113 = vunpack.c.l.b16 %v4081
    %v4114 = vunpack.c.l.b16 %v4082
    %v4115 = vunpack.c.l.b16 %v4083
    %v4116 = vunpack.c.l.b16 %v4084
    %v4117 = vunpack.c.l.b16 %v4085
    %v4118 = vunpack.c.l.b16 %v4086
    %v4119 = vunpack.c.l.b16 %v4087
    %v4120 = vunpack.c.l.b16 %v4088
    %v4121 = vunpack.c.l.b16 %v4089
    %v4122 = vunpack.c.l.b16 %v4090
    %v4123 = vunpack.c.l.b16 %v4091
    %v4124 = vunpack.c.l.b16 %v4092
    %v4125 = vpack.c.b16 %v4110, %v4109
    %v4126 = vpack.c.b16 %v4112, %v4111
    %v4127 = vpack.c.b16 %v4114, %v4113
    %v4128 = vpack.c.b16 %v4116, %v4115
    %v4129 = vpack.c.b16 %v4118, %v4117
    %v4130 = vpack.c.b16 %v4120, %v4119
    %v4131 = vpack.c.b16 %v4122, %v4121
    %v4132 = vpack.c.b16 %v4124, %v4123
    %4141 = vmatprep.subr.bf16.mxu0 0
    %4142 = vmatpush1.bf16.msra.mxu0 %v4125
    %4143 = vmatprep.subr.bf16.mxu0 0
    %4144 = vmatpush1.bf16.msra.mxu0 %v4126
    %4145 = vmatprep.subr.bf16.mxu0 0
    %4146 = vmatpush1.bf16.msra.mxu0 %v4127
    %4147 = vmatprep.subr.bf16.mxu0 0
    %4148 = vmatpush1.bf16.msra.mxu0 %v4128
    %4149 = vmatprep.subr.bf16.mxu0 0
    %4150 = vmatpush1.bf16.msra.mxu0 %v4129
    %4151 = vmatprep.subr.bf16.mxu0 0
    %4152 = vmatpush1.bf16.msra.mxu0 %v4130
    %4153 = vmatprep.subr.bf16.mxu0 0
    %4154 = vmatpush1.bf16.msra.mxu0 %v4131
    %4155 = vmatprep.subr.bf16.mxu0 0
    %4156 = vmatpush1.bf16.msra.mxu0 %v4132
    %4157 = vmatprep.subr.bf16.mxu0 0
    %4158 = vmatpush1.bf16.msra.mxu0 0
    %4159 = vmatprep.subr.bf16.mxu0 0
    %4160 = vmatpush1.bf16.msra.mxu0 0
    %4161 = vmatprep.subr.bf16.mxu0 0
    %4162 = vmatpush1.bf16.msra.mxu0 0
    %4163 = vmatprep.subr.bf16.mxu0 0
    %4164 = vmatpush1.bf16.msra.mxu0 0
    %4165 = vmatprep.subr.bf16.mxu0 0
    %4166 = vmatpush1.bf16.msra.mxu0 0
    %4167 = vmatprep.subr.bf16.mxu0 0
    %4168 = vmatpush1.bf16.msra.mxu0 0
    %4169 = vmatprep.subr.bf16.mxu0 0
    %4170 = vmatpush1.bf16.msra.mxu0 0
    %4171 = vmatprep.subr.bf16.mxu0 0
    %4172 = vmatpush1.bf16.msra.mxu0 0
    %4173 = vmatprep.mubr.bf16.mxu0 0
    %4174 = vmatmul.mubr.bf16.gmra.mrb[0].mxu0 %v4076
    %v4175 = vpop.f32.mrb[0].mxu0
    %v4176 = vadd.f32 %v1276, %v4175
    %v4177 = vpop.f32.mrb[0].mxu0
    %v4178 = vpop.f32.mrb[0].mxu0
    %v4179 = vpop.f32.mrb[0].mxu0
    %4180 = vdwg.mxu0
    %4181 = vst.msk [vmem:[%s6] sm:$0xff] %vm1662, %v4176
    // Predicated region
    $region33: #{tpu_custom_call.1} parent=1 // pred_check
      _
    $region34: #{tpu_custom_call.1} parent=1 // pred_check_branch
      %4183 = sbr.rel (0) target = $region36
    $region35: #{tpu_custom_call.1} parent=1 // pred_region
      _
    $region36: #{tpu_custom_call.1} parent=1 // pred_fallthru
      _
    // Predicated region
    $region37: #{tpu_custom_call.1} parent=1 // pred_check
      _
    $region38: #{tpu_custom_call.1} parent=1 // pred_check_branch
      %4185 = sbr.rel (0) target = $region40
    $region39: #{tpu_custom_call.1} parent=1 // pred_region
      %s4187 = ssub.s32 128, 128
      %4188 = vsyncadd [#allocation4], %s4187
      %s4190 = sshll.u32 [#allocation3], 4
      %s4191 = int_to_ptr.vmem [resolvable:$true] %s4190
      %4193 = dma.vmem_to_hbm [thread:$0]  %s4191, 128, %s7, [#allocation4]
    $region40: #{tpu_custom_call.1} parent=1 // pred_fallthru
      _
    // Predicated region
    $region41: #{tpu_custom_call.1} parent=1 // pred_check
      _
    $region42: #{tpu_custom_call.1} parent=1 // pred_check_branch
      %4195 = sbr.rel (0) target = $region44
    $region43: #{tpu_custom_call.1} parent=1 // pred_region
      _
    $region44: #{tpu_custom_call.1} parent=1 // pred_fallthru
      _
    // Predicated region
    $region45: #{tpu_custom_call.1} parent=1 // pred_check
      _
    $region46: #{tpu_custom_call.1} parent=1 // pred_check_branch
      %4197 = sbr.rel (0) target = $region48
    $region47: #{tpu_custom_call.1} parent=1 // pred_region
      %4198 = dma.done [#allocation4], 128
    $region48: #{tpu_custom_call.1} parent=1 // pred_fallthru
      _
    %4199 = vsyncpa [#allocation4], 1

// kernel: tpu_custom_call.1
$region0: #{tpu_custom_call.1}
  #allocation0 [shape = 'u32[]', space=smem, size = 0x4, offset = 0x4, fixed_abs, tag = 'smem constant byte address 0x4 - core index']
  #allocation1 [shape = 'u32[144,128]{1,0:T(1,128)}', space=vmem, size = 0x12000, scoped, tag = 'internal scratch']
  #allocation2 [shape = 'f32[8,8,512]{2,1,0:T(8,128)}', space=vmem, size = 0x20000, scoped, tag = 'scratch operand']
  %s0 = inlined_call_operand.vmem [shape: f32[8,8,4], index: 0, kind: input, shape index: {}]
  %s1 = inlined_call_operand.vmem [shape: bf16[4,512], index: 1, kind: input, shape index: {}]
  %s2 = inlined_call_operand.vmem [shape: bf16[128,512], index: 2, kind: input, shape index: {}]
  %s3 = inlined_call_operand.vmem [shape: f32[1,512], index: 3, kind: input, shape index: {}]
  %s4 = inlined_call_operand.vmem [shape: bf16[128,516], index: 4, kind: input, shape index: {}]
  %s5 = inlined_call_operand.vmem [shape: f32[1,516], index: 5, kind: input, shape index: {}]
  %s6 = inlined_call_operand.vmem [shape: f32[8,8,4], index: 6, kind: output, shape index: {0}]
  %s7 = inlined_call_operand.hbm [shape: f32[8,128], index: 7, kind: output, shape index: {1}]
  %8 = xla_tuple %s6, %s7
  %s9 = sld [smem:[#allocation0]]
  $region49: #{tpu_custom_call.1} parent=0
    _
  %s11 = ssub.s32 1, %s9
  %s12 = scalar_select 0, %s11, %s9
  $region1: #{tpu_custom_call.1} parent=0
    #allocation3 [shape = 'u8[4096]{0}', space=vmem, size = 0x1000, scoped, tag = 'output window, operand 1, single buffered']
    #allocation4 [shape = 's32[1]{0}', space=sflag, size = 0x4, scoped, tag = 'scoped memory for tpu_custom_call.1']
    %13 = vsyncpa [#allocation4], 0
    // Predicated region
    $region2: #{tpu_custom_call.1} parent=1 // pred_check
      _
    $region3: #{tpu_custom_call.1} parent=1 // pred_check_branch
      %15 = sbr.rel (0) target = $region5
    $region4: #{tpu_custom_call.1} parent=1 // pred_region
      _
    $region5: #{tpu_custom_call.1} parent=1 // pred_fallthru
      _
    // Predicated region
    $region6: #{tpu_custom_call.1} parent=1 // pred_check
      _
    $region7: #{tpu_custom_call.1} parent=1 // pred_check_branch
      %17 = sbr.rel (0) target = $region9
    $region8: #{tpu_custom_call.1} parent=1 // pred_region
      _
    $region9: #{tpu_custom_call.1} parent=1 // pred_fallthru
      _
    // Predicated region
    $region10: #{tpu_custom_call.1} parent=1 // pred_check
      _
    $region11: #{tpu_custom_call.1} parent=1 // pred_check_branch
      %19 = sbr.rel (0) target = $region13
    $region12: #{tpu_custom_call.1} parent=1 // pred_region
      _
    $region13: #{tpu_custom_call.1} parent=1 // pred_fallthru
      _
    // Predicated region
    $region14: #{tpu_custom_call.1} parent=1 // pred_check
      _
    $region15: #{tpu_custom_call.1} parent=1 // pred_check_branch
      %21 = sbr.rel (0) target = $region17
    $region16: #{tpu_custom_call.1} parent=1 // pred_region
      _
    $region17: #{tpu_custom_call.1} parent=1 // pred_fallthru
      _
    // Predicated region
    $region18: #{tpu_custom_call.1} parent=1 // pred_check
      _
    $region19: #{tpu_custom_call.1} parent=1 // pred_check_branch
      %23 = sbr.rel (0) target = $region21
    $region20: #{tpu_custom_call.1} parent=1 // pred_region
      _
    $region21: #{tpu_custom_call.1} parent=1 // pred_fallthru
      _
    // Predicated region
    $region22: #{tpu_custom_call.1} parent=1 // pred_check
      _
    $region23: #{tpu_custom_call.1} parent=1 // pred_check_branch
      %25 = sbr.rel (0) target = $region25
    $region24: #{tpu_custom_call.1} parent=1 // pred_region
      _
    $region25: #{tpu_custom_call.1} parent=1 // pred_fallthru
      _
    %v27 = vld [vmem:[%s3] sm:$0xf]
    %v29 = vlaneseq
    %v30 = vshrl.u32 %v29, 7
    %v31 = vsub.s32 0, %v30
    %v32 = vrot.slane %v27, %v31
    %v33 = vlaneseq
    %v34 = vshrl.u32 %v33, 7
    %v35 = vsub.s32 1, %v34
    %v36 = vrot.slane %v27, %v35
    %v37 = vlaneseq
    %v38 = vshrl.u32 %v37, 7
    %v39 = vsub.s32 2, %v38
    %v40 = vrot.slane %v27, %v39
    %v41 = vlaneseq
    %v42 = vshrl.u32 %v41, 7
    %v43 = vsub.s32 3, %v42
    %v44 = vrot.slane %v27, %v43
    loop: start=0, step=1, limit=8
    $region26: #{tpu_custom_call.1} parent=1 // loop_pre_header
      _
    $region27: #{tpu_custom_call.1} parent=1 // loop_header
      %s50 = sphi 0, %s54
      %p51 = scmp.ge.s32.totalorder %s50, 8
    $region28: #{tpu_custom_call.1} parent=1 // loop_header_branch
      %53 = sbr.rel (%p51) target = $region32
    $region29: #{tpu_custom_call.1} parent=1 // loop_body
      %s55 = smul.u32 %s50, 8
      %s56 = scalar_lea.vmem %s0, %s55
      %v57 = vld [vmem:[%s56] sm:$0xff]
      %v58 = vpack.c.bf16 %v57, %v57
      %v59 = vld [vmem:[%s1] sm:$0xff]
      %v61 = vcombine.high %v59, %v59
      %v63 = vunpack.c.l.s4 1983009808
      %v64 = vunpack.c.0.s8 %v63
      %v65 = vlaneseq
      %v66 = vshrl.u32 %v65, 7
      %v67 = vsub.s32 %v64, %v66
      %v68 = vrot.slane %v59, %v67
      %v70 = vunpack.c.l.s4 1983009808
      %v71 = vunpack.c.0.s8 %v70
      %v72 = vlaneseq
      %v73 = vshrl.u32 %v72, 7
      %v74 = vsub.s32 %v71, %v73
      %v75 = vrot.slane %v61, %v74
      %v76 = vcombine.high %v68, %v68
      %v77 = vcombine.high %v75, %v75
      %vm78 = vcmask 31744
      %v80 = vsel %vm78, %v58, 0
      %vm82 = vcmask 1041408
      %v84 = vsel %vm82, %v68, 0
      %v87 = vsel %vm82, %v76, 0
      %v90 = vsel %vm82, %v75, 0
      %v93 = vsel %vm82, %v77, 0
      %95 = vmatprep.subr.bf16.mxu0 %v87
      %96 = vmatpush1.bf16.msra.mxu0 %v84
      %97 = vmatprep.subr.bf16.mxu0 0
      %98 = vmatpush1.bf16.msra.mxu0 0
      %99 = vmatprep.subr.bf16.mxu0 0
      %100 = vmatpush1.bf16.msra.mxu0 0
      %101 = vmatprep.subr.bf16.mxu0 0
      %102 = vmatpush1.bf16.msra.mxu0 0
      %103 = vmatprep.subr.bf16.mxu0 0
      %104 = vmatpush1.bf16.msra.mxu0 0
      %105 = vmatprep.subr.bf16.mxu0 0
      %106 = vmatpush1.bf16.msra.mxu0 0
      %107 = vmatprep.subr.bf16.mxu0 0
      %108 = vmatpush1.bf16.msra.mxu0 0
      %109 = vmatprep.subr.bf16.mxu0 0
      %110 = vmatpush1.bf16.msra.mxu0 0
      %111 = vmatprep.subr.bf16.mxu0 0
      %112 = vmatpush1.bf16.msra.mxu0 0
      %113 = vmatprep.subr.bf16.mxu0 0
      %114 = vmatpush1.bf16.msra.mxu0 0
      %115 = vmatprep.subr.bf16.mxu0 0
      %116 = vmatpush1.bf16.msra.mxu0 0
      %117 = vmatprep.subr.bf16.mxu0 0
      %118 = vmatpush1.bf16.msra.mxu0 0
      %119 = vmatprep.subr.bf16.mxu0 0
      %120 = vmatpush1.bf16.msra.mxu0 0
      %121 = vmatprep.subr.bf16.mxu0 0
      %122 = vmatpush1.bf16.msra.mxu0 0
      %123 = vmatprep.subr.bf16.mxu0 0
      %124 = vmatpush1.bf16.msra.mxu0 0
      %125 = vmatprep.subr.bf16.mxu0 0
      %126 = vmatpush1.bf16.msra.mxu0 0
      %127 = vmatprep.mubr.bf16.mxu0 0
      %128 = vmatmul.mubr.bf16.gmra.mrb[0].mxu0 %v80
      %v129 = vpop.f32.mrb[0].mxu0
      %v130 = vadd.f32 %v32, %v129
      %v131 = vpop.f32.mrb[0].mxu0
      %v132 = vadd.f32 %v36, %v131
      %v133 = vpop.f32.mrb[0].mxu0
      %v134 = vpop.f32.mrb[0].mxu0
      %135 = vdwg.mxu0
      %136 = vmatprep.subr.bf16.mxu0 %v93
      %137 = vmatpush1.bf16.msra.mxu0 %v90
      %138 = vmatprep.subr.bf16.mxu0 0
      %139 = vmatpush1.bf16.msra.mxu0 0
      %140 = vmatprep.subr.bf16.mxu0 0
      %141 = vmatpush1.bf16.msra.mxu0 0
      %142 = vmatprep.subr.bf16.mxu0 0
      %143 = vmatpush1.bf16.msra.mxu0 0
      %144 = vmatprep.subr.bf16.mxu0 0
      %145 = vmatpush1.bf16.msra.mxu0 0
      %146 = vmatprep.subr.bf16.mxu0 0
      %147 = vmatpush1.bf16.msra.mxu0 0
      %148 = vmatprep.subr.bf16.mxu0 0
      %149 = vmatpush1.bf16.msra.mxu0 0
      %150 = vmatprep.subr.bf16.mxu0 0
      %151 = vmatpush1.bf16.msra.mxu0 0
      %152 = vmatprep.subr.bf16.mxu0 0
      %153 = vmatpush1.bf16.msra.mxu0 0
      %154 = vmatprep.subr.bf16.mxu0 0
      %155 = vmatpush1.bf16.msra.mxu0 0
      %156 = vmatprep.subr.bf16.mxu0 0
      %157 = vmatpush1.bf16.msra.mxu0 0
      %158 = vmatprep.subr.bf16.mxu0 0
      %159 = vmatpush1.bf16.msra.mxu0 0
      %160 = vmatprep.subr.bf16.mxu0 0
      %161 = vmatpush1.bf16.msra.mxu0 0
      %162 = vmatprep.subr.bf16.mxu0 0
      %163 = vmatpush1.bf16.msra.mxu0 0
      %164 = vmatprep.subr.bf16.mxu0 0
      %165 = vmatpush1.bf16.msra.mxu0 0
      %166 = vmatprep.subr.bf16.mxu0 0
      %167 = vmatpush1.bf16.msra.mxu0 0
      %168 = vmatprep.mubr.bf16.mxu0 0
      %169 = vmatmul.mubr.bf16.gmra.mrb[0].mxu0 %v80
      %v170 = vpop.f32.mrb[0].mxu0
      %v171 = vadd.f32 %v40, %v170
      %v172 = vpop.f32.mrb[0].mxu0
      %v173 = vadd.f32 %v44, %v172
      %v174 = vpop.f32.mrb[0].mxu0
      %v175 = vpop.f32.mrb[0].mxu0
      %176 = vdwg.mxu0
      %s177 = smul.u32 %s50, 4
      %s178 = smul.addr %s177, 8
      %s179 = scalar_lea.vmem [#allocation2], %s178
      %180 = vst [vmem:[%s179] sm:$0xff] %v130
      %181 = vst [vmem:[%s179 + $0x8] sm:$0xff] %v132
      %182 = vst [vmem:[%s179 + $0x10] sm:$0xff] %v171
      %183 = vst [vmem:[%s179 + $0x18] sm:$0xff] %v173
    $region30: #{tpu_custom_call.1} parent=1 // loop_footer
      %s54 = sadd.s32 1, %s50
    $region31: #{tpu_custom_call.1} parent=1 // loop_footer_branch
      %49 = sbr.rel target = $region27
    $region32: #{tpu_custom_call.1} parent=1 // loop_exit
      _
    %v184 = vld [vmem:[#allocation2] sm:$0xff]
    %v185 = vld [vmem:[#allocation2 + $0x8] sm:$0xff]
    %v186 = vld [vmem:[#allocation2 + $0x10] sm:$0xff]
    %v187 = vld [vmem:[#allocation2 + $0x18] sm:$0xff]
    %v188 = vld [vmem:[%s2] sm:$0xff]
    %v189 = vld [vmem:[%s2 + $0x8] sm:$0xff]
    %v190 = vld [vmem:[%s2 + $0x10] sm:$0xff]
    %v191 = vld [vmem:[%s2 + $0x18] sm:$0xff]
    %v192 = vld [vmem:[%s2 + $0x20] sm:$0xff]
    %v193 = vld [vmem:[%s2 + $0x28] sm:$0xff]
    %v194 = vld [vmem:[%s2 + $0x30] sm:$0xff]
    %v195 = vld [vmem:[%s2 + $0x38] sm:$0xff]
    %v196 = vld [vmem:[%s2 + $0x40] sm:$0xff]
    %v197 = vld [vmem:[%s2 + $0x48] sm:$0xff]
    %v198 = vld [vmem:[%s2 + $0x50] sm:$0xff]
    %v199 = vld [vmem:[%s2 + $0x58] sm:$0xff]
    %v200 = vld [vmem:[%s2 + $0x60] sm:$0xff]
    %v201 = vld [vmem:[%s2 + $0x68] sm:$0xff]
    %v202 = vld [vmem:[%s2 + $0x70] sm:$0xff]
    %v203 = vld [vmem:[%s2 + $0x78] sm:$0xff]
    %v204 = vld [vmem:[%s2 + $0x80] sm:$0xff]
    %v205 = vld [vmem:[%s2 + $0x88] sm:$0xff]
    %v206 = vld [vmem:[%s2 + $0x90] sm:$0xff]
    %v207 = vld [vmem:[%s2 + $0x98] sm:$0xff]
    %v208 = vld [vmem:[%s2 + $0xa0] sm:$0xff]
    %v209 = vld [vmem:[%s2 + $0xa8] sm:$0xff]
    %v210 = vld [vmem:[%s2 + $0xb0] sm:$0xff]
    %v211 = vld [vmem:[%s2 + $0xb8] sm:$0xff]
    %v212 = vld [vmem:[%s2 + $0xc0] sm:$0xff]
    %v213 = vld [vmem:[%s2 + $0xc8] sm:$0xff]
    %v214 = vld [vmem:[%s2 + $0xd0] sm:$0xff]
    %v215 = vld [vmem:[%s2 + $0xd8] sm:$0xff]
    %v216 = vld [vmem:[%s2 + $0xe0] sm:$0xff]
    %v217 = vld [vmem:[%s2 + $0xe8] sm:$0xff]
    %v218 = vld [vmem:[%s2 + $0xf0] sm:$0xff]
    %v219 = vld [vmem:[%s2 + $0xf8] sm:$0xff]
    %v252 = vunpack.c.l.b16 %v188
    %v253 = vunpack.c.h.b16 %v188
    %v254 = vunpack.c.l.b16 %v189
    %v255 = vunpack.c.h.b16 %v189
    %v256 = vunpack.c.l.b16 %v190
    %v257 = vunpack.c.h.b16 %v190
    %v258 = vunpack.c.l.b16 %v191
    %v259 = vunpack.c.h.b16 %v191
    %v260 = vunpack.c.l.b16 %v192
    %v261 = vunpack.c.h.b16 %v192
    %v262 = vunpack.c.l.b16 %v193
    %v263 = vunpack.c.h.b16 %v193
    %v264 = vunpack.c.l.b16 %v194
    %v265 = vunpack.c.h.b16 %v194
    %v266 = vunpack.c.l.b16 %v195
    %v267 = vunpack.c.h.b16 %v195
    %v268 = vunpack.c.l.b16 %v196
    %v269 = vunpack.c.h.b16 %v196
    %v270 = vunpack.c.l.b16 %v197
    %v271 = vunpack.c.h.b16 %v197
    %v272 = vunpack.c.l.b16 %v198
    %v273 = vunpack.c.h.b16 %v198
    %v274 = vunpack.c.l.b16 %v199
    %v275 = vunpack.c.h.b16 %v199
    %v276 = vunpack.c.l.b16 %v200
    %v277 = vunpack.c.h.b16 %v200
    %v278 = vunpack.c.l.b16 %v201
    %v279 = vunpack.c.h.b16 %v201
    %v280 = vunpack.c.l.b16 %v202
    %v281 = vunpack.c.h.b16 %v202
    %v282 = vunpack.c.l.b16 %v203
    %v283 = vunpack.c.h.b16 %v203
    %v284 = vunpack.c.l.b16 %v204
    %v285 = vunpack.c.h.b16 %v204
    %v286 = vunpack.c.l.b16 %v205
    %v287 = vunpack.c.h.b16 %v205
    %v288 = vunpack.c.l.b16 %v206
    %v289 = vunpack.c.h.b16 %v206
    %v290 = vunpack.c.l.b16 %v207
    %v291 = vunpack.c.h.b16 %v207
    %v292 = vunpack.c.l.b16 %v208
    %v293 = vunpack.c.h.b16 %v208
    %v294 = vunpack.c.l.b16 %v209
    %v295 = vunpack.c.h.b16 %v209
    %v296 = vunpack.c.l.b16 %v210
    %v297 = vunpack.c.h.b16 %v210
    %v298 = vunpack.c.l.b16 %v211
    %v299 = vunpack.c.h.b16 %v211
    %v300 = vunpack.c.l.b16 %v212
    %v301 = vunpack.c.h.b16 %v212
    %v302 = vunpack.c.l.b16 %v213
    %v303 = vunpack.c.h.b16 %v213
    %v304 = vunpack.c.l.b16 %v214
    %v305 = vunpack.c.h.b16 %v214
    %v306 = vunpack.c.l.b16 %v215
    %v307 = vunpack.c.h.b16 %v215
    %v308 = vunpack.c.l.b16 %v216
    %v309 = vunpack.c.h.b16 %v216
    %v310 = vunpack.c.l.b16 %v217
    %v311 = vunpack.c.h.b16 %v217
    %v312 = vunpack.c.l.b16 %v218
    %v313 = vunpack.c.h.b16 %v218
    %v314 = vunpack.c.l.b16 %v219
    %v315 = vunpack.c.h.b16 %v219
    %v316 = vpack.c.b16 %v256, %v252
    %v317 = vpack.c.b16 %v257, %v253
    %v318 = vpack.c.b16 %v258, %v254
    %v319 = vpack.c.b16 %v259, %v255
    %v320 = vpack.c.b16 %v264, %v260
    %v321 = vpack.c.b16 %v265, %v261
    %v322 = vpack.c.b16 %v266, %v262
    %v323 = vpack.c.b16 %v267, %v263
    %v324 = vpack.c.b16 %v272, %v268
    %v325 = vpack.c.b16 %v273, %v269
    %v326 = vpack.c.b16 %v274, %v270
    %v327 = vpack.c.b16 %v275, %v271
    %v328 = vpack.c.b16 %v280, %v276
    %v329 = vpack.c.b16 %v281, %v277
    %v330 = vpack.c.b16 %v282, %v278
    %v331 = vpack.c.b16 %v283, %v279
    %v332 = vpack.c.b16 %v288, %v284
    %v333 = vpack.c.b16 %v289, %v285
    %v334 = vpack.c.b16 %v290, %v286
    %v335 = vpack.c.b16 %v291, %v287
    %v336 = vpack.c.b16 %v296, %v292
    %v337 = vpack.c.b16 %v297, %v293
    %v338 = vpack.c.b16 %v298, %v294
    %v339 = vpack.c.b16 %v299, %v295
    %v340 = vpack.c.b16 %v304, %v300
    %v341 = vpack.c.b16 %v305, %v301
    %v342 = vpack.c.b16 %v306, %v302
    %v343 = vpack.c.b16 %v307, %v303
    %v344 = vpack.c.b16 %v312, %v308
    %v345 = vpack.c.b16 %v313, %v309
    %v346 = vpack.c.b16 %v314, %v310
    %v347 = vpack.c.b16 %v315, %v311
    %380 = vmatprep.subr.bf16.mxu0 %v317
    %381 = vmatpush1.bf16.msra.mxu0 %v316
    %382 = vmatprep.subr.bf16.mxu0 %v321
    %383 = vmatpush1.bf16.msra.mxu0 %v320
    %384 = vmatprep.subr.bf16.mxu0 %v325
    %385 = vmatpush1.bf16.msra.mxu0 %v324
    %386 = vmatprep.subr.bf16.mxu0 %v329
    %387 = vmatpush1.bf16.msra.mxu0 %v328
    %388 = vmatprep.subr.bf16.mxu0 %v333
    %389 = vmatpush1.bf16.msra.mxu0 %v332
    %390 = vmatprep.subr.bf16.mxu0 %v337
    %391 = vmatpush1.bf16.msra.mxu0 %v336
    %392 = vmatprep.subr.bf16.mxu0 %v341
    %393 = vmatpush1.bf16.msra.mxu0 %v340
    %394 = vmatprep.subr.bf16.mxu0 %v345
    %395 = vmatpush1.bf16.msra.mxu0 %v344
    %396 = vmatprep.subr.bf16.mxu0 0
    %397 = vmatpush1.bf16.msra.mxu0 0
    %398 = vmatprep.subr.bf16.mxu0 0
    %399 = vmatpush1.bf16.msra.mxu0 0
    %400 = vmatprep.subr.bf16.mxu0 0
    %401 = vmatpush1.bf16.msra.mxu0 0
    %402 = vmatprep.subr.bf16.mxu0 0
    %403 = vmatpush1.bf16.msra.mxu0 0
    %404 = vmatprep.subr.bf16.mxu0 0
    %405 = vmatpush1.bf16.msra.mxu0 0
    %406 = vmatprep.subr.bf16.mxu0 0
    %407 = vmatpush1.bf16.msra.mxu0 0
    %408 = vmatprep.subr.bf16.mxu0 0
    %409 = vmatpush1.bf16.msra.mxu0 0
    %410 = vmatprep.subr.bf16.mxu0 0
    %411 = vmatpush1.bf16.msra.mxu0 0
    %412 = vmatprep.mubr.bf16.mxu0 0
    %413 = vmatmul.mubr.bf16.gmra.mrb[0].mxu0 0
    %v414 = vpop.f32.mrb[0].mxu0
    %v415 = vadd.f32 0.0, %v414
    %v416 = vpop.f32.mrb[0].mxu0
    %v417 = vadd.f32 0.0, %v416
    %v418 = vpop.f32.mrb[0].mxu0
    %v419 = vpop.f32.mrb[0].mxu0
    %420 = vdwg.mxu0
    %421 = vmatprep.subr.bf16.mxu0 %v319
    %422 = vmatpush1.bf16.msra.mxu0 %v318
    %423 = vmatprep.subr.bf16.mxu0 %v323
    %424 = vmatpush1.bf16.msra.mxu0 %v322
    %425 = vmatprep.subr.bf16.mxu0 %v327
    %426 = vmatpush1.bf16.msra.mxu0 %v326
    %427 = vmatprep.subr.bf16.mxu0 %v331
    %428 = vmatpush1.bf16.msra.mxu0 %v330
    %429 = vmatprep.subr.bf16.mxu0 %v335
    %430 = vmatpush1.bf16.msra.mxu0 %v334
    %431 = vmatprep.subr.bf16.mxu0 %v339
    %432 = vmatpush1.bf16.msra.mxu0 %v338
    %433 = vmatprep.subr.bf16.mxu0 %v343
    %434 = vmatpush1.bf16.msra.mxu0 %v342
    %435 = vmatprep.subr.bf16.mxu0 %v347
    %436 = vmatpush1.bf16.msra.mxu0 %v346
    %437 = vmatprep.subr.bf16.mxu0 0
    %438 = vmatpush1.bf16.msra.mxu0 0
    %439 = vmatprep.subr.bf16.mxu0 0
    %440 = vmatpush1.bf16.msra.mxu0 0
    %441 = vmatprep.subr.bf16.mxu0 0
    %442 = vmatpush1.bf16.msra.mxu0 0
    %443 = vmatprep.subr.bf16.mxu0 0
    %444 = vmatpush1.bf16.msra.mxu0 0
    %445 = vmatprep.subr.bf16.mxu0 0
    %446 = vmatpush1.bf16.msra.mxu0 0
    %447 = vmatprep.subr.bf16.mxu0 0
    %448 = vmatpush1.bf16.msra.mxu0 0
    %449 = vmatprep.subr.bf16.mxu0 0
    %450 = vmatpush1.bf16.msra.mxu0 0
    %451 = vmatprep.subr.bf16.mxu0 0
    %452 = vmatpush1.bf16.msra.mxu0 0
    %453 = vmatprep.mubr.bf16.mxu0 0
    %454 = vmatmul.mubr.bf16.gmra.mrb[0].mxu0 0
    %v455 = vpop.f32.mrb[0].mxu0
    %v456 = vadd.f32 0.0, %v455
    %v457 = vpop.f32.mrb[0].mxu0
    %v458 = vadd.f32 0.0, %v457
    %v459 = vpop.f32.mrb[0].mxu0
    %v460 = vpop.f32.mrb[0].mxu0
    %461 = vdwg.mxu0
    %v462 = vadd.f32 %v184, %v415
    %v463 = vadd.f32 %v185, %v417
    %v464 = vadd.f32 %v186, %v456
    %v465 = vadd.f32 %v187, %v458
    %v466 = vmul.f32 %v462, 0.5
    %v467 = vtanh.pop %v466
    %v468 = vmul.f32 %v467, 0.5
    %v469 = vadd.f32 %v468, 0.5
    %v470 = vmul.f32 %v463, 0.5
    %v471 = vtanh.pop %v470
    %v472 = vmul.f32 %v471, 0.5
    %v473 = vadd.f32 %v472, 0.5
    %v474 = vtanh.pop %v464
    %v475 = vmul.f32 %v465, 0.5
    %v476 = vtanh.pop %v475
    %v477 = vmul.f32 %v476, 0.5
    %v478 = vadd.f32 %v477, 0.5
    %v479 = vmul.f32 %v473, 0.0
    %v480 = vmul.f32 %v469, %v474
    %v481 = vadd.f32 %v479, %v480
    %v482 = vtanh.pop %v481
    %v483 = vmul.f32 %v478, %v482
    %s484 = scalar_lea.vmem [#allocation2], 32
    %v485 = vld [vmem:[%s484] sm:$0xff]
    %v486 = vld [vmem:[%s484 + $0x8] sm:$0xff]
    %v487 = vld [vmem:[%s484 + $0x10] sm:$0xff]
    %v488 = vld [vmem:[%s484 + $0x18] sm:$0xff]
    %v489 = vpack.c.bf16 %v483, %v483
    %490 = vmatprep.subr.bf16.mxu0 %v317
    %491 = vmatpush1.bf16.msra.mxu0 %v316
    %492 = vmatprep.subr.bf16.mxu0 %v321
    %493 = vmatpush1.bf16.msra.mxu0 %v320
    %494 = vmatprep.subr.bf16.mxu0 %v325
    %495 = vmatpush1.bf16.msra.mxu0 %v324
    %496 = vmatprep.subr.bf16.mxu0 %v329
    %497 = vmatpush1.bf16.msra.mxu0 %v328
    %498 = vmatprep.subr.bf16.mxu0 %v333
    %499 = vmatpush1.bf16.msra.mxu0 %v332
    %500 = vmatprep.subr.bf16.mxu0 %v337
    %501 = vmatpush1.bf16.msra.mxu0 %v336
    %502 = vmatprep.subr.bf16.mxu0 %v341
    %503 = vmatpush1.bf16.msra.mxu0 %v340
    %504 = vmatprep.subr.bf16.mxu0 %v345
    %505 = vmatpush1.bf16.msra.mxu0 %v344
    %506 = vmatprep.subr.bf16.mxu0 0
    %507 = vmatpush1.bf16.msra.mxu0 0
    %508 = vmatprep.subr.bf16.mxu0 0
    %509 = vmatpush1.bf16.msra.mxu0 0
    %510 = vmatprep.subr.bf16.mxu0 0
    %511 = vmatpush1.bf16.msra.mxu0 0
    %512 = vmatprep.subr.bf16.mxu0 0
    %513 = vmatpush1.bf16.msra.mxu0 0
    %514 = vmatprep.subr.bf16.mxu0 0
    %515 = vmatpush1.bf16.msra.mxu0 0
    %516 = vmatprep.subr.bf16.mxu0 0
    %517 = vmatpush1.bf16.msra.mxu0 0
    %518 = vmatprep.subr.bf16.mxu0 0
    %519 = vmatpush1.bf16.msra.mxu0 0
    %520 = vmatprep.subr.bf16.mxu0 0
    %521 = vmatpush1.bf16.msra.mxu0 0
    %522 = vmatprep.mubr.bf16.mxu0 0
    %523 = vmatmul.mubr.bf16.gmra.mrb[0].mxu0 %v489
    %v524 = vpop.f32.mrb[0].mxu0
    %v525 = vadd.f32 0.0, %v524
    %v526 = vpop.f32.mrb[0].mxu0
    %v527 = vadd.f32 0.0, %v526
    %v528 = vpop.f32.mrb[0].mxu0
    %v529 = vpop.f32.mrb[0].mxu0
    %530 = vdwg.mxu0
    %531 = vmatprep.subr.bf16.mxu0 %v319
    %532 = vmatpush1.bf16.msra.mxu0 %v318
    %533 = vmatprep.subr.bf16.mxu0 %v323
    %534 = vmatpush1.bf16.msra.mxu0 %v322
    %535 = vmatprep.subr.bf16.mxu0 %v327
    %536 = vmatpush1.bf16.msra.mxu0 %v326
    %537 = vmatprep.subr.bf16.mxu0 %v331
    %538 = vmatpush1.bf16.msra.mxu0 %v330
    %539 = vmatprep.subr.bf16.mxu0 %v335
    %540 = vmatpush1.bf16.msra.mxu0 %v334
    %541 = vmatprep.subr.bf16.mxu0 %v339
    %542 = vmatpush1.bf16.msra.mxu0 %v338
    %543 = vmatprep.subr.bf16.mxu0 %v343
    %544 = vmatpush1.bf16.msra.mxu0 %v342
    %545 = vmatprep.subr.bf16.mxu0 %v347
    %546 = vmatpush1.bf16.msra.mxu0 %v346
    %547 = vmatprep.subr.bf16.mxu0 0
    %548 = vmatpush1.bf16.msra.mxu0 0
    %549 = vmatprep.subr.bf16.mxu0 0
    %550 = vmatpush1.bf16.msra.mxu0 0
    %551 = vmatprep.subr.bf16.mxu0 0
    %552 = vmatpush1.bf16.msra.mxu0 0
    %553 = vmatprep.subr.bf16.mxu0 0
    %554 = vmatpush1.bf16.msra.mxu0 0
    %555 = vmatprep.subr.bf16.mxu0 0
    %556 = vmatpush1.bf16.msra.mxu0 0
    %557 = vmatprep.subr.bf16.mxu0 0
    %558 = vmatpush1.bf16.msra.mxu0 0
    %559 = vmatprep.subr.bf16.mxu0 0
    %560 = vmatpush1.bf16.msra.mxu0 0
    %561 = vmatprep.subr.bf16.mxu0 0
    %562 = vmatpush1.bf16.msra.mxu0 0
    %563 = vmatprep.mubr.bf16.mxu0 0
    %564 = vmatmul.mubr.bf16.gmra.mrb[0].mxu0 %v489
    %v565 = vpop.f32.mrb[0].mxu0
    %v566 = vadd.f32 0.0, %v565
    %v567 = vpop.f32.mrb[0].mxu0
    %v568 = vadd.f32 0.0, %v567
    %v569 = vpop.f32.mrb[0].mxu0
    %v570 = vpop.f32.mrb[0].mxu0
    %571 = vdwg.mxu0
    %v572 = vadd.f32 %v485, %v525
    %v573 = vadd.f32 %v486, %v527
    %v574 = vadd.f32 %v487, %v566
    %v575 = vadd.f32 %v488, %v568
    %v576 = vmul.f32 %v572, 0.5
    %v577 = vtanh.pop %v576
    %v578 = vmul.f32 %v577, 0.5
    %v579 = vadd.f32 %v578, 0.5
    %v580 = vmul.f32 %v573, 0.5
    %v581 = vtanh.pop %v580
    %v582 = vmul.f32 %v581, 0.5
    %v583 = vadd.f32 %v582, 0.5
    %v584 = vtanh.pop %v574
    %v585 = vmul.f32 %v575, 0.5
    %v586 = vtanh.pop %v585
    %v587 = vmul.f32 %v586, 0.5
    %v588 = vadd.f32 %v587, 0.5
    %v589 = vmul.f32 %v583, %v481
    %v590 = vmul.f32 %v579, %v584
    %v591 = vadd.f32 %v589, %v590
    %v592 = vtanh.pop %v591
    %v593 = vmul.f32 %v588, %v592
    %s594 = scalar_lea.vmem [#allocation2], 64
    %v595 = vld [vmem:[%s594] sm:$0xff]
    %v596 = vld [vmem:[%s594 + $0x8] sm:$0xff]
    %v597 = vld [vmem:[%s594 + $0x10] sm:$0xff]
    %v598 = vld [vmem:[%s594 + $0x18] sm:$0xff]
    %v599 = vpack.c.bf16 %v593, %v593
    %600 = vmatprep.subr.bf16.mxu0 %v317
    %601 = vmatpush1.bf16.msra.mxu0 %v316
    %602 = vmatprep.subr.bf16.mxu0 %v321
    %603 = vmatpush1.bf16.msra.mxu0 %v320
    %604 = vmatprep.subr.bf16.mxu0 %v325
    %605 = vmatpush1.bf16.msra.mxu0 %v324
    %606 = vmatprep.subr.bf16.mxu0 %v329
    %607 = vmatpush1.bf16.msra.mxu0 %v328
    %608 = vmatprep.subr.bf16.mxu0 %v333
    %609 = vmatpush1.bf16.msra.mxu0 %v332
    %610 = vmatprep.subr.bf16.mxu0 %v337
    %611 = vmatpush1.bf16.msra.mxu0 %v336
    %612 = vmatprep.subr.bf16.mxu0 %v341
    %613 = vmatpush1.bf16.msra.mxu0 %v340
    %614 = vmatprep.subr.bf16.mxu0 %v345
    %615 = vmatpush1.bf16.msra.mxu0 %v344
    %616 = vmatprep.subr.bf16.mxu0 0
    %617 = vmatpush1.bf16.msra.mxu0 0
    %618 = vmatprep.subr.bf16.mxu0 0
    %619 = vmatpush1.bf16.msra.mxu0 0
    %620 = vmatprep.subr.bf16.mxu0 0
    %621 = vmatpush1.bf16.msra.mxu0 0
    %622 = vmatprep.subr.bf16.mxu0 0
    %623 = vmatpush1.bf16.msra.mxu0 0
    %624 = vmatprep.subr.bf16.mxu0 0
    %625 = vmatpush1.bf16.msra.mxu0 0
    %626 = vmatprep.subr.bf16.mxu0 0
    %627 = vmatpush1.bf16.msra.mxu0 0
    %628 = vmatprep.subr.bf16.mxu0 0
    %629 = vmatpush1.bf16.msra.mxu0 0
    %630 = vmatprep.subr.bf16.mxu0 0
    %631 = vmatpush1.bf16.msra.mxu0 0
    %632 = vmatprep.mubr.bf16.mxu0 0
    %633 = vmatmul.mubr.bf16.gmra.mrb[0].mxu0 %v599
    %v634 = vpop.f32.mrb[0].mxu0
    %v635 = vadd.f32 0.0, %v634
    %v636 = vpop.f32.mrb[0].mxu0
    %v637 = vadd.f32 0.0, %v636
    %v638 = vpop.f32.mrb[0].mxu0
    %v639 = vpop.f32.mrb[0].mxu0
    %640 = vdwg.mxu0
    %641 = vmatprep.subr.bf16.mxu0 %v319
    %642 = vmatpush1.bf16.msra.mxu0 %v318
    %643 = vmatprep.subr.bf16.mxu0 %v323
    %644 = vmatpush1.bf16.msra.mxu0 %v322
    %645 = vmatprep.subr.bf16.mxu0 %v327
    %646 = vmatpush1.bf16.msra.mxu0 %v326
    %647 = vmatprep.subr.bf16.mxu0 %v331
    %648 = vmatpush1.bf16.msra.mxu0 %v330
    %649 = vmatprep.subr.bf16.mxu0 %v335
    %650 = vmatpush1.bf16.msra.mxu0 %v334
    %651 = vmatprep.subr.bf16.mxu0 %v339
    %652 = vmatpush1.bf16.msra.mxu0 %v338
    %653 = vmatprep.subr.bf16.mxu0 %v343
    %654 = vmatpush1.bf16.msra.mxu0 %v342
    %655 = vmatprep.subr.bf16.mxu0 %v347
    %656 = vmatpush1.bf16.msra.mxu0 %v346
    %657 = vmatprep.subr.bf16.mxu0 0
    %658 = vmatpush1.bf16.msra.mxu0 0
    %659 = vmatprep.subr.bf16.mxu0 0
    %660 = vmatpush1.bf16.msra.mxu0 0
    %661 = vmatprep.subr.bf16.mxu0 0
    %662 = vmatpush1.bf16.msra.mxu0 0
    %663 = vmatprep.subr.bf16.mxu0 0
    %664 = vmatpush1.bf16.msra.mxu0 0
    %665 = vmatprep.subr.bf16.mxu0 0
    %666 = vmatpush1.bf16.msra.mxu0 0
    %667 = vmatprep.subr.bf16.mxu0 0
    %668 = vmatpush1.bf16.msra.mxu0 0
    %669 = vmatprep.subr.bf16.mxu0 0
    %670 = vmatpush1.bf16.msra.mxu0 0
    %671 = vmatprep.subr.bf16.mxu0 0
    %672 = vmatpush1.bf16.msra.mxu0 0
    %673 = vmatprep.mubr.bf16.mxu0 0
    %674 = vmatmul.mubr.bf16.gmra.mrb[0].mxu0 %v599
    %v675 = vpop.f32.mrb[0].mxu0
    %v676 = vadd.f32 0.0, %v675
    %v677 = vpop.f32.mrb[0].mxu0
    %v678 = vadd.f32 0.0, %v677
    %v679 = vpop.f32.mrb[0].mxu0
    %v680 = vpop.f32.mrb[0].mxu0
    %681 = vdwg.mxu0
    %v682 = vadd.f32 %v595, %v635
    %v683 = vadd.f32 %v596, %v637
    %v684 = vadd.f32 %v597, %v676
    %v685 = vadd.f32 %v598, %v678
    %v686 = vmul.f32 %v682, 0.5
    %v687 = vtanh.pop %v686
    %v688 = vmul.f32 %v687, 0.5
    %v689 = vadd.f32 %v688, 0.5
    %v690 = vmul.f32 %v683, 0.5
    %v691 = vtanh.pop %v690
    %v692 = vmul.f32 %v691, 0.5
    %v693 = vadd.f32 %v692, 0.5
    %v694 = vtanh.pop %v684
    %v695 = vmul.f32 %v685, 0.5
    %v696 = vtanh.pop %v695
    %v697 = vmul.f32 %v696, 0.5
    %v698 = vadd.f32 %v697, 0.5
    %v699 = vmul.f32 %v693, %v591
    %v700 = vmul.f32 %v689, %v694
    %v701 = vadd.f32 %v699, %v700
    %v702 = vtanh.pop %v701
    %v703 = vmul.f32 %v698, %v702
    %s704 = scalar_lea.vmem [#allocation2], 96
    %v705 = vld [vmem:[%s704] sm:$0xff]
    %v706 = vld [vmem:[%s704 + $0x8] sm:$0xff]
    %v707 = vld [vmem:[%s704 + $0x10] sm:$0xff]
    %v708 = vld [vmem:[%s704 + $0x18] sm:$0xff]
    %v709 = vpack.c.bf16 %v703, %v703
    %710 = vmatprep.subr.bf16.mxu0 %v317
    %711 = vmatpush1.bf16.msra.mxu0 %v316
    %712 = vmatprep.subr.bf16.mxu0 %v321
    %713 = vmatpush1.bf16.msra.mxu0 %v320
    %714 = vmatprep.subr.bf16.mxu0 %v325
    %715 = vmatpush1.bf16.msra.mxu0 %v324
    %716 = vmatprep.subr.bf16.mxu0 %v329
    %717 = vmatpush1.bf16.msra.mxu0 %v328
    %718 = vmatprep.subr.bf16.mxu0 %v333
    %719 = vmatpush1.bf16.msra.mxu0 %v332
    %720 = vmatprep.subr.bf16.mxu0 %v337
    %721 = vmatpush1.bf16.msra.mxu0 %v336
    %722 = vmatprep.subr.bf16.mxu0 %v341
    %723 = vmatpush1.bf16.msra.mxu0 %v340
    %724 = vmatprep.subr.bf16.mxu0 %v345
    %725 = vmatpush1.bf16.msra.mxu0 %v344
    %726 = vmatprep.subr.bf16.mxu0 0
    %727 = vmatpush1.bf16.msra.mxu0 0
    %728 = vmatprep.subr.bf16.mxu0 0
    %729 = vmatpush1.bf16.msra.mxu0 0
    %730 = vmatprep.subr.bf16.mxu0 0
    %731 = vmatpush1.bf16.msra.mxu0 0
    %732 = vmatprep.subr.bf16.mxu0 0
    %733 = vmatpush1.bf16.msra.mxu0 0
    %734 = vmatprep.subr.bf16.mxu0 0
    %735 = vmatpush1.bf16.msra.mxu0 0
    %736 = vmatprep.subr.bf16.mxu0 0
    %737 = vmatpush1.bf16.msra.mxu0 0
    %738 = vmatprep.subr.bf16.mxu0 0
    %739 = vmatpush1.bf16.msra.mxu0 0
    %740 = vmatprep.subr.bf16.mxu0 0
    %741 = vmatpush1.bf16.msra.mxu0 0
    %742 = vmatprep.mubr.bf16.mxu0 0
    %743 = vmatmul.mubr.bf16.gmra.mrb[0].mxu0 %v709
    %v744 = vpop.f32.mrb[0].mxu0
    %v745 = vadd.f32 0.0, %v744
    %v746 = vpop.f32.mrb[0].mxu0
    %v747 = vadd.f32 0.0, %v746
    %v748 = vpop.f32.mrb[0].mxu0
    %v749 = vpop.f32.mrb[0].mxu0
    %750 = vdwg.mxu0
    %751 = vmatprep.subr.bf16.mxu0 %v319
    %752 = vmatpush1.bf16.msra.mxu0 %v318
    %753 = vmatprep.subr.bf16.mxu0 %v323
    %754 = vmatpush1.bf16.msra.mxu0 %v322
    %755 = vmatprep.subr.bf16.mxu0 %v327
    %756 = vmatpush1.bf16.msra.mxu0 %v326
    %757 = vmatprep.subr.bf16.mxu0 %v331
    %758 = vmatpush1.bf16.msra.mxu0 %v330
    %759 = vmatprep.subr.bf16.mxu0 %v335
    %760 = vmatpush1.bf16.msra.mxu0 %v334
    %761 = vmatprep.subr.bf16.mxu0 %v339
    %762 = vmatpush1.bf16.msra.mxu0 %v338
    %763 = vmatprep.subr.bf16.mxu0 %v343
    %764 = vmatpush1.bf16.msra.mxu0 %v342
    %765 = vmatprep.subr.bf16.mxu0 %v347
    %766 = vmatpush1.bf16.msra.mxu0 %v346
    %767 = vmatprep.subr.bf16.mxu0 0
    %768 = vmatpush1.bf16.msra.mxu0 0
    %769 = vmatprep.subr.bf16.mxu0 0
    %770 = vmatpush1.bf16.msra.mxu0 0
    %771 = vmatprep.subr.bf16.mxu0 0
    %772 = vmatpush1.bf16.msra.mxu0 0
    %773 = vmatprep.subr.bf16.mxu0 0
    %774 = vmatpush1.bf16.msra.mxu0 0
    %775 = vmatprep.subr.bf16.mxu0 0
    %776 = vmatpush1.bf16.msra.mxu0 0
    %777 = vmatprep.subr.bf16.mxu0 0
    %778 = vmatpush1.bf16.msra.mxu0 0
    %779 = vmatprep.subr.bf16.mxu0 0
    %780 = vmatpush1.bf16.msra.mxu0 0
    %781 = vmatprep.subr.bf16.mxu0 0
    %782 = vmatpush1.bf16.msra.mxu0 0
    %783 = vmatprep.mubr.bf16.mxu0 0
    %784 = vmatmul.mubr.bf16.gmra.mrb[0].mxu0 %v709
    %v785 = vpop.f32.mrb[0].mxu0
    %v786 = vadd.f32 0.0, %v785
    %v787 = vpop.f32.mrb[0].mxu0
    %v788 = vadd.f32 0.0, %v787
    %v789 = vpop.f32.mrb[0].mxu0
    %v790 = vpop.f32.mrb[0].mxu0
    %791 = vdwg.mxu0
    %v792 = vadd.f32 %v705, %v745
    %v793 = vadd.f32 %v706, %v747
    %v794 = vadd.f32 %v707, %v786
    %v795 = vadd.f32 %v708, %v788
    %v796 = vmul.f32 %v792, 0.5
    %v797 = vtanh.pop %v796
    %v798 = vmul.f32 %v797, 0.5
    %v799 = vadd.f32 %v798, 0.5
    %v800 = vmul.f32 %v793, 0.5
    %v801 = vtanh.pop %v800
    %v802 = vmul.f32 %v801, 0.5
    %v803 = vadd.f32 %v802, 0.5
    %v804 = vtanh.pop %v794
    %v805 = vmul.f32 %v795, 0.5
    %v806 = vtanh.pop %v805
    %v807 = vmul.f32 %v806, 0.5
    %v808 = vadd.f32 %v807, 0.5
    %v809 = vmul.f32 %v803, %v701
    %v810 = vmul.f32 %v799, %v804
    %v811 = vadd.f32 %v809, %v810
    %v812 = vtanh.pop %v811
    %v813 = vmul.f32 %v808, %v812
    %s814 = scalar_lea.vmem [#allocation2], 128
    %v815 = vld [vmem:[%s814] sm:$0xff]
    %v816 = vld [vmem:[%s814 + $0x8] sm:$0xff]
    %v817 = vld [vmem:[%s814 + $0x10] sm:$0xff]
    %v818 = vld [vmem:[%s814 + $0x18] sm:$0xff]
    %v819 = vpack.c.bf16 %v813, %v813
    %820 = vmatprep.subr.bf16.mxu0 %v317
    %821 = vmatpush1.bf16.msra.mxu0 %v316
    %822 = vmatprep.subr.bf16.mxu0 %v321
    %823 = vmatpush1.bf16.msra.mxu0 %v320
    %824 = vmatprep.subr.bf16.mxu0 %v325
    %825 = vmatpush1.bf16.msra.mxu0 %v324
    %826 = vmatprep.subr.bf16.mxu0 %v329
    %827 = vmatpush1.bf16.msra.mxu0 %v328
    %828 = vmatprep.subr.bf16.mxu0 %v333
    %829 = vmatpush1.bf16.msra.mxu0 %v332
    %830 = vmatprep.subr.bf16.mxu0 %v337
    %831 = vmatpush1.bf16.msra.mxu0 %v336
    %832 = vmatprep.subr.bf16.mxu0 %v341
    %833 = vmatpush1.bf16.msra.mxu0 %v340
    %834 = vmatprep.subr.bf16.mxu0 %v345
    %835 = vmatpush1.bf16.msra.mxu0 %v344
    %836 = vmatprep.subr.bf16.mxu0 0
    %837 = vmatpush1.bf16.msra.mxu0 0
    %838 = vmatprep.subr.bf16.mxu0 0
    %839 = vmatpush1.bf16.msra.mxu0 0
    %840 = vmatprep.subr.bf16.mxu0 0
    %841 = vmatpush1.bf16.msra.mxu0 0
    %842 = vmatprep.subr.bf16.mxu0 0
    %843 = vmatpush1.bf16.msra.mxu0 0
    %844 = vmatprep.subr.bf16.mxu0 0
    %845 = vmatpush1.bf16.msra.mxu0 0
    %846 = vmatprep.subr.bf16.mxu0 0
    %847 = vmatpush1.bf16.msra.mxu0 0
    %848 = vmatprep.subr.bf16.mxu0 0
    %849 = vmatpush1.bf16.msra.mxu0 0
    %850 = vmatprep.subr.bf16.mxu0 0
    %851 = vmatpush1.bf16.msra.mxu0 0
    %852 = vmatprep.mubr.bf16.mxu0 0
    %853 = vmatmul.mubr.bf16.gmra.mrb[0].mxu0 %v819
    %v854 = vpop.f32.mrb[0].mxu0
    %v855 = vadd.f32 0.0, %v854
    %v856 = vpop.f32.mrb[0].mxu0
    %v857 = vadd.f32 0.0, %v856
    %v858 = vpop.f32.mrb[0].mxu0
    %v859 = vpop.f32.mrb[0].mxu0
    %860 = vdwg.mxu0
    %861 = vmatprep.subr.bf16.mxu0 %v319
    %862 = vmatpush1.bf16.msra.mxu0 %v318
    %863 = vmatprep.subr.bf16.mxu0 %v323
    %864 = vmatpush1.bf16.msra.mxu0 %v322
    %865 = vmatprep.subr.bf16.mxu0 %v327
    %866 = vmatpush1.bf16.msra.mxu0 %v326
    %867 = vmatprep.subr.bf16.mxu0 %v331
    %868 = vmatpush1.bf16.msra.mxu0 %v330
    %869 = vmatprep.subr.bf16.mxu0 %v335
    %870 = vmatpush1.bf16.msra.mxu0 %v334
    %871 = vmatprep.subr.bf16.mxu0 %v339
    %872 = vmatpush1.bf16.msra.mxu0 %v338
    %873 = vmatprep.subr.bf16.mxu0 %v343
    %874 = vmatpush1.bf16.msra.mxu0 %v342
    %875 = vmatprep.subr.bf16.mxu0 %v347
    %876 = vmatpush1.bf16.msra.mxu0 %v346
    %877 = vmatprep.subr.bf16.mxu0 0
    %878 = vmatpush1.bf16.msra.mxu0 0
    %879 = vmatprep.subr.bf16.mxu0 0
    %880 = vmatpush1.bf16.msra.mxu0 0
    %881 = vmatprep.subr.bf16.mxu0 0
    %882 = vmatpush1.bf16.msra.mxu0 0
    %883 = vmatprep.subr.bf16.mxu0 0
    %884 = vmatpush1.bf16.msra.mxu0 0
    %885 = vmatprep.subr.bf16.mxu0 0
    %886 = vmatpush1.bf16.msra.mxu0 0
    %887 = vmatprep.subr.bf16.mxu0 0
    %888 = vmatpush1.bf16.msra.mxu0 0
    %889 = vmatprep.subr.bf16.mxu0 0
    %890 = vmatpush1.bf16.msra.mxu0 0
    %891 = vmatprep.subr.bf16.mxu0 0
    %892 = vmatpush1.bf16.msra.mxu0 0
    %893 = vmatprep.mubr.bf16.mxu0 0
    %894 = vmatmul.mubr.bf16.gmra.mrb[0].mxu0 %v819
    %v895 = vpop.f32.mrb[0].mxu0
    %v896 = vadd.f32 0.0, %v895
    %v897 = vpop.f32.mrb[0].mxu0
    %v898 = vadd.f32 0.0, %v897
    %v899 = vpop.f32.mrb[0].mxu0
    %v900 = vpop.f32.mrb[0].mxu0
    %901 = vdwg.mxu0
    %v902 = vadd.f32 %v815, %v855
    %v903 = vadd.f32 %v816, %v857
    %v904 = vadd.f32 %v817, %v896
    %v905 = vadd.f32 %v818, %v898
    %v906 = vmul.f32 %v902, 0.5
    %v907 = vtanh.pop %v906
    %v908 = vmul.f32 %v907, 0.5
    %v909 = vadd.f32 %v908, 0.5
    %v910 = vmul.f32 %v903, 0.5
    %v911 = vtanh.pop %v910
    %v912 = vmul.f32 %v911, 0.5
    %v913 = vadd.f32 %v912, 0.5
    %v914 = vtanh.pop %v904
    %v915 = vmul.f32 %v905, 0.5
    %v916 = vtanh.pop %v915
    %v917 = vmul.f32 %v916, 0.5
    %v918 = vadd.f32 %v917, 0.5
    %v919 = vmul.f32 %v913, %v811
    %v920 = vmul.f32 %v909, %v914
    %v921 = vadd.f32 %v919, %v920
    %v922 = vtanh.pop %v921
    %v923 = vmul.f32 %v918, %v922
    %s924 = scalar_lea.vmem [#allocation2], 160
    %v925 = vld [vmem:[%s924] sm:$0xff]
    %v926 = vld [vmem:[%s924 + $0x8] sm:$0xff]
    %v927 = vld [vmem:[%s924 + $0x10] sm:$0xff]
    %v928 = vld [vmem:[%s924 + $0x18] sm:$0xff]
    %v929 = vpack.c.bf16 %v923, %v923
    %930 = vmatprep.subr.bf16.mxu0 %v317
    %931 = vmatpush1.bf16.msra.mxu0 %v316
    %932 = vmatprep.subr.bf16.mxu0 %v321
    %933 = vmatpush1.bf16.msra.mxu0 %v320
    %934 = vmatprep.subr.bf16.mxu0 %v325
    %935 = vmatpush1.bf16.msra.mxu0 %v324
    %936 = vmatprep.subr.bf16.mxu0 %v329
    %937 = vmatpush1.bf16.msra.mxu0 %v328
    %938 = vmatprep.subr.bf16.mxu0 %v333
    %939 = vmatpush1.bf16.msra.mxu0 %v332
    %940 = vmatprep.subr.bf16.mxu0 %v337
    %941 = vmatpush1.bf16.msra.mxu0 %v336
    %942 = vmatprep.subr.bf16.mxu0 %v341
    %943 = vmatpush1.bf16.msra.mxu0 %v340
    %944 = vmatprep.subr.bf16.mxu0 %v345
    %945 = vmatpush1.bf16.msra.mxu0 %v344
    %946 = vmatprep.subr.bf16.mxu0 0
    %947 = vmatpush1.bf16.msra.mxu0 0
    %948 = vmatprep.subr.bf16.mxu0 0
    %949 = vmatpush1.bf16.msra.mxu0 0
    %950 = vmatprep.subr.bf16.mxu0 0
    %951 = vmatpush1.bf16.msra.mxu0 0
    %952 = vmatprep.subr.bf16.mxu0 0
    %953 = vmatpush1.bf16.msra.mxu0 0
    %954 = vmatprep.subr.bf16.mxu0 0
    %955 = vmatpush1.bf16.msra.mxu0 0
    %956 = vmatprep.subr.bf16.mxu0 0
    %957 = vmatpush1.bf16.msra.mxu0 0
    %958 = vmatprep.subr.bf16.mxu0 0
    %959 = vmatpush1.bf16.msra.mxu0 0
    %960 = vmatprep.subr.bf16.mxu0 0
    %961 = vmatpush1.bf16.msra.mxu0 0
    %962 = vmatprep.mubr.bf16.mxu0 0
    %963 = vmatmul.mubr.bf16.gmra.mrb[0].mxu0 %v929
    %v964 = vpop.f32.mrb[0].mxu0
    %v965 = vadd.f32 0.0, %v964
    %v966 = vpop.f32.mrb[0].mxu0
    %v967 = vadd.f32 0.0, %v966
    %v968 = vpop.f32.mrb[0].mxu0
    %v969 = vpop.f32.mrb[0].mxu0
    %970 = vdwg.mxu0
    %971 = vmatprep.subr.bf16.mxu0 %v319
    %972 = vmatpush1.bf16.msra.mxu0 %v318
    %973 = vmatprep.subr.bf16.mxu0 %v323
    %974 = vmatpush1.bf16.msra.mxu0 %v322
    %975 = vmatprep.subr.bf16.mxu0 %v327
    %976 = vmatpush1.bf16.msra.mxu0 %v326
    %977 = vmatprep.subr.bf16.mxu0 %v331
    %978 = vmatpush1.bf16.msra.mxu0 %v330
    %979 = vmatprep.subr.bf16.mxu0 %v335
    %980 = vmatpush1.bf16.msra.mxu0 %v334
    %981 = vmatprep.subr.bf16.mxu0 %v339
    %982 = vmatpush1.bf16.msra.mxu0 %v338
    %983 = vmatprep.subr.bf16.mxu0 %v343
    %984 = vmatpush1.bf16.msra.mxu0 %v342
    %985 = vmatprep.subr.bf16.mxu0 %v347
    %986 = vmatpush1.bf16.msra.mxu0 %v346
    %987 = vmatprep.subr.bf16.mxu0 0
    %988 = vmatpush1.bf16.msra.mxu0 0
    %989 = vmatprep.subr.bf16.mxu0 0
    %990 = vmatpush1.bf16.msra.mxu0 0
    %991 = vmatprep.subr.bf16.mxu0 0
    %992 = vmatpush1.bf16.msra.mxu0 0
    %993 = vmatprep.subr.bf16.mxu0 0
    %994 = vmatpush1.bf16.msra.mxu0 0
    %995 = vmatprep.subr.bf16.mxu0 0
    %996 = vmatpush1.bf16.msra.mxu0 0
    %997 = vmatprep.subr.bf16.mxu0 0
    %998 = vmatpush1.bf16.msra.mxu0 0
    %999 = vmatprep.subr.bf16.mxu0 0
    %1000 = vmatpush1.bf16.msra.mxu0 0
    %1001 = vmatprep.subr.bf16.mxu0 0
    %1002 = vmatpush1.bf16.msra.mxu0 0
    %1003 = vmatprep.mubr.bf16.mxu0 0
    %1004 = vmatmul.mubr.bf16.gmra.mrb[0].mxu0 %v929
    %v1005 = vpop.f32.mrb[0].mxu0
    %v1006 = vadd.f32 0.0, %v1005
    %v1007 = vpop.f32.mrb[0].mxu0
    %v1008 = vadd.f32 0.0, %v1007
    %v1009 = vpop.f32.mrb[0].mxu0
    %v1010 = vpop.f32.mrb[0].mxu0
    %1011 = vdwg.mxu0
    %v1012 = vadd.f32 %v925, %v965
    %v1013 = vadd.f32 %v926, %v967
    %v1014 = vadd.f32 %v927, %v1006
    %v1015 = vadd.f32 %v928, %v1008
    %v1016 = vmul.f32 %v1012, 0.5
    %v1017 = vtanh.pop %v1016
    %v1018 = vmul.f32 %v1017, 0.5
    %v1019 = vadd.f32 %v1018, 0.5
    %v1020 = vmul.f32 %v1013, 0.5
    %v1021 = vtanh.pop %v1020
    %v1022 = vmul.f32 %v1021, 0.5
    %v1023 = vadd.f32 %v1022, 0.5
    %v1024 = vtanh.pop %v1014
    %v1025 = vmul.f32 %v1015, 0.5
    %v1026 = vtanh.pop %v1025
    %v1027 = vmul.f32 %v1026, 0.5
    %v1028 = vadd.f32 %v1027, 0.5
    %v1029 = vmul.f32 %v1023, %v921
    %v1030 = vmul.f32 %v1019, %v1024
    %v1031 = vadd.f32 %v1029, %v1030
    %v1032 = vtanh.pop %v1031
    %v1033 = vmul.f32 %v1028, %v1032
    %s1034 = scalar_lea.vmem [#allocation2], 192
    %v1035 = vld [vmem:[%s1034] sm:$0xff]
    %v1036 = vld [vmem:[%s1034 + $0x8] sm:$0xff]
    %v1037 = vld [vmem:[%s1034 + $0x10] sm:$0xff]
    %v1038 = vld [vmem:[%s1034 + $0x18] sm:$0xff]
    %v1039 = vpack.c.bf16 %v1033, %v1033
    %1040 = vmatprep.subr.bf16.mxu0 %v317
    %1041 = vmatpush1.bf16.msra.mxu0 %v316
    %1042 = vmatprep.subr.bf16.mxu0 %v321
    %1043 = vmatpush1.bf16.msra.mxu0 %v320
    %1044 = vmatprep.subr.bf16.mxu0 %v325
    %1045 = vmatpush1.bf16.msra.mxu0 %v324
    %1046 = vmatprep.subr.bf16.mxu0 %v329
    %1047 = vmatpush1.bf16.msra.mxu0 %v328
    %1048 = vmatprep.subr.bf16.mxu0 %v333
    %1049 = vmatpush1.bf16.msra.mxu0 %v332
    %1050 = vmatprep.subr.bf16.mxu0 %v337
    %1051 = vmatpush1.bf16.msra.mxu0 %v336
    %1052 = vmatprep.subr.bf16.mxu0 %v341
    %1053 = vmatpush1.bf16.msra.mxu0 %v340
    %1054 = vmatprep.subr.bf16.mxu0 %v345
    %1055 = vmatpush1.bf16.msra.mxu0 %v344
    %1056 = vmatprep.subr.bf16.mxu0 0
    %1057 = vmatpush1.bf16.msra.mxu0 0
    %1058 = vmatprep.subr.bf16.mxu0 0
    %1059 = vmatpush1.bf16.msra.mxu0 0
    %1060 = vmatprep.subr.bf16.mxu0 0
    %1061 = vmatpush1.bf16.msra.mxu0 0
    %1062 = vmatprep.subr.bf16.mxu0 0
    %1063 = vmatpush1.bf16.msra.mxu0 0
    %1064 = vmatprep.subr.bf16.mxu0 0
    %1065 = vmatpush1.bf16.msra.mxu0 0
    %1066 = vmatprep.subr.bf16.mxu0 0
    %1067 = vmatpush1.bf16.msra.mxu0 0
    %1068 = vmatprep.subr.bf16.mxu0 0
    %1069 = vmatpush1.bf16.msra.mxu0 0
    %1070 = vmatprep.subr.bf16.mxu0 0
    %1071 = vmatpush1.bf16.msra.mxu0 0
    %1072 = vmatprep.mubr.bf16.mxu0 0
    %1073 = vmatmul.mubr.bf16.gmra.mrb[0].mxu0 %v1039
    %v1074 = vpop.f32.mrb[0].mxu0
    %v1075 = vadd.f32 0.0, %v1074
    %v1076 = vpop.f32.mrb[0].mxu0
    %v1077 = vadd.f32 0.0, %v1076
    %v1078 = vpop.f32.mrb[0].mxu0
    %v1079 = vpop.f32.mrb[0].mxu0
    %1080 = vdwg.mxu0
    %1081 = vmatprep.subr.bf16.mxu0 %v319
    %1082 = vmatpush1.bf16.msra.mxu0 %v318
    %1083 = vmatprep.subr.bf16.mxu0 %v323
    %1084 = vmatpush1.bf16.msra.mxu0 %v322
    %1085 = vmatprep.subr.bf16.mxu0 %v327
    %1086 = vmatpush1.bf16.msra.mxu0 %v326
    %1087 = vmatprep.subr.bf16.mxu0 %v331
    %1088 = vmatpush1.bf16.msra.mxu0 %v330
    %1089 = vmatprep.subr.bf16.mxu0 %v335
    %1090 = vmatpush1.bf16.msra.mxu0 %v334
    %1091 = vmatprep.subr.bf16.mxu0 %v339
    %1092 = vmatpush1.bf16.msra.mxu0 %v338
    %1093 = vmatprep.subr.bf16.mxu0 %v343
    %1094 = vmatpush1.bf16.msra.mxu0 %v342
    %1095 = vmatprep.subr.bf16.mxu0 %v347
    %1096 = vmatpush1.bf16.msra.mxu0 %v346
    %1097 = vmatprep.subr.bf16.mxu0 0
    %1098 = vmatpush1.bf16.msra.mxu0 0
    %1099 = vmatprep.subr.bf16.mxu0 0
    %1100 = vmatpush1.bf16.msra.mxu0 0
    %1101 = vmatprep.subr.bf16.mxu0 0
    %1102 = vmatpush1.bf16.msra.mxu0 0
    %1103 = vmatprep.subr.bf16.mxu0 0
    %1104 = vmatpush1.bf16.msra.mxu0 0
    %1105 = vmatprep.subr.bf16.mxu0 0
    %1106 = vmatpush1.bf16.msra.mxu0 0
    %1107 = vmatprep.subr.bf16.mxu0 0
    %1108 = vmatpush1.bf16.msra.mxu0 0
    %1109 = vmatprep.subr.bf16.mxu0 0
    %1110 = vmatpush1.bf16.msra.mxu0 0
    %1111 = vmatprep.subr.bf16.mxu0 0
    %1112 = vmatpush1.bf16.msra.mxu0 0
    %1113 = vmatprep.mubr.bf16.mxu0 0
    %1114 = vmatmul.mubr.bf16.gmra.mrb[0].mxu0 %v1039
    %v1115 = vpop.f32.mrb[0].mxu0
    %v1116 = vadd.f32 0.0, %v1115
    %v1117 = vpop.f32.mrb[0].mxu0
    %v1118 = vadd.f32 0.0, %v1117
    %v1119 = vpop.f32.mrb[0].mxu0
    %v1120 = vpop.f32.mrb[0].mxu0
    %1121 = vdwg.mxu0
    %v1122 = vadd.f32 %v1035, %v1075
    %v1123 = vadd.f32 %v1036, %v1077
    %v1124 = vadd.f32 %v1037, %v1116
    %v1125 = vadd.f32 %v1038, %v1118
    %v1126 = vmul.f32 %v1122, 0.5
    %v1127 = vtanh.pop %v1126
    %v1128 = vmul.f32 %v1127, 0.5
    %v1129 = vadd.f32 %v1128, 0.5
    %v1130 = vmul.f32 %v1123, 0.5
    %v1131 = vtanh.pop %v1130
    %v1132 = vmul.f32 %v1131, 0.5
    %v1133 = vadd.f32 %v1132, 0.5
    %v1134 = vtanh.pop %v1124
    %v1135 = vmul.f32 %v1125, 0.5
    %v1136 = vtanh.pop %v1135
    %v1137 = vmul.f32 %v1136, 0.5
    %v1138 = vadd.f32 %v1137, 0.5
    %v1139 = vmul.f32 %v1133, %v1031
    %v1140 = vmul.f32 %v1129, %v1134
    %v1141 = vadd.f32 %v1139, %v1140
    %v1142 = vtanh.pop %v1141
    %v1143 = vmul.f32 %v1138, %v1142
    %s1144 = scalar_lea.vmem [#allocation2], 224
    %v1145 = vld [vmem:[%s1144] sm:$0xff]
    %v1146 = vld [vmem:[%s1144 + $0x8] sm:$0xff]
    %v1147 = vld [vmem:[%s1144 + $0x10] sm:$0xff]
    %v1148 = vld [vmem:[%s1144 + $0x18] sm:$0xff]
    %v1149 = vpack.c.bf16 %v1143, %v1143
    %1150 = vmatprep.subr.bf16.mxu0 %v317
    %1151 = vmatpush1.bf16.msra.mxu0 %v316
    %1152 = vmatprep.subr.bf16.mxu0 %v321
    %1153 = vmatpush1.bf16.msra.mxu0 %v320
    %1154 = vmatprep.subr.bf16.mxu0 %v325
    %1155 = vmatpush1.bf16.msra.mxu0 %v324
    %1156 = vmatprep.subr.bf16.mxu0 %v329
    %1157 = vmatpush1.bf16.msra.mxu0 %v328
    %1158 = vmatprep.subr.bf16.mxu0 %v333
    %1159 = vmatpush1.bf16.msra.mxu0 %v332
    %1160 = vmatprep.subr.bf16.mxu0 %v337
    %1161 = vmatpush1.bf16.msra.mxu0 %v336
    %1162 = vmatprep.subr.bf16.mxu0 %v341
    %1163 = vmatpush1.bf16.msra.mxu0 %v340
    %1164 = vmatprep.subr.bf16.mxu0 %v345
    %1165 = vmatpush1.bf16.msra.mxu0 %v344
    %1166 = vmatprep.subr.bf16.mxu0 0
    %1167 = vmatpush1.bf16.msra.mxu0 0
    %1168 = vmatprep.subr.bf16.mxu0 0
    %1169 = vmatpush1.bf16.msra.mxu0 0
    %1170 = vmatprep.subr.bf16.mxu0 0
    %1171 = vmatpush1.bf16.msra.mxu0 0
    %1172 = vmatprep.subr.bf16.mxu0 0
    %1173 = vmatpush1.bf16.msra.mxu0 0
    %1174 = vmatprep.subr.bf16.mxu0 0
    %1175 = vmatpush1.bf16.msra.mxu0 0
    %1176 = vmatprep.subr.bf16.mxu0 0
    %1177 = vmatpush1.bf16.msra.mxu0 0
    %1178 = vmatprep.subr.bf16.mxu0 0
    %1179 = vmatpush1.bf16.msra.mxu0 0
    %1180 = vmatprep.subr.bf16.mxu0 0
    %1181 = vmatpush1.bf16.msra.mxu0 0
    %1182 = vmatprep.mubr.bf16.mxu0 0
    %1183 = vmatmul.mubr.bf16.gmra.mrb[0].mxu0 %v1149
    %v1184 = vpop.f32.mrb[0].mxu0
    %v1185 = vadd.f32 0.0, %v1184
    %v1186 = vpop.f32.mrb[0].mxu0
    %v1187 = vadd.f32 0.0, %v1186
    %v1188 = vpop.f32.mrb[0].mxu0
    %v1189 = vpop.f32.mrb[0].mxu0
    %1190 = vdwg.mxu0
    %1191 = vmatprep.subr.bf16.mxu0 %v319
    %1192 = vmatpush1.bf16.msra.mxu0 %v318
    %1193 = vmatprep.subr.bf16.mxu0 %v323
    %1194 = vmatpush1.bf16.msra.mxu0 %v322
    %1195 = vmatprep.subr.bf16.mxu0 %v327
    %1196 = vmatpush1.bf16.msra.mxu0 %v326
    %1197 = vmatprep.subr.bf16.mxu0 %v331
    %1198 = vmatpush1.bf16.msra.mxu0 %v330
    %1199 = vmatprep.subr.bf16.mxu0 %v335
    %1200 = vmatpush1.bf16.msra.mxu0 %v334
    %1201 = vmatprep.subr.bf16.mxu0 %v339
    %1202 = vmatpush1.bf16.msra.mxu0 %v338
    %1203 = vmatprep.subr.bf16.mxu0 %v343
    %1204 = vmatpush1.bf16.msra.mxu0 %v342
    %1205 = vmatprep.subr.bf16.mxu0 %v347
    %1206 = vmatpush1.bf16.msra.mxu0 %v346
    %1207 = vmatprep.subr.bf16.mxu0 0
    %1208 = vmatpush1.bf16.msra.mxu0 0
    %1209 = vmatprep.subr.bf16.mxu0 0
    %1210 = vmatpush1.bf16.msra.mxu0 0
    %1211 = vmatprep.subr.bf16.mxu0 0
    %1212 = vmatpush1.bf16.msra.mxu0 0
    %1213 = vmatprep.subr.bf16.mxu0 0
    %1214 = vmatpush1.bf16.msra.mxu0 0
    %1215 = vmatprep.subr.bf16.mxu0 0
    %1216 = vmatpush1.bf16.msra.mxu0 0
    %1217 = vmatprep.subr.bf16.mxu0 0
    %1218 = vmatpush1.bf16.msra.mxu0 0
    %1219 = vmatprep.subr.bf16.mxu0 0
    %1220 = vmatpush1.bf16.msra.mxu0 0
    %1221 = vmatprep.subr.bf16.mxu0 0
    %1222 = vmatpush1.bf16.msra.mxu0 0
    %1223 = vmatprep.mubr.bf16.mxu0 0
    %1224 = vmatmul.mubr.bf16.gmra.mrb[0].mxu0 %v1149
    %v1225 = vpop.f32.mrb[0].mxu0
    %v1226 = vadd.f32 0.0, %v1225
    %v1227 = vpop.f32.mrb[0].mxu0
    %v1228 = vadd.f32 0.0, %v1227
    %v1229 = vpop.f32.mrb[0].mxu0
    %v1230 = vpop.f32.mrb[0].mxu0
    %1231 = vdwg.mxu0
    %v1232 = vadd.f32 %v1145, %v1185
    %v1233 = vadd.f32 %v1146, %v1187
    %v1234 = vadd.f32 %v1147, %v1226
    %v1235 = vadd.f32 %v1148, %v1228
    %v1236 = vmul.f32 %v1232, 0.5
    %v1237 = vtanh.pop %v1236
    %v1238 = vmul.f32 %v1237, 0.5
    %v1239 = vadd.f32 %v1238, 0.5
    %v1240 = vmul.f32 %v1233, 0.5
    %v1241 = vtanh.pop %v1240
    %v1242 = vmul.f32 %v1241, 0.5
    %v1243 = vadd.f32 %v1242, 0.5
    %v1244 = vtanh.pop %v1234
    %v1245 = vmul.f32 %v1235, 0.5
    %v1246 = vtanh.pop %v1245
    %v1247 = vmul.f32 %v1246, 0.5
    %v1248 = vadd.f32 %v1247, 0.5
    %v1249 = vmul.f32 %v1243, %v1141
    %v1250 = vmul.f32 %v1239, %v1244
    %v1251 = vadd.f32 %v1249, %v1250
    %v1252 = vtanh.pop %v1251
    %v1253 = vmul.f32 %v1248, %v1252
    %1254 = vst [vmem:[#allocation3] sm:$0xff] %v1251
    %v1255 = vld [vmem:[%s5] sm:$0x1f]
    %v1257 = vlaneseq
    %v1258 = vshrl.u32 %v1257, 7
    %v1259 = vsub.s32 0, %v1258
    %v1260 = vrot.slane %v1255, %v1259
    %v1261 = vlaneseq
    %v1262 = vshrl.u32 %v1261, 7
    %v1263 = vsub.s32 1, %v1262
    %v1264 = vrot.slane %v1255, %v1263
    %v1265 = vlaneseq
    %v1266 = vshrl.u32 %v1265, 7
    %v1267 = vsub.s32 2, %v1266
    %v1268 = vrot.slane %v1255, %v1267
    %v1269 = vlaneseq
    %v1270 = vshrl.u32 %v1269, 7
    %v1271 = vsub.s32 3, %v1270
    %v1272 = vrot.slane %v1255, %v1271
    %v1273 = vlaneseq
    %v1274 = vshrl.u32 %v1273, 7
    %v1275 = vsub.s32 4, %v1274
    %v1276 = vrot.slane %v1255, %v1275
    %v1282 = vpack.c.bf16 %v1253, %v1253
    %v1283 = vld [vmem:[%s4] sm:$0xff]
    %v1284 = vld [vmem:[%s4 + $0x8] sm:$0xff]
    %v1285 = vld [vmem:[%s4 + $0x10] sm:$0xf]
    %v1286 = vld [vmem:[%s4 + $0x14] sm:$0xff]
    %v1287 = vld [vmem:[%s4 + $0x1c] sm:$0xff]
    %v1288 = vld [vmem:[%s4 + $0x24] sm:$0xf]
    %v1289 = vld [vmem:[%s4 + $0x28] sm:$0xff]
    %v1290 = vld [vmem:[%s4 + $0x30] sm:$0xff]
    %v1291 = vld [vmem:[%s4 + $0x38] sm:$0xf]
    %v1292 = vld [vmem:[%s4 + $0x3c] sm:$0xff]
    %v1293 = vld [vmem:[%s4 + $0x44] sm:$0xff]
    %v1294 = vld [vmem:[%s4 + $0x4c] sm:$0xf]
    %v1295 = vld [vmem:[%s4 + $0x50] sm:$0xff]
    %v1296 = vld [vmem:[%s4 + $0x58] sm:$0xff]
    %v1297 = vld [vmem:[%s4 + $0x60] sm:$0xf]
    %v1298 = vld [vmem:[%s4 + $0x64] sm:$0xff]
    %v1299 = vld [vmem:[%s4 + $0x6c] sm:$0xff]
    %v1300 = vld [vmem:[%s4 + $0x74] sm:$0xf]
    %v1301 = vld [vmem:[%s4 + $0x78] sm:$0xff]
    %v1302 = vld [vmem:[%s4 + $0x80] sm:$0xff]
    %v1303 = vld [vmem:[%s4 + $0x88] sm:$0xf]
    %v1304 = vld [vmem:[%s4 + $0x8c] sm:$0xff]
    %v1305 = vld [vmem:[%s4 + $0x94] sm:$0xff]
    %v1306 = vld [vmem:[%s4 + $0x9c] sm:$0xf]
    %v1307 = vld [vmem:[%s4 + $0xa0] sm:$0xff]
    %v1308 = vld [vmem:[%s4 + $0xa8] sm:$0xff]
    %v1309 = vld [vmem:[%s4 + $0xb0] sm:$0xf]
    %v1310 = vld [vmem:[%s4 + $0xb4] sm:$0xff]
    %v1311 = vld [vmem:[%s4 + $0xbc] sm:$0xff]
    %v1312 = vld [vmem:[%s4 + $0xc4] sm:$0xf]
    %v1313 = vld [vmem:[%s4 + $0xc8] sm:$0xff]
    %v1314 = vld [vmem:[%s4 + $0xd0] sm:$0xff]
    %v1315 = vld [vmem:[%s4 + $0xd8] sm:$0xf]
    %v1316 = vld [vmem:[%s4 + $0xdc] sm:$0xff]
    %v1317 = vld [vmem:[%s4 + $0xe4] sm:$0xff]
    %v1318 = vld [vmem:[%s4 + $0xec] sm:$0xf]
    %v1319 = vld [vmem:[%s4 + $0xf0] sm:$0xff]
    %v1320 = vld [vmem:[%s4 + $0xf8] sm:$0xff]
    %v1321 = vld [vmem:[%s4 + $0x100] sm:$0xf]
    %v1322 = vld [vmem:[%s4 + $0x104] sm:$0xff]
    %v1323 = vld [vmem:[%s4 + $0x10c] sm:$0xff]
    %v1324 = vld [vmem:[%s4 + $0x114] sm:$0xf]
    %v1325 = vld [vmem:[%s4 + $0x118] sm:$0xff]
    %v1326 = vld [vmem:[%s4 + $0x120] sm:$0xff]
    %v1327 = vld [vmem:[%s4 + $0x128] sm:$0xf]
    %v1328 = vld [vmem:[%s4 + $0x12c] sm:$0xff]
    %v1329 = vld [vmem:[%s4 + $0x134] sm:$0xff]
    %v1330 = vld [vmem:[%s4 + $0x13c] sm:$0xf]
    %v1379 = vunpack.c.l.b16 %v1283
    %v1380 = vunpack.c.h.b16 %v1283
    %v1381 = vunpack.c.l.b16 %v1284
    %v1382 = vunpack.c.h.b16 %v1284
    %v1383 = vunpack.c.l.b16 %v1285
    %v1384 = vunpack.c.l.b16 %v1286
    %v1385 = vunpack.c.h.b16 %v1286
    %v1386 = vunpack.c.l.b16 %v1287
    %v1387 = vunpack.c.h.b16 %v1287
    %v1388 = vunpack.c.l.b16 %v1288
    %v1389 = vunpack.c.l.b16 %v1289
    %v1390 = vunpack.c.h.b16 %v1289
    %v1391 = vunpack.c.l.b16 %v1290
    %v1392 = vunpack.c.h.b16 %v1290
    %v1393 = vunpack.c.l.b16 %v1291
    %v1394 = vunpack.c.l.b16 %v1292
    %v1395 = vunpack.c.h.b16 %v1292
    %v1396 = vunpack.c.l.b16 %v1293
    %v1397 = vunpack.c.h.b16 %v1293
    %v1398 = vunpack.c.l.b16 %v1294
    %v1399 = vunpack.c.l.b16 %v1295
    %v1400 = vunpack.c.h.b16 %v1295
    %v1401 = vunpack.c.l.b16 %v1296
    %v1402 = vunpack.c.h.b16 %v1296
    %v1403 = vunpack.c.l.b16 %v1297
    %v1404 = vunpack.c.l.b16 %v1298
    %v1405 = vunpack.c.h.b16 %v1298
    %v1406 = vunpack.c.l.b16 %v1299
    %v1407 = vunpack.c.h.b16 %v1299
    %v1408 = vunpack.c.l.b16 %v1300
    %v1409 = vunpack.c.l.b16 %v1301
    %v1410 = vunpack.c.h.b16 %v1301
    %v1411 = vunpack.c.l.b16 %v1302
    %v1412 = vunpack.c.h.b16 %v1302
    %v1413 = vunpack.c.l.b16 %v1303
    %v1414 = vunpack.c.l.b16 %v1304
    %v1415 = vunpack.c.h.b16 %v1304
    %v1416 = vunpack.c.l.b16 %v1305
    %v1417 = vunpack.c.h.b16 %v1305
    %v1418 = vunpack.c.l.b16 %v1306
    %v1419 = vunpack.c.l.b16 %v1307
    %v1420 = vunpack.c.h.b16 %v1307
    %v1421 = vunpack.c.l.b16 %v1308
    %v1422 = vunpack.c.h.b16 %v1308
    %v1423 = vunpack.c.l.b16 %v1309
    %v1424 = vunpack.c.l.b16 %v1310
    %v1425 = vunpack.c.h.b16 %v1310
    %v1426 = vunpack.c.l.b16 %v1311
    %v1427 = vunpack.c.h.b16 %v1311
    %v1428 = vunpack.c.l.b16 %v1312
    %v1429 = vunpack.c.l.b16 %v1313
    %v1430 = vunpack.c.h.b16 %v1313
    %v1431 = vunpack.c.l.b16 %v1314
    %v1432 = vunpack.c.h.b16 %v1314
    %v1433 = vunpack.c.l.b16 %v1315
    %v1434 = vunpack.c.l.b16 %v1316
    %v1435 = vunpack.c.h.b16 %v1316
    %v1436 = vunpack.c.l.b16 %v1317
    %v1437 = vunpack.c.h.b16 %v1317
    %v1438 = vunpack.c.l.b16 %v1318
    %v1439 = vunpack.c.l.b16 %v1319
    %v1440 = vunpack.c.h.b16 %v1319
    %v1441 = vunpack.c.l.b16 %v1320
    %v1442 = vunpack.c.h.b16 %v1320
    %v1443 = vunpack.c.l.b16 %v1321
    %v1444 = vunpack.c.l.b16 %v1322
    %v1445 = vunpack.c.h.b16 %v1322
    %v1446 = vunpack.c.l.b16 %v1323
    %v1447 = vunpack.c.h.b16 %v1323
    %v1448 = vunpack.c.l.b16 %v1324
    %v1449 = vunpack.c.l.b16 %v1325
    %v1450 = vunpack.c.h.b16 %v1325
    %v1451 = vunpack.c.l.b16 %v1326
    %v1452 = vunpack.c.h.b16 %v1326
    %v1453 = vunpack.c.l.b16 %v1327
    %v1454 = vunpack.c.l.b16 %v1328
    %v1455 = vunpack.c.h.b16 %v1328
    %v1456 = vunpack.c.l.b16 %v1329
    %v1457 = vunpack.c.h.b16 %v1329
    %v1458 = vunpack.c.l.b16 %v1330
    %v1459 = vpack.c.b16 %v1384, %v1379
    %v1460 = vpack.c.b16 %v1385, %v1380
    %v1461 = vpack.c.b16 %v1386, %v1381
    %v1462 = vpack.c.b16 %v1387, %v1382
    %v1463 = vpack.c.b16 %v1388, %v1383
    %v1464 = vpack.c.b16 %v1394, %v1389
    %v1465 = vpack.c.b16 %v1395, %v1390
    %v1466 = vpack.c.b16 %v1396, %v1391
    %v1467 = vpack.c.b16 %v1397, %v1392
    %v1468 = vpack.c.b16 %v1398, %v1393
    %v1469 = vpack.c.b16 %v1404, %v1399
    %v1470 = vpack.c.b16 %v1405, %v1400
    %v1471 = vpack.c.b16 %v1406, %v1401
    %v1472 = vpack.c.b16 %v1407, %v1402
    %v1473 = vpack.c.b16 %v1408, %v1403
    %v1474 = vpack.c.b16 %v1414, %v1409
    %v1475 = vpack.c.b16 %v1415, %v1410
    %v1476 = vpack.c.b16 %v1416, %v1411
    %v1477 = vpack.c.b16 %v1417, %v1412
    %v1478 = vpack.c.b16 %v1418, %v1413
    %v1479 = vpack.c.b16 %v1424, %v1419
    %v1480 = vpack.c.b16 %v1425, %v1420
    %v1481 = vpack.c.b16 %v1426, %v1421
    %v1482 = vpack.c.b16 %v1427, %v1422
    %v1483 = vpack.c.b16 %v1428, %v1423
    %v1484 = vpack.c.b16 %v1434, %v1429
    %v1485 = vpack.c.b16 %v1435, %v1430
    %v1486 = vpack.c.b16 %v1436, %v1431
    %v1487 = vpack.c.b16 %v1437, %v1432
    %v1488 = vpack.c.b16 %v1438, %v1433
    %v1489 = vpack.c.b16 %v1444, %v1439
    %v1490 = vpack.c.b16 %v1445, %v1440
    %v1491 = vpack.c.b16 %v1446, %v1441
    %v1492 = vpack.c.b16 %v1447, %v1442
    %v1493 = vpack.c.b16 %v1448, %v1443
    %v1494 = vpack.c.b16 %v1454, %v1449
    %v1495 = vpack.c.b16 %v1455, %v1450
    %v1496 = vpack.c.b16 %v1456, %v1451
    %v1497 = vpack.c.b16 %v1457, %v1452
    %v1498 = vpack.c.b16 %v1458, %v1453
    %1539 = vmatprep.subr.bf16.mxu0 %v1460
    %1540 = vmatpush1.bf16.msra.mxu0 %v1459
    %1541 = vmatprep.subr.bf16.mxu0 %v1465
    %1542 = vmatpush1.bf16.msra.mxu0 %v1464
    %1543 = vmatprep.subr.bf16.mxu0 %v1470
    %1544 = vmatpush1.bf16.msra.mxu0 %v1469
    %1545 = vmatprep.subr.bf16.mxu0 %v1475
    %1546 = vmatpush1.bf16.msra.mxu0 %v1474
    %1547 = vmatprep.subr.bf16.mxu0 %v1480
    %1548 = vmatpush1.bf16.msra.mxu0 %v1479
    %1549 = vmatprep.subr.bf16.mxu0 %v1485
    %1550 = vmatpush1.bf16.msra.mxu0 %v1484
    %1551 = vmatprep.subr.bf16.mxu0 %v1490
    %1552 = vmatpush1.bf16.msra.mxu0 %v1489
    %1553 = vmatprep.subr.bf16.mxu0 %v1495
    %1554 = vmatpush1.bf16.msra.mxu0 %v1494
    %1555 = vmatprep.subr.bf16.mxu0 0
    %1556 = vmatpush1.bf16.msra.mxu0 0
    %1557 = vmatprep.subr.bf16.mxu0 0
    %1558 = vmatpush1.bf16.msra.mxu0 0
    %1559 = vmatprep.subr.bf16.mxu0 0
    %1560 = vmatpush1.bf16.msra.mxu0 0
    %1561 = vmatprep.subr.bf16.mxu0 0
    %1562 = vmatpush1.bf16.msra.mxu0 0
    %1563 = vmatprep.subr.bf16.mxu0 0
    %1564 = vmatpush1.bf16.msra.mxu0 0
    %1565 = vmatprep.subr.bf16.mxu0 0
    %1566 = vmatpush1.bf16.msra.mxu0 0
    %1567 = vmatprep.subr.bf16.mxu0 0
    %1568 = vmatpush1.bf16.msra.mxu0 0
    %1569 = vmatprep.subr.bf16.mxu0 0
    %1570 = vmatpush1.bf16.msra.mxu0 0
    %1571 = vmatprep.mubr.bf16.mxu0 0
    %1572 = vmatmul.mubr.bf16.gmra.mrb[0].mxu0 %v1282
    %v1573 = vpop.f32.mrb[0].mxu0
    %v1574 = vadd.f32 %v1260, %v1573
    %v1575 = vpop.f32.mrb[0].mxu0
    %v1576 = vadd.f32 %v1264, %v1575
    %v1577 = vpop.f32.mrb[0].mxu0
    %v1578 = vpop.f32.mrb[0].mxu0
    %1579 = vdwg.mxu0
    %1580 = vmatprep.subr.bf16.mxu0 %v1462
    %1581 = vmatpush1.bf16.msra.mxu0 %v1461
    %1582 = vmatprep.subr.bf16.mxu0 %v1467
    %1583 = vmatpush1.bf16.msra.mxu0 %v1466
    %1584 = vmatprep.subr.bf16.mxu0 %v1472
    %1585 = vmatpush1.bf16.msra.mxu0 %v1471
    %1586 = vmatprep.subr.bf16.mxu0 %v1477
    %1587 = vmatpush1.bf16.msra.mxu0 %v1476
    %1588 = vmatprep.subr.bf16.mxu0 %v1482
    %1589 = vmatpush1.bf16.msra.mxu0 %v1481
    %1590 = vmatprep.subr.bf16.mxu0 %v1487
    %1591 = vmatpush1.bf16.msra.mxu0 %v1486
    %1592 = vmatprep.subr.bf16.mxu0 %v1492
    %1593 = vmatpush1.bf16.msra.mxu0 %v1491
    %1594 = vmatprep.subr.bf16.mxu0 %v1497
    %1595 = vmatpush1.bf16.msra.mxu0 %v1496
    %1596 = vmatprep.subr.bf16.mxu0 0
    %1597 = vmatpush1.bf16.msra.mxu0 0
    %1598 = vmatprep.subr.bf16.mxu0 0
    %1599 = vmatpush1.bf16.msra.mxu0 0
    %1600 = vmatprep.subr.bf16.mxu0 0
    %1601 = vmatpush1.bf16.msra.mxu0 0
    %1602 = vmatprep.subr.bf16.mxu0 0
    %1603 = vmatpush1.bf16.msra.mxu0 0
    %1604 = vmatprep.subr.bf16.mxu0 0
    %1605 = vmatpush1.bf16.msra.mxu0 0
    %1606 = vmatprep.subr.bf16.mxu0 0
    %1607 = vmatpush1.bf16.msra.mxu0 0
    %1608 = vmatprep.subr.bf16.mxu0 0
    %1609 = vmatpush1.bf16.msra.mxu0 0
    %1610 = vmatprep.subr.bf16.mxu0 0
    %1611 = vmatpush1.bf16.msra.mxu0 0
    %1612 = vmatprep.mubr.bf16.mxu0 0
    %1613 = vmatmul.mubr.bf16.gmra.mrb[0].mxu0 %v1282
    %v1614 = vpop.f32.mrb[0].mxu0
    %v1615 = vadd.f32 %v1268, %v1614
    %v1616 = vpop.f32.mrb[0].mxu0
    %v1617 = vadd.f32 %v1272, %v1616
    %v1618 = vpop.f32.mrb[0].mxu0
    %v1619 = vpop.f32.mrb[0].mxu0
    %1620 = vdwg.mxu0
    %1621 = vmatprep.subr.bf16.mxu0 0
    %1622 = vmatpush1.bf16.msra.mxu0 %v1463
    %1623 = vmatprep.subr.bf16.mxu0 0
    %1624 = vmatpush1.bf16.msra.mxu0 %v1468
    %1625 = vmatprep.subr.bf16.mxu0 0
    %1626 = vmatpush1.bf16.msra.mxu0 %v1473
    %1627 = vmatprep.subr.bf16.mxu0 0
    %1628 = vmatpush1.bf16.msra.mxu0 %v1478
    %1629 = vmatprep.subr.bf16.mxu0 0
    %1630 = vmatpush1.bf16.msra.mxu0 %v1483
    %1631 = vmatprep.subr.bf16.mxu0 0
    %1632 = vmatpush1.bf16.msra.mxu0 %v1488
    %1633 = vmatprep.subr.bf16.mxu0 0
    %1634 = vmatpush1.bf16.msra.mxu0 %v1493
    %1635 = vmatprep.subr.bf16.mxu0 0
    %1636 = vmatpush1.bf16.msra.mxu0 %v1498
    %1637 = vmatprep.subr.bf16.mxu0 0
    %1638 = vmatpush1.bf16.msra.mxu0 0
    %1639 = vmatprep.subr.bf16.mxu0 0
    %1640 = vmatpush1.bf16.msra.mxu0 0
    %1641 = vmatprep.subr.bf16.mxu0 0
    %1642 = vmatpush1.bf16.msra.mxu0 0
    %1643 = vmatprep.subr.bf16.mxu0 0
    %1644 = vmatpush1.bf16.msra.mxu0 0
    %1645 = vmatprep.subr.bf16.mxu0 0
    %1646 = vmatpush1.bf16.msra.mxu0 0
    %1647 = vmatprep.subr.bf16.mxu0 0
    %1648 = vmatpush1.bf16.msra.mxu0 0
    %1649 = vmatprep.subr.bf16.mxu0 0
    %1650 = vmatpush1.bf16.msra.mxu0 0
    %1651 = vmatprep.subr.bf16.mxu0 0
    %1652 = vmatpush1.bf16.msra.mxu0 0
    %1653 = vmatprep.mubr.bf16.mxu0 0
    %1654 = vmatmul.mubr.bf16.gmra.mrb[0].mxu0 %v1282
    %v1655 = vpop.f32.mrb[0].mxu0
    %v1656 = vadd.f32 %v1276, %v1655
    %v1657 = vpop.f32.mrb[0].mxu0
    %v1658 = vpop.f32.mrb[0].mxu0
    %v1659 = vpop.f32.mrb[0].mxu0
    %1660 = vdwg.mxu0
    %s1661 = scalar_lea.vmem %s6, 56
    %vm1662 = vcmask 31744
    %1663 = vst.msk [vmem:[%s1661] sm:$0xff] %vm1662, %v1656
    %v1664 = vmul.f32 %v1574, 0.5
    %v1665 = vtanh.pop %v1664
    %v1666 = vmul.f32 %v1665, 0.5
    %v1667 = vadd.f32 %v1666, 0.5
    %v1668 = vmul.f32 %v1576, 0.5
    %v1669 = vtanh.pop %v1668
    %v1670 = vmul.f32 %v1669, 0.5
    %v1671 = vadd.f32 %v1670, 0.5
    %v1672 = vtanh.pop %v1615
    %v1673 = vmul.f32 %v1617, 0.5
    %v1674 = vtanh.pop %v1673
    %v1675 = vmul.f32 %v1674, 0.5
    %v1676 = vadd.f32 %v1675, 0.5
    %v1677 = vmul.f32 %v1671, %v1251
    %v1678 = vmul.f32 %v1667, %v1672
    %v1679 = vadd.f32 %v1677, %v1678
    %v1680 = vtanh.pop %v1679
    %v1681 = vmul.f32 %v1676, %v1680
    %v1682 = vpack.c.bf16 %v1681, %v1681
    %v1683 = vld [vmem:[%s4] sm:$0xff]
    %v1684 = vld [vmem:[%s4 + $0x8] sm:$0xff]
    %v1685 = vld [vmem:[%s4 + $0x10] sm:$0xf]
    %v1686 = vld [vmem:[%s4 + $0x14] sm:$0xff]
    %v1687 = vld [vmem:[%s4 + $0x1c] sm:$0xff]
    %v1688 = vld [vmem:[%s4 + $0x24] sm:$0xf]
    %v1689 = vld [vmem:[%s4 + $0x28] sm:$0xff]
    %v1690 = vld [vmem:[%s4 + $0x30] sm:$0xff]
    %v1691 = vld [vmem:[%s4 + $0x38] sm:$0xf]
    %v1692 = vld [vmem:[%s4 + $0x3c] sm:$0xff]
    %v1693 = vld [vmem:[%s4 + $0x44] sm:$0xff]
    %v1694 = vld [vmem:[%s4 + $0x4c] sm:$0xf]
    %v1695 = vld [vmem:[%s4 + $0x50] sm:$0xff]
    %v1696 = vld [vmem:[%s4 + $0x58] sm:$0xff]
    %v1697 = vld [vmem:[%s4 + $0x60] sm:$0xf]
    %v1698 = vld [vmem:[%s4 + $0x64] sm:$0xff]
    %v1699 = vld [vmem:[%s4 + $0x6c] sm:$0xff]
    %v1700 = vld [vmem:[%s4 + $0x74] sm:$0xf]
    %v1701 = vld [vmem:[%s4 + $0x78] sm:$0xff]
    %v1702 = vld [vmem:[%s4 + $0x80] sm:$0xff]
    %v1703 = vld [vmem:[%s4 + $0x88] sm:$0xf]
    %v1704 = vld [vmem:[%s4 + $0x8c] sm:$0xff]
    %v1705 = vld [vmem:[%s4 + $0x94] sm:$0xff]
    %v1706 = vld [vmem:[%s4 + $0x9c] sm:$0xf]
    %v1707 = vld [vmem:[%s4 + $0xa0] sm:$0xff]
    %v1708 = vld [vmem:[%s4 + $0xa8] sm:$0xff]
    %v1709 = vld [vmem:[%s4 + $0xb0] sm:$0xf]
    %v1710 = vld [vmem:[%s4 + $0xb4] sm:$0xff]
    %v1711 = vld [vmem:[%s4 + $0xbc] sm:$0xff]
    %v1712 = vld [vmem:[%s4 + $0xc4] sm:$0xf]
    %v1713 = vld [vmem:[%s4 + $0xc8] sm:$0xff]
    %v1714 = vld [vmem:[%s4 + $0xd0] sm:$0xff]
    %v1715 = vld [vmem:[%s4 + $0xd8] sm:$0xf]
    %v1716 = vld [vmem:[%s4 + $0xdc] sm:$0xff]
    %v1717 = vld [vmem:[%s4 + $0xe4] sm:$0xff]
    %v1718 = vld [vmem:[%s4 + $0xec] sm:$0xf]
    %v1719 = vld [vmem:[%s4 + $0xf0] sm:$0xff]
    %v1720 = vld [vmem:[%s4 + $0xf8] sm:$0xff]
    %v1721 = vld [vmem:[%s4 + $0x100] sm:$0xf]
    %v1722 = vld [vmem:[%s4 + $0x104] sm:$0xff]
    %v1723 = vld [vmem:[%s4 + $0x10c] sm:$0xff]
    %v1724 = vld [vmem:[%s4 + $0x114] sm:$0xf]
    %v1725 = vld [vmem:[%s4 + $0x118] sm:$0xff]
    %v1726 = vld [vmem:[%s4 + $0x120] sm:$0xff]
    %v1727 = vld [vmem:[%s4 + $0x128] sm:$0xf]
    %v1728 = vld [vmem:[%s4 + $0x12c] sm:$0xff]
    %v1729 = vld [vmem:[%s4 + $0x134] sm:$0xff]
    %v1730 = vld [vmem:[%s4 + $0x13c] sm:$0xf]
    %v1779 = vunpack.c.l.b16 %v1683
    %v1780 = vunpack.c.h.b16 %v1683
    %v1781 = vunpack.c.l.b16 %v1684
    %v1782 = vunpack.c.h.b16 %v1684
    %v1783 = vunpack.c.l.b16 %v1685
    %v1784 = vunpack.c.l.b16 %v1686
    %v1785 = vunpack.c.h.b16 %v1686
    %v1786 = vunpack.c.l.b16 %v1687
    %v1787 = vunpack.c.h.b16 %v1687
    %v1788 = vunpack.c.l.b16 %v1688
    %v1789 = vunpack.c.l.b16 %v1689
    %v1790 = vunpack.c.h.b16 %v1689
    %v1791 = vunpack.c.l.b16 %v1690
    %v1792 = vunpack.c.h.b16 %v1690
    %v1793 = vunpack.c.l.b16 %v1691
    %v1794 = vunpack.c.l.b16 %v1692
    %v1795 = vunpack.c.h.b16 %v1692
    %v1796 = vunpack.c.l.b16 %v1693
    %v1797 = vunpack.c.h.b16 %v1693
    %v1798 = vunpack.c.l.b16 %v1694
    %v1799 = vunpack.c.l.b16 %v1695
    %v1800 = vunpack.c.h.b16 %v1695
    %v1801 = vunpack.c.l.b16 %v1696
    %v1802 = vunpack.c.h.b16 %v1696
    %v1803 = vunpack.c.l.b16 %v1697
    %v1804 = vunpack.c.l.b16 %v1698
    %v1805 = vunpack.c.h.b16 %v1698
    %v1806 = vunpack.c.l.b16 %v1699
    %v1807 = vunpack.c.h.b16 %v1699
    %v1808 = vunpack.c.l.b16 %v1700
    %v1809 = vunpack.c.l.b16 %v1701
    %v1810 = vunpack.c.h.b16 %v1701
    %v1811 = vunpack.c.l.b16 %v1702
    %v1812 = vunpack.c.h.b16 %v1702
    %v1813 = vunpack.c.l.b16 %v1703
    %v1814 = vunpack.c.l.b16 %v1704
    %v1815 = vunpack.c.h.b16 %v1704
    %v1816 = vunpack.c.l.b16 %v1705
    %v1817 = vunpack.c.h.b16 %v1705
    %v1818 = vunpack.c.l.b16 %v1706
    %v1819 = vunpack.c.l.b16 %v1707
    %v1820 = vunpack.c.h.b16 %v1707
    %v1821 = vunpack.c.l.b16 %v1708
    %v1822 = vunpack.c.h.b16 %v1708
    %v1823 = vunpack.c.l.b16 %v1709
    %v1824 = vunpack.c.l.b16 %v1710
    %v1825 = vunpack.c.h.b16 %v1710
    %v1826 = vunpack.c.l.b16 %v1711
    %v1827 = vunpack.c.h.b16 %v1711
    %v1828 = vunpack.c.l.b16 %v1712
    %v1829 = vunpack.c.l.b16 %v1713
    %v1830 = vunpack.c.h.b16 %v1713
    %v1831 = vunpack.c.l.b16 %v1714
    %v1832 = vunpack.c.h.b16 %v1714
    %v1833 = vunpack.c.l.b16 %v1715
    %v1834 = vunpack.c.l.b16 %v1716
    %v1835 = vunpack.c.h.b16 %v1716
    %v1836 = vunpack.c.l.b16 %v1717
    %v1837 = vunpack.c.h.b16 %v1717
    %v1838 = vunpack.c.l.b16 %v1718
    %v1839 = vunpack.c.l.b16 %v1719
    %v1840 = vunpack.c.h.b16 %v1719
    %v1841 = vunpack.c.l.b16 %v1720
    %v1842 = vunpack.c.h.b16 %v1720
    %v1843 = vunpack.c.l.b16 %v1721
    %v1844 = vunpack.c.l.b16 %v1722
    %v1845 = vunpack.c.h.b16 %v1722
    %v1846 = vunpack.c.l.b16 %v1723
    %v1847 = vunpack.c.h.b16 %v1723
    %v1848 = vunpack.c.l.b16 %v1724
    %v1849 = vunpack.c.l.b16 %v1725
    %v1850 = vunpack.c.h.b16 %v1725
    %v1851 = vunpack.c.l.b16 %v1726
    %v1852 = vunpack.c.h.b16 %v1726
    %v1853 = vunpack.c.l.b16 %v1727
    %v1854 = vunpack.c.l.b16 %v1728
    %v1855 = vunpack.c.h.b16 %v1728
    %v1856 = vunpack.c.l.b16 %v1729
    %v1857 = vunpack.c.h.b16 %v1729
    %v1858 = vunpack.c.l.b16 %v1730
    %v1859 = vpack.c.b16 %v1784, %v1779
    %v1860 = vpack.c.b16 %v1785, %v1780
    %v1861 = vpack.c.b16 %v1786, %v1781
    %v1862 = vpack.c.b16 %v1787, %v1782
    %v1863 = vpack.c.b16 %v1788, %v1783
    %v1864 = vpack.c.b16 %v1794, %v1789
    %v1865 = vpack.c.b16 %v1795, %v1790
    %v1866 = vpack.c.b16 %v1796, %v1791
    %v1867 = vpack.c.b16 %v1797, %v1792
    %v1868 = vpack.c.b16 %v1798, %v1793
    %v1869 = vpack.c.b16 %v1804, %v1799
    %v1870 = vpack.c.b16 %v1805, %v1800
    %v1871 = vpack.c.b16 %v1806, %v1801
    %v1872 = vpack.c.b16 %v1807, %v1802
    %v1873 = vpack.c.b16 %v1808, %v1803
    %v1874 = vpack.c.b16 %v1814, %v1809
    %v1875 = vpack.c.b16 %v1815, %v1810
    %v1876 = vpack.c.b16 %v1816, %v1811
    %v1877 = vpack.c.b16 %v1817, %v1812
    %v1878 = vpack.c.b16 %v1818, %v1813
    %v1879 = vpack.c.b16 %v1824, %v1819
    %v1880 = vpack.c.b16 %v1825, %v1820
    %v1881 = vpack.c.b16 %v1826, %v1821
    %v1882 = vpack.c.b16 %v1827, %v1822
    %v1883 = vpack.c.b16 %v1828, %v1823
    %v1884 = vpack.c.b16 %v1834, %v1829
    %v1885 = vpack.c.b16 %v1835, %v1830
    %v1886 = vpack.c.b16 %v1836, %v1831
    %v1887 = vpack.c.b16 %v1837, %v1832
    %v1888 = vpack.c.b16 %v1838, %v1833
    %v1889 = vpack.c.b16 %v1844, %v1839
    %v1890 = vpack.c.b16 %v1845, %v1840
    %v1891 = vpack.c.b16 %v1846, %v1841
    %v1892 = vpack.c.b16 %v1847, %v1842
    %v1893 = vpack.c.b16 %v1848, %v1843
    %v1894 = vpack.c.b16 %v1854, %v1849
    %v1895 = vpack.c.b16 %v1855, %v1850
    %v1896 = vpack.c.b16 %v1856, %v1851
    %v1897 = vpack.c.b16 %v1857, %v1852
    %v1898 = vpack.c.b16 %v1858, %v1853
    %1939 = vmatprep.subr.bf16.mxu0 %v1860
    %1940 = vmatpush1.bf16.msra.mxu0 %v1859
    %1941 = vmatprep.subr.bf16.mxu0 %v1865
    %1942 = vmatpush1.bf16.msra.mxu0 %v1864
    %1943 = vmatprep.subr.bf16.mxu0 %v1870
    %1944 = vmatpush1.bf16.msra.mxu0 %v1869
    %1945 = vmatprep.subr.bf16.mxu0 %v1875
    %1946 = vmatpush1.bf16.msra.mxu0 %v1874
    %1947 = vmatprep.subr.bf16.mxu0 %v1880
    %1948 = vmatpush1.bf16.msra.mxu0 %v1879
    %1949 = vmatprep.subr.bf16.mxu0 %v1885
    %1950 = vmatpush1.bf16.msra.mxu0 %v1884
    %1951 = vmatprep.subr.bf16.mxu0 %v1890
    %1952 = vmatpush1.bf16.msra.mxu0 %v1889
    %1953 = vmatprep.subr.bf16.mxu0 %v1895
    %1954 = vmatpush1.bf16.msra.mxu0 %v1894
    %1955 = vmatprep.subr.bf16.mxu0 0
    %1956 = vmatpush1.bf16.msra.mxu0 0
    %1957 = vmatprep.subr.bf16.mxu0 0
    %1958 = vmatpush1.bf16.msra.mxu0 0
    %1959 = vmatprep.subr.bf16.mxu0 0
    %1960 = vmatpush1.bf16.msra.mxu0 0
    %1961 = vmatprep.subr.bf16.mxu0 0
    %1962 = vmatpush1.bf16.msra.mxu0 0
    %1963 = vmatprep.subr.bf16.mxu0 0
    %1964 = vmatpush1.bf16.msra.mxu0 0
    %1965 = vmatprep.subr.bf16.mxu0 0
    %1966 = vmatpush1.bf16.msra.mxu0 0
    %1967 = vmatprep.subr.bf16.mxu0 0
    %1968 = vmatpush1.bf16.msra.mxu0 0
    %1969 = vmatprep.subr.bf16.mxu0 0
    %1970 = vmatpush1.bf16.msra.mxu0 0
    %1971 = vmatprep.mubr.bf16.mxu0 0
    %1972 = vmatmul.mubr.bf16.gmra.mrb[0].mxu0 %v1682
    %v1973 = vpop.f32.mrb[0].mxu0
    %v1974 = vadd.f32 %v1260, %v1973
    %v1975 = vpop.f32.mrb[0].mxu0
    %v1976 = vadd.f32 %v1264, %v1975
    %v1977 = vpop.f32.mrb[0].mxu0
    %v1978 = vpop.f32.mrb[0].mxu0
    %1979 = vdwg.mxu0
    %1980 = vmatprep.subr.bf16.mxu0 %v1862
    %1981 = vmatpush1.bf16.msra.mxu0 %v1861
    %1982 = vmatprep.subr.bf16.mxu0 %v1867
    %1983 = vmatpush1.bf16.msra.mxu0 %v1866
    %1984 = vmatprep.subr.bf16.mxu0 %v1872
    %1985 = vmatpush1.bf16.msra.mxu0 %v1871
    %1986 = vmatprep.subr.bf16.mxu0 %v1877
    %1987 = vmatpush1.bf16.msra.mxu0 %v1876
    %1988 = vmatprep.subr.bf16.mxu0 %v1882
    %1989 = vmatpush1.bf16.msra.mxu0 %v1881
    %1990 = vmatprep.subr.bf16.mxu0 %v1887
    %1991 = vmatpush1.bf16.msra.mxu0 %v1886
    %1992 = vmatprep.subr.bf16.mxu0 %v1892
    %1993 = vmatpush1.bf16.msra.mxu0 %v1891
    %1994 = vmatprep.subr.bf16.mxu0 %v1897
    %1995 = vmatpush1.bf16.msra.mxu0 %v1896
    %1996 = vmatprep.subr.bf16.mxu0 0
    %1997 = vmatpush1.bf16.msra.mxu0 0
    %1998 = vmatprep.subr.bf16.mxu0 0
    %1999 = vmatpush1.bf16.msra.mxu0 0
    %2000 = vmatprep.subr.bf16.mxu0 0
    %2001 = vmatpush1.bf16.msra.mxu0 0
    %2002 = vmatprep.subr.bf16.mxu0 0
    %2003 = vmatpush1.bf16.msra.mxu0 0
    %2004 = vmatprep.subr.bf16.mxu0 0
    %2005 = vmatpush1.bf16.msra.mxu0 0
    %2006 = vmatprep.subr.bf16.mxu0 0
    %2007 = vmatpush1.bf16.msra.mxu0 0
    %2008 = vmatprep.subr.bf16.mxu0 0
    %2009 = vmatpush1.bf16.msra.mxu0 0
    %2010 = vmatprep.subr.bf16.mxu0 0
    %2011 = vmatpush1.bf16.msra.mxu0 0
    %2012 = vmatprep.mubr.bf16.mxu0 0
    %2013 = vmatmul.mubr.bf16.gmra.mrb[0].mxu0 %v1682
    %v2014 = vpop.f32.mrb[0].mxu0
    %v2015 = vadd.f32 %v1268, %v2014
    %v2016 = vpop.f32.mrb[0].mxu0
    %v2017 = vadd.f32 %v1272, %v2016
    %v2018 = vpop.f32.mrb[0].mxu0
    %v2019 = vpop.f32.mrb[0].mxu0
    %2020 = vdwg.mxu0
    %2021 = vmatprep.subr.bf16.mxu0 0
    %2022 = vmatpush1.bf16.msra.mxu0 %v1863
    %2023 = vmatprep.subr.bf16.mxu0 0
    %2024 = vmatpush1.bf16.msra.mxu0 %v1868
    %2025 = vmatprep.subr.bf16.mxu0 0
    %2026 = vmatpush1.bf16.msra.mxu0 %v1873
    %2027 = vmatprep.subr.bf16.mxu0 0
    %2028 = vmatpush1.bf16.msra.mxu0 %v1878
    %2029 = vmatprep.subr.bf16.mxu0 0
    %2030 = vmatpush1.bf16.msra.mxu0 %v1883
    %2031 = vmatprep.subr.bf16.mxu0 0
    %2032 = vmatpush1.bf16.msra.mxu0 %v1888
    %2033 = vmatprep.subr.bf16.mxu0 0
    %2034 = vmatpush1.bf16.msra.mxu0 %v1893
    %2035 = vmatprep.subr.bf16.mxu0 0
    %2036 = vmatpush1.bf16.msra.mxu0 %v1898
    %2037 = vmatprep.subr.bf16.mxu0 0
    %2038 = vmatpush1.bf16.msra.mxu0 0
    %2039 = vmatprep.subr.bf16.mxu0 0
    %2040 = vmatpush1.bf16.msra.mxu0 0
    %2041 = vmatprep.subr.bf16.mxu0 0
    %2042 = vmatpush1.bf16.msra.mxu0 0
    %2043 = vmatprep.subr.bf16.mxu0 0
    %2044 = vmatpush1.bf16.msra.mxu0 0
    %2045 = vmatprep.subr.bf16.mxu0 0
    %2046 = vmatpush1.bf16.msra.mxu0 0
    %2047 = vmatprep.subr.bf16.mxu0 0
    %2048 = vmatpush1.bf16.msra.mxu0 0
    %2049 = vmatprep.subr.bf16.mxu0 0
    %2050 = vmatpush1.bf16.msra.mxu0 0
    %2051 = vmatprep.subr.bf16.mxu0 0
    %2052 = vmatpush1.bf16.msra.mxu0 0
    %2053 = vmatprep.mubr.bf16.mxu0 0
    %2054 = vmatmul.mubr.bf16.gmra.mrb[0].mxu0 %v1682
    %v2055 = vpop.f32.mrb[0].mxu0
    %v2056 = vadd.f32 %v1276, %v2055
    %v2057 = vpop.f32.mrb[0].mxu0
    %v2058 = vpop.f32.mrb[0].mxu0
    %v2059 = vpop.f32.mrb[0].mxu0
    %2060 = vdwg.mxu0
    %s2061 = scalar_lea.vmem %s6, 48
    %2062 = vst.msk [vmem:[%s2061] sm:$0xff] %vm1662, %v2056
    %v2063 = vmul.f32 %v1974, 0.5
    %v2064 = vtanh.pop %v2063
    %v2065 = vmul.f32 %v2064, 0.5
    %v2066 = vadd.f32 %v2065, 0.5
    %v2067 = vmul.f32 %v1976, 0.5
    %v2068 = vtanh.pop %v2067
    %v2069 = vmul.f32 %v2068, 0.5
    %v2070 = vadd.f32 %v2069, 0.5
    %v2071 = vtanh.pop %v2015
    %v2072 = vmul.f32 %v2017, 0.5
    %v2073 = vtanh.pop %v2072
    %v2074 = vmul.f32 %v2073, 0.5
    %v2075 = vadd.f32 %v2074, 0.5
    %v2076 = vmul.f32 %v2070, %v1679
    %v2077 = vmul.f32 %v2066, %v2071
    %v2078 = vadd.f32 %v2076, %v2077
    %v2079 = vtanh.pop %v2078
    %v2080 = vmul.f32 %v2075, %v2079
    %v2081 = vpack.c.bf16 %v2080, %v2080
    %v2082 = vld [vmem:[%s4] sm:$0xff]
    %v2083 = vld [vmem:[%s4 + $0x8] sm:$0xff]
    %v2084 = vld [vmem:[%s4 + $0x10] sm:$0xf]
    %v2085 = vld [vmem:[%s4 + $0x14] sm:$0xff]
    %v2086 = vld [vmem:[%s4 + $0x1c] sm:$0xff]
    %v2087 = vld [vmem:[%s4 + $0x24] sm:$0xf]
    %v2088 = vld [vmem:[%s4 + $0x28] sm:$0xff]
    %v2089 = vld [vmem:[%s4 + $0x30] sm:$0xff]
    %v2090 = vld [vmem:[%s4 + $0x38] sm:$0xf]
    %v2091 = vld [vmem:[%s4 + $0x3c] sm:$0xff]
    %v2092 = vld [vmem:[%s4 + $0x44] sm:$0xff]
    %v2093 = vld [vmem:[%s4 + $0x4c] sm:$0xf]
    %v2094 = vld [vmem:[%s4 + $0x50] sm:$0xff]
    %v2095 = vld [vmem:[%s4 + $0x58] sm:$0xff]
    %v2096 = vld [vmem:[%s4 + $0x60] sm:$0xf]
    %v2097 = vld [vmem:[%s4 + $0x64] sm:$0xff]
    %v2098 = vld [vmem:[%s4 + $0x6c] sm:$0xff]
    %v2099 = vld [vmem:[%s4 + $0x74] sm:$0xf]
    %v2100 = vld [vmem:[%s4 + $0x78] sm:$0xff]
    %v2101 = vld [vmem:[%s4 + $0x80] sm:$0xff]
    %v2102 = vld [vmem:[%s4 + $0x88] sm:$0xf]
    %v2103 = vld [vmem:[%s4 + $0x8c] sm:$0xff]
    %v2104 = vld [vmem:[%s4 + $0x94] sm:$0xff]
    %v2105 = vld [vmem:[%s4 + $0x9c] sm:$0xf]
    %v2106 = vld [vmem:[%s4 + $0xa0] sm:$0xff]
    %v2107 = vld [vmem:[%s4 + $0xa8] sm:$0xff]
    %v2108 = vld [vmem:[%s4 + $0xb0] sm:$0xf]
    %v2109 = vld [vmem:[%s4 + $0xb4] sm:$0xff]
    %v2110 = vld [vmem:[%s4 + $0xbc] sm:$0xff]
    %v2111 = vld [vmem:[%s4 + $0xc4] sm:$0xf]
    %v2112 = vld [vmem:[%s4 + $0xc8] sm:$0xff]
    %v2113 = vld [vmem:[%s4 + $0xd0] sm:$0xff]
    %v2114 = vld [vmem:[%s4 + $0xd8] sm:$0xf]
    %v2115 = vld [vmem:[%s4 + $0xdc] sm:$0xff]
    %v2116 = vld [vmem:[%s4 + $0xe4] sm:$0xff]
    %v2117 = vld [vmem:[%s4 + $0xec] sm:$0xf]
    %v2118 = vld [vmem:[%s4 + $0xf0] sm:$0xff]
    %v2119 = vld [vmem:[%s4 + $0xf8] sm:$0xff]
    %v2120 = vld [vmem:[%s4 + $0x100] sm:$0xf]
    %v2121 = vld [vmem:[%s4 + $0x104] sm:$0xff]
    %v2122 = vld [vmem:[%s4 + $0x10c] sm:$0xff]
    %v2123 = vld [vmem:[%s4 + $0x114] sm:$0xf]
    %v2124 = vld [vmem:[%s4 + $0x118] sm:$0xff]
    %v2125 = vld [vmem:[%s4 + $0x120] sm:$0xff]
    %v2126 = vld [vmem:[%s4 + $0x128] sm:$0xf]
    %v2127 = vld [vmem:[%s4 + $0x12c] sm:$0xff]
    %v2128 = vld [vmem:[%s4 + $0x134] sm:$0xff]
    %v2129 = vld [vmem:[%s4 + $0x13c] sm:$0xf]
    %v2178 = vunpack.c.l.b16 %v2082
    %v2179 = vunpack.c.h.b16 %v2082
    %v2180 = vunpack.c.l.b16 %v2083
    %v2181 = vunpack.c.h.b16 %v2083
    %v2182 = vunpack.c.l.b16 %v2084
    %v2183 = vunpack.c.l.b16 %v2085
    %v2184 = vunpack.c.h.b16 %v2085
    %v2185 = vunpack.c.l.b16 %v2086
    %v2186 = vunpack.c.h.b16 %v2086
    %v2187 = vunpack.c.l.b16 %v2087
    %v2188 = vunpack.c.l.b16 %v2088
    %v2189 = vunpack.c.h.b16 %v2088
    %v2190 = vunpack.c.l.b16 %v2089
    %v2191 = vunpack.c.h.b16 %v2089
    %v2192 = vunpack.c.l.b16 %v2090
    %v2193 = vunpack.c.l.b16 %v2091
    %v2194 = vunpack.c.h.b16 %v2091
    %v2195 = vunpack.c.l.b16 %v2092
    %v2196 = vunpack.c.h.b16 %v2092
    %v2197 = vunpack.c.l.b16 %v2093
    %v2198 = vunpack.c.l.b16 %v2094
    %v2199 = vunpack.c.h.b16 %v2094
    %v2200 = vunpack.c.l.b16 %v2095
    %v2201 = vunpack.c.h.b16 %v2095
    %v2202 = vunpack.c.l.b16 %v2096
    %v2203 = vunpack.c.l.b16 %v2097
    %v2204 = vunpack.c.h.b16 %v2097
    %v2205 = vunpack.c.l.b16 %v2098
    %v2206 = vunpack.c.h.b16 %v2098
    %v2207 = vunpack.c.l.b16 %v2099
    %v2208 = vunpack.c.l.b16 %v2100
    %v2209 = vunpack.c.h.b16 %v2100
    %v2210 = vunpack.c.l.b16 %v2101
    %v2211 = vunpack.c.h.b16 %v2101
    %v2212 = vunpack.c.l.b16 %v2102
    %v2213 = vunpack.c.l.b16 %v2103
    %v2214 = vunpack.c.h.b16 %v2103
    %v2215 = vunpack.c.l.b16 %v2104
    %v2216 = vunpack.c.h.b16 %v2104
    %v2217 = vunpack.c.l.b16 %v2105
    %v2218 = vunpack.c.l.b16 %v2106
    %v2219 = vunpack.c.h.b16 %v2106
    %v2220 = vunpack.c.l.b16 %v2107
    %v2221 = vunpack.c.h.b16 %v2107
    %v2222 = vunpack.c.l.b16 %v2108
    %v2223 = vunpack.c.l.b16 %v2109
    %v2224 = vunpack.c.h.b16 %v2109
    %v2225 = vunpack.c.l.b16 %v2110
    %v2226 = vunpack.c.h.b16 %v2110
    %v2227 = vunpack.c.l.b16 %v2111
    %v2228 = vunpack.c.l.b16 %v2112
    %v2229 = vunpack.c.h.b16 %v2112
    %v2230 = vunpack.c.l.b16 %v2113
    %v2231 = vunpack.c.h.b16 %v2113
    %v2232 = vunpack.c.l.b16 %v2114
    %v2233 = vunpack.c.l.b16 %v2115
    %v2234 = vunpack.c.h.b16 %v2115
    %v2235 = vunpack.c.l.b16 %v2116
    %v2236 = vunpack.c.h.b16 %v2116
    %v2237 = vunpack.c.l.b16 %v2117
    %v2238 = vunpack.c.l.b16 %v2118
    %v2239 = vunpack.c.h.b16 %v2118
    %v2240 = vunpack.c.l.b16 %v2119
    %v2241 = vunpack.c.h.b16 %v2119
    %v2242 = vunpack.c.l.b16 %v2120
    %v2243 = vunpack.c.l.b16 %v2121
    %v2244 = vunpack.c.h.b16 %v2121
    %v2245 = vunpack.c.l.b16 %v2122
    %v2246 = vunpack.c.h.b16 %v2122
    %v2247 = vunpack.c.l.b16 %v2123
    %v2248 = vunpack.c.l.b16 %v2124
    %v2249 = vunpack.c.h.b16 %v2124
    %v2250 = vunpack.c.l.b16 %v2125
    %v2251 = vunpack.c.h.b16 %v2125
    %v2252 = vunpack.c.l.b16 %v2126
    %v2253 = vunpack.c.l.b16 %v2127
    %v2254 = vunpack.c.h.b16 %v2127
    %v2255 = vunpack.c.l.b16 %v2128
    %v2256 = vunpack.c.h.b16 %v2128
    %v2257 = vunpack.c.l.b16 %v2129
    %v2258 = vpack.c.b16 %v2183, %v2178
    %v2259 = vpack.c.b16 %v2184, %v2179
    %v2260 = vpack.c.b16 %v2185, %v2180
    %v2261 = vpack.c.b16 %v2186, %v2181
    %v2262 = vpack.c.b16 %v2187, %v2182
    %v2263 = vpack.c.b16 %v2193, %v2188
    %v2264 = vpack.c.b16 %v2194, %v2189
    %v2265 = vpack.c.b16 %v2195, %v2190
    %v2266 = vpack.c.b16 %v2196, %v2191
    %v2267 = vpack.c.b16 %v2197, %v2192
    %v2268 = vpack.c.b16 %v2203, %v2198
    %v2269 = vpack.c.b16 %v2204, %v2199
    %v2270 = vpack.c.b16 %v2205, %v2200
    %v2271 = vpack.c.b16 %v2206, %v2201
    %v2272 = vpack.c.b16 %v2207, %v2202
    %v2273 = vpack.c.b16 %v2213, %v2208
    %v2274 = vpack.c.b16 %v2214, %v2209
    %v2275 = vpack.c.b16 %v2215, %v2210
    %v2276 = vpack.c.b16 %v2216, %v2211
    %v2277 = vpack.c.b16 %v2217, %v2212
    %v2278 = vpack.c.b16 %v2223, %v2218
    %v2279 = vpack.c.b16 %v2224, %v2219
    %v2280 = vpack.c.b16 %v2225, %v2220
    %v2281 = vpack.c.b16 %v2226, %v2221
    %v2282 = vpack.c.b16 %v2227, %v2222
    %v2283 = vpack.c.b16 %v2233, %v2228
    %v2284 = vpack.c.b16 %v2234, %v2229
    %v2285 = vpack.c.b16 %v2235, %v2230
    %v2286 = vpack.c.b16 %v2236, %v2231
    %v2287 = vpack.c.b16 %v2237, %v2232
    %v2288 = vpack.c.b16 %v2243, %v2238
    %v2289 = vpack.c.b16 %v2244, %v2239
    %v2290 = vpack.c.b16 %v2245, %v2240
    %v2291 = vpack.c.b16 %v2246, %v2241
    %v2292 = vpack.c.b16 %v2247, %v2242
    %v2293 = vpack.c.b16 %v2253, %v2248
    %v2294 = vpack.c.b16 %v2254, %v2249
    %v2295 = vpack.c.b16 %v2255, %v2250
    %v2296 = vpack.c.b16 %v2256, %v2251
    %v2297 = vpack.c.b16 %v2257, %v2252
    %2338 = vmatprep.subr.bf16.mxu0 %v2259
    %2339 = vmatpush1.bf16.msra.mxu0 %v2258
    %2340 = vmatprep.subr.bf16.mxu0 %v2264
    %2341 = vmatpush1.bf16.msra.mxu0 %v2263
    %2342 = vmatprep.subr.bf16.mxu0 %v2269
    %2343 = vmatpush1.bf16.msra.mxu0 %v2268
    %2344 = vmatprep.subr.bf16.mxu0 %v2274
    %2345 = vmatpush1.bf16.msra.mxu0 %v2273
    %2346 = vmatprep.subr.bf16.mxu0 %v2279
    %2347 = vmatpush1.bf16.msra.mxu0 %v2278
    %2348 = vmatprep.subr.bf16.mxu0 %v2284
    %2349 = vmatpush1.bf16.msra.mxu0 %v2283
    %2350 = vmatprep.subr.bf16.mxu0 %v2289
    %2351 = vmatpush1.bf16.msra.mxu0 %v2288
    %2352 = vmatprep.subr.bf16.mxu0 %v2294
    %2353 = vmatpush1.bf16.msra.mxu0 %v2293
    %2354 = vmatprep.subr.bf16.mxu0 0
    %2355 = vmatpush1.bf16.msra.mxu0 0
    %2356 = vmatprep.subr.bf16.mxu0 0
    %2357 = vmatpush1.bf16.msra.mxu0 0
    %2358 = vmatprep.subr.bf16.mxu0 0
    %2359 = vmatpush1.bf16.msra.mxu0 0
    %2360 = vmatprep.subr.bf16.mxu0 0
    %2361 = vmatpush1.bf16.msra.mxu0 0
    %2362 = vmatprep.subr.bf16.mxu0 0
    %2363 = vmatpush1.bf16.msra.mxu0 0
    %2364 = vmatprep.subr.bf16.mxu0 0
    %2365 = vmatpush1.bf16.msra.mxu0 0
    %2366 = vmatprep.subr.bf16.mxu0 0
    %2367 = vmatpush1.bf16.msra.mxu0 0
    %2368 = vmatprep.subr.bf16.mxu0 0
    %2369 = vmatpush1.bf16.msra.mxu0 0
    %2370 = vmatprep.mubr.bf16.mxu0 0
    %2371 = vmatmul.mubr.bf16.gmra.mrb[0].mxu0 %v2081
    %v2372 = vpop.f32.mrb[0].mxu0
    %v2373 = vadd.f32 %v1260, %v2372
    %v2374 = vpop.f32.mrb[0].mxu0
    %v2375 = vadd.f32 %v1264, %v2374
    %v2376 = vpop.f32.mrb[0].mxu0
    %v2377 = vpop.f32.mrb[0].mxu0
    %2378 = vdwg.mxu0
    %2379 = vmatprep.subr.bf16.mxu0 %v2261
    %2380 = vmatpush1.bf16.msra.mxu0 %v2260
    %2381 = vmatprep.subr.bf16.mxu0 %v2266
    %2382 = vmatpush1.bf16.msra.mxu0 %v2265
    %2383 = vmatprep.subr.bf16.mxu0 %v2271
    %2384 = vmatpush1.bf16.msra.mxu0 %v2270
    %2385 = vmatprep.subr.bf16.mxu0 %v2276
    %2386 = vmatpush1.bf16.msra.mxu0 %v2275
    %2387 = vmatprep.subr.bf16.mxu0 %v2281
    %2388 = vmatpush1.bf16.msra.mxu0 %v2280
    %2389 = vmatprep.subr.bf16.mxu0 %v2286
    %2390 = vmatpush1.bf16.msra.mxu0 %v2285
    %2391 = vmatprep.subr.bf16.mxu0 %v2291
    %2392 = vmatpush1.bf16.msra.mxu0 %v2290
    %2393 = vmatprep.subr.bf16.mxu0 %v2296
    %2394 = vmatpush1.bf16.msra.mxu0 %v2295
    %2395 = vmatprep.subr.bf16.mxu0 0
    %2396 = vmatpush1.bf16.msra.mxu0 0
    %2397 = vmatprep.subr.bf16.mxu0 0
    %2398 = vmatpush1.bf16.msra.mxu0 0
    %2399 = vmatprep.subr.bf16.mxu0 0
    %2400 = vmatpush1.bf16.msra.mxu0 0
    %2401 = vmatprep.subr.bf16.mxu0 0
    %2402 = vmatpush1.bf16.msra.mxu0 0
    %2403 = vmatprep.subr.bf16.mxu0 0
    %2404 = vmatpush1.bf16.msra.mxu0 0
    %2405 = vmatprep.subr.bf16.mxu0 0
    %2406 = vmatpush1.bf16.msra.mxu0 0
    %2407 = vmatprep.subr.bf16.mxu0 0
    %2408 = vmatpush1.bf16.msra.mxu0 0
    %2409 = vmatprep.subr.bf16.mxu0 0
    %2410 = vmatpush1.bf16.msra.mxu0 0
    %2411 = vmatprep.mubr.bf16.mxu0 0
    %2412 = vmatmul.mubr.bf16.gmra.mrb[0].mxu0 %v2081
    %v2413 = vpop.f32.mrb[0].mxu0
    %v2414 = vadd.f32 %v1268, %v2413
    %v2415 = vpop.f32.mrb[0].mxu0
    %v2416 = vadd.f32 %v1272, %v2415
    %v2417 = vpop.f32.mrb[0].mxu0
    %v2418 = vpop.f32.mrb[0].mxu0
    %2419 = vdwg.mxu0
    %2420 = vmatprep.subr.bf16.mxu0 0
    %2421 = vmatpush1.bf16.msra.mxu0 %v2262
    %2422 = vmatprep.subr.bf16.mxu0 0
    %2423 = vmatpush1.bf16.msra.mxu0 %v2267
    %2424 = vmatprep.subr.bf16.mxu0 0
    %2425 = vmatpush1.bf16.msra.mxu0 %v2272
    %2426 = vmatprep.subr.bf16.mxu0 0
    %2427 = vmatpush1.bf16.msra.mxu0 %v2277
    %2428 = vmatprep.subr.bf16.mxu0 0
    %2429 = vmatpush1.bf16.msra.mxu0 %v2282
    %2430 = vmatprep.subr.bf16.mxu0 0
    %2431 = vmatpush1.bf16.msra.mxu0 %v2287
    %2432 = vmatprep.subr.bf16.mxu0 0
    %2433 = vmatpush1.bf16.msra.mxu0 %v2292
    %2434 = vmatprep.subr.bf16.mxu0 0
    %2435 = vmatpush1.bf16.msra.mxu0 %v2297
    %2436 = vmatprep.subr.bf16.mxu0 0
    %2437 = vmatpush1.bf16.msra.mxu0 0
    %2438 = vmatprep.subr.bf16.mxu0 0
    %2439 = vmatpush1.bf16.msra.mxu0 0
    %2440 = vmatprep.subr.bf16.mxu0 0
    %2441 = vmatpush1.bf16.msra.mxu0 0
    %2442 = vmatprep.subr.bf16.mxu0 0
    %2443 = vmatpush1.bf16.msra.mxu0 0
    %2444 = vmatprep.subr.bf16.mxu0 0
    %2445 = vmatpush1.bf16.msra.mxu0 0
    %2446 = vmatprep.subr.bf16.mxu0 0
    %2447 = vmatpush1.bf16.msra.mxu0 0
    %2448 = vmatprep.subr.bf16.mxu0 0
    %2449 = vmatpush1.bf16.msra.mxu0 0
    %2450 = vmatprep.subr.bf16.mxu0 0
    %2451 = vmatpush1.bf16.msra.mxu0 0
    %2452 = vmatprep.mubr.bf16.mxu0 0
    %2453 = vmatmul.mubr.bf16.gmra.mrb[0].mxu0 %v2081
    %v2454 = vpop.f32.mrb[0].mxu0
    %v2455 = vadd.f32 %v1276, %v2454
    %v2456 = vpop.f32.mrb[0].mxu0
    %v2457 = vpop.f32.mrb[0].mxu0
    %v2458 = vpop.f32.mrb[0].mxu0
    %2459 = vdwg.mxu0
    %s2460 = scalar_lea.vmem %s6, 40
    %2461 = vst.msk [vmem:[%s2460] sm:$0xff] %vm1662, %v2455
    %v2462 = vmul.f32 %v2373, 0.5
    %v2463 = vtanh.pop %v2462
    %v2464 = vmul.f32 %v2463, 0.5
    %v2465 = vadd.f32 %v2464, 0.5
    %v2466 = vmul.f32 %v2375, 0.5
    %v2467 = vtanh.pop %v2466
    %v2468 = vmul.f32 %v2467, 0.5
    %v2469 = vadd.f32 %v2468, 0.5
    %v2470 = vtanh.pop %v2414
    %v2471 = vmul.f32 %v2416, 0.5
    %v2472 = vtanh.pop %v2471
    %v2473 = vmul.f32 %v2472, 0.5
    %v2474 = vadd.f32 %v2473, 0.5
    %v2475 = vmul.f32 %v2469, %v2078
    %v2476 = vmul.f32 %v2465, %v2470
    %v2477 = vadd.f32 %v2475, %v2476
    %v2478 = vtanh.pop %v2477
    %v2479 = vmul.f32 %v2474, %v2478
    %v2480 = vpack.c.bf16 %v2479, %v2479
    %v2481 = vld [vmem:[%s4] sm:$0xff]
    %v2482 = vld [vmem:[%s4 + $0x8] sm:$0xff]
    %v2483 = vld [vmem:[%s4 + $0x10] sm:$0xf]
    %v2484 = vld [vmem:[%s4 + $0x14] sm:$0xff]
    %v2485 = vld [vmem:[%s4 + $0x1c] sm:$0xff]
    %v2486 = vld [vmem:[%s4 + $0x24] sm:$0xf]
    %v2487 = vld [vmem:[%s4 + $0x28] sm:$0xff]
    %v2488 = vld [vmem:[%s4 + $0x30] sm:$0xff]
    %v2489 = vld [vmem:[%s4 + $0x38] sm:$0xf]
    %v2490 = vld [vmem:[%s4 + $0x3c] sm:$0xff]
    %v2491 = vld [vmem:[%s4 + $0x44] sm:$0xff]
    %v2492 = vld [vmem:[%s4 + $0x4c] sm:$0xf]
    %v2493 = vld [vmem:[%s4 + $0x50] sm:$0xff]
    %v2494 = vld [vmem:[%s4 + $0x58] sm:$0xff]
    %v2495 = vld [vmem:[%s4 + $0x60] sm:$0xf]
    %v2496 = vld [vmem:[%s4 + $0x64] sm:$0xff]
    %v2497 = vld [vmem:[%s4 + $0x6c] sm:$0xff]
    %v2498 = vld [vmem:[%s4 + $0x74] sm:$0xf]
    %v2499 = vld [vmem:[%s4 + $0x78] sm:$0xff]
    %v2500 = vld [vmem:[%s4 + $0x80] sm:$0xff]
    %v2501 = vld [vmem:[%s4 + $0x88] sm:$0xf]
    %v2502 = vld [vmem:[%s4 + $0x8c] sm:$0xff]
    %v2503 = vld [vmem:[%s4 + $0x94] sm:$0xff]
    %v2504 = vld [vmem:[%s4 + $0x9c] sm:$0xf]
    %v2505 = vld [vmem:[%s4 + $0xa0] sm:$0xff]
    %v2506 = vld [vmem:[%s4 + $0xa8] sm:$0xff]
    %v2507 = vld [vmem:[%s4 + $0xb0] sm:$0xf]
    %v2508 = vld [vmem:[%s4 + $0xb4] sm:$0xff]
    %v2509 = vld [vmem:[%s4 + $0xbc] sm:$0xff]
    %v2510 = vld [vmem:[%s4 + $0xc4] sm:$0xf]
    %v2511 = vld [vmem:[%s4 + $0xc8] sm:$0xff]
    %v2512 = vld [vmem:[%s4 + $0xd0] sm:$0xff]
    %v2513 = vld [vmem:[%s4 + $0xd8] sm:$0xf]
    %v2514 = vld [vmem:[%s4 + $0xdc] sm:$0xff]
    %v2515 = vld [vmem:[%s4 + $0xe4] sm:$0xff]
    %v2516 = vld [vmem:[%s4 + $0xec] sm:$0xf]
    %v2517 = vld [vmem:[%s4 + $0xf0] sm:$0xff]
    %v2518 = vld [vmem:[%s4 + $0xf8] sm:$0xff]
    %v2519 = vld [vmem:[%s4 + $0x100] sm:$0xf]
    %v2520 = vld [vmem:[%s4 + $0x104] sm:$0xff]
    %v2521 = vld [vmem:[%s4 + $0x10c] sm:$0xff]
    %v2522 = vld [vmem:[%s4 + $0x114] sm:$0xf]
    %v2523 = vld [vmem:[%s4 + $0x118] sm:$0xff]
    %v2524 = vld [vmem:[%s4 + $0x120] sm:$0xff]
    %v2525 = vld [vmem:[%s4 + $0x128] sm:$0xf]
    %v2526 = vld [vmem:[%s4 + $0x12c] sm:$0xff]
    %v2527 = vld [vmem:[%s4 + $0x134] sm:$0xff]
    %v2528 = vld [vmem:[%s4 + $0x13c] sm:$0xf]
    %v2577 = vunpack.c.l.b16 %v2481
    %v2578 = vunpack.c.h.b16 %v2481
    %v2579 = vunpack.c.l.b16 %v2482
    %v2580 = vunpack.c.h.b16 %v2482
    %v2581 = vunpack.c.l.b16 %v2483
    %v2582 = vunpack.c.l.b16 %v2484
    %v2583 = vunpack.c.h.b16 %v2484
    %v2584 = vunpack.c.l.b16 %v2485
    %v2585 = vunpack.c.h.b16 %v2485
    %v2586 = vunpack.c.l.b16 %v2486
    %v2587 = vunpack.c.l.b16 %v2487
    %v2588 = vunpack.c.h.b16 %v2487
    %v2589 = vunpack.c.l.b16 %v2488
    %v2590 = vunpack.c.h.b16 %v2488
    %v2591 = vunpack.c.l.b16 %v2489
    %v2592 = vunpack.c.l.b16 %v2490
    %v2593 = vunpack.c.h.b16 %v2490
    %v2594 = vunpack.c.l.b16 %v2491
    %v2595 = vunpack.c.h.b16 %v2491
    %v2596 = vunpack.c.l.b16 %v2492
    %v2597 = vunpack.c.l.b16 %v2493
    %v2598 = vunpack.c.h.b16 %v2493
    %v2599 = vunpack.c.l.b16 %v2494
    %v2600 = vunpack.c.h.b16 %v2494
    %v2601 = vunpack.c.l.b16 %v2495
    %v2602 = vunpack.c.l.b16 %v2496
    %v2603 = vunpack.c.h.b16 %v2496
    %v2604 = vunpack.c.l.b16 %v2497
    %v2605 = vunpack.c.h.b16 %v2497
    %v2606 = vunpack.c.l.b16 %v2498
    %v2607 = vunpack.c.l.b16 %v2499
    %v2608 = vunpack.c.h.b16 %v2499
    %v2609 = vunpack.c.l.b16 %v2500
    %v2610 = vunpack.c.h.b16 %v2500
    %v2611 = vunpack.c.l.b16 %v2501
    %v2612 = vunpack.c.l.b16 %v2502
    %v2613 = vunpack.c.h.b16 %v2502
    %v2614 = vunpack.c.l.b16 %v2503
    %v2615 = vunpack.c.h.b16 %v2503
    %v2616 = vunpack.c.l.b16 %v2504
    %v2617 = vunpack.c.l.b16 %v2505
    %v2618 = vunpack.c.h.b16 %v2505
    %v2619 = vunpack.c.l.b16 %v2506
    %v2620 = vunpack.c.h.b16 %v2506
    %v2621 = vunpack.c.l.b16 %v2507
    %v2622 = vunpack.c.l.b16 %v2508
    %v2623 = vunpack.c.h.b16 %v2508
    %v2624 = vunpack.c.l.b16 %v2509
    %v2625 = vunpack.c.h.b16 %v2509
    %v2626 = vunpack.c.l.b16 %v2510
    %v2627 = vunpack.c.l.b16 %v2511
    %v2628 = vunpack.c.h.b16 %v2511
    %v2629 = vunpack.c.l.b16 %v2512
    %v2630 = vunpack.c.h.b16 %v2512
    %v2631 = vunpack.c.l.b16 %v2513
    %v2632 = vunpack.c.l.b16 %v2514
    %v2633 = vunpack.c.h.b16 %v2514
    %v2634 = vunpack.c.l.b16 %v2515
    %v2635 = vunpack.c.h.b16 %v2515
    %v2636 = vunpack.c.l.b16 %v2516
    %v2637 = vunpack.c.l.b16 %v2517
    %v2638 = vunpack.c.h.b16 %v2517
    %v2639 = vunpack.c.l.b16 %v2518
    %v2640 = vunpack.c.h.b16 %v2518
    %v2641 = vunpack.c.l.b16 %v2519
    %v2642 = vunpack.c.l.b16 %v2520
    %v2643 = vunpack.c.h.b16 %v2520
    %v2644 = vunpack.c.l.b16 %v2521
    %v2645 = vunpack.c.h.b16 %v2521
    %v2646 = vunpack.c.l.b16 %v2522
    %v2647 = vunpack.c.l.b16 %v2523
    %v2648 = vunpack.c.h.b16 %v2523
    %v2649 = vunpack.c.l.b16 %v2524
    %v2650 = vunpack.c.h.b16 %v2524
    %v2651 = vunpack.c.l.b16 %v2525
    %v2652 = vunpack.c.l.b16 %v2526
    %v2653 = vunpack.c.h.b16 %v2526
    %v2654 = vunpack.c.l.b16 %v2527
    %v2655 = vunpack.c.h.b16 %v2527
    %v2656 = vunpack.c.l.b16 %v2528
    %v2657 = vpack.c.b16 %v2582, %v2577
    %v2658 = vpack.c.b16 %v2583, %v2578
    %v2659 = vpack.c.b16 %v2584, %v2579
    %v2660 = vpack.c.b16 %v2585, %v2580
    %v2661 = vpack.c.b16 %v2586, %v2581
    %v2662 = vpack.c.b16 %v2592, %v2587
    %v2663 = vpack.c.b16 %v2593, %v2588
    %v2664 = vpack.c.b16 %v2594, %v2589
    %v2665 = vpack.c.b16 %v2595, %v2590
    %v2666 = vpack.c.b16 %v2596, %v2591
    %v2667 = vpack.c.b16 %v2602, %v2597
    %v2668 = vpack.c.b16 %v2603, %v2598
    %v2669 = vpack.c.b16 %v2604, %v2599
    %v2670 = vpack.c.b16 %v2605, %v2600
    %v2671 = vpack.c.b16 %v2606, %v2601
    %v2672 = vpack.c.b16 %v2612, %v2607
    %v2673 = vpack.c.b16 %v2613, %v2608
    %v2674 = vpack.c.b16 %v2614, %v2609
    %v2675 = vpack.c.b16 %v2615, %v2610
    %v2676 = vpack.c.b16 %v2616, %v2611
    %v2677 = vpack.c.b16 %v2622, %v2617
    %v2678 = vpack.c.b16 %v2623, %v2618
    %v2679 = vpack.c.b16 %v2624, %v2619
    %v2680 = vpack.c.b16 %v2625, %v2620
    %v2681 = vpack.c.b16 %v2626, %v2621
    %v2682 = vpack.c.b16 %v2632, %v2627
    %v2683 = vpack.c.b16 %v2633, %v2628
    %v2684 = vpack.c.b16 %v2634, %v2629
    %v2685 = vpack.c.b16 %v2635, %v2630
    %v2686 = vpack.c.b16 %v2636, %v2631
    %v2687 = vpack.c.b16 %v2642, %v2637
    %v2688 = vpack.c.b16 %v2643, %v2638
    %v2689 = vpack.c.b16 %v2644, %v2639
    %v2690 = vpack.c.b16 %v2645, %v2640
    %v2691 = vpack.c.b16 %v2646, %v2641
    %v2692 = vpack.c.b16 %v2652, %v2647
    %v2693 = vpack.c.b16 %v2653, %v2648
    %v2694 = vpack.c.b16 %v2654, %v2649
    %v2695 = vpack.c.b16 %v2655, %v2650
    %v2696 = vpack.c.b16 %v2656, %v2651
    %2737 = vmatprep.subr.bf16.mxu0 %v2658
    %2738 = vmatpush1.bf16.msra.mxu0 %v2657
    %2739 = vmatprep.subr.bf16.mxu0 %v2663
    %2740 = vmatpush1.bf16.msra.mxu0 %v2662
    %2741 = vmatprep.subr.bf16.mxu0 %v2668
    %2742 = vmatpush1.bf16.msra.mxu0 %v2667
    %2743 = vmatprep.subr.bf16.mxu0 %v2673
    %2744 = vmatpush1.bf16.msra.mxu0 %v2672
    %2745 = vmatprep.subr.bf16.mxu0 %v2678
    %2746 = vmatpush1.bf16.msra.mxu0 %v2677
    %2747 = vmatprep.subr.bf16.mxu0 %v2683
    %2748 = vmatpush1.bf16.msra.mxu0 %v2682
    %2749 = vmatprep.subr.bf16.mxu0 %v2688
    %2750 = vmatpush1.bf16.msra.mxu0 %v2687
    %2751 = vmatprep.subr.bf16.mxu0 %v2693
    %2752 = vmatpush1.bf16.msra.mxu0 %v2692
    %2753 = vmatprep.subr.bf16.mxu0 0
    %2754 = vmatpush1.bf16.msra.mxu0 0
    %2755 = vmatprep.subr.bf16.mxu0 0
    %2756 = vmatpush1.bf16.msra.mxu0 0
    %2757 = vmatprep.subr.bf16.mxu0 0
    %2758 = vmatpush1.bf16.msra.mxu0 0
    %2759 = vmatprep.subr.bf16.mxu0 0
    %2760 = vmatpush1.bf16.msra.mxu0 0
    %2761 = vmatprep.subr.bf16.mxu0 0
    %2762 = vmatpush1.bf16.msra.mxu0 0
    %2763 = vmatprep.subr.bf16.mxu0 0
    %2764 = vmatpush1.bf16.msra.mxu0 0
    %2765 = vmatprep.subr.bf16.mxu0 0
    %2766 = vmatpush1.bf16.msra.mxu0 0
    %2767 = vmatprep.subr.bf16.mxu0 0
    %2768 = vmatpush1.bf16.msra.mxu0 0
    %2769 = vmatprep.mubr.bf16.mxu0 0
    %2770 = vmatmul.mubr.bf16.gmra.mrb[0].mxu0 %v2480
    %v2771 = vpop.f32.mrb[0].mxu0
    %v2772 = vadd.f32 %v1260, %v2771
    %v2773 = vpop.f32.mrb[0].mxu0
    %v2774 = vadd.f32 %v1264, %v2773
    %v2775 = vpop.f32.mrb[0].mxu0
    %v2776 = vpop.f32.mrb[0].mxu0
    %2777 = vdwg.mxu0
    %2778 = vmatprep.subr.bf16.mxu0 %v2660
    %2779 = vmatpush1.bf16.msra.mxu0 %v2659
    %2780 = vmatprep.subr.bf16.mxu0 %v2665
    %2781 = vmatpush1.bf16.msra.mxu0 %v2664
    %2782 = vmatprep.subr.bf16.mxu0 %v2670
    %2783 = vmatpush1.bf16.msra.mxu0 %v2669
    %2784 = vmatprep.subr.bf16.mxu0 %v2675
    %2785 = vmatpush1.bf16.msra.mxu0 %v2674
    %2786 = vmatprep.subr.bf16.mxu0 %v2680
    %2787 = vmatpush1.bf16.msra.mxu0 %v2679
    %2788 = vmatprep.subr.bf16.mxu0 %v2685
    %2789 = vmatpush1.bf16.msra.mxu0 %v2684
    %2790 = vmatprep.subr.bf16.mxu0 %v2690
    %2791 = vmatpush1.bf16.msra.mxu0 %v2689
    %2792 = vmatprep.subr.bf16.mxu0 %v2695
    %2793 = vmatpush1.bf16.msra.mxu0 %v2694
    %2794 = vmatprep.subr.bf16.mxu0 0
    %2795 = vmatpush1.bf16.msra.mxu0 0
    %2796 = vmatprep.subr.bf16.mxu0 0
    %2797 = vmatpush1.bf16.msra.mxu0 0
    %2798 = vmatprep.subr.bf16.mxu0 0
    %2799 = vmatpush1.bf16.msra.mxu0 0
    %2800 = vmatprep.subr.bf16.mxu0 0
    %2801 = vmatpush1.bf16.msra.mxu0 0
    %2802 = vmatprep.subr.bf16.mxu0 0
    %2803 = vmatpush1.bf16.msra.mxu0 0
    %2804 = vmatprep.subr.bf16.mxu0 0
    %2805 = vmatpush1.bf16.msra.mxu0 0
    %2806 = vmatprep.subr.bf16.mxu0 0
    %2807 = vmatpush1.bf16.msra.mxu0 0
    %2808 = vmatprep.subr.bf16.mxu0 0
    %2809 = vmatpush1.bf16.msra.mxu0 0
    %2810 = vmatprep.mubr.bf16.mxu0 0
    %2811 = vmatmul.mubr.bf16.gmra.mrb[0].mxu0 %v2480
    %v2812 = vpop.f32.mrb[0].mxu0
    %v2813 = vadd.f32 %v1268, %v2812
    %v2814 = vpop.f32.mrb[0].mxu0
    %v2815 = vadd.f32 %v1272, %v2814
    %v2816 = vpop.f32.mrb[0].mxu0
    %v2817 = vpop.f32.mrb[0].mxu0
    %2818 = vdwg.mxu0
    %2819 = vmatprep.subr.bf16.mxu0 0
    %2820 = vmatpush1.bf16.msra.mxu0 %v2661
    %2821 = vmatprep.subr.bf16.mxu0 0
    %2822 = vmatpush1.bf16.msra.mxu0 %v2666
    %2823 = vmatprep.subr.bf16.mxu0 0
    %2824 = vmatpush1.bf16.msra.mxu0 %v2671
    %2825 = vmatprep.subr.bf16.mxu0 0
    %2826 = vmatpush1.bf16.msra.mxu0 %v2676
    %2827 = vmatprep.subr.bf16.mxu0 0
    %2828 = vmatpush1.bf16.msra.mxu0 %v2681
    %2829 = vmatprep.subr.bf16.mxu0 0
    %2830 = vmatpush1.bf16.msra.mxu0 %v2686
    %2831 = vmatprep.subr.bf16.mxu0 0
    %2832 = vmatpush1.bf16.msra.mxu0 %v2691
    %2833 = vmatprep.subr.bf16.mxu0 0
    %2834 = vmatpush1.bf16.msra.mxu0 %v2696
    %2835 = vmatprep.subr.bf16.mxu0 0
    %2836 = vmatpush1.bf16.msra.mxu0 0
    %2837 = vmatprep.subr.bf16.mxu0 0
    %2838 = vmatpush1.bf16.msra.mxu0 0
    %2839 = vmatprep.subr.bf16.mxu0 0
    %2840 = vmatpush1.bf16.msra.mxu0 0
    %2841 = vmatprep.subr.bf16.mxu0 0
    %2842 = vmatpush1.bf16.msra.mxu0 0
    %2843 = vmatprep.subr.bf16.mxu0 0
    %2844 = vmatpush1.bf16.msra.mxu0 0
    %2845 = vmatprep.subr.bf16.mxu0 0
    %2846 = vmatpush1.bf16.msra.mxu0 0
    %2847 = vmatprep.subr.bf16.mxu0 0
    %2848 = vmatpush1.bf16.msra.mxu0 0
    %2849 = vmatprep.subr.bf16.mxu0 0
    %2850 = vmatpush1.bf16.msra.mxu0 0
    %2851 = vmatprep.mubr.bf16.mxu0 0
    %2852 = vmatmul.mubr.bf16.gmra.mrb[0].mxu0 %v2480
    %v2853 = vpop.f32.mrb[0].mxu0
    %v2854 = vadd.f32 %v1276, %v2853
    %v2855 = vpop.f32.mrb[0].mxu0
    %v2856 = vpop.f32.mrb[0].mxu0
    %v2857 = vpop.f32.mrb[0].mxu0
    %2858 = vdwg.mxu0
    %s2859 = scalar_lea.vmem %s6, 32
    %2860 = vst.msk [vmem:[%s2859] sm:$0xff] %vm1662, %v2854
    %v2861 = vmul.f32 %v2772, 0.5
    %v2862 = vtanh.pop %v2861
    %v2863 = vmul.f32 %v2862, 0.5
    %v2864 = vadd.f32 %v2863, 0.5
    %v2865 = vmul.f32 %v2774, 0.5
    %v2866 = vtanh.pop %v2865
    %v2867 = vmul.f32 %v2866, 0.5
    %v2868 = vadd.f32 %v2867, 0.5
    %v2869 = vtanh.pop %v2813
    %v2870 = vmul.f32 %v2815, 0.5
    %v2871 = vtanh.pop %v2870
    %v2872 = vmul.f32 %v2871, 0.5
    %v2873 = vadd.f32 %v2872, 0.5
    %v2874 = vmul.f32 %v2868, %v2477
    %v2875 = vmul.f32 %v2864, %v2869
    %v2876 = vadd.f32 %v2874, %v2875
    %v2877 = vtanh.pop %v2876
    %v2878 = vmul.f32 %v2873, %v2877
    %v2879 = vpack.c.bf16 %v2878, %v2878
    %v2880 = vld [vmem:[%s4] sm:$0xff]
    %v2881 = vld [vmem:[%s4 + $0x8] sm:$0xff]
    %v2882 = vld [vmem:[%s4 + $0x10] sm:$0xf]
    %v2883 = vld [vmem:[%s4 + $0x14] sm:$0xff]
    %v2884 = vld [vmem:[%s4 + $0x1c] sm:$0xff]
    %v2885 = vld [vmem:[%s4 + $0x24] sm:$0xf]
    %v2886 = vld [vmem:[%s4 + $0x28] sm:$0xff]
    %v2887 = vld [vmem:[%s4 + $0x30] sm:$0xff]
    %v2888 = vld [vmem:[%s4 + $0x38] sm:$0xf]
    %v2889 = vld [vmem:[%s4 + $0x3c] sm:$0xff]
    %v2890 = vld [vmem:[%s4 + $0x44] sm:$0xff]
    %v2891 = vld [vmem:[%s4 + $0x4c] sm:$0xf]
    %v2892 = vld [vmem:[%s4 + $0x50] sm:$0xff]
    %v2893 = vld [vmem:[%s4 + $0x58] sm:$0xff]
    %v2894 = vld [vmem:[%s4 + $0x60] sm:$0xf]
    %v2895 = vld [vmem:[%s4 + $0x64] sm:$0xff]
    %v2896 = vld [vmem:[%s4 + $0x6c] sm:$0xff]
    %v2897 = vld [vmem:[%s4 + $0x74] sm:$0xf]
    %v2898 = vld [vmem:[%s4 + $0x78] sm:$0xff]
    %v2899 = vld [vmem:[%s4 + $0x80] sm:$0xff]
    %v2900 = vld [vmem:[%s4 + $0x88] sm:$0xf]
    %v2901 = vld [vmem:[%s4 + $0x8c] sm:$0xff]
    %v2902 = vld [vmem:[%s4 + $0x94] sm:$0xff]
    %v2903 = vld [vmem:[%s4 + $0x9c] sm:$0xf]
    %v2904 = vld [vmem:[%s4 + $0xa0] sm:$0xff]
    %v2905 = vld [vmem:[%s4 + $0xa8] sm:$0xff]
    %v2906 = vld [vmem:[%s4 + $0xb0] sm:$0xf]
    %v2907 = vld [vmem:[%s4 + $0xb4] sm:$0xff]
    %v2908 = vld [vmem:[%s4 + $0xbc] sm:$0xff]
    %v2909 = vld [vmem:[%s4 + $0xc4] sm:$0xf]
    %v2910 = vld [vmem:[%s4 + $0xc8] sm:$0xff]
    %v2911 = vld [vmem:[%s4 + $0xd0] sm:$0xff]
    %v2912 = vld [vmem:[%s4 + $0xd8] sm:$0xf]
    %v2913 = vld [vmem:[%s4 + $0xdc] sm:$0xff]
    %v2914 = vld [vmem:[%s4 + $0xe4] sm:$0xff]
    %v2915 = vld [vmem:[%s4 + $0xec] sm:$0xf]
    %v2916 = vld [vmem:[%s4 + $0xf0] sm:$0xff]
    %v2917 = vld [vmem:[%s4 + $0xf8] sm:$0xff]
    %v2918 = vld [vmem:[%s4 + $0x100] sm:$0xf]
    %v2919 = vld [vmem:[%s4 + $0x104] sm:$0xff]
    %v2920 = vld [vmem:[%s4 + $0x10c] sm:$0xff]
    %v2921 = vld [vmem:[%s4 + $0x114] sm:$0xf]
    %v2922 = vld [vmem:[%s4 + $0x118] sm:$0xff]
    %v2923 = vld [vmem:[%s4 + $0x120] sm:$0xff]
    %v2924 = vld [vmem:[%s4 + $0x128] sm:$0xf]
    %v2925 = vld [vmem:[%s4 + $0x12c] sm:$0xff]
    %v2926 = vld [vmem:[%s4 + $0x134] sm:$0xff]
    %v2927 = vld [vmem:[%s4 + $0x13c] sm:$0xf]
    %v2976 = vunpack.c.l.b16 %v2880
    %v2977 = vunpack.c.h.b16 %v2880
    %v2978 = vunpack.c.l.b16 %v2881
    %v2979 = vunpack.c.h.b16 %v2881
    %v2980 = vunpack.c.l.b16 %v2882
    %v2981 = vunpack.c.l.b16 %v2883
    %v2982 = vunpack.c.h.b16 %v2883
    %v2983 = vunpack.c.l.b16 %v2884
    %v2984 = vunpack.c.h.b16 %v2884
    %v2985 = vunpack.c.l.b16 %v2885
    %v2986 = vunpack.c.l.b16 %v2886
    %v2987 = vunpack.c.h.b16 %v2886
    %v2988 = vunpack.c.l.b16 %v2887
    %v2989 = vunpack.c.h.b16 %v2887
    %v2990 = vunpack.c.l.b16 %v2888
    %v2991 = vunpack.c.l.b16 %v2889
    %v2992 = vunpack.c.h.b16 %v2889
    %v2993 = vunpack.c.l.b16 %v2890
    %v2994 = vunpack.c.h.b16 %v2890
    %v2995 = vunpack.c.l.b16 %v2891
    %v2996 = vunpack.c.l.b16 %v2892
    %v2997 = vunpack.c.h.b16 %v2892
    %v2998 = vunpack.c.l.b16 %v2893
    %v2999 = vunpack.c.h.b16 %v2893
    %v3000 = vunpack.c.l.b16 %v2894
    %v3001 = vunpack.c.l.b16 %v2895
    %v3002 = vunpack.c.h.b16 %v2895
    %v3003 = vunpack.c.l.b16 %v2896
    %v3004 = vunpack.c.h.b16 %v2896
    %v3005 = vunpack.c.l.b16 %v2897
    %v3006 = vunpack.c.l.b16 %v2898
    %v3007 = vunpack.c.h.b16 %v2898
    %v3008 = vunpack.c.l.b16 %v2899
    %v3009 = vunpack.c.h.b16 %v2899
    %v3010 = vunpack.c.l.b16 %v2900
    %v3011 = vunpack.c.l.b16 %v2901
    %v3012 = vunpack.c.h.b16 %v2901
    %v3013 = vunpack.c.l.b16 %v2902
    %v3014 = vunpack.c.h.b16 %v2902
    %v3015 = vunpack.c.l.b16 %v2903
    %v3016 = vunpack.c.l.b16 %v2904
    %v3017 = vunpack.c.h.b16 %v2904
    %v3018 = vunpack.c.l.b16 %v2905
    %v3019 = vunpack.c.h.b16 %v2905
    %v3020 = vunpack.c.l.b16 %v2906
    %v3021 = vunpack.c.l.b16 %v2907
    %v3022 = vunpack.c.h.b16 %v2907
    %v3023 = vunpack.c.l.b16 %v2908
    %v3024 = vunpack.c.h.b16 %v2908
    %v3025 = vunpack.c.l.b16 %v2909
    %v3026 = vunpack.c.l.b16 %v2910
    %v3027 = vunpack.c.h.b16 %v2910
    %v3028 = vunpack.c.l.b16 %v2911
    %v3029 = vunpack.c.h.b16 %v2911
    %v3030 = vunpack.c.l.b16 %v2912
    %v3031 = vunpack.c.l.b16 %v2913
    %v3032 = vunpack.c.h.b16 %v2913
    %v3033 = vunpack.c.l.b16 %v2914
    %v3034 = vunpack.c.h.b16 %v2914
    %v3035 = vunpack.c.l.b16 %v2915
    %v3036 = vunpack.c.l.b16 %v2916
    %v3037 = vunpack.c.h.b16 %v2916
    %v3038 = vunpack.c.l.b16 %v2917
    %v3039 = vunpack.c.h.b16 %v2917
    %v3040 = vunpack.c.l.b16 %v2918
    %v3041 = vunpack.c.l.b16 %v2919
    %v3042 = vunpack.c.h.b16 %v2919
    %v3043 = vunpack.c.l.b16 %v2920
    %v3044 = vunpack.c.h.b16 %v2920
    %v3045 = vunpack.c.l.b16 %v2921
    %v3046 = vunpack.c.l.b16 %v2922
    %v3047 = vunpack.c.h.b16 %v2922
    %v3048 = vunpack.c.l.b16 %v2923
    %v3049 = vunpack.c.h.b16 %v2923
    %v3050 = vunpack.c.l.b16 %v2924
    %v3051 = vunpack.c.l.b16 %v2925
    %v3052 = vunpack.c.h.b16 %v2925
    %v3053 = vunpack.c.l.b16 %v2926
    %v3054 = vunpack.c.h.b16 %v2926
    %v3055 = vunpack.c.l.b16 %v2927
    %v3056 = vpack.c.b16 %v2981, %v2976
    %v3057 = vpack.c.b16 %v2982, %v2977
    %v3058 = vpack.c.b16 %v2983, %v2978
    %v3059 = vpack.c.b16 %v2984, %v2979
    %v3060 = vpack.c.b16 %v2985, %v2980
    %v3061 = vpack.c.b16 %v2991, %v2986
    %v3062 = vpack.c.b16 %v2992, %v2987
    %v3063 = vpack.c.b16 %v2993, %v2988
    %v3064 = vpack.c.b16 %v2994, %v2989
    %v3065 = vpack.c.b16 %v2995, %v2990
    %v3066 = vpack.c.b16 %v3001, %v2996
    %v3067 = vpack.c.b16 %v3002, %v2997
    %v3068 = vpack.c.b16 %v3003, %v2998
    %v3069 = vpack.c.b16 %v3004, %v2999
    %v3070 = vpack.c.b16 %v3005, %v3000
    %v3071 = vpack.c.b16 %v3011, %v3006
    %v3072 = vpack.c.b16 %v3012, %v3007
    %v3073 = vpack.c.b16 %v3013, %v3008
    %v3074 = vpack.c.b16 %v3014, %v3009
    %v3075 = vpack.c.b16 %v3015, %v3010
    %v3076 = vpack.c.b16 %v3021, %v3016
    %v3077 = vpack.c.b16 %v3022, %v3017
    %v3078 = vpack.c.b16 %v3023, %v3018
    %v3079 = vpack.c.b16 %v3024, %v3019
    %v3080 = vpack.c.b16 %v3025, %v3020
    %v3081 = vpack.c.b16 %v3031, %v3026
    %v3082 = vpack.c.b16 %v3032, %v3027
    %v3083 = vpack.c.b16 %v3033, %v3028
    %v3084 = vpack.c.b16 %v3034, %v3029
    %v3085 = vpack.c.b16 %v3035, %v3030
    %v3086 = vpack.c.b16 %v3041, %v3036
    %v3087 = vpack.c.b16 %v3042, %v3037
    %v3088 = vpack.c.b16 %v3043, %v3038
    %v3089 = vpack.c.b16 %v3044, %v3039
    %v3090 = vpack.c.b16 %v3045, %v3040
    %v3091 = vpack.c.b16 %v3051, %v3046
    %v3092 = vpack.c.b16 %v3052, %v3047
    %v3093 = vpack.c.b16 %v3053, %v3048
    %v3094 = vpack.c.b16 %v3054, %v3049
    %v3095 = vpack.c.b16 %v3055, %v3050
    %3136 = vmatprep.subr.bf16.mxu0 %v3057
    %3137 = vmatpush1.bf16.msra.mxu0 %v3056
    %3138 = vmatprep.subr.bf16.mxu0 %v3062
    %3139 = vmatpush1.bf16.msra.mxu0 %v3061
    %3140 = vmatprep.subr.bf16.mxu0 %v3067
    %3141 = vmatpush1.bf16.msra.mxu0 %v3066
    %3142 = vmatprep.subr.bf16.mxu0 %v3072
    %3143 = vmatpush1.bf16.msra.mxu0 %v3071
    %3144 = vmatprep.subr.bf16.mxu0 %v3077
    %3145 = vmatpush1.bf16.msra.mxu0 %v3076
    %3146 = vmatprep.subr.bf16.mxu0 %v3082
    %3147 = vmatpush1.bf16.msra.mxu0 %v3081
    %3148 = vmatprep.subr.bf16.mxu0 %v3087
    %3149 = vmatpush1.bf16.msra.mxu0 %v3086
    %3150 = vmatprep.subr.bf16.mxu0 %v3092
    %3151 = vmatpush1.bf16.msra.mxu0 %v3091
    %3152 = vmatprep.subr.bf16.mxu0 0
    %3153 = vmatpush1.bf16.msra.mxu0 0
    %3154 = vmatprep.subr.bf16.mxu0 0
    %3155 = vmatpush1.bf16.msra.mxu0 0
    %3156 = vmatprep.subr.bf16.mxu0 0
    %3157 = vmatpush1.bf16.msra.mxu0 0
    %3158 = vmatprep.subr.bf16.mxu0 0
    %3159 = vmatpush1.bf16.msra.mxu0 0
    %3160 = vmatprep.subr.bf16.mxu0 0
    %3161 = vmatpush1.bf16.msra.mxu0 0
    %3162 = vmatprep.subr.bf16.mxu0 0
    %3163 = vmatpush1.bf16.msra.mxu0 0
    %3164 = vmatprep.subr.bf16.mxu0 0
    %3165 = vmatpush1.bf16.msra.mxu0 0
    %3166 = vmatprep.subr.bf16.mxu0 0
    %3167 = vmatpush1.bf16.msra.mxu0 0
    %3168 = vmatprep.mubr.bf16.mxu0 0
    %3169 = vmatmul.mubr.bf16.gmra.mrb[0].mxu0 %v2879
    %v3170 = vpop.f32.mrb[0].mxu0
    %v3171 = vadd.f32 %v1260, %v3170
    %v3172 = vpop.f32.mrb[0].mxu0
    %v3173 = vadd.f32 %v1264, %v3172
    %v3174 = vpop.f32.mrb[0].mxu0
    %v3175 = vpop.f32.mrb[0].mxu0
    %3176 = vdwg.mxu0
    %3177 = vmatprep.subr.bf16.mxu0 %v3059
    %3178 = vmatpush1.bf16.msra.mxu0 %v3058
    %3179 = vmatprep.subr.bf16.mxu0 %v3064
    %3180 = vmatpush1.bf16.msra.mxu0 %v3063
    %3181 = vmatprep.subr.bf16.mxu0 %v3069
    %3182 = vmatpush1.bf16.msra.mxu0 %v3068
    %3183 = vmatprep.subr.bf16.mxu0 %v3074
    %3184 = vmatpush1.bf16.msra.mxu0 %v3073
    %3185 = vmatprep.subr.bf16.mxu0 %v3079
    %3186 = vmatpush1.bf16.msra.mxu0 %v3078
    %3187 = vmatprep.subr.bf16.mxu0 %v3084
    %3188 = vmatpush1.bf16.msra.mxu0 %v3083
    %3189 = vmatprep.subr.bf16.mxu0 %v3089
    %3190 = vmatpush1.bf16.msra.mxu0 %v3088
    %3191 = vmatprep.subr.bf16.mxu0 %v3094
    %3192 = vmatpush1.bf16.msra.mxu0 %v3093
    %3193 = vmatprep.subr.bf16.mxu0 0
    %3194 = vmatpush1.bf16.msra.mxu0 0
    %3195 = vmatprep.subr.bf16.mxu0 0
    %3196 = vmatpush1.bf16.msra.mxu0 0
    %3197 = vmatprep.subr.bf16.mxu0 0
    %3198 = vmatpush1.bf16.msra.mxu0 0
    %3199 = vmatprep.subr.bf16.mxu0 0
    %3200 = vmatpush1.bf16.msra.mxu0 0
    %3201 = vmatprep.subr.bf16.mxu0 0
    %3202 = vmatpush1.bf16.msra.mxu0 0
    %3203 = vmatprep.subr.bf16.mxu0 0
    %3204 = vmatpush1.bf16.msra.mxu0 0
    %3205 = vmatprep.subr.bf16.mxu0 0
    %3206 = vmatpush1.bf16.msra.mxu0 0
    %3207 = vmatprep.subr.bf16.mxu0 0
    %3208 = vmatpush1.bf16.msra.mxu0 0
    %3209 = vmatprep.mubr.bf16.mxu0 0
    %3210 = vmatmul.mubr.bf16.gmra.mrb[0].mxu0 %v2879
    %v3211 = vpop.f32.mrb[0].mxu0
    %v3212 = vadd.f32 %v1268, %v3211
    %v3213 = vpop.f32.mrb[0].mxu0
    %v3214 = vadd.f32 %v1272, %v3213
    %v3215 = vpop.f32.mrb[0].mxu0
    %v3216 = vpop.f32.mrb[0].mxu0
    %3217 = vdwg.mxu0
    %3218 = vmatprep.subr.bf16.mxu0 0
    %3219 = vmatpush1.bf16.msra.mxu0 %v3060
    %3220 = vmatprep.subr.bf16.mxu0 0
    %3221 = vmatpush1.bf16.msra.mxu0 %v3065
    %3222 = vmatprep.subr.bf16.mxu0 0
    %3223 = vmatpush1.bf16.msra.mxu0 %v3070
    %3224 = vmatprep.subr.bf16.mxu0 0
    %3225 = vmatpush1.bf16.msra.mxu0 %v3075
    %3226 = vmatprep.subr.bf16.mxu0 0
    %3227 = vmatpush1.bf16.msra.mxu0 %v3080
    %3228 = vmatprep.subr.bf16.mxu0 0
    %3229 = vmatpush1.bf16.msra.mxu0 %v3085
    %3230 = vmatprep.subr.bf16.mxu0 0
    %3231 = vmatpush1.bf16.msra.mxu0 %v3090
    %3232 = vmatprep.subr.bf16.mxu0 0
    %3233 = vmatpush1.bf16.msra.mxu0 %v3095
    %3234 = vmatprep.subr.bf16.mxu0 0
    %3235 = vmatpush1.bf16.msra.mxu0 0
    %3236 = vmatprep.subr.bf16.mxu0 0
    %3237 = vmatpush1.bf16.msra.mxu0 0
    %3238 = vmatprep.subr.bf16.mxu0 0
    %3239 = vmatpush1.bf16.msra.mxu0 0
    %3240 = vmatprep.subr.bf16.mxu0 0
    %3241 = vmatpush1.bf16.msra.mxu0 0
    %3242 = vmatprep.subr.bf16.mxu0 0
    %3243 = vmatpush1.bf16.msra.mxu0 0
    %3244 = vmatprep.subr.bf16.mxu0 0
    %3245 = vmatpush1.bf16.msra.mxu0 0
    %3246 = vmatprep.subr.bf16.mxu0 0
    %3247 = vmatpush1.bf16.msra.mxu0 0
    %3248 = vmatprep.subr.bf16.mxu0 0
    %3249 = vmatpush1.bf16.msra.mxu0 0
    %3250 = vmatprep.mubr.bf16.mxu0 0
    %3251 = vmatmul.mubr.bf16.gmra.mrb[0].mxu0 %v2879
    %v3252 = vpop.f32.mrb[0].mxu0
    %v3253 = vadd.f32 %v1276, %v3252
    %v3254 = vpop.f32.mrb[0].mxu0
    %v3255 = vpop.f32.mrb[0].mxu0
    %v3256 = vpop.f32.mrb[0].mxu0
    %3257 = vdwg.mxu0
    %s3258 = scalar_lea.vmem %s6, 24
    %3259 = vst.msk [vmem:[%s3258] sm:$0xff] %vm1662, %v3253
    %v3260 = vmul.f32 %v3171, 0.5
    %v3261 = vtanh.pop %v3260
    %v3262 = vmul.f32 %v3261, 0.5
    %v3263 = vadd.f32 %v3262, 0.5
    %v3264 = vmul.f32 %v3173, 0.5
    %v3265 = vtanh.pop %v3264
    %v3266 = vmul.f32 %v3265, 0.5
    %v3267 = vadd.f32 %v3266, 0.5
    %v3268 = vtanh.pop %v3212
    %v3269 = vmul.f32 %v3214, 0.5
    %v3270 = vtanh.pop %v3269
    %v3271 = vmul.f32 %v3270, 0.5
    %v3272 = vadd.f32 %v3271, 0.5
    %v3273 = vmul.f32 %v3267, %v2876
    %v3274 = vmul.f32 %v3263, %v3268
    %v3275 = vadd.f32 %v3273, %v3274
    %v3276 = vtanh.pop %v3275
    %v3277 = vmul.f32 %v3272, %v3276
    %v3278 = vpack.c.bf16 %v3277, %v3277
    %v3279 = vld [vmem:[%s4] sm:$0xff]
    %v3280 = vld [vmem:[%s4 + $0x8] sm:$0xff]
    %v3281 = vld [vmem:[%s4 + $0x10] sm:$0xf]
    %v3282 = vld [vmem:[%s4 + $0x14] sm:$0xff]
    %v3283 = vld [vmem:[%s4 + $0x1c] sm:$0xff]
    %v3284 = vld [vmem:[%s4 + $0x24] sm:$0xf]
    %v3285 = vld [vmem:[%s4 + $0x28] sm:$0xff]
    %v3286 = vld [vmem:[%s4 + $0x30] sm:$0xff]
    %v3287 = vld [vmem:[%s4 + $0x38] sm:$0xf]
    %v3288 = vld [vmem:[%s4 + $0x3c] sm:$0xff]
    %v3289 = vld [vmem:[%s4 + $0x44] sm:$0xff]
    %v3290 = vld [vmem:[%s4 + $0x4c] sm:$0xf]
    %v3291 = vld [vmem:[%s4 + $0x50] sm:$0xff]
    %v3292 = vld [vmem:[%s4 + $0x58] sm:$0xff]
    %v3293 = vld [vmem:[%s4 + $0x60] sm:$0xf]
    %v3294 = vld [vmem:[%s4 + $0x64] sm:$0xff]
    %v3295 = vld [vmem:[%s4 + $0x6c] sm:$0xff]
    %v3296 = vld [vmem:[%s4 + $0x74] sm:$0xf]
    %v3297 = vld [vmem:[%s4 + $0x78] sm:$0xff]
    %v3298 = vld [vmem:[%s4 + $0x80] sm:$0xff]
    %v3299 = vld [vmem:[%s4 + $0x88] sm:$0xf]
    %v3300 = vld [vmem:[%s4 + $0x8c] sm:$0xff]
    %v3301 = vld [vmem:[%s4 + $0x94] sm:$0xff]
    %v3302 = vld [vmem:[%s4 + $0x9c] sm:$0xf]
    %v3303 = vld [vmem:[%s4 + $0xa0] sm:$0xff]
    %v3304 = vld [vmem:[%s4 + $0xa8] sm:$0xff]
    %v3305 = vld [vmem:[%s4 + $0xb0] sm:$0xf]
    %v3306 = vld [vmem:[%s4 + $0xb4] sm:$0xff]
    %v3307 = vld [vmem:[%s4 + $0xbc] sm:$0xff]
    %v3308 = vld [vmem:[%s4 + $0xc4] sm:$0xf]
    %v3309 = vld [vmem:[%s4 + $0xc8] sm:$0xff]
    %v3310 = vld [vmem:[%s4 + $0xd0] sm:$0xff]
    %v3311 = vld [vmem:[%s4 + $0xd8] sm:$0xf]
    %v3312 = vld [vmem:[%s4 + $0xdc] sm:$0xff]
    %v3313 = vld [vmem:[%s4 + $0xe4] sm:$0xff]
    %v3314 = vld [vmem:[%s4 + $0xec] sm:$0xf]
    %v3315 = vld [vmem:[%s4 + $0xf0] sm:$0xff]
    %v3316 = vld [vmem:[%s4 + $0xf8] sm:$0xff]
    %v3317 = vld [vmem:[%s4 + $0x100] sm:$0xf]
    %v3318 = vld [vmem:[%s4 + $0x104] sm:$0xff]
    %v3319 = vld [vmem:[%s4 + $0x10c] sm:$0xff]
    %v3320 = vld [vmem:[%s4 + $0x114] sm:$0xf]
    %v3321 = vld [vmem:[%s4 + $0x118] sm:$0xff]
    %v3322 = vld [vmem:[%s4 + $0x120] sm:$0xff]
    %v3323 = vld [vmem:[%s4 + $0x128] sm:$0xf]
    %v3324 = vld [vmem:[%s4 + $0x12c] sm:$0xff]
    %v3325 = vld [vmem:[%s4 + $0x134] sm:$0xff]
    %v3326 = vld [vmem:[%s4 + $0x13c] sm:$0xf]
    %v3375 = vunpack.c.l.b16 %v3279
    %v3376 = vunpack.c.h.b16 %v3279
    %v3377 = vunpack.c.l.b16 %v3280
    %v3378 = vunpack.c.h.b16 %v3280
    %v3379 = vunpack.c.l.b16 %v3281
    %v3380 = vunpack.c.l.b16 %v3282
    %v3381 = vunpack.c.h.b16 %v3282
    %v3382 = vunpack.c.l.b16 %v3283
    %v3383 = vunpack.c.h.b16 %v3283
    %v3384 = vunpack.c.l.b16 %v3284
    %v3385 = vunpack.c.l.b16 %v3285
    %v3386 = vunpack.c.h.b16 %v3285
    %v3387 = vunpack.c.l.b16 %v3286
    %v3388 = vunpack.c.h.b16 %v3286
    %v3389 = vunpack.c.l.b16 %v3287
    %v3390 = vunpack.c.l.b16 %v3288
    %v3391 = vunpack.c.h.b16 %v3288
    %v3392 = vunpack.c.l.b16 %v3289
    %v3393 = vunpack.c.h.b16 %v3289
    %v3394 = vunpack.c.l.b16 %v3290
    %v3395 = vunpack.c.l.b16 %v3291
    %v3396 = vunpack.c.h.b16 %v3291
    %v3397 = vunpack.c.l.b16 %v3292
    %v3398 = vunpack.c.h.b16 %v3292
    %v3399 = vunpack.c.l.b16 %v3293
    %v3400 = vunpack.c.l.b16 %v3294
    %v3401 = vunpack.c.h.b16 %v3294
    %v3402 = vunpack.c.l.b16 %v3295
    %v3403 = vunpack.c.h.b16 %v3295
    %v3404 = vunpack.c.l.b16 %v3296
    %v3405 = vunpack.c.l.b16 %v3297
    %v3406 = vunpack.c.h.b16 %v3297
    %v3407 = vunpack.c.l.b16 %v3298
    %v3408 = vunpack.c.h.b16 %v3298
    %v3409 = vunpack.c.l.b16 %v3299
    %v3410 = vunpack.c.l.b16 %v3300
    %v3411 = vunpack.c.h.b16 %v3300
    %v3412 = vunpack.c.l.b16 %v3301
    %v3413 = vunpack.c.h.b16 %v3301
    %v3414 = vunpack.c.l.b16 %v3302
    %v3415 = vunpack.c.l.b16 %v3303
    %v3416 = vunpack.c.h.b16 %v3303
    %v3417 = vunpack.c.l.b16 %v3304
    %v3418 = vunpack.c.h.b16 %v3304
    %v3419 = vunpack.c.l.b16 %v3305
    %v3420 = vunpack.c.l.b16 %v3306
    %v3421 = vunpack.c.h.b16 %v3306
    %v3422 = vunpack.c.l.b16 %v3307
    %v3423 = vunpack.c.h.b16 %v3307
    %v3424 = vunpack.c.l.b16 %v3308
    %v3425 = vunpack.c.l.b16 %v3309
    %v3426 = vunpack.c.h.b16 %v3309
    %v3427 = vunpack.c.l.b16 %v3310
    %v3428 = vunpack.c.h.b16 %v3310
    %v3429 = vunpack.c.l.b16 %v3311
    %v3430 = vunpack.c.l.b16 %v3312
    %v3431 = vunpack.c.h.b16 %v3312
    %v3432 = vunpack.c.l.b16 %v3313
    %v3433 = vunpack.c.h.b16 %v3313
    %v3434 = vunpack.c.l.b16 %v3314
    %v3435 = vunpack.c.l.b16 %v3315
    %v3436 = vunpack.c.h.b16 %v3315
    %v3437 = vunpack.c.l.b16 %v3316
    %v3438 = vunpack.c.h.b16 %v3316
    %v3439 = vunpack.c.l.b16 %v3317
    %v3440 = vunpack.c.l.b16 %v3318
    %v3441 = vunpack.c.h.b16 %v3318
    %v3442 = vunpack.c.l.b16 %v3319
    %v3443 = vunpack.c.h.b16 %v3319
    %v3444 = vunpack.c.l.b16 %v3320
    %v3445 = vunpack.c.l.b16 %v3321
    %v3446 = vunpack.c.h.b16 %v3321
    %v3447 = vunpack.c.l.b16 %v3322
    %v3448 = vunpack.c.h.b16 %v3322
    %v3449 = vunpack.c.l.b16 %v3323
    %v3450 = vunpack.c.l.b16 %v3324
    %v3451 = vunpack.c.h.b16 %v3324
    %v3452 = vunpack.c.l.b16 %v3325
    %v3453 = vunpack.c.h.b16 %v3325
    %v3454 = vunpack.c.l.b16 %v3326
    %v3455 = vpack.c.b16 %v3380, %v3375
    %v3456 = vpack.c.b16 %v3381, %v3376
    %v3457 = vpack.c.b16 %v3382, %v3377
    %v3458 = vpack.c.b16 %v3383, %v3378
    %v3459 = vpack.c.b16 %v3384, %v3379
    %v3460 = vpack.c.b16 %v3390, %v3385
    %v3461 = vpack.c.b16 %v3391, %v3386
    %v3462 = vpack.c.b16 %v3392, %v3387
    %v3463 = vpack.c.b16 %v3393, %v3388
    %v3464 = vpack.c.b16 %v3394, %v3389
    %v3465 = vpack.c.b16 %v3400, %v3395
    %v3466 = vpack.c.b16 %v3401, %v3396
    %v3467 = vpack.c.b16 %v3402, %v3397
    %v3468 = vpack.c.b16 %v3403, %v3398
    %v3469 = vpack.c.b16 %v3404, %v3399
    %v3470 = vpack.c.b16 %v3410, %v3405
    %v3471 = vpack.c.b16 %v3411, %v3406
    %v3472 = vpack.c.b16 %v3412, %v3407
    %v3473 = vpack.c.b16 %v3413, %v3408
    %v3474 = vpack.c.b16 %v3414, %v3409
    %v3475 = vpack.c.b16 %v3420, %v3415
    %v3476 = vpack.c.b16 %v3421, %v3416
    %v3477 = vpack.c.b16 %v3422, %v3417
    %v3478 = vpack.c.b16 %v3423, %v3418
    %v3479 = vpack.c.b16 %v3424, %v3419
    %v3480 = vpack.c.b16 %v3430, %v3425
    %v3481 = vpack.c.b16 %v3431, %v3426
    %v3482 = vpack.c.b16 %v3432, %v3427
    %v3483 = vpack.c.b16 %v3433, %v3428
    %v3484 = vpack.c.b16 %v3434, %v3429
    %v3485 = vpack.c.b16 %v3440, %v3435
    %v3486 = vpack.c.b16 %v3441, %v3436
    %v3487 = vpack.c.b16 %v3442, %v3437
    %v3488 = vpack.c.b16 %v3443, %v3438
    %v3489 = vpack.c.b16 %v3444, %v3439
    %v3490 = vpack.c.b16 %v3450, %v3445
    %v3491 = vpack.c.b16 %v3451, %v3446
    %v3492 = vpack.c.b16 %v3452, %v3447
    %v3493 = vpack.c.b16 %v3453, %v3448
    %v3494 = vpack.c.b16 %v3454, %v3449
    %3535 = vmatprep.subr.bf16.mxu0 %v3456
    %3536 = vmatpush1.bf16.msra.mxu0 %v3455
    %3537 = vmatprep.subr.bf16.mxu0 %v3461
    %3538 = vmatpush1.bf16.msra.mxu0 %v3460
    %3539 = vmatprep.subr.bf16.mxu0 %v3466
    %3540 = vmatpush1.bf16.msra.mxu0 %v3465
    %3541 = vmatprep.subr.bf16.mxu0 %v3471
    %3542 = vmatpush1.bf16.msra.mxu0 %v3470
    %3543 = vmatprep.subr.bf16.mxu0 %v3476
    %3544 = vmatpush1.bf16.msra.mxu0 %v3475
    %3545 = vmatprep.subr.bf16.mxu0 %v3481
    %3546 = vmatpush1.bf16.msra.mxu0 %v3480
    %3547 = vmatprep.subr.bf16.mxu0 %v3486
    %3548 = vmatpush1.bf16.msra.mxu0 %v3485
    %3549 = vmatprep.subr.bf16.mxu0 %v3491
    %3550 = vmatpush1.bf16.msra.mxu0 %v3490
    %3551 = vmatprep.subr.bf16.mxu0 0
    %3552 = vmatpush1.bf16.msra.mxu0 0
    %3553 = vmatprep.subr.bf16.mxu0 0
    %3554 = vmatpush1.bf16.msra.mxu0 0
    %3555 = vmatprep.subr.bf16.mxu0 0
    %3556 = vmatpush1.bf16.msra.mxu0 0
    %3557 = vmatprep.subr.bf16.mxu0 0
    %3558 = vmatpush1.bf16.msra.mxu0 0
    %3559 = vmatprep.subr.bf16.mxu0 0
    %3560 = vmatpush1.bf16.msra.mxu0 0
    %3561 = vmatprep.subr.bf16.mxu0 0
    %3562 = vmatpush1.bf16.msra.mxu0 0
    %3563 = vmatprep.subr.bf16.mxu0 0
    %3564 = vmatpush1.bf16.msra.mxu0 0
    %3565 = vmatprep.subr.bf16.mxu0 0
    %3566 = vmatpush1.bf16.msra.mxu0 0
    %3567 = vmatprep.mubr.bf16.mxu0 0
    %3568 = vmatmul.mubr.bf16.gmra.mrb[0].mxu0 %v3278
    %v3569 = vpop.f32.mrb[0].mxu0
    %v3570 = vadd.f32 %v1260, %v3569
    %v3571 = vpop.f32.mrb[0].mxu0
    %v3572 = vadd.f32 %v1264, %v3571
    %v3573 = vpop.f32.mrb[0].mxu0
    %v3574 = vpop.f32.mrb[0].mxu0
    %3575 = vdwg.mxu0
    %3576 = vmatprep.subr.bf16.mxu0 %v3458
    %3577 = vmatpush1.bf16.msra.mxu0 %v3457
    %3578 = vmatprep.subr.bf16.mxu0 %v3463
    %3579 = vmatpush1.bf16.msra.mxu0 %v3462
    %3580 = vmatprep.subr.bf16.mxu0 %v3468
    %3581 = vmatpush1.bf16.msra.mxu0 %v3467
    %3582 = vmatprep.subr.bf16.mxu0 %v3473
    %3583 = vmatpush1.bf16.msra.mxu0 %v3472
    %3584 = vmatprep.subr.bf16.mxu0 %v3478
    %3585 = vmatpush1.bf16.msra.mxu0 %v3477
    %3586 = vmatprep.subr.bf16.mxu0 %v3483
    %3587 = vmatpush1.bf16.msra.mxu0 %v3482
    %3588 = vmatprep.subr.bf16.mxu0 %v3488
    %3589 = vmatpush1.bf16.msra.mxu0 %v3487
    %3590 = vmatprep.subr.bf16.mxu0 %v3493
    %3591 = vmatpush1.bf16.msra.mxu0 %v3492
    %3592 = vmatprep.subr.bf16.mxu0 0
    %3593 = vmatpush1.bf16.msra.mxu0 0
    %3594 = vmatprep.subr.bf16.mxu0 0
    %3595 = vmatpush1.bf16.msra.mxu0 0
    %3596 = vmatprep.subr.bf16.mxu0 0
    %3597 = vmatpush1.bf16.msra.mxu0 0
    %3598 = vmatprep.subr.bf16.mxu0 0
    %3599 = vmatpush1.bf16.msra.mxu0 0
    %3600 = vmatprep.subr.bf16.mxu0 0
    %3601 = vmatpush1.bf16.msra.mxu0 0
    %3602 = vmatprep.subr.bf16.mxu0 0
    %3603 = vmatpush1.bf16.msra.mxu0 0
    %3604 = vmatprep.subr.bf16.mxu0 0
    %3605 = vmatpush1.bf16.msra.mxu0 0
    %3606 = vmatprep.subr.bf16.mxu0 0
    %3607 = vmatpush1.bf16.msra.mxu0 0
    %3608 = vmatprep.mubr.bf16.mxu0 0
    %3609 = vmatmul.mubr.bf16.gmra.mrb[0].mxu0 %v3278
    %v3610 = vpop.f32.mrb[0].mxu0
    %v3611 = vadd.f32 %v1268, %v3610
    %v3612 = vpop.f32.mrb[0].mxu0
    %v3613 = vadd.f32 %v1272, %v3612
    %v3614 = vpop.f32.mrb[0].mxu0
    %v3615 = vpop.f32.mrb[0].mxu0
    %3616 = vdwg.mxu0
    %3617 = vmatprep.subr.bf16.mxu0 0
    %3618 = vmatpush1.bf16.msra.mxu0 %v3459
    %3619 = vmatprep.subr.bf16.mxu0 0
    %3620 = vmatpush1.bf16.msra.mxu0 %v3464
    %3621 = vmatprep.subr.bf16.mxu0 0
    %3622 = vmatpush1.bf16.msra.mxu0 %v3469
    %3623 = vmatprep.subr.bf16.mxu0 0
    %3624 = vmatpush1.bf16.msra.mxu0 %v3474
    %3625 = vmatprep.subr.bf16.mxu0 0
    %3626 = vmatpush1.bf16.msra.mxu0 %v3479
    %3627 = vmatprep.subr.bf16.mxu0 0
    %3628 = vmatpush1.bf16.msra.mxu0 %v3484
    %3629 = vmatprep.subr.bf16.mxu0 0
    %3630 = vmatpush1.bf16.msra.mxu0 %v3489
    %3631 = vmatprep.subr.bf16.mxu0 0
    %3632 = vmatpush1.bf16.msra.mxu0 %v3494
    %3633 = vmatprep.subr.bf16.mxu0 0
    %3634 = vmatpush1.bf16.msra.mxu0 0
    %3635 = vmatprep.subr.bf16.mxu0 0
    %3636 = vmatpush1.bf16.msra.mxu0 0
    %3637 = vmatprep.subr.bf16.mxu0 0
    %3638 = vmatpush1.bf16.msra.mxu0 0
    %3639 = vmatprep.subr.bf16.mxu0 0
    %3640 = vmatpush1.bf16.msra.mxu0 0
    %3641 = vmatprep.subr.bf16.mxu0 0
    %3642 = vmatpush1.bf16.msra.mxu0 0
    %3643 = vmatprep.subr.bf16.mxu0 0
    %3644 = vmatpush1.bf16.msra.mxu0 0
    %3645 = vmatprep.subr.bf16.mxu0 0
    %3646 = vmatpush1.bf16.msra.mxu0 0
    %3647 = vmatprep.subr.bf16.mxu0 0
    %3648 = vmatpush1.bf16.msra.mxu0 0
    %3649 = vmatprep.mubr.bf16.mxu0 0
    %3650 = vmatmul.mubr.bf16.gmra.mrb[0].mxu0 %v3278
    %v3651 = vpop.f32.mrb[0].mxu0
    %v3652 = vadd.f32 %v1276, %v3651
    %v3653 = vpop.f32.mrb[0].mxu0
    %v3654 = vpop.f32.mrb[0].mxu0
    %v3655 = vpop.f32.mrb[0].mxu0
    %3656 = vdwg.mxu0
    %s3657 = scalar_lea.vmem %s6, 16
    %3658 = vst.msk [vmem:[%s3657] sm:$0xff] %vm1662, %v3652
    %v3659 = vmul.f32 %v3570, 0.5
    %v3660 = vtanh.pop %v3659
    %v3661 = vmul.f32 %v3660, 0.5
    %v3662 = vadd.f32 %v3661, 0.5
    %v3663 = vmul.f32 %v3572, 0.5
    %v3664 = vtanh.pop %v3663
    %v3665 = vmul.f32 %v3664, 0.5
    %v3666 = vadd.f32 %v3665, 0.5
    %v3667 = vtanh.pop %v3611
    %v3668 = vmul.f32 %v3613, 0.5
    %v3669 = vtanh.pop %v3668
    %v3670 = vmul.f32 %v3669, 0.5
    %v3671 = vadd.f32 %v3670, 0.5
    %v3672 = vmul.f32 %v3666, %v3275
    %v3673 = vmul.f32 %v3662, %v3667
    %v3674 = vadd.f32 %v3672, %v3673
    %v3675 = vtanh.pop %v3674
    %v3676 = vmul.f32 %v3671, %v3675
    %v3677 = vpack.c.bf16 %v3676, %v3676
    %v3678 = vld [vmem:[%s4] sm:$0xff]
    %v3679 = vld [vmem:[%s4 + $0x8] sm:$0xff]
    %v3680 = vld [vmem:[%s4 + $0x10] sm:$0xf]
    %v3681 = vld [vmem:[%s4 + $0x14] sm:$0xff]
    %v3682 = vld [vmem:[%s4 + $0x1c] sm:$0xff]
    %v3683 = vld [vmem:[%s4 + $0x24] sm:$0xf]
    %v3684 = vld [vmem:[%s4 + $0x28] sm:$0xff]
    %v3685 = vld [vmem:[%s4 + $0x30] sm:$0xff]
    %v3686 = vld [vmem:[%s4 + $0x38] sm:$0xf]
    %v3687 = vld [vmem:[%s4 + $0x3c] sm:$0xff]
    %v3688 = vld [vmem:[%s4 + $0x44] sm:$0xff]
    %v3689 = vld [vmem:[%s4 + $0x4c] sm:$0xf]
    %v3690 = vld [vmem:[%s4 + $0x50] sm:$0xff]
    %v3691 = vld [vmem:[%s4 + $0x58] sm:$0xff]
    %v3692 = vld [vmem:[%s4 + $0x60] sm:$0xf]
    %v3693 = vld [vmem:[%s4 + $0x64] sm:$0xff]
    %v3694 = vld [vmem:[%s4 + $0x6c] sm:$0xff]
    %v3695 = vld [vmem:[%s4 + $0x74] sm:$0xf]
    %v3696 = vld [vmem:[%s4 + $0x78] sm:$0xff]
    %v3697 = vld [vmem:[%s4 + $0x80] sm:$0xff]
    %v3698 = vld [vmem:[%s4 + $0x88] sm:$0xf]
    %v3699 = vld [vmem:[%s4 + $0x8c] sm:$0xff]
    %v3700 = vld [vmem:[%s4 + $0x94] sm:$0xff]
    %v3701 = vld [vmem:[%s4 + $0x9c] sm:$0xf]
    %v3702 = vld [vmem:[%s4 + $0xa0] sm:$0xff]
    %v3703 = vld [vmem:[%s4 + $0xa8] sm:$0xff]
    %v3704 = vld [vmem:[%s4 + $0xb0] sm:$0xf]
    %v3705 = vld [vmem:[%s4 + $0xb4] sm:$0xff]
    %v3706 = vld [vmem:[%s4 + $0xbc] sm:$0xff]
    %v3707 = vld [vmem:[%s4 + $0xc4] sm:$0xf]
    %v3708 = vld [vmem:[%s4 + $0xc8] sm:$0xff]
    %v3709 = vld [vmem:[%s4 + $0xd0] sm:$0xff]
    %v3710 = vld [vmem:[%s4 + $0xd8] sm:$0xf]
    %v3711 = vld [vmem:[%s4 + $0xdc] sm:$0xff]
    %v3712 = vld [vmem:[%s4 + $0xe4] sm:$0xff]
    %v3713 = vld [vmem:[%s4 + $0xec] sm:$0xf]
    %v3714 = vld [vmem:[%s4 + $0xf0] sm:$0xff]
    %v3715 = vld [vmem:[%s4 + $0xf8] sm:$0xff]
    %v3716 = vld [vmem:[%s4 + $0x100] sm:$0xf]
    %v3717 = vld [vmem:[%s4 + $0x104] sm:$0xff]
    %v3718 = vld [vmem:[%s4 + $0x10c] sm:$0xff]
    %v3719 = vld [vmem:[%s4 + $0x114] sm:$0xf]
    %v3720 = vld [vmem:[%s4 + $0x118] sm:$0xff]
    %v3721 = vld [vmem:[%s4 + $0x120] sm:$0xff]
    %v3722 = vld [vmem:[%s4 + $0x128] sm:$0xf]
    %v3723 = vld [vmem:[%s4 + $0x12c] sm:$0xff]
    %v3724 = vld [vmem:[%s4 + $0x134] sm:$0xff]
    %v3725 = vld [vmem:[%s4 + $0x13c] sm:$0xf]
    %v3774 = vunpack.c.l.b16 %v3678
    %v3775 = vunpack.c.h.b16 %v3678
    %v3776 = vunpack.c.l.b16 %v3679
    %v3777 = vunpack.c.h.b16 %v3679
    %v3778 = vunpack.c.l.b16 %v3680
    %v3779 = vunpack.c.l.b16 %v3681
    %v3780 = vunpack.c.h.b16 %v3681
    %v3781 = vunpack.c.l.b16 %v3682
    %v3782 = vunpack.c.h.b16 %v3682
    %v3783 = vunpack.c.l.b16 %v3683
    %v3784 = vunpack.c.l.b16 %v3684
    %v3785 = vunpack.c.h.b16 %v3684
    %v3786 = vunpack.c.l.b16 %v3685
    %v3787 = vunpack.c.h.b16 %v3685
    %v3788 = vunpack.c.l.b16 %v3686
    %v3789 = vunpack.c.l.b16 %v3687
    %v3790 = vunpack.c.h.b16 %v3687
    %v3791 = vunpack.c.l.b16 %v3688
    %v3792 = vunpack.c.h.b16 %v3688
    %v3793 = vunpack.c.l.b16 %v3689
    %v3794 = vunpack.c.l.b16 %v3690
    %v3795 = vunpack.c.h.b16 %v3690
    %v3796 = vunpack.c.l.b16 %v3691
    %v3797 = vunpack.c.h.b16 %v3691
    %v3798 = vunpack.c.l.b16 %v3692
    %v3799 = vunpack.c.l.b16 %v3693
    %v3800 = vunpack.c.h.b16 %v3693
    %v3801 = vunpack.c.l.b16 %v3694
    %v3802 = vunpack.c.h.b16 %v3694
    %v3803 = vunpack.c.l.b16 %v3695
    %v3804 = vunpack.c.l.b16 %v3696
    %v3805 = vunpack.c.h.b16 %v3696
    %v3806 = vunpack.c.l.b16 %v3697
    %v3807 = vunpack.c.h.b16 %v3697
    %v3808 = vunpack.c.l.b16 %v3698
    %v3809 = vunpack.c.l.b16 %v3699
    %v3810 = vunpack.c.h.b16 %v3699
    %v3811 = vunpack.c.l.b16 %v3700
    %v3812 = vunpack.c.h.b16 %v3700
    %v3813 = vunpack.c.l.b16 %v3701
    %v3814 = vunpack.c.l.b16 %v3702
    %v3815 = vunpack.c.h.b16 %v3702
    %v3816 = vunpack.c.l.b16 %v3703
    %v3817 = vunpack.c.h.b16 %v3703
    %v3818 = vunpack.c.l.b16 %v3704
    %v3819 = vunpack.c.l.b16 %v3705
    %v3820 = vunpack.c.h.b16 %v3705
    %v3821 = vunpack.c.l.b16 %v3706
    %v3822 = vunpack.c.h.b16 %v3706
    %v3823 = vunpack.c.l.b16 %v3707
    %v3824 = vunpack.c.l.b16 %v3708
    %v3825 = vunpack.c.h.b16 %v3708
    %v3826 = vunpack.c.l.b16 %v3709
    %v3827 = vunpack.c.h.b16 %v3709
    %v3828 = vunpack.c.l.b16 %v3710
    %v3829 = vunpack.c.l.b16 %v3711
    %v3830 = vunpack.c.h.b16 %v3711
    %v3831 = vunpack.c.l.b16 %v3712
    %v3832 = vunpack.c.h.b16 %v3712
    %v3833 = vunpack.c.l.b16 %v3713
    %v3834 = vunpack.c.l.b16 %v3714
    %v3835 = vunpack.c.h.b16 %v3714
    %v3836 = vunpack.c.l.b16 %v3715
    %v3837 = vunpack.c.h.b16 %v3715
    %v3838 = vunpack.c.l.b16 %v3716
    %v3839 = vunpack.c.l.b16 %v3717
    %v3840 = vunpack.c.h.b16 %v3717
    %v3841 = vunpack.c.l.b16 %v3718
    %v3842 = vunpack.c.h.b16 %v3718
    %v3843 = vunpack.c.l.b16 %v3719
    %v3844 = vunpack.c.l.b16 %v3720
    %v3845 = vunpack.c.h.b16 %v3720
    %v3846 = vunpack.c.l.b16 %v3721
    %v3847 = vunpack.c.h.b16 %v3721
    %v3848 = vunpack.c.l.b16 %v3722
    %v3849 = vunpack.c.l.b16 %v3723
    %v3850 = vunpack.c.h.b16 %v3723
    %v3851 = vunpack.c.l.b16 %v3724
    %v3852 = vunpack.c.h.b16 %v3724
    %v3853 = vunpack.c.l.b16 %v3725
    %v3854 = vpack.c.b16 %v3779, %v3774
    %v3855 = vpack.c.b16 %v3780, %v3775
    %v3856 = vpack.c.b16 %v3781, %v3776
    %v3857 = vpack.c.b16 %v3782, %v3777
    %v3858 = vpack.c.b16 %v3783, %v3778
    %v3859 = vpack.c.b16 %v3789, %v3784
    %v3860 = vpack.c.b16 %v3790, %v3785
    %v3861 = vpack.c.b16 %v3791, %v3786
    %v3862 = vpack.c.b16 %v3792, %v3787
    %v3863 = vpack.c.b16 %v3793, %v3788
    %v3864 = vpack.c.b16 %v3799, %v3794
    %v3865 = vpack.c.b16 %v3800, %v3795
    %v3866 = vpack.c.b16 %v3801, %v3796
    %v3867 = vpack.c.b16 %v3802, %v3797
    %v3868 = vpack.c.b16 %v3803, %v3798
    %v3869 = vpack.c.b16 %v3809, %v3804
    %v3870 = vpack.c.b16 %v3810, %v3805
    %v3871 = vpack.c.b16 %v3811, %v3806
    %v3872 = vpack.c.b16 %v3812, %v3807
    %v3873 = vpack.c.b16 %v3813, %v3808
    %v3874 = vpack.c.b16 %v3819, %v3814
    %v3875 = vpack.c.b16 %v3820, %v3815
    %v3876 = vpack.c.b16 %v3821, %v3816
    %v3877 = vpack.c.b16 %v3822, %v3817
    %v3878 = vpack.c.b16 %v3823, %v3818
    %v3879 = vpack.c.b16 %v3829, %v3824
    %v3880 = vpack.c.b16 %v3830, %v3825
    %v3881 = vpack.c.b16 %v3831, %v3826
    %v3882 = vpack.c.b16 %v3832, %v3827
    %v3883 = vpack.c.b16 %v3833, %v3828
    %v3884 = vpack.c.b16 %v3839, %v3834
    %v3885 = vpack.c.b16 %v3840, %v3835
    %v3886 = vpack.c.b16 %v3841, %v3836
    %v3887 = vpack.c.b16 %v3842, %v3837
    %v3888 = vpack.c.b16 %v3843, %v3838
    %v3889 = vpack.c.b16 %v3849, %v3844
    %v3890 = vpack.c.b16 %v3850, %v3845
    %v3891 = vpack.c.b16 %v3851, %v3846
    %v3892 = vpack.c.b16 %v3852, %v3847
    %v3893 = vpack.c.b16 %v3853, %v3848
    %3934 = vmatprep.subr.bf16.mxu0 %v3855
    %3935 = vmatpush1.bf16.msra.mxu0 %v3854
    %3936 = vmatprep.subr.bf16.mxu0 %v3860
    %3937 = vmatpush1.bf16.msra.mxu0 %v3859
    %3938 = vmatprep.subr.bf16.mxu0 %v3865
    %3939 = vmatpush1.bf16.msra.mxu0 %v3864
    %3940 = vmatprep.subr.bf16.mxu0 %v3870
    %3941 = vmatpush1.bf16.msra.mxu0 %v3869
    %3942 = vmatprep.subr.bf16.mxu0 %v3875
    %3943 = vmatpush1.bf16.msra.mxu0 %v3874
    %3944 = vmatprep.subr.bf16.mxu0 %v3880
    %3945 = vmatpush1.bf16.msra.mxu0 %v3879
    %3946 = vmatprep.subr.bf16.mxu0 %v3885
    %3947 = vmatpush1.bf16.msra.mxu0 %v3884
    %3948 = vmatprep.subr.bf16.mxu0 %v3890
    %3949 = vmatpush1.bf16.msra.mxu0 %v3889
    %3950 = vmatprep.subr.bf16.mxu0 0
    %3951 = vmatpush1.bf16.msra.mxu0 0
    %3952 = vmatprep.subr.bf16.mxu0 0
    %3953 = vmatpush1.bf16.msra.mxu0 0
    %3954 = vmatprep.subr.bf16.mxu0 0
    %3955 = vmatpush1.bf16.msra.mxu0 0
    %3956 = vmatprep.subr.bf16.mxu0 0
    %3957 = vmatpush1.bf16.msra.mxu0 0
    %3958 = vmatprep.subr.bf16.mxu0 0
    %3959 = vmatpush1.bf16.msra.mxu0 0
    %3960 = vmatprep.subr.bf16.mxu0 0
    %3961 = vmatpush1.bf16.msra.mxu0 0
    %3962 = vmatprep.subr.bf16.mxu0 0
    %3963 = vmatpush1.bf16.msra.mxu0 0
    %3964 = vmatprep.subr.bf16.mxu0 0
    %3965 = vmatpush1.bf16.msra.mxu0 0
    %3966 = vmatprep.mubr.bf16.mxu0 0
    %3967 = vmatmul.mubr.bf16.gmra.mrb[0].mxu0 %v3677
    %v3968 = vpop.f32.mrb[0].mxu0
    %v3969 = vadd.f32 %v1260, %v3968
    %v3970 = vpop.f32.mrb[0].mxu0
    %v3971 = vadd.f32 %v1264, %v3970
    %v3972 = vpop.f32.mrb[0].mxu0
    %v3973 = vpop.f32.mrb[0].mxu0
    %3974 = vdwg.mxu0
    %3975 = vmatprep.subr.bf16.mxu0 %v3857
    %3976 = vmatpush1.bf16.msra.mxu0 %v3856
    %3977 = vmatprep.subr.bf16.mxu0 %v3862
    %3978 = vmatpush1.bf16.msra.mxu0 %v3861
    %3979 = vmatprep.subr.bf16.mxu0 %v3867
    %3980 = vmatpush1.bf16.msra.mxu0 %v3866
    %3981 = vmatprep.subr.bf16.mxu0 %v3872
    %3982 = vmatpush1.bf16.msra.mxu0 %v3871
    %3983 = vmatprep.subr.bf16.mxu0 %v3877
    %3984 = vmatpush1.bf16.msra.mxu0 %v3876
    %3985 = vmatprep.subr.bf16.mxu0 %v3882
    %3986 = vmatpush1.bf16.msra.mxu0 %v3881
    %3987 = vmatprep.subr.bf16.mxu0 %v3887
    %3988 = vmatpush1.bf16.msra.mxu0 %v3886
    %3989 = vmatprep.subr.bf16.mxu0 %v3892
    %3990 = vmatpush1.bf16.msra.mxu0 %v3891
    %3991 = vmatprep.subr.bf16.mxu0 0
    %3992 = vmatpush1.bf16.msra.mxu0 0
    %3993 = vmatprep.subr.bf16.mxu0 0
    %3994 = vmatpush1.bf16.msra.mxu0 0
    %3995 = vmatprep.subr.bf16.mxu0 0
    %3996 = vmatpush1.bf16.msra.mxu0 0
    %3997 = vmatprep.subr.bf16.mxu0 0
    %3998 = vmatpush1.bf16.msra.mxu0 0
    %3999 = vmatprep.subr.bf16.mxu0 0
    %4000 = vmatpush1.bf16.msra.mxu0 0
    %4001 = vmatprep.subr.bf16.mxu0 0
    %4002 = vmatpush1.bf16.msra.mxu0 0
    %4003 = vmatprep.subr.bf16.mxu0 0
    %4004 = vmatpush1.bf16.msra.mxu0 0
    %4005 = vmatprep.subr.bf16.mxu0 0
    %4006 = vmatpush1.bf16.msra.mxu0 0
    %4007 = vmatprep.mubr.bf16.mxu0 0
    %4008 = vmatmul.mubr.bf16.gmra.mrb[0].mxu0 %v3677
    %v4009 = vpop.f32.mrb[0].mxu0
    %v4010 = vadd.f32 %v1268, %v4009
    %v4011 = vpop.f32.mrb[0].mxu0
    %v4012 = vadd.f32 %v1272, %v4011
    %v4013 = vpop.f32.mrb[0].mxu0
    %v4014 = vpop.f32.mrb[0].mxu0
    %4015 = vdwg.mxu0
    %4016 = vmatprep.subr.bf16.mxu0 0
    %4017 = vmatpush1.bf16.msra.mxu0 %v3858
    %4018 = vmatprep.subr.bf16.mxu0 0
    %4019 = vmatpush1.bf16.msra.mxu0 %v3863
    %4020 = vmatprep.subr.bf16.mxu0 0
    %4021 = vmatpush1.bf16.msra.mxu0 %v3868
    %4022 = vmatprep.subr.bf16.mxu0 0
    %4023 = vmatpush1.bf16.msra.mxu0 %v3873
    %4024 = vmatprep.subr.bf16.mxu0 0
    %4025 = vmatpush1.bf16.msra.mxu0 %v3878
    %4026 = vmatprep.subr.bf16.mxu0 0
    %4027 = vmatpush1.bf16.msra.mxu0 %v3883
    %4028 = vmatprep.subr.bf16.mxu0 0
    %4029 = vmatpush1.bf16.msra.mxu0 %v3888
    %4030 = vmatprep.subr.bf16.mxu0 0
    %4031 = vmatpush1.bf16.msra.mxu0 %v3893
    %4032 = vmatprep.subr.bf16.mxu0 0
    %4033 = vmatpush1.bf16.msra.mxu0 0
    %4034 = vmatprep.subr.bf16.mxu0 0
    %4035 = vmatpush1.bf16.msra.mxu0 0
    %4036 = vmatprep.subr.bf16.mxu0 0
    %4037 = vmatpush1.bf16.msra.mxu0 0
    %4038 = vmatprep.subr.bf16.mxu0 0
    %4039 = vmatpush1.bf16.msra.mxu0 0
    %4040 = vmatprep.subr.bf16.mxu0 0
    %4041 = vmatpush1.bf16.msra.mxu0 0
    %4042 = vmatprep.subr.bf16.mxu0 0
    %4043 = vmatpush1.bf16.msra.mxu0 0
    %4044 = vmatprep.subr.bf16.mxu0 0
    %4045 = vmatpush1.bf16.msra.mxu0 0
    %4046 = vmatprep.subr.bf16.mxu0 0
    %4047 = vmatpush1.bf16.msra.mxu0 0
    %4048 = vmatprep.mubr.bf16.mxu0 0
    %4049 = vmatmul.mubr.bf16.gmra.mrb[0].mxu0 %v3677
    %v4050 = vpop.f32.mrb[0].mxu0
    %v4051 = vadd.f32 %v1276, %v4050
    %v4052 = vpop.f32.mrb[0].mxu0
    %v4053 = vpop.f32.mrb[0].mxu0
    %v4054 = vpop.f32.mrb[0].mxu0
    %4055 = vdwg.mxu0
    %s4056 = scalar_lea.vmem %s6, 8
    %4057 = vst.msk [vmem:[%s4056] sm:$0xff] %vm1662, %v4051
    %v4058 = vmul.f32 %v3969, 0.5
    %v4059 = vtanh.pop %v4058
    %v4060 = vmul.f32 %v4059, 0.5
    %v4061 = vadd.f32 %v4060, 0.5
    %v4062 = vmul.f32 %v3971, 0.5
    %v4063 = vtanh.pop %v4062
    %v4064 = vmul.f32 %v4063, 0.5
    %v4065 = vadd.f32 %v4064, 0.5
    %v4066 = vtanh.pop %v4010
    %v4067 = vmul.f32 %v4012, 0.5
    %v4068 = vtanh.pop %v4067
    %v4069 = vmul.f32 %v4068, 0.5
    %v4070 = vadd.f32 %v4069, 0.5
    %v4071 = vmul.f32 %v4065, %v3674
    %v4072 = vmul.f32 %v4061, %v4066
    %v4073 = vadd.f32 %v4071, %v4072
    %v4074 = vtanh.pop %v4073
    %v4075 = vmul.f32 %v4070, %v4074
    %v4076 = vpack.c.bf16 %v4075, %v4075
    %v4077 = vld [vmem:[%s4 + $0x10] sm:$0xf]
    %v4078 = vld [vmem:[%s4 + $0x24] sm:$0xf]
    %v4079 = vld [vmem:[%s4 + $0x38] sm:$0xf]
    %v4080 = vld [vmem:[%s4 + $0x4c] sm:$0xf]
    %v4081 = vld [vmem:[%s4 + $0x60] sm:$0xf]
    %v4082 = vld [vmem:[%s4 + $0x74] sm:$0xf]
    %v4083 = vld [vmem:[%s4 + $0x88] sm:$0xf]
    %v4084 = vld [vmem:[%s4 + $0x9c] sm:$0xf]
    %v4085 = vld [vmem:[%s4 + $0xb0] sm:$0xf]
    %v4086 = vld [vmem:[%s4 + $0xc4] sm:$0xf]
    %v4087 = vld [vmem:[%s4 + $0xd8] sm:$0xf]
    %v4088 = vld [vmem:[%s4 + $0xec] sm:$0xf]
    %v4089 = vld [vmem:[%s4 + $0x100] sm:$0xf]
    %v4090 = vld [vmem:[%s4 + $0x114] sm:$0xf]
    %v4091 = vld [vmem:[%s4 + $0x128] sm:$0xf]
    %v4092 = vld [vmem:[%s4 + $0x13c] sm:$0xf]
    %v4109 = vunpack.c.l.b16 %v4077
    %v4110 = vunpack.c.l.b16 %v4078
    %v4111 = vunpack.c.l.b16 %v4079
    %v4112 = vunpack.c.l.b16 %v4080
    %v4113 = vunpack.c.l.b16 %v4081
    %v4114 = vunpack.c.l.b16 %v4082
    %v4115 = vunpack.c.l.b16 %v4083
    %v4116 = vunpack.c.l.b16 %v4084
    %v4117 = vunpack.c.l.b16 %v4085
    %v4118 = vunpack.c.l.b16 %v4086
    %v4119 = vunpack.c.l.b16 %v4087
    %v4120 = vunpack.c.l.b16 %v4088
    %v4121 = vunpack.c.l.b16 %v4089
    %v4122 = vunpack.c.l.b16 %v4090
    %v4123 = vunpack.c.l.b16 %v4091
    %v4124 = vunpack.c.l.b16 %v4092
    %v4125 = vpack.c.b16 %v4110, %v4109
    %v4126 = vpack.c.b16 %v4112, %v4111
    %v4127 = vpack.c.b16 %v4114, %v4113
    %v4128 = vpack.c.b16 %v4116, %v4115
    %v4129 = vpack.c.b16 %v4118, %v4117
    %v4130 = vpack.c.b16 %v4120, %v4119
    %v4131 = vpack.c.b16 %v4122, %v4121
    %v4132 = vpack.c.b16 %v4124, %v4123
    %4141 = vmatprep.subr.bf16.mxu0 0
    %4142 = vmatpush1.bf16.msra.mxu0 %v4125
    %4143 = vmatprep.subr.bf16.mxu0 0
    %4144 = vmatpush1.bf16.msra.mxu0 %v4126
    %4145 = vmatprep.subr.bf16.mxu0 0
    %4146 = vmatpush1.bf16.msra.mxu0 %v4127
    %4147 = vmatprep.subr.bf16.mxu0 0
    %4148 = vmatpush1.bf16.msra.mxu0 %v4128
    %4149 = vmatprep.subr.bf16.mxu0 0
    %4150 = vmatpush1.bf16.msra.mxu0 %v4129
    %4151 = vmatprep.subr.bf16.mxu0 0
    %4152 = vmatpush1.bf16.msra.mxu0 %v4130
    %4153 = vmatprep.subr.bf16.mxu0 0
    %4154 = vmatpush1.bf16.msra.mxu0 %v4131
    %4155 = vmatprep.subr.bf16.mxu0 0
    %4156 = vmatpush1.bf16.msra.mxu0 %v4132
    %4157 = vmatprep.subr.bf16.mxu0 0
    %4158 = vmatpush1.bf16.msra.mxu0 0
    %4159 = vmatprep.subr.bf16.mxu0 0
    %4160 = vmatpush1.bf16.msra.mxu0 0
    %4161 = vmatprep.subr.bf16.mxu0 0
    %4162 = vmatpush1.bf16.msra.mxu0 0
    %4163 = vmatprep.subr.bf16.mxu0 0
    %4164 = vmatpush1.bf16.msra.mxu0 0
    %4165 = vmatprep.subr.bf16.mxu0 0
    %4166 = vmatpush1.bf16.msra.mxu0 0
    %4167 = vmatprep.subr.bf16.mxu0 0
    %4168 = vmatpush1.bf16.msra.mxu0 0
    %4169 = vmatprep.subr.bf16.mxu0 0
    %4170 = vmatpush1.bf16.msra.mxu0 0
    %4171 = vmatprep.subr.bf16.mxu0 0
    %4172 = vmatpush1.bf16.msra.mxu0 0
    %4173 = vmatprep.mubr.bf16.mxu0 0
    %4174 = vmatmul.mubr.bf16.gmra.mrb[0].mxu0 %v4076
    %v4175 = vpop.f32.mrb[0].mxu0
    %v4176 = vadd.f32 %v1276, %v4175
    %v4177 = vpop.f32.mrb[0].mxu0
    %v4178 = vpop.f32.mrb[0].mxu0
    %v4179 = vpop.f32.mrb[0].mxu0
    %4180 = vdwg.mxu0
    %4181 = vst.msk [vmem:[%s6] sm:$0xff] %vm1662, %v4176
    // Predicated region
    $region33: #{tpu_custom_call.1} parent=1 // pred_check
      _
    $region34: #{tpu_custom_call.1} parent=1 // pred_check_branch
      %4183 = sbr.rel (0) target = $region36
    $region35: #{tpu_custom_call.1} parent=1 // pred_region
      _
    $region36: #{tpu_custom_call.1} parent=1 // pred_fallthru
      _
    // Predicated region
    $region37: #{tpu_custom_call.1} parent=1 // pred_check
      _
    $region38: #{tpu_custom_call.1} parent=1 // pred_check_branch
      %4185 = sbr.rel (0) target = $region40
    $region39: #{tpu_custom_call.1} parent=1 // pred_region
      %s4187 = ssub.s32 128, 128
      %4188 = vsyncadd [#allocation4], %s4187
      %s4190 = sshll.u32 [#allocation3], 4
      %s4191 = int_to_ptr.vmem [resolvable:$true] %s4190
      %4193 = dma.vmem_to_hbm [thread:$0]  %s4191, 128, %s7, [#allocation4]
    $region40: #{tpu_custom_call.1} parent=1 // pred_fallthru
      _
    // Predicated region
    $region41: #{tpu_custom_call.1} parent=1 // pred_check
      _
    $region42: #{tpu_custom_call.1} parent=1 // pred_check_branch
      %4195 = sbr.rel (0) target = $region44
    $region43: #{tpu_custom_call.1} parent=1 // pred_region
      _
    $region44: #{tpu_custom_call.1} parent=1 // pred_fallthru
      _
    // Predicated region
    $region45: #{tpu_custom_call.1} parent=1 // pred_check
      _
    $region46: #{tpu_custom_call.1} parent=1 // pred_check_branch
      %4197 = sbr.rel (0) target = $region48
    $region47: #{tpu_custom_call.1} parent=1 // pred_region
      %4198 = dma.done [#allocation4], 128
    $region48: #{tpu_custom_call.1} parent=1 // pred_fallthru
      _
    %4199 = vsyncpa [#allocation4], 1

</llo_original>
